<compile_context>
chip_gen: v5e
topology: v5e:2x2
jax: 0.10.0
libtpu: 0.0.40
codegen_flags: <defaults>
</compile_context>

<pallas_src>
from functools import partial

import numpy as np
import jax
import jax.numpy as jnp
from jax.experimental import pallas as pl
from jax.experimental.pallas import tpu as pltpu

# ---------------- reduced Swin3D config (structure identical to swin3d_t) ----
IN_CHANNELS = 3
PATCH_SIZE = (2, 4, 4)
EMBED_DIM = 16
DEPTHS = (2, 2)
NUM_HEADS = (2, 4)
WINDOW_SIZE = (2, 2, 2)
MLP_RATIO = 4
NUM_CLASSES = 6            # cfg.MODEL.OUTPUT_DIM (=5) + 1
LN_EPS = 1e-5
PARAM_DTYPE = jnp.bfloat16  # weights / matmul operands bf16, f32 accumulation


# ============================ static geometry helpers ========================
def _adjust_window(size, ws, ss):
    """torchvision _get_window_and_shift_size."""
    ws = list(ws)
    ss = list(ss)
    for i in range(3):
        if size[i] <= ws[i]:
            ws[i] = size[i]
            ss[i] = 0
    return tuple(ws), tuple(ss)


def _relative_position_index(ws):
    wt, wh, ww = ws
    coords = np.stack(np.meshgrid(np.arange(wt), np.arange(wh), np.arange(ww),
                                  indexing="ij"))
    coords = coords.reshape(3, -1)
    rel = coords[:, :, None] - coords[:, None, :]
    rel = rel.transpose(1, 2, 0).astype(np.int64)
    rel[:, :, 0] += wt - 1
    rel[:, :, 1] += wh - 1
    rel[:, :, 2] += ww - 1
    rel[:, :, 0] *= (2 * wh - 1) * (2 * ww - 1)
    rel[:, :, 1] *= (2 * ww - 1)
    return rel.sum(-1).astype(np.int32)      # (N, N)


def _attn_mask_np(T, H, W, ws, ss):
    """Replicates torchvision's shifted-window attention mask (static)."""
    mask = np.zeros((T, H, W), dtype=np.float32)
    slices = [((0, -ws[i]), (-ws[i], -ss[i]), (-ss[i], None)) for i in range(3)]
    count = 0
    for t0, t1 in slices[0]:
        for h0, h1 in slices[1]:
            for w0, w1 in slices[2]:
                mask[t0:t1, h0:h1, w0:w1] = count
                count += 1
    N = ws[0] * ws[1] * ws[2]
    m = mask.reshape(T // ws[0], ws[0], H // ws[1], ws[1], W // ws[2], ws[2])
    m = m.transpose(0, 2, 4, 1, 3, 5).reshape(-1, N)
    diff = m[:, None, :] - m[:, :, None]
    return np.where(diff != 0, np.float32(-100.0), np.float32(0.0))   # (nW, N, N)


def _window_perm_np(T, H, W, ws, ss):
    """Permutation P (M, M): rows of (P @ x) are the (roll + window partition) of
    x stored in (t, h, w) raster order.  Inverse is P.T."""
    M = T * H * W
    P = np.zeros((M, M), np.float32)
    row = 0
    for wt in range(T // ws[0]):
        for wh in range(H // ws[1]):
            for ww in range(W // ws[2]):
                for dt in range(ws[0]):
                    for dh in range(ws[1]):
                        for dw in range(ws[2]):
                            t = (wt * ws[0] + dt + ss[0]) % T   # torch.roll(-ss)
                            h = (wh * ws[1] + dh + ss[1]) % H
                            w = (ww * ws[2] + dw + ss[2]) % W
                            P[row, (t * H + h) * W + w] = 1.0
                            row += 1
    return P


def _merge_select_np(T, H, W):
    """Selection matrices (4, Mo, Mi) for torchvision PatchMerging concat order."""
    offs = [(0, 0), (1, 0), (0, 1), (1, 1)]          # (dh, dw): x0, x1, x2, x3
    Ho, Wo = H // 2, W // 2
    Mo, Mi = T * Ho * Wo, T * H * W
    S = np.zeros((4, Mo, Mi), np.float32)
    for k, (dh, dw) in enumerate(offs):
        for t in range(T):
            for h2 in range(Ho):
                for w2 in range(Wo):
                    dst = (t * Ho + h2) * Wo + w2
                    src = (t * H + (2 * h2 + dh)) * W + (2 * w2 + dw)
                    S[k, dst, src] = 1.0
    return S


def _const_index_map(ndim):
    return lambda b: (0,) * ndim


# ============================= fused forward kernel ==========================
def _fused_forward_kernel(*refs, plan):
    """Whole network for one batch element; everything resident in VMEM."""
    o_ref = refs[-1]
    it = iter(refs[:-1])
    f32 = jnp.float32

    def nxt_val():
        return next(it)[...]

    def ln(v, g, b):
        mu = jnp.mean(v, axis=-1, keepdims=True)
        var = jnp.mean(jnp.square(v - mu), axis=-1, keepdims=True)
        return (v - mu) * jax.lax.rsqrt(var + LN_EPS) * g + b

    def bdot(a, w):                      # bf16 MXU matmul, f32 accumulation
        return jnp.dot(a.astype(PARAM_DTYPE), w, preferred_element_type=f32)

    def fdot(a, b_):                     # exact f32 matmul (perm / selection / head)
        return jnp.dot(a, b_, preferred_element_type=f32)

    # ---- patch embed: conv-as-GEMM + LayerNorm epilogue ----
    xp = next(it)[0]                                  # (M0, K_PE) bf16
    w_pe = nxt_val()                                  # (K_PE, C0) bf16
    b_pe = nxt_val().astype(f32)
    g_pe = nxt_val().astype(f32)
    be_pe = nxt_val().astype(f32)
    x = ln(jnp.dot(xp, w_pe, preferred_element_type=f32) + b_pe, g_pe, be_pe)

    # ---- transformer stages (static plan, unrolled at trace time) ----
    for step in plan:
        if step["kind"] == "block":
            heads, nW, N, C, hd = (step["heads"], step["nW"], step["N"],
                                   step["C"], step["hd"])
            scale = np.float32(step["scale"])
            P = nxt_val() if step["perm"] else None        # (M, M) f32 permutation
            Pi = nxt_val() if step["perm"] else None
            g1 = nxt_val().astype(f32); b1 = nxt_val().astype(f32)
            wqkv = nxt_val()                               # (3, heads, C, hd) bf16
            bqkv = nxt_val().astype(f32)                   # (3, heads, 1, hd)
            relb = nxt_val().astype(f32)                   # (heads, N, N)
            mask = nxt_val().astype(f32) if step["shifted"] else None  # (nW, N, N)
            wpr = nxt_val()                                # (heads, hd, C) bf16
            bpr = nxt_val().astype(f32)                    # (1, C)
            g2 = nxt_val().astype(f32); b2 = nxt_val().astype(f32)
            w1 = nxt_val(); bb1 = nxt_val().astype(f32)
            w2 = nxt_val(); bb2 = nxt_val().astype(f32)

            # --- (shifted) window multi-head self-attention + residual ---
            xw = fdot(P, x) if P is not None else x        # roll + window partition
            xn = ln(xw, g1, b1)                            # (nW*N, C) f32
            attn = jnp.zeros((nW * N, C), f32)
            for h in range(heads):                         # per-head GEMMs, no lane
                q = (bdot(xn, wqkv[0, h]) + bqkv[0, h]) * scale   # slicing / concats
                k = bdot(xn, wqkv[1, h]) + bqkv[1, h]
                v = bdot(xn, wqkv[2, h]) + bqkv[2, h]
                q = q.reshape(nW, N, hd)
                k = k.reshape(nW, N, hd)
                v = v.reshape(nW, N, hd)
                s = jax.lax.dot_general(q, k, (((2,), (2,)), ((0,), (0,))),
                                        preferred_element_type=f32)   # (nW, N, N)
                s = s + relb[h][None]
                if mask is not None:
                    s = s + mask
                s = s - jnp.max(s, axis=-1, keepdims=True)
                prob = jnp.exp(s)
                # approx reciprocal (EUP): ~1e-3 rel. vs exact softmax, OK for inference
                prob = prob * pl.reciprocal(jnp.sum(prob, axis=-1, keepdims=True),
                                            approx=True)
                o = jax.lax.dot_general(prob.astype(PARAM_DTYPE),
                                        v.astype(PARAM_DTYPE),
                                        (((2,), (1,)), ((0,), (0,))),
                                        preferred_element_type=f32)   # (nW, N, hd)
                # head merge folded into the output projection: sum_h o_h @ Wp_h
                attn = attn + bdot(o.reshape(nW * N, hd), wpr[h])
            attn = attn + bpr
            if Pi is not None:
                attn = fdot(Pi, attn)                      # un-partition + un-roll
            x = x + attn                                   # residual 1 (f32)

            # --- MLP: norm2 -> fc1 -> GELU(erf) -> fc2 -> residual ---
            hdn = bdot(ln(x, g2, b2), w1) + bb1
            hdn = 0.5 * hdn * (1.0 + jax.lax.erf(hdn * np.float32(1.0 / np.sqrt(2.0))))
            x = x + (bdot(hdn, w2) + bb2)                  # residual 2 (f32)

        else:  # ---- patch merging: select -> LN(concat) -> bias-free reduction ----
            C, Mo = step["C"], step["Mo"]
            sel = nxt_val()                                # (4, Mo, Mi) f32
            gm = nxt_val().astype(f32)                     # (4, C)
            bm = nxt_val().astype(f32)                     # (4, C)
            wred = nxt_val()                               # (4, C, 2C) bf16
            zs = [fdot(sel[k], x) for k in range(4)]       # 4 x (Mo, C) exact gathers
            mu = sum(jnp.sum(z, axis=-1, keepdims=True) for z in zs) / np.float32(4 * C)
            var = sum(jnp.sum(jnp.square(z - mu), axis=-1, keepdims=True)
                      for z in zs) / np.float32(4 * C)
            rstd = jax.lax.rsqrt(var + LN_EPS)
            y = jnp.zeros((Mo, 2 * C), f32)
            for k in range(4):                             # LN(concat) @ W, no lane concat
                zn = (zs[k] - mu) * rstd * gm[k:k + 1, :] + bm[k:k + 1, :]
                y = y + bdot(zn, wred[k])
            x = y

    # ---- final LN -> global average pool -> classification head ----
    g_f = nxt_val().astype(f32); b_f = nxt_val().astype(f32)
    w_h = nxt_val()                                        # (C_final, NUM_CLASSES) f32
    b_h = nxt_val()                                        # (1, NUM_CLASSES) f32
    xf = ln(x, g_f, b_f)
    pooled = jnp.mean(xf, axis=0, keepdims=True)           # AdaptiveAvgPool3d(1)
    logits = fdot(pooled, w_h) + b_h                       # (1, NUM_CLASSES)
    o_ref[...] = logits.reshape(1, 1, NUM_CLASSES)


# ============================== forward wrapper ==============================
def _extract_patches(img):
    """NCDHW image -> (B, num_patches, Cin*pt*ph*pw) bf16 (cast before the relayout)."""
    B, Cin, T, H, W = img.shape
    pt, ph, pw = PATCH_SIZE
    img = jnp.pad(img.astype(PARAM_DTYPE),
                  ((0, 0), (0, 0), (0, (-T) % pt), (0, (-H) % ph), (0, (-W) % pw)))
    T2, H2, W2 = T + (-T) % pt, H + (-H) % ph, W + (-W) % pw
    nt, nh, nw = T2 // pt, H2 // ph, W2 // pw
    x = img.reshape(B, Cin, nt, pt, nh, ph, nw, pw)
    x = x.transpose(0, 2, 4, 6, 1, 3, 5, 7).reshape(B, nt * nh * nw, Cin * pt * ph * pw)
    return x, (nt, nh, nw)


def _build_fused_call_args(params, x_patches, grid_thw):
    B, M0, K_PE = x_patches.shape
    args = [x_patches]
    in_specs = [pl.BlockSpec((1, M0, K_PE), lambda b: (b, 0, 0))]

    def add(a):
        a = jnp.asarray(a)
        args.append(a)
        in_specs.append(pl.BlockSpec(a.shape, _const_index_map(a.ndim)))

    pe = params["patch_embed"]
    add(pe["w"]); add(pe["b"]); add(pe["norm_g"]); add(pe["norm_b"])

    plan = []
    T, H, W = grid_thw
    for i, blocks in enumerate(params["stages"]):
        heads = NUM_HEADS[i]
        C = EMBED_DIM * (2 ** i)
        hd = C // heads
        for j, bp in enumerate(blocks):
            shift = tuple(0 if j % 2 == 0 else w // 2 for w in WINDOW_SIZE)
            ws, ss = _adjust_window((T, H, W), WINDOW_SIZE, shift)
            assert T % ws[0] == 0 and H % ws[1] == 0 and W % ws[2] == 0, \
                "fused kernel assumes no spatial padding at demo sizes"
            nW = (T // ws[0]) * (H // ws[1]) * (W // ws[2])
            N = ws[0] * ws[1] * ws[2]
            shifted = sum(ss) > 0
            identity_part = (nW == 1 and ws == (T, H, W))
            need_perm = shifted or not identity_part
            plan.append(dict(kind="block", heads=heads, nW=nW, N=N, C=C, hd=hd,
                             shifted=shifted, perm=need_perm,
                             scale=float(hd) ** -0.5))
            if need_perm:
                P = _window_perm_np(T, H, W, ws, ss)
                add(P)
                add(np.ascontiguousarray(P.T))
            add(bp["norm1_g"]); add(bp["norm1_b"])
            add(bp["wqkv"]); add(bp["bqkv"])
            add(bp["rel_bias"][:, :N, :N])
            if shifted:
                add(_attn_mask_np(T, H, W, ws, ss))
            add(bp["wproj"]); add(bp["bproj"])
            add(bp["norm2_g"]); add(bp["norm2_b"])
            add(bp["fc1_w"]); add(bp["fc1_b"])
            add(bp["fc2_w"]); add(bp["fc2_b"])
        if i < len(params["stages"]) - 1:
            mp = params["merges"][i]
            assert H % 2 == 0 and W % 2 == 0
            Mo = T * (H // 2) * (W // 2)
            plan.append(dict(kind="merge", C=C, Mo=Mo))
            add(_merge_select_np(T, H, W))
            add(mp["norm_g"]); add(mp["norm_b"]); add(mp["red_w"])
            H, W = H // 2, W // 2
    add(params["norm_g"]); add(params["norm_b"])
    add(params["head_w"]); add(params["head_b"])
    return args, in_specs, plan


def omni_transformer_v3_forward(params, img):
    """img: (B, 3, T, H, W) float32 (PyTorch NCDHW); returns (B, NUM_CLASSES) f32."""
    B = img.shape[0]
    x_patches, grid_thw = _extract_patches(img)
    args, in_specs, plan = _build_fused_call_args(params, x_patches, grid_thw)
    out = pl.pallas_call(
        partial(_fused_forward_kernel, plan=plan),
        out_shape=jax.ShapeDtypeStruct((B, 1, NUM_CLASSES), jnp.float32),
        grid=(B,),
        in_specs=in_specs,
        out_specs=pl.BlockSpec((1, 1, NUM_CLASSES), lambda b: (b, 0, 0)),
        compiler_params=pltpu.CompilerParams(
            dimension_semantics=("parallel",),
            vmem_limit_bytes=32 * 1024 * 1024),
    )(*args)
    return out.reshape(B, NUM_CLASSES)


# ============================== parameter init ===============================
def init_params(key):
    keys = iter(jax.random.split(key, 256))

    def nrm(shape, std=0.02, dtype=PARAM_DTYPE):
        return (jax.random.normal(next(keys), shape, jnp.float32) * std).astype(dtype)

    zeros = lambda s, d=PARAM_DTYPE: jnp.zeros(s, d)
    ones = lambda s, d=PARAM_DTYPE: jnp.ones(s, d)

    p = {}
    kpe = IN_CHANNELS * PATCH_SIZE[0] * PATCH_SIZE[1] * PATCH_SIZE[2]
    p["patch_embed"] = {                       # Conv3d(kernel==stride==patch) as GEMM
        "w": nrm((kpe, EMBED_DIM)),
        "b": jnp.zeros((1, EMBED_DIM), jnp.float32),
        "norm_g": ones((1, EMBED_DIM)), "norm_b": zeros((1, EMBED_DIM)),
    }

    rel_index = _relative_position_index(WINDOW_SIZE)
    Nf = WINDOW_SIZE[0] * WINDOW_SIZE[1] * WINDOW_SIZE[2]
    table_len = ((2 * WINDOW_SIZE[0] - 1) * (2 * WINDOW_SIZE[1] - 1)
                 * (2 * WINDOW_SIZE[2] - 1))

    stages = []
    for i, depth in enumerate(DEPTHS):
        C = EMBED_DIM * (2 ** i)
        heads = NUM_HEADS[i]
        hd = C // heads
        blocks = []
        for _ in range(depth):
            # torch layout: qkv weight (3C, C) rows=[q|k|v] x (head, d); proj (C, C).
            qkv_w = nrm((C, 3 * C))            # x @ W convention (columns = outputs)
            proj_w = nrm((C, C))
            table = nrm((table_len, heads), dtype=jnp.float32)
            # relative-position bias precomputed once at init (no per-forward gather)
            bias = table[jnp.asarray(rel_index.reshape(-1))]
            bias = bias.reshape(Nf, Nf, heads).transpose(2, 0, 1).astype(jnp.float32)
            blocks.append({
                "norm1_g": ones((1, C)), "norm1_b": zeros((1, C)),
                # per-head stacks (host-side split -> no in-kernel lane slicing)
                "wqkv": qkv_w.reshape(C, 3, heads, hd).transpose(1, 2, 0, 3),
                "bqkv": jnp.zeros((3, heads, 1, hd), jnp.float32),
                "rel_bias": bias,
                "wproj": proj_w.reshape(heads, hd, C),
                "bproj": jnp.zeros((1, C), jnp.float32),
                "norm2_g": ones((1, C)), "norm2_b": zeros((1, C)),
                "fc1_w": nrm((C, MLP_RATIO * C)),
                "fc1_b": jnp.zeros((1, MLP_RATIO * C), jnp.float32),
                "fc2_w": nrm((MLP_RATIO * C, C)),
                "fc2_b": jnp.zeros((1, C), jnp.float32),
            })
        stages.append(blocks)
    p["stages"] = stages

    merges = []
    for i in range(len(DEPTHS) - 1):
        C = EMBED_DIM * (2 ** i)
        merges.append({
            "norm_g": ones((4, C)), "norm_b": zeros((4, C)),   # LN over concat(4C)
            "red_w": nrm((4 * C, 2 * C)).reshape(4, C, 2 * C),  # bias-free reduction
        })
    p["merges"] = merges

    final_dim = EMBED_DIM * (2 ** (len(DEPTHS) - 1))
    p["norm_g"] = ones((1, final_dim))
    p["norm_b"] = zeros((1, final_dim))
    p["head_w"] = nrm((final_dim, NUM_CLASSES), dtype=jnp.float32)  # new head (f32)
    p["head_b"] = jnp.zeros((1, NUM_CLASSES), jnp.float32)
    return p


# ==================================== main ===================================
if __name__ == "__main__":
    root = jax.random.PRNGKey(0)
    pkey, xkey = jax.random.split(root)
    params = init_params(pkey)
    img = jax.random.normal(xkey, (2, IN_CHANNELS, 4, 16, 16), dtype=jnp.float32)

    fwd = jax.jit(omni_transformer_v3_forward)
    logits = jax.block_until_ready(fwd(params, img))
    assert logits.shape == (2, NUM_CLASSES), logits.shape
    assert bool(jnp.all(jnp.isfinite(logits)))
    print("KERNEL_OK")
</pallas_src>

<mosaic_0001>
module attributes {stable_mosaic.version = 11 : i64} {
  func.func @_fused_forward_kernel(%arg0: i32, %arg1: memref<1x32x96xbf16, #tpu.memory_space<vmem>>, %arg2: memref<96x16xbf16, #tpu.memory_space<vmem>>, %arg3: memref<1x16xf32, #tpu.memory_space<vmem>>, %arg4: memref<1x16xbf16, #tpu.memory_space<vmem>>, %arg5: memref<1x16xbf16, #tpu.memory_space<vmem>>, %arg6: memref<32x32xf32, #tpu.memory_space<vmem>>, %arg7: memref<32x32xf32, #tpu.memory_space<vmem>>, %arg8: memref<1x16xbf16, #tpu.memory_space<vmem>>, %arg9: memref<1x16xbf16, #tpu.memory_space<vmem>>, %arg10: memref<3x2x16x8xbf16, #tpu.memory_space<vmem>>, %arg11: memref<3x2x1x8xf32, #tpu.memory_space<vmem>>, %arg12: memref<2x8x8xf32, #tpu.memory_space<vmem>>, %arg13: memref<2x8x16xbf16, #tpu.memory_space<vmem>>, %arg14: memref<1x16xf32, #tpu.memory_space<vmem>>, %arg15: memref<1x16xbf16, #tpu.memory_space<vmem>>, %arg16: memref<1x16xbf16, #tpu.memory_space<vmem>>, %arg17: memref<16x64xbf16, #tpu.memory_space<vmem>>, %arg18: memref<1x64xf32, #tpu.memory_space<vmem>>, %arg19: memref<64x16xbf16, #tpu.memory_space<vmem>>, %arg20: memref<1x16xf32, #tpu.memory_space<vmem>>, %arg21: memref<32x32xf32, #tpu.memory_space<vmem>>, %arg22: memref<32x32xf32, #tpu.memory_space<vmem>>, %arg23: memref<1x16xbf16, #tpu.memory_space<vmem>>, %arg24: memref<1x16xbf16, #tpu.memory_space<vmem>>, %arg25: memref<3x2x16x8xbf16, #tpu.memory_space<vmem>>, %arg26: memref<3x2x1x8xf32, #tpu.memory_space<vmem>>, %arg27: memref<2x8x8xf32, #tpu.memory_space<vmem>>, %arg28: memref<4x8x8xf32, #tpu.memory_space<vmem>>, %arg29: memref<2x8x16xbf16, #tpu.memory_space<vmem>>, %arg30: memref<1x16xf32, #tpu.memory_space<vmem>>, %arg31: memref<1x16xbf16, #tpu.memory_space<vmem>>, %arg32: memref<1x16xbf16, #tpu.memory_space<vmem>>, %arg33: memref<16x64xbf16, #tpu.memory_space<vmem>>, %arg34: memref<1x64xf32, #tpu.memory_space<vmem>>, %arg35: memref<64x16xbf16, #tpu.memory_space<vmem>>, %arg36: memref<1x16xf32, #tpu.memory_space<vmem>>, %arg37: memref<4x8x32xf32, #tpu.memory_space<vmem>>, %arg38: memref<4x16xbf16, #tpu.memory_space<vmem>>, %arg39: memref<4x16xbf16, #tpu.memory_space<vmem>>, %arg40: memref<4x16x32xbf16, #tpu.memory_space<vmem>>, %arg41: memref<1x32xbf16, #tpu.memory_space<vmem>>, %arg42: memref<1x32xbf16, #tpu.memory_space<vmem>>, %arg43: memref<3x4x32x8xbf16, #tpu.memory_space<vmem>>, %arg44: memref<3x4x1x8xf32, #tpu.memory_space<vmem>>, %arg45: memref<4x8x8xf32, #tpu.memory_space<vmem>>, %arg46: memref<4x8x32xbf16, #tpu.memory_space<vmem>>, %arg47: memref<1x32xf32, #tpu.memory_space<vmem>>, %arg48: memref<1x32xbf16, #tpu.memory_space<vmem>>, %arg49: memref<1x32xbf16, #tpu.memory_space<vmem>>, %arg50: memref<32x128xbf16, #tpu.memory_space<vmem>>, %arg51: memref<1x128xf32, #tpu.memory_space<vmem>>, %arg52: memref<128x32xbf16, #tpu.memory_space<vmem>>, %arg53: memref<1x32xf32, #tpu.memory_space<vmem>>, %arg54: memref<1x32xbf16, #tpu.memory_space<vmem>>, %arg55: memref<1x32xbf16, #tpu.memory_space<vmem>>, %arg56: memref<3x4x32x8xbf16, #tpu.memory_space<vmem>>, %arg57: memref<3x4x1x8xf32, #tpu.memory_space<vmem>>, %arg58: memref<4x8x8xf32, #tpu.memory_space<vmem>>, %arg59: memref<4x8x32xbf16, #tpu.memory_space<vmem>>, %arg60: memref<1x32xf32, #tpu.memory_space<vmem>>, %arg61: memref<1x32xbf16, #tpu.memory_space<vmem>>, %arg62: memref<1x32xbf16, #tpu.memory_space<vmem>>, %arg63: memref<32x128xbf16, #tpu.memory_space<vmem>>, %arg64: memref<1x128xf32, #tpu.memory_space<vmem>>, %arg65: memref<128x32xbf16, #tpu.memory_space<vmem>>, %arg66: memref<1x32xf32, #tpu.memory_space<vmem>>, %arg67: memref<1x32xbf16, #tpu.memory_space<vmem>>, %arg68: memref<1x32xbf16, #tpu.memory_space<vmem>>, %arg69: memref<32x6xf32, #tpu.memory_space<vmem>>, %arg70: memref<1x6xf32, #tpu.memory_space<vmem>>, %arg71: memref<1x1x6xf32, #tpu.memory_space<vmem>>) attributes {dimension_semantics = [#tpu.dimension_semantics<parallel>], iteration_bounds = array<i64: 2>, scalar_prefetch = 0 : i64, scratch_operands = 0 : i64, tpu.core_type = #tpu.core_type<tc>, window_params = [{transform_indices = @transform_0, window_bounds = array<i64: 1, 32, 96>}, {pipeline_mode = #tpu.pipeline_mode<synchronous>, transform_indices = @transform_1, window_bounds = array<i64: 96, 16>}, {pipeline_mode = #tpu.pipeline_mode<synchronous>, transform_indices = @transform_2, window_bounds = array<i64: 1, 16>}, {pipeline_mode = #tpu.pipeline_mode<synchronous>, transform_indices = @transform_3, window_bounds = array<i64: 1, 16>}, {pipeline_mode = #tpu.pipeline_mode<synchronous>, transform_indices = @transform_4, window_bounds = array<i64: 1, 16>}, {pipeline_mode = #tpu.pipeline_mode<synchronous>, transform_indices = @transform_5, window_bounds = array<i64: 32, 32>}, {pipeline_mode = #tpu.pipeline_mode<synchronous>, transform_indices = @transform_6, window_bounds = array<i64: 32, 32>}, {pipeline_mode = #tpu.pipeline_mode<synchronous>, transform_indices = @transform_7, window_bounds = array<i64: 1, 16>}, {pipeline_mode = #tpu.pipeline_mode<synchronous>, transform_indices = @transform_8, window_bounds = array<i64: 1, 16>}, {pipeline_mode = #tpu.pipeline_mode<synchronous>, transform_indices = @transform_9, window_bounds = array<i64: 3, 2, 16, 8>}, {pipeline_mode = #tpu.pipeline_mode<synchronous>, transform_indices = @transform_10, window_bounds = array<i64: 3, 2, 1, 8>}, {pipeline_mode = #tpu.pipeline_mode<synchronous>, transform_indices = @transform_11, window_bounds = array<i64: 2, 8, 8>}, {pipeline_mode = #tpu.pipeline_mode<synchronous>, transform_indices = @transform_12, window_bounds = array<i64: 2, 8, 16>}, {pipeline_mode = #tpu.pipeline_mode<synchronous>, transform_indices = @transform_13, window_bounds = array<i64: 1, 16>}, {pipeline_mode = #tpu.pipeline_mode<synchronous>, transform_indices = @transform_14, window_bounds = array<i64: 1, 16>}, {pipeline_mode = #tpu.pipeline_mode<synchronous>, transform_indices = @transform_15, window_bounds = array<i64: 1, 16>}, {pipeline_mode = #tpu.pipeline_mode<synchronous>, transform_indices = @transform_16, window_bounds = array<i64: 16, 64>}, {pipeline_mode = #tpu.pipeline_mode<synchronous>, transform_indices = @transform_17, window_bounds = array<i64: 1, 64>}, {pipeline_mode = #tpu.pipeline_mode<synchronous>, transform_indices = @transform_18, window_bounds = array<i64: 64, 16>}, {pipeline_mode = #tpu.pipeline_mode<synchronous>, transform_indices = @transform_19, window_bounds = array<i64: 1, 16>}, {pipeline_mode = #tpu.pipeline_mode<synchronous>, transform_indices = @transform_20, window_bounds = array<i64: 32, 32>}, {pipeline_mode = #tpu.pipeline_mode<synchronous>, transform_indices = @transform_21, window_bounds = array<i64: 32, 32>}, {pipeline_mode = #tpu.pipeline_mode<synchronous>, transform_indices = @transform_22, window_bounds = array<i64: 1, 16>}, {pipeline_mode = #tpu.pipeline_mode<synchronous>, transform_indices = @transform_23, window_bounds = array<i64: 1, 16>}, {pipeline_mode = #tpu.pipeline_mode<synchronous>, transform_indices = @transform_24, window_bounds = array<i64: 3, 2, 16, 8>}, {pipeline_mode = #tpu.pipeline_mode<synchronous>, transform_indices = @transform_25, window_bounds = array<i64: 3, 2, 1, 8>}, {pipeline_mode = #tpu.pipeline_mode<synchronous>, transform_indices = @transform_26, window_bounds = array<i64: 2, 8, 8>}, {pipeline_mode = #tpu.pipeline_mode<synchronous>, transform_indices = @transform_27, window_bounds = array<i64: 4, 8, 8>}, {pipeline_mode = #tpu.pipeline_mode<synchronous>, transform_indices = @transform_28, window_bounds = array<i64: 2, 8, 16>}, {pipeline_mode = #tpu.pipeline_mode<synchronous>, transform_indices = @transform_29, window_bounds = array<i64: 1, 16>}, {pipeline_mode = #tpu.pipeline_mode<synchronous>, transform_indices = @transform_30, window_bounds = array<i64: 1, 16>}, {pipeline_mode = #tpu.pipeline_mode<synchronous>, transform_indices = @transform_31, window_bounds = array<i64: 1, 16>}, {pipeline_mode = #tpu.pipeline_mode<synchronous>, transform_indices = @transform_32, window_bounds = array<i64: 16, 64>}, {pipeline_mode = #tpu.pipeline_mode<synchronous>, transform_indices = @transform_33, window_bounds = array<i64: 1, 64>}, {pipeline_mode = #tpu.pipeline_mode<synchronous>, transform_indices = @transform_34, window_bounds = array<i64: 64, 16>}, {pipeline_mode = #tpu.pipeline_mode<synchronous>, transform_indices = @transform_35, window_bounds = array<i64: 1, 16>}, {pipeline_mode = #tpu.pipeline_mode<synchronous>, transform_indices = @transform_36, window_bounds = array<i64: 4, 8, 32>}, {pipeline_mode = #tpu.pipeline_mode<synchronous>, transform_indices = @transform_37, window_bounds = array<i64: 4, 16>}, {pipeline_mode = #tpu.pipeline_mode<synchronous>, transform_indices = @transform_38, window_bounds = array<i64: 4, 16>}, {pipeline_mode = #tpu.pipeline_mode<synchronous>, transform_indices = @transform_39, window_bounds = array<i64: 4, 16, 32>}, {pipeline_mode = #tpu.pipeline_mode<synchronous>, transform_indices = @transform_40, window_bounds = array<i64: 1, 32>}, {pipeline_mode = #tpu.pipeline_mode<synchronous>, transform_indices = @transform_41, window_bounds = array<i64: 1, 32>}, {pipeline_mode = #tpu.pipeline_mode<synchronous>, transform_indices = @transform_42, window_bounds = array<i64: 3, 4, 32, 8>}, {pipeline_mode = #tpu.pipeline_mode<synchronous>, transform_indices = @transform_43, window_bounds = array<i64: 3, 4, 1, 8>}, {pipeline_mode = #tpu.pipeline_mode<synchronous>, transform_indices = @transform_44, window_bounds = array<i64: 4, 8, 8>}, {pipeline_mode = #tpu.pipeline_mode<synchronous>, transform_indices = @transform_45, window_bounds = array<i64: 4, 8, 32>}, {pipeline_mode = #tpu.pipeline_mode<synchronous>, transform_indices = @transform_46, window_bounds = array<i64: 1, 32>}, {pipeline_mode = #tpu.pipeline_mode<synchronous>, transform_indices = @transform_47, window_bounds = array<i64: 1, 32>}, {pipeline_mode = #tpu.pipeline_mode<synchronous>, transform_indices = @transform_48, window_bounds = array<i64: 1, 32>}, {pipeline_mode = #tpu.pipeline_mode<synchronous>, transform_indices = @transform_49, window_bounds = array<i64: 32, 128>}, {pipeline_mode = #tpu.pipeline_mode<synchronous>, transform_indices = @transform_50, window_bounds = array<i64: 1, 128>}, {pipeline_mode = #tpu.pipeline_mode<synchronous>, transform_indices = @transform_51, window_bounds = array<i64: 128, 32>}, {pipeline_mode = #tpu.pipeline_mode<synchronous>, transform_indices = @transform_52, window_bounds = array<i64: 1, 32>}, {pipeline_mode = #tpu.pipeline_mode<synchronous>, transform_indices = @transform_53, window_bounds = array<i64: 1, 32>}, {pipeline_mode = #tpu.pipeline_mode<synchronous>, transform_indices = @transform_54, window_bounds = array<i64: 1, 32>}, {pipeline_mode = #tpu.pipeline_mode<synchronous>, transform_indices = @transform_55, window_bounds = array<i64: 3, 4, 32, 8>}, {pipeline_mode = #tpu.pipeline_mode<synchronous>, transform_indices = @transform_56, window_bounds = array<i64: 3, 4, 1, 8>}, {pipeline_mode = #tpu.pipeline_mode<synchronous>, transform_indices = @transform_57, window_bounds = array<i64: 4, 8, 8>}, {pipeline_mode = #tpu.pipeline_mode<synchronous>, transform_indices = @transform_58, window_bounds = array<i64: 4, 8, 32>}, {pipeline_mode = #tpu.pipeline_mode<synchronous>, transform_indices = @transform_59, window_bounds = array<i64: 1, 32>}, {pipeline_mode = #tpu.pipeline_mode<synchronous>, transform_indices = @transform_60, window_bounds = array<i64: 1, 32>}, {pipeline_mode = #tpu.pipeline_mode<synchronous>, transform_indices = @transform_61, window_bounds = array<i64: 1, 32>}, {pipeline_mode = #tpu.pipeline_mode<synchronous>, transform_indices = @transform_62, window_bounds = array<i64: 32, 128>}, {pipeline_mode = #tpu.pipeline_mode<synchronous>, transform_indices = @transform_63, window_bounds = array<i64: 1, 128>}, {pipeline_mode = #tpu.pipeline_mode<synchronous>, transform_indices = @transform_64, window_bounds = array<i64: 128, 32>}, {pipeline_mode = #tpu.pipeline_mode<synchronous>, transform_indices = @transform_65, window_bounds = array<i64: 1, 32>}, {pipeline_mode = #tpu.pipeline_mode<synchronous>, transform_indices = @transform_66, window_bounds = array<i64: 1, 32>}, {pipeline_mode = #tpu.pipeline_mode<synchronous>, transform_indices = @transform_67, window_bounds = array<i64: 1, 32>}, {pipeline_mode = #tpu.pipeline_mode<synchronous>, transform_indices = @transform_68, window_bounds = array<i64: 32, 6>}, {pipeline_mode = #tpu.pipeline_mode<synchronous>, transform_indices = @transform_69, window_bounds = array<i64: 1, 6>}, {transform_indices = @transform_70, window_bounds = array<i64: 1, 1, 6>}]} {
    %c0 = arith.constant 0 : index
    %c0_0 = arith.constant 0 : index
    %c0_1 = arith.constant 0 : index
    %0 = vector.load %arg1[%c0, %c0_0, %c0_1] : memref<1x32x96xbf16, #tpu.memory_space<vmem>>, vector<1x32x96xbf16>
    %1 = vector.shape_cast %0 : vector<1x32x96xbf16> to vector<32x96xbf16>
    %c0_2 = arith.constant 0 : index
    %c0_3 = arith.constant 0 : index
    %2 = vector.load %arg2[%c0_2, %c0_3] : memref<96x16xbf16, #tpu.memory_space<vmem>>, vector<96x16xbf16>
    %c0_4 = arith.constant 0 : index
    %c0_5 = arith.constant 0 : index
    %3 = vector.load %arg3[%c0_4, %c0_5] : memref<1x16xf32, #tpu.memory_space<vmem>>, vector<1x16xf32>
    %c0_6 = arith.constant 0 : index
    %c0_7 = arith.constant 0 : index
    %4 = vector.load %arg4[%c0_6, %c0_7] : memref<1x16xbf16, #tpu.memory_space<vmem>>, vector<1x16xbf16>
    %5 = arith.extf %4 : vector<1x16xbf16> to vector<1x16xf32>
    %c0_8 = arith.constant 0 : index
    %c0_9 = arith.constant 0 : index
    %6 = vector.load %arg5[%c0_8, %c0_9] : memref<1x16xbf16, #tpu.memory_space<vmem>>, vector<1x16xbf16>
    %7 = arith.extf %6 : vector<1x16xbf16> to vector<1x16xf32>
    %cst = arith.constant dense<0.000000e+00> : vector<32x16xf32>
    %8 = tpu.matmul %1, %2, %cst {dimension_numbers = #tpu.dot_dimension_numbers<[1], [0], [0], [1], [0, 0, 1, 1], [], []>} : vector<32x96xbf16>, vector<96x16xbf16>, vector<32x16xf32> -> vector<32x16xf32>
    %9 = vector.broadcast %3 : vector<1x16xf32> to vector<32x16xf32>
    %10 = arith.addf %8, %9 : vector<32x16xf32>
    %cst_10 = arith.constant dense<0.000000e+00> : vector<32xf32>
    %11 = vector.multi_reduction <add>, %10, %cst_10 [1] : vector<32x16xf32> to vector<32xf32>
    %12 = vector.shape_cast %11 : vector<32xf32> to vector<32x1xf32>
    %cst_11 = arith.constant 1.600000e+01 : f32
    %13 = vector.broadcast %cst_11 : f32 to vector<32x1xf32>
    %14 = arith.divf %12, %13 : vector<32x1xf32>
    %15 = vector.broadcast %14 : vector<32x1xf32> to vector<32x16xf32>
    %16 = arith.subf %10, %15 : vector<32x16xf32>
    %17 = arith.mulf %16, %16 : vector<32x16xf32>
    %cst_12 = arith.constant dense<0.000000e+00> : vector<32xf32>
    %18 = vector.multi_reduction <add>, %17, %cst_12 [1] : vector<32x16xf32> to vector<32xf32>
    %19 = vector.shape_cast %18 : vector<32xf32> to vector<32x1xf32>
    %cst_13 = arith.constant 1.600000e+01 : f32
    %20 = vector.broadcast %cst_13 : f32 to vector<32x1xf32>
    %21 = arith.divf %19, %20 : vector<32x1xf32>
    %22 = vector.broadcast %14 : vector<32x1xf32> to vector<32x16xf32>
    %23 = arith.subf %10, %22 : vector<32x16xf32>
    %cst_14 = arith.constant 9.99999974E-6 : f32
    %24 = vector.broadcast %cst_14 : f32 to vector<32x1xf32>
    %25 = arith.addf %21, %24 : vector<32x1xf32>
    %26 = math.rsqrt %25 : vector<32x1xf32>
    %27 = vector.broadcast %26 : vector<32x1xf32> to vector<32x16xf32>
    %28 = arith.mulf %23, %27 : vector<32x16xf32>
    %29 = vector.broadcast %5 : vector<1x16xf32> to vector<32x16xf32>
    %30 = arith.mulf %28, %29 : vector<32x16xf32>
    %31 = vector.broadcast %7 : vector<1x16xf32> to vector<32x16xf32>
    %32 = arith.addf %30, %31 : vector<32x16xf32>
    %c0_15 = arith.constant 0 : index
    %c0_16 = arith.constant 0 : index
    %33 = vector.load %arg6[%c0_15, %c0_16] : memref<32x32xf32, #tpu.memory_space<vmem>>, vector<32x32xf32>
    %c0_17 = arith.constant 0 : index
    %c0_18 = arith.constant 0 : index
    %34 = vector.load %arg7[%c0_17, %c0_18] : memref<32x32xf32, #tpu.memory_space<vmem>>, vector<32x32xf32>
    %c0_19 = arith.constant 0 : index
    %c0_20 = arith.constant 0 : index
    %35 = vector.load %arg8[%c0_19, %c0_20] : memref<1x16xbf16, #tpu.memory_space<vmem>>, vector<1x16xbf16>
    %36 = arith.extf %35 : vector<1x16xbf16> to vector<1x16xf32>
    %c0_21 = arith.constant 0 : index
    %c0_22 = arith.constant 0 : index
    %37 = vector.load %arg9[%c0_21, %c0_22] : memref<1x16xbf16, #tpu.memory_space<vmem>>, vector<1x16xbf16>
    %38 = arith.extf %37 : vector<1x16xbf16> to vector<1x16xf32>
    %c0_23 = arith.constant 0 : index
    %c0_24 = arith.constant 0 : index
    %c0_25 = arith.constant 0 : index
    %c0_26 = arith.constant 0 : index
    %39 = vector.load %arg10[%c0_23, %c0_24, %c0_25, %c0_26] : memref<3x2x16x8xbf16, #tpu.memory_space<vmem>>, vector<3x2x16x8xbf16>
    %c0_27 = arith.constant 0 : index
    %c0_28 = arith.constant 0 : index
    %c0_29 = arith.constant 0 : index
    %c0_30 = arith.constant 0 : index
    %40 = vector.load %arg11[%c0_27, %c0_28, %c0_29, %c0_30] : memref<3x2x1x8xf32, #tpu.memory_space<vmem>>, vector<3x2x1x8xf32>
    %c0_31 = arith.constant 0 : index
    %c0_32 = arith.constant 0 : index
    %c0_33 = arith.constant 0 : index
    %41 = vector.load %arg12[%c0_31, %c0_32, %c0_33] : memref<2x8x8xf32, #tpu.memory_space<vmem>>, vector<2x8x8xf32>
    %c0_34 = arith.constant 0 : index
    %c0_35 = arith.constant 0 : index
    %c0_36 = arith.constant 0 : index
    %42 = vector.load %arg13[%c0_34, %c0_35, %c0_36] : memref<2x8x16xbf16, #tpu.memory_space<vmem>>, vector<2x8x16xbf16>
    %c0_37 = arith.constant 0 : index
    %c0_38 = arith.constant 0 : index
    %43 = vector.load %arg14[%c0_37, %c0_38] : memref<1x16xf32, #tpu.memory_space<vmem>>, vector<1x16xf32>
    %c0_39 = arith.constant 0 : index
    %c0_40 = arith.constant 0 : index
    %44 = vector.load %arg15[%c0_39, %c0_40] : memref<1x16xbf16, #tpu.memory_space<vmem>>, vector<1x16xbf16>
    %45 = arith.extf %44 : vector<1x16xbf16> to vector<1x16xf32>
    %c0_41 = arith.constant 0 : index
    %c0_42 = arith.constant 0 : index
    %46 = vector.load %arg16[%c0_41, %c0_42] : memref<1x16xbf16, #tpu.memory_space<vmem>>, vector<1x16xbf16>
    %47 = arith.extf %46 : vector<1x16xbf16> to vector<1x16xf32>
    %c0_43 = arith.constant 0 : index
    %c0_44 = arith.constant 0 : index
    %48 = vector.load %arg17[%c0_43, %c0_44] : memref<16x64xbf16, #tpu.memory_space<vmem>>, vector<16x64xbf16>
    %c0_45 = arith.constant 0 : index
    %c0_46 = arith.constant 0 : index
    %49 = vector.load %arg18[%c0_45, %c0_46] : memref<1x64xf32, #tpu.memory_space<vmem>>, vector<1x64xf32>
    %c0_47 = arith.constant 0 : index
    %c0_48 = arith.constant 0 : index
    %50 = vector.load %arg19[%c0_47, %c0_48] : memref<64x16xbf16, #tpu.memory_space<vmem>>, vector<64x16xbf16>
    %c0_49 = arith.constant 0 : index
    %c0_50 = arith.constant 0 : index
    %51 = vector.load %arg20[%c0_49, %c0_50] : memref<1x16xf32, #tpu.memory_space<vmem>>, vector<1x16xf32>
    %cst_51 = arith.constant dense<0.000000e+00> : vector<32x16xf32>
    %52 = tpu.matmul %33, %32, %cst_51 {dimension_numbers = #tpu.dot_dimension_numbers<[1], [0], [0], [1], [0, 0, 1, 1], [], []>} : vector<32x32xf32>, vector<32x16xf32>, vector<32x16xf32> -> vector<32x16xf32>
    %cst_52 = arith.constant dense<0.000000e+00> : vector<32xf32>
    %53 = vector.multi_reduction <add>, %52, %cst_52 [1] : vector<32x16xf32> to vector<32xf32>
    %54 = vector.shape_cast %53 : vector<32xf32> to vector<32x1xf32>
    %cst_53 = arith.constant 1.600000e+01 : f32
    %55 = vector.broadcast %cst_53 : f32 to vector<32x1xf32>
    %56 = arith.divf %54, %55 : vector<32x1xf32>
    %57 = vector.broadcast %56 : vector<32x1xf32> to vector<32x16xf32>
    %58 = arith.subf %52, %57 : vector<32x16xf32>
    %59 = arith.mulf %58, %58 : vector<32x16xf32>
    %cst_54 = arith.constant dense<0.000000e+00> : vector<32xf32>
    %60 = vector.multi_reduction <add>, %59, %cst_54 [1] : vector<32x16xf32> to vector<32xf32>
    %61 = vector.shape_cast %60 : vector<32xf32> to vector<32x1xf32>
    %cst_55 = arith.constant 1.600000e+01 : f32
    %62 = vector.broadcast %cst_55 : f32 to vector<32x1xf32>
    %63 = arith.divf %61, %62 : vector<32x1xf32>
    %64 = vector.broadcast %56 : vector<32x1xf32> to vector<32x16xf32>
    %65 = arith.subf %52, %64 : vector<32x16xf32>
    %cst_56 = arith.constant 9.99999974E-6 : f32
    %66 = vector.broadcast %cst_56 : f32 to vector<32x1xf32>
    %67 = arith.addf %63, %66 : vector<32x1xf32>
    %68 = math.rsqrt %67 : vector<32x1xf32>
    %69 = vector.broadcast %68 : vector<32x1xf32> to vector<32x16xf32>
    %70 = arith.mulf %65, %69 : vector<32x16xf32>
    %71 = vector.broadcast %36 : vector<1x16xf32> to vector<32x16xf32>
    %72 = arith.mulf %70, %71 : vector<32x16xf32>
    %73 = vector.broadcast %38 : vector<1x16xf32> to vector<32x16xf32>
    %74 = arith.addf %72, %73 : vector<32x16xf32>
    %cst_57 = arith.constant 0.000000e+00 : f32
    %75 = vector.broadcast %cst_57 : f32 to vector<32x16xf32>
    %76 = vector.extract_strided_slice %39 {offsets = [0, 0, 0, 0], sizes = [1, 1, 16, 8], strides = [1, 1, 1, 1]} : vector<3x2x16x8xbf16> to vector<1x1x16x8xbf16>
    %77 = vector.shape_cast %76 : vector<1x1x16x8xbf16> to vector<16x8xbf16>
    %78 = arith.truncf %74 : vector<32x16xf32> to vector<32x16xbf16>
    %cst_58 = arith.constant dense<0.000000e+00> : vector<32x8xf32>
    %79 = tpu.matmul %78, %77, %cst_58 {dimension_numbers = #tpu.dot_dimension_numbers<[1], [0], [0], [1], [0, 0, 1, 1], [], []>} : vector<32x16xbf16>, vector<16x8xbf16>, vector<32x8xf32> -> vector<32x8xf32>
    %80 = vector.extract_strided_slice %40 {offsets = [0, 0, 0, 0], sizes = [1, 1, 1, 8], strides = [1, 1, 1, 1]} : vector<3x2x1x8xf32> to vector<1x1x1x8xf32>
    %81 = vector.shape_cast %80 : vector<1x1x1x8xf32> to vector<1x8xf32>
    %82 = vector.broadcast %81 : vector<1x8xf32> to vector<32x8xf32>
    %83 = arith.addf %79, %82 : vector<32x8xf32>
    %cst_59 = arith.constant 0.353553385 : f32
    %84 = vector.broadcast %cst_59 : f32 to vector<32x8xf32>
    %85 = arith.mulf %83, %84 : vector<32x8xf32>
    %86 = vector.extract_strided_slice %39 {offsets = [1, 0, 0, 0], sizes = [1, 1, 16, 8], strides = [1, 1, 1, 1]} : vector<3x2x16x8xbf16> to vector<1x1x16x8xbf16>
    %87 = vector.shape_cast %86 : vector<1x1x16x8xbf16> to vector<16x8xbf16>
    %88 = arith.truncf %74 : vector<32x16xf32> to vector<32x16xbf16>
    %cst_60 = arith.constant dense<0.000000e+00> : vector<32x8xf32>
    %89 = tpu.matmul %88, %87, %cst_60 {dimension_numbers = #tpu.dot_dimension_numbers<[1], [0], [0], [1], [0, 0, 1, 1], [], []>} : vector<32x16xbf16>, vector<16x8xbf16>, vector<32x8xf32> -> vector<32x8xf32>
    %90 = vector.extract_strided_slice %40 {offsets = [1, 0, 0, 0], sizes = [1, 1, 1, 8], strides = [1, 1, 1, 1]} : vector<3x2x1x8xf32> to vector<1x1x1x8xf32>
    %91 = vector.shape_cast %90 : vector<1x1x1x8xf32> to vector<1x8xf32>
    %92 = vector.broadcast %91 : vector<1x8xf32> to vector<32x8xf32>
    %93 = arith.addf %89, %92 : vector<32x8xf32>
    %94 = vector.extract_strided_slice %39 {offsets = [2, 0, 0, 0], sizes = [1, 1, 16, 8], strides = [1, 1, 1, 1]} : vector<3x2x16x8xbf16> to vector<1x1x16x8xbf16>
    %95 = vector.shape_cast %94 : vector<1x1x16x8xbf16> to vector<16x8xbf16>
    %96 = arith.truncf %74 : vector<32x16xf32> to vector<32x16xbf16>
    %cst_61 = arith.constant dense<0.000000e+00> : vector<32x8xf32>
    %97 = tpu.matmul %96, %95, %cst_61 {dimension_numbers = #tpu.dot_dimension_numbers<[1], [0], [0], [1], [0, 0, 1, 1], [], []>} : vector<32x16xbf16>, vector<16x8xbf16>, vector<32x8xf32> -> vector<32x8xf32>
    %98 = vector.extract_strided_slice %40 {offsets = [2, 0, 0, 0], sizes = [1, 1, 1, 8], strides = [1, 1, 1, 1]} : vector<3x2x1x8xf32> to vector<1x1x1x8xf32>
    %99 = vector.shape_cast %98 : vector<1x1x1x8xf32> to vector<1x8xf32>
    %100 = vector.broadcast %99 : vector<1x8xf32> to vector<32x8xf32>
    %101 = arith.addf %97, %100 : vector<32x8xf32>
    %102 = vector.shape_cast %85 : vector<32x8xf32> to vector<4x8x8xf32>
    %103 = vector.shape_cast %93 : vector<32x8xf32> to vector<4x8x8xf32>
    %104 = vector.shape_cast %101 : vector<32x8xf32> to vector<4x8x8xf32>
    %cst_62 = arith.constant dense<0.000000e+00> : vector<4x8x8xf32>
    %105 = tpu.matmul %102, %103, %cst_62 {dimension_numbers = #tpu.dot_dimension_numbers<[2], [2], [1], [1], [0, 0, 0, 1, 1, 1], [0], [0]>} : vector<4x8x8xf32>, vector<4x8x8xf32>, vector<4x8x8xf32> -> vector<4x8x8xf32>
    %106 = vector.extract_strided_slice %41 {offsets = [0, 0, 0], sizes = [1, 8, 8], strides = [1, 1, 1]} : vector<2x8x8xf32> to vector<1x8x8xf32>
    %107 = vector.shape_cast %106 : vector<1x8x8xf32> to vector<8x8xf32>
    %108 = vector.shape_cast %107 : vector<8x8xf32> to vector<1x8x8xf32>
    %109 = vector.broadcast %108 : vector<1x8x8xf32> to vector<4x8x8xf32>
    %110 = arith.addf %105, %109 : vector<4x8x8xf32>
    %cst_63 = arith.constant dense<0xFF800000> : vector<4x8xf32>
    %111 = vector.multi_reduction <maximumf>, %110, %cst_63 [2] : vector<4x8x8xf32> to vector<4x8xf32>
    %112 = vector.shape_cast %111 : vector<4x8xf32> to vector<4x8x1xf32>
    %113 = vector.broadcast %112 : vector<4x8x1xf32> to vector<4x8x8xf32>
    %114 = arith.subf %110, %113 : vector<4x8x8xf32>
    %115 = math.exp %114 : vector<4x8x8xf32>
    %cst_64 = arith.constant dense<0.000000e+00> : vector<4x8xf32>
    %116 = vector.multi_reduction <add>, %115, %cst_64 [2] : vector<4x8x8xf32> to vector<4x8xf32>
    %117 = vector.shape_cast %116 : vector<4x8xf32> to vector<4x8x1xf32>
    %118 = tpu.reciprocal %117 {approx = true} : vector<4x8x1xf32> -> vector<4x8x1xf32>
    %119 = vector.broadcast %118 : vector<4x8x1xf32> to vector<4x8x8xf32>
    %120 = arith.mulf %115, %119 : vector<4x8x8xf32>
    %121 = arith.truncf %120 : vector<4x8x8xf32> to vector<4x8x8xbf16>
    %122 = arith.truncf %104 : vector<4x8x8xf32> to vector<4x8x8xbf16>
    %cst_65 = arith.constant dense<0.000000e+00> : vector<4x8x8xf32>
    %123 = tpu.matmul %121, %122, %cst_65 {dimension_numbers = #tpu.dot_dimension_numbers<[2], [1], [1], [2], [0, 0, 0, 1, 1, 2], [0], [0]>} : vector<4x8x8xbf16>, vector<4x8x8xbf16>, vector<4x8x8xf32> -> vector<4x8x8xf32>
    %124 = vector.shape_cast %123 : vector<4x8x8xf32> to vector<32x8xf32>
    %125 = vector.extract_strided_slice %42 {offsets = [0, 0, 0], sizes = [1, 8, 16], strides = [1, 1, 1]} : vector<2x8x16xbf16> to vector<1x8x16xbf16>
    %126 = vector.shape_cast %125 : vector<1x8x16xbf16> to vector<8x16xbf16>
    %127 = arith.truncf %124 : vector<32x8xf32> to vector<32x8xbf16>
    %cst_66 = arith.constant dense<0.000000e+00> : vector<32x16xf32>
    %128 = tpu.matmul %127, %126, %cst_66 {dimension_numbers = #tpu.dot_dimension_numbers<[1], [0], [0], [1], [0, 0, 1, 1], [], []>} : vector<32x8xbf16>, vector<8x16xbf16>, vector<32x16xf32> -> vector<32x16xf32>
    %129 = arith.addf %75, %128 : vector<32x16xf32>
    %130 = vector.extract_strided_slice %39 {offsets = [0, 1, 0, 0], sizes = [1, 1, 16, 8], strides = [1, 1, 1, 1]} : vector<3x2x16x8xbf16> to vector<1x1x16x8xbf16>
    %131 = vector.shape_cast %130 : vector<1x1x16x8xbf16> to vector<16x8xbf16>
    %132 = arith.truncf %74 : vector<32x16xf32> to vector<32x16xbf16>
    %cst_67 = arith.constant dense<0.000000e+00> : vector<32x8xf32>
    %133 = tpu.matmul %132, %131, %cst_67 {dimension_numbers = #tpu.dot_dimension_numbers<[1], [0], [0], [1], [0, 0, 1, 1], [], []>} : vector<32x16xbf16>, vector<16x8xbf16>, vector<32x8xf32> -> vector<32x8xf32>
    %134 = vector.extract_strided_slice %40 {offsets = [0, 1, 0, 0], sizes = [1, 1, 1, 8], strides = [1, 1, 1, 1]} : vector<3x2x1x8xf32> to vector<1x1x1x8xf32>
    %135 = vector.shape_cast %134 : vector<1x1x1x8xf32> to vector<1x8xf32>
    %136 = vector.broadcast %135 : vector<1x8xf32> to vector<32x8xf32>
    %137 = arith.addf %133, %136 : vector<32x8xf32>
    %cst_68 = arith.constant 0.353553385 : f32
    %138 = vector.broadcast %cst_68 : f32 to vector<32x8xf32>
    %139 = arith.mulf %137, %138 : vector<32x8xf32>
    %140 = vector.extract_strided_slice %39 {offsets = [1, 1, 0, 0], sizes = [1, 1, 16, 8], strides = [1, 1, 1, 1]} : vector<3x2x16x8xbf16> to vector<1x1x16x8xbf16>
    %141 = vector.shape_cast %140 : vector<1x1x16x8xbf16> to vector<16x8xbf16>
    %142 = arith.truncf %74 : vector<32x16xf32> to vector<32x16xbf16>
    %cst_69 = arith.constant dense<0.000000e+00> : vector<32x8xf32>
    %143 = tpu.matmul %142, %141, %cst_69 {dimension_numbers = #tpu.dot_dimension_numbers<[1], [0], [0], [1], [0, 0, 1, 1], [], []>} : vector<32x16xbf16>, vector<16x8xbf16>, vector<32x8xf32> -> vector<32x8xf32>
    %144 = vector.extract_strided_slice %40 {offsets = [1, 1, 0, 0], sizes = [1, 1, 1, 8], strides = [1, 1, 1, 1]} : vector<3x2x1x8xf32> to vector<1x1x1x8xf32>
    %145 = vector.shape_cast %144 : vector<1x1x1x8xf32> to vector<1x8xf32>
    %146 = vector.broadcast %145 : vector<1x8xf32> to vector<32x8xf32>
    %147 = arith.addf %143, %146 : vector<32x8xf32>
    %148 = vector.extract_strided_slice %39 {offsets = [2, 1, 0, 0], sizes = [1, 1, 16, 8], strides = [1, 1, 1, 1]} : vector<3x2x16x8xbf16> to vector<1x1x16x8xbf16>
    %149 = vector.shape_cast %148 : vector<1x1x16x8xbf16> to vector<16x8xbf16>
    %150 = arith.truncf %74 : vector<32x16xf32> to vector<32x16xbf16>
    %cst_70 = arith.constant dense<0.000000e+00> : vector<32x8xf32>
    %151 = tpu.matmul %150, %149, %cst_70 {dimension_numbers = #tpu.dot_dimension_numbers<[1], [0], [0], [1], [0, 0, 1, 1], [], []>} : vector<32x16xbf16>, vector<16x8xbf16>, vector<32x8xf32> -> vector<32x8xf32>
    %152 = vector.extract_strided_slice %40 {offsets = [2, 1, 0, 0], sizes = [1, 1, 1, 8], strides = [1, 1, 1, 1]} : vector<3x2x1x8xf32> to vector<1x1x1x8xf32>
    %153 = vector.shape_cast %152 : vector<1x1x1x8xf32> to vector<1x8xf32>
    %154 = vector.broadcast %153 : vector<1x8xf32> to vector<32x8xf32>
    %155 = arith.addf %151, %154 : vector<32x8xf32>
    %156 = vector.shape_cast %139 : vector<32x8xf32> to vector<4x8x8xf32>
    %157 = vector.shape_cast %147 : vector<32x8xf32> to vector<4x8x8xf32>
    %158 = vector.shape_cast %155 : vector<32x8xf32> to vector<4x8x8xf32>
    %cst_71 = arith.constant dense<0.000000e+00> : vector<4x8x8xf32>
    %159 = tpu.matmul %156, %157, %cst_71 {dimension_numbers = #tpu.dot_dimension_numbers<[2], [2], [1], [1], [0, 0, 0, 1, 1, 1], [0], [0]>} : vector<4x8x8xf32>, vector<4x8x8xf32>, vector<4x8x8xf32> -> vector<4x8x8xf32>
    %160 = vector.extract_strided_slice %41 {offsets = [1, 0, 0], sizes = [1, 8, 8], strides = [1, 1, 1]} : vector<2x8x8xf32> to vector<1x8x8xf32>
    %161 = vector.shape_cast %160 : vector<1x8x8xf32> to vector<8x8xf32>
    %162 = vector.shape_cast %161 : vector<8x8xf32> to vector<1x8x8xf32>
    %163 = vector.broadcast %162 : vector<1x8x8xf32> to vector<4x8x8xf32>
    %164 = arith.addf %159, %163 : vector<4x8x8xf32>
    %cst_72 = arith.constant dense<0xFF800000> : vector<4x8xf32>
    %165 = vector.multi_reduction <maximumf>, %164, %cst_72 [2] : vector<4x8x8xf32> to vector<4x8xf32>
    %166 = vector.shape_cast %165 : vector<4x8xf32> to vector<4x8x1xf32>
    %167 = vector.broadcast %166 : vector<4x8x1xf32> to vector<4x8x8xf32>
    %168 = arith.subf %164, %167 : vector<4x8x8xf32>
    %169 = math.exp %168 : vector<4x8x8xf32>
    %cst_73 = arith.constant dense<0.000000e+00> : vector<4x8xf32>
    %170 = vector.multi_reduction <add>, %169, %cst_73 [2] : vector<4x8x8xf32> to vector<4x8xf32>
    %171 = vector.shape_cast %170 : vector<4x8xf32> to vector<4x8x1xf32>
    %172 = tpu.reciprocal %171 {approx = true} : vector<4x8x1xf32> -> vector<4x8x1xf32>
    %173 = vector.broadcast %172 : vector<4x8x1xf32> to vector<4x8x8xf32>
    %174 = arith.mulf %169, %173 : vector<4x8x8xf32>
    %175 = arith.truncf %174 : vector<4x8x8xf32> to vector<4x8x8xbf16>
    %176 = arith.truncf %158 : vector<4x8x8xf32> to vector<4x8x8xbf16>
    %cst_74 = arith.constant dense<0.000000e+00> : vector<4x8x8xf32>
    %177 = tpu.matmul %175, %176, %cst_74 {dimension_numbers = #tpu.dot_dimension_numbers<[2], [1], [1], [2], [0, 0, 0, 1, 1, 2], [0], [0]>} : vector<4x8x8xbf16>, vector<4x8x8xbf16>, vector<4x8x8xf32> -> vector<4x8x8xf32>
    %178 = vector.shape_cast %177 : vector<4x8x8xf32> to vector<32x8xf32>
    %179 = vector.extract_strided_slice %42 {offsets = [1, 0, 0], sizes = [1, 8, 16], strides = [1, 1, 1]} : vector<2x8x16xbf16> to vector<1x8x16xbf16>
    %180 = vector.shape_cast %179 : vector<1x8x16xbf16> to vector<8x16xbf16>
    %181 = arith.truncf %178 : vector<32x8xf32> to vector<32x8xbf16>
    %cst_75 = arith.constant dense<0.000000e+00> : vector<32x16xf32>
    %182 = tpu.matmul %181, %180, %cst_75 {dimension_numbers = #tpu.dot_dimension_numbers<[1], [0], [0], [1], [0, 0, 1, 1], [], []>} : vector<32x8xbf16>, vector<8x16xbf16>, vector<32x16xf32> -> vector<32x16xf32>
    %183 = arith.addf %129, %182 : vector<32x16xf32>
    %184 = vector.broadcast %43 : vector<1x16xf32> to vector<32x16xf32>
    %185 = arith.addf %183, %184 : vector<32x16xf32>
    %cst_76 = arith.constant dense<0.000000e+00> : vector<32x16xf32>
    %186 = tpu.matmul %34, %185, %cst_76 {dimension_numbers = #tpu.dot_dimension_numbers<[1], [0], [0], [1], [0, 0, 1, 1], [], []>} : vector<32x32xf32>, vector<32x16xf32>, vector<32x16xf32> -> vector<32x16xf32>
    %187 = arith.addf %32, %186 : vector<32x16xf32>
    %cst_77 = arith.constant dense<0.000000e+00> : vector<32xf32>
    %188 = vector.multi_reduction <add>, %187, %cst_77 [1] : vector<32x16xf32> to vector<32xf32>
    %189 = vector.shape_cast %188 : vector<32xf32> to vector<32x1xf32>
    %cst_78 = arith.constant 1.600000e+01 : f32
    %190 = vector.broadcast %cst_78 : f32 to vector<32x1xf32>
    %191 = arith.divf %189, %190 : vector<32x1xf32>
    %192 = vector.broadcast %191 : vector<32x1xf32> to vector<32x16xf32>
    %193 = arith.subf %187, %192 : vector<32x16xf32>
    %194 = arith.mulf %193, %193 : vector<32x16xf32>
    %cst_79 = arith.constant dense<0.000000e+00> : vector<32xf32>
    %195 = vector.multi_reduction <add>, %194, %cst_79 [1] : vector<32x16xf32> to vector<32xf32>
    %196 = vector.shape_cast %195 : vector<32xf32> to vector<32x1xf32>
    %cst_80 = arith.constant 1.600000e+01 : f32
    %197 = vector.broadcast %cst_80 : f32 to vector<32x1xf32>
    %198 = arith.divf %196, %197 : vector<32x1xf32>
    %199 = vector.broadcast %191 : vector<32x1xf32> to vector<32x16xf32>
    %200 = arith.subf %187, %199 : vector<32x16xf32>
    %cst_81 = arith.constant 9.99999974E-6 : f32
    %201 = vector.broadcast %cst_81 : f32 to vector<32x1xf32>
    %202 = arith.addf %198, %201 : vector<32x1xf32>
    %203 = math.rsqrt %202 : vector<32x1xf32>
    %204 = vector.broadcast %203 : vector<32x1xf32> to vector<32x16xf32>
    %205 = arith.mulf %200, %204 : vector<32x16xf32>
    %206 = vector.broadcast %45 : vector<1x16xf32> to vector<32x16xf32>
    %207 = arith.mulf %205, %206 : vector<32x16xf32>
    %208 = vector.broadcast %47 : vector<1x16xf32> to vector<32x16xf32>
    %209 = arith.addf %207, %208 : vector<32x16xf32>
    %210 = arith.truncf %209 : vector<32x16xf32> to vector<32x16xbf16>
    %cst_82 = arith.constant dense<0.000000e+00> : vector<32x64xf32>
    %211 = tpu.matmul %210, %48, %cst_82 {dimension_numbers = #tpu.dot_dimension_numbers<[1], [0], [0], [1], [0, 0, 1, 1], [], []>} : vector<32x16xbf16>, vector<16x64xbf16>, vector<32x64xf32> -> vector<32x64xf32>
    %212 = vector.broadcast %49 : vector<1x64xf32> to vector<32x64xf32>
    %213 = arith.addf %211, %212 : vector<32x64xf32>
    %cst_83 = arith.constant 5.000000e-01 : f32
    %214 = vector.broadcast %cst_83 : f32 to vector<32x64xf32>
    %215 = arith.mulf %214, %213 : vector<32x64xf32>
    %cst_84 = arith.constant 0.707106769 : f32
    %216 = vector.broadcast %cst_84 : f32 to vector<32x64xf32>
    %217 = arith.mulf %213, %216 : vector<32x64xf32>
    %218 = math.erf %217 : vector<32x64xf32>
    %cst_85 = arith.constant 1.000000e+00 : f32
    %219 = vector.broadcast %cst_85 : f32 to vector<32x64xf32>
    %220 = arith.addf %219, %218 : vector<32x64xf32>
    %221 = arith.mulf %215, %220 : vector<32x64xf32>
    %222 = arith.truncf %221 : vector<32x64xf32> to vector<32x64xbf16>
    %cst_86 = arith.constant dense<0.000000e+00> : vector<32x16xf32>
    %223 = tpu.matmul %222, %50, %cst_86 {dimension_numbers = #tpu.dot_dimension_numbers<[1], [0], [0], [1], [0, 0, 1, 1], [], []>} : vector<32x64xbf16>, vector<64x16xbf16>, vector<32x16xf32> -> vector<32x16xf32>
    %224 = vector.broadcast %51 : vector<1x16xf32> to vector<32x16xf32>
    %225 = arith.addf %223, %224 : vector<32x16xf32>
    %226 = arith.addf %187, %225 : vector<32x16xf32>
    %c0_87 = arith.constant 0 : index
    %c0_88 = arith.constant 0 : index
    %227 = vector.load %arg21[%c0_87, %c0_88] : memref<32x32xf32, #tpu.memory_space<vmem>>, vector<32x32xf32>
    %c0_89 = arith.constant 0 : index
    %c0_90 = arith.constant 0 : index
    %228 = vector.load %arg22[%c0_89, %c0_90] : memref<32x32xf32, #tpu.memory_space<vmem>>, vector<32x32xf32>
    %c0_91 = arith.constant 0 : index
    %c0_92 = arith.constant 0 : index
    %229 = vector.load %arg23[%c0_91, %c0_92] : memref<1x16xbf16, #tpu.memory_space<vmem>>, vector<1x16xbf16>
    %230 = arith.extf %229 : vector<1x16xbf16> to vector<1x16xf32>
    %c0_93 = arith.constant 0 : index
    %c0_94 = arith.constant 0 : index
    %231 = vector.load %arg24[%c0_93, %c0_94] : memref<1x16xbf16, #tpu.memory_space<vmem>>, vector<1x16xbf16>
    %232 = arith.extf %231 : vector<1x16xbf16> to vector<1x16xf32>
    %c0_95 = arith.constant 0 : index
    %c0_96 = arith.constant 0 : index
    %c0_97 = arith.constant 0 : index
    %c0_98 = arith.constant 0 : index
    %233 = vector.load %arg25[%c0_95, %c0_96, %c0_97, %c0_98] : memref<3x2x16x8xbf16, #tpu.memory_space<vmem>>, vector<3x2x16x8xbf16>
    %c0_99 = arith.constant 0 : index
    %c0_100 = arith.constant 0 : index
    %c0_101 = arith.constant 0 : index
    %c0_102 = arith.constant 0 : index
    %234 = vector.load %arg26[%c0_99, %c0_100, %c0_101, %c0_102] : memref<3x2x1x8xf32, #tpu.memory_space<vmem>>, vector<3x2x1x8xf32>
    %c0_103 = arith.constant 0 : index
    %c0_104 = arith.constant 0 : index
    %c0_105 = arith.constant 0 : index
    %235 = vector.load %arg27[%c0_103, %c0_104, %c0_105] : memref<2x8x8xf32, #tpu.memory_space<vmem>>, vector<2x8x8xf32>
    %c0_106 = arith.constant 0 : index
    %c0_107 = arith.constant 0 : index
    %c0_108 = arith.constant 0 : index
    %236 = vector.load %arg28[%c0_106, %c0_107, %c0_108] : memref<4x8x8xf32, #tpu.memory_space<vmem>>, vector<4x8x8xf32>
    %c0_109 = arith.constant 0 : index
    %c0_110 = arith.constant 0 : index
    %c0_111 = arith.constant 0 : index
    %237 = vector.load %arg29[%c0_109, %c0_110, %c0_111] : memref<2x8x16xbf16, #tpu.memory_space<vmem>>, vector<2x8x16xbf16>
    %c0_112 = arith.constant 0 : index
    %c0_113 = arith.constant 0 : index
    %238 = vector.load %arg30[%c0_112, %c0_113] : memref<1x16xf32, #tpu.memory_space<vmem>>, vector<1x16xf32>
    %c0_114 = arith.constant 0 : index
    %c0_115 = arith.constant 0 : index
    %239 = vector.load %arg31[%c0_114, %c0_115] : memref<1x16xbf16, #tpu.memory_space<vmem>>, vector<1x16xbf16>
    %240 = arith.extf %239 : vector<1x16xbf16> to vector<1x16xf32>
    %c0_116 = arith.constant 0 : index
    %c0_117 = arith.constant 0 : index
    %241 = vector.load %arg32[%c0_116, %c0_117] : memref<1x16xbf16, #tpu.memory_space<vmem>>, vector<1x16xbf16>
    %242 = arith.extf %241 : vector<1x16xbf16> to vector<1x16xf32>
    %c0_118 = arith.constant 0 : index
    %c0_119 = arith.constant 0 : index
    %243 = vector.load %arg33[%c0_118, %c0_119] : memref<16x64xbf16, #tpu.memory_space<vmem>>, vector<16x64xbf16>
    %c0_120 = arith.constant 0 : index
    %c0_121 = arith.constant 0 : index
    %244 = vector.load %arg34[%c0_120, %c0_121] : memref<1x64xf32, #tpu.memory_space<vmem>>, vector<1x64xf32>
    %c0_122 = arith.constant 0 : index
    %c0_123 = arith.constant 0 : index
    %245 = vector.load %arg35[%c0_122, %c0_123] : memref<64x16xbf16, #tpu.memory_space<vmem>>, vector<64x16xbf16>
    %c0_124 = arith.constant 0 : index
    %c0_125 = arith.constant 0 : index
    %246 = vector.load %arg36[%c0_124, %c0_125] : memref<1x16xf32, #tpu.memory_space<vmem>>, vector<1x16xf32>
    %cst_126 = arith.constant dense<0.000000e+00> : vector<32x16xf32>
    %247 = tpu.matmul %227, %226, %cst_126 {dimension_numbers = #tpu.dot_dimension_numbers<[1], [0], [0], [1], [0, 0, 1, 1], [], []>} : vector<32x32xf32>, vector<32x16xf32>, vector<32x16xf32> -> vector<32x16xf32>
    %cst_127 = arith.constant dense<0.000000e+00> : vector<32xf32>
    %248 = vector.multi_reduction <add>, %247, %cst_127 [1] : vector<32x16xf32> to vector<32xf32>
    %249 = vector.shape_cast %248 : vector<32xf32> to vector<32x1xf32>
    %cst_128 = arith.constant 1.600000e+01 : f32
    %250 = vector.broadcast %cst_128 : f32 to vector<32x1xf32>
    %251 = arith.divf %249, %250 : vector<32x1xf32>
    %252 = vector.broadcast %251 : vector<32x1xf32> to vector<32x16xf32>
    %253 = arith.subf %247, %252 : vector<32x16xf32>
    %254 = arith.mulf %253, %253 : vector<32x16xf32>
    %cst_129 = arith.constant dense<0.000000e+00> : vector<32xf32>
    %255 = vector.multi_reduction <add>, %254, %cst_129 [1] : vector<32x16xf32> to vector<32xf32>
    %256 = vector.shape_cast %255 : vector<32xf32> to vector<32x1xf32>
    %cst_130 = arith.constant 1.600000e+01 : f32
    %257 = vector.broadcast %cst_130 : f32 to vector<32x1xf32>
    %258 = arith.divf %256, %257 : vector<32x1xf32>
    %259 = vector.broadcast %251 : vector<32x1xf32> to vector<32x16xf32>
    %260 = arith.subf %247, %259 : vector<32x16xf32>
    %cst_131 = arith.constant 9.99999974E-6 : f32
    %261 = vector.broadcast %cst_131 : f32 to vector<32x1xf32>
    %262 = arith.addf %258, %261 : vector<32x1xf32>
    %263 = math.rsqrt %262 : vector<32x1xf32>
    %264 = vector.broadcast %263 : vector<32x1xf32> to vector<32x16xf32>
    %265 = arith.mulf %260, %264 : vector<32x16xf32>
    %266 = vector.broadcast %230 : vector<1x16xf32> to vector<32x16xf32>
    %267 = arith.mulf %265, %266 : vector<32x16xf32>
    %268 = vector.broadcast %232 : vector<1x16xf32> to vector<32x16xf32>
    %269 = arith.addf %267, %268 : vector<32x16xf32>
    %cst_132 = arith.constant 0.000000e+00 : f32
    %270 = vector.broadcast %cst_132 : f32 to vector<32x16xf32>
    %271 = vector.extract_strided_slice %233 {offsets = [0, 0, 0, 0], sizes = [1, 1, 16, 8], strides = [1, 1, 1, 1]} : vector<3x2x16x8xbf16> to vector<1x1x16x8xbf16>
    %272 = vector.shape_cast %271 : vector<1x1x16x8xbf16> to vector<16x8xbf16>
    %273 = arith.truncf %269 : vector<32x16xf32> to vector<32x16xbf16>
    %cst_133 = arith.constant dense<0.000000e+00> : vector<32x8xf32>
    %274 = tpu.matmul %273, %272, %cst_133 {dimension_numbers = #tpu.dot_dimension_numbers<[1], [0], [0], [1], [0, 0, 1, 1], [], []>} : vector<32x16xbf16>, vector<16x8xbf16>, vector<32x8xf32> -> vector<32x8xf32>
    %275 = vector.extract_strided_slice %234 {offsets = [0, 0, 0, 0], sizes = [1, 1, 1, 8], strides = [1, 1, 1, 1]} : vector<3x2x1x8xf32> to vector<1x1x1x8xf32>
    %276 = vector.shape_cast %275 : vector<1x1x1x8xf32> to vector<1x8xf32>
    %277 = vector.broadcast %276 : vector<1x8xf32> to vector<32x8xf32>
    %278 = arith.addf %274, %277 : vector<32x8xf32>
    %cst_134 = arith.constant 0.353553385 : f32
    %279 = vector.broadcast %cst_134 : f32 to vector<32x8xf32>
    %280 = arith.mulf %278, %279 : vector<32x8xf32>
    %281 = vector.extract_strided_slice %233 {offsets = [1, 0, 0, 0], sizes = [1, 1, 16, 8], strides = [1, 1, 1, 1]} : vector<3x2x16x8xbf16> to vector<1x1x16x8xbf16>
    %282 = vector.shape_cast %281 : vector<1x1x16x8xbf16> to vector<16x8xbf16>
    %283 = arith.truncf %269 : vector<32x16xf32> to vector<32x16xbf16>
    %cst_135 = arith.constant dense<0.000000e+00> : vector<32x8xf32>
    %284 = tpu.matmul %283, %282, %cst_135 {dimension_numbers = #tpu.dot_dimension_numbers<[1], [0], [0], [1], [0, 0, 1, 1], [], []>} : vector<32x16xbf16>, vector<16x8xbf16>, vector<32x8xf32> -> vector<32x8xf32>
    %285 = vector.extract_strided_slice %234 {offsets = [1, 0, 0, 0], sizes = [1, 1, 1, 8], strides = [1, 1, 1, 1]} : vector<3x2x1x8xf32> to vector<1x1x1x8xf32>
    %286 = vector.shape_cast %285 : vector<1x1x1x8xf32> to vector<1x8xf32>
    %287 = vector.broadcast %286 : vector<1x8xf32> to vector<32x8xf32>
    %288 = arith.addf %284, %287 : vector<32x8xf32>
    %289 = vector.extract_strided_slice %233 {offsets = [2, 0, 0, 0], sizes = [1, 1, 16, 8], strides = [1, 1, 1, 1]} : vector<3x2x16x8xbf16> to vector<1x1x16x8xbf16>
    %290 = vector.shape_cast %289 : vector<1x1x16x8xbf16> to vector<16x8xbf16>
    %291 = arith.truncf %269 : vector<32x16xf32> to vector<32x16xbf16>
    %cst_136 = arith.constant dense<0.000000e+00> : vector<32x8xf32>
    %292 = tpu.matmul %291, %290, %cst_136 {dimension_numbers = #tpu.dot_dimension_numbers<[1], [0], [0], [1], [0, 0, 1, 1], [], []>} : vector<32x16xbf16>, vector<16x8xbf16>, vector<32x8xf32> -> vector<32x8xf32>
    %293 = vector.extract_strided_slice %234 {offsets = [2, 0, 0, 0], sizes = [1, 1, 1, 8], strides = [1, 1, 1, 1]} : vector<3x2x1x8xf32> to vector<1x1x1x8xf32>
    %294 = vector.shape_cast %293 : vector<1x1x1x8xf32> to vector<1x8xf32>
    %295 = vector.broadcast %294 : vector<1x8xf32> to vector<32x8xf32>
    %296 = arith.addf %292, %295 : vector<32x8xf32>
    %297 = vector.shape_cast %280 : vector<32x8xf32> to vector<4x8x8xf32>
    %298 = vector.shape_cast %288 : vector<32x8xf32> to vector<4x8x8xf32>
    %299 = vector.shape_cast %296 : vector<32x8xf32> to vector<4x8x8xf32>
    %cst_137 = arith.constant dense<0.000000e+00> : vector<4x8x8xf32>
    %300 = tpu.matmul %297, %298, %cst_137 {dimension_numbers = #tpu.dot_dimension_numbers<[2], [2], [1], [1], [0, 0, 0, 1, 1, 1], [0], [0]>} : vector<4x8x8xf32>, vector<4x8x8xf32>, vector<4x8x8xf32> -> vector<4x8x8xf32>
    %301 = vector.extract_strided_slice %235 {offsets = [0, 0, 0], sizes = [1, 8, 8], strides = [1, 1, 1]} : vector<2x8x8xf32> to vector<1x8x8xf32>
    %302 = vector.shape_cast %301 : vector<1x8x8xf32> to vector<8x8xf32>
    %303 = vector.shape_cast %302 : vector<8x8xf32> to vector<1x8x8xf32>
    %304 = vector.broadcast %303 : vector<1x8x8xf32> to vector<4x8x8xf32>
    %305 = arith.addf %300, %304 : vector<4x8x8xf32>
    %306 = arith.addf %305, %236 : vector<4x8x8xf32>
    %cst_138 = arith.constant dense<0xFF800000> : vector<4x8xf32>
    %307 = vector.multi_reduction <maximumf>, %306, %cst_138 [2] : vector<4x8x8xf32> to vector<4x8xf32>
    %308 = vector.shape_cast %307 : vector<4x8xf32> to vector<4x8x1xf32>
    %309 = vector.broadcast %308 : vector<4x8x1xf32> to vector<4x8x8xf32>
    %310 = arith.subf %306, %309 : vector<4x8x8xf32>
    %311 = math.exp %310 : vector<4x8x8xf32>
    %cst_139 = arith.constant dense<0.000000e+00> : vector<4x8xf32>
    %312 = vector.multi_reduction <add>, %311, %cst_139 [2] : vector<4x8x8xf32> to vector<4x8xf32>
    %313 = vector.shape_cast %312 : vector<4x8xf32> to vector<4x8x1xf32>
    %314 = tpu.reciprocal %313 {approx = true} : vector<4x8x1xf32> -> vector<4x8x1xf32>
    %315 = vector.broadcast %314 : vector<4x8x1xf32> to vector<4x8x8xf32>
    %316 = arith.mulf %311, %315 : vector<4x8x8xf32>
    %317 = arith.truncf %316 : vector<4x8x8xf32> to vector<4x8x8xbf16>
    %318 = arith.truncf %299 : vector<4x8x8xf32> to vector<4x8x8xbf16>
    %cst_140 = arith.constant dense<0.000000e+00> : vector<4x8x8xf32>
    %319 = tpu.matmul %317, %318, %cst_140 {dimension_numbers = #tpu.dot_dimension_numbers<[2], [1], [1], [2], [0, 0, 0, 1, 1, 2], [0], [0]>} : vector<4x8x8xbf16>, vector<4x8x8xbf16>, vector<4x8x8xf32> -> vector<4x8x8xf32>
    %320 = vector.shape_cast %319 : vector<4x8x8xf32> to vector<32x8xf32>
    %321 = vector.extract_strided_slice %237 {offsets = [0, 0, 0], sizes = [1, 8, 16], strides = [1, 1, 1]} : vector<2x8x16xbf16> to vector<1x8x16xbf16>
    %322 = vector.shape_cast %321 : vector<1x8x16xbf16> to vector<8x16xbf16>
    %323 = arith.truncf %320 : vector<32x8xf32> to vector<32x8xbf16>
    %cst_141 = arith.constant dense<0.000000e+00> : vector<32x16xf32>
    %324 = tpu.matmul %323, %322, %cst_141 {dimension_numbers = #tpu.dot_dimension_numbers<[1], [0], [0], [1], [0, 0, 1, 1], [], []>} : vector<32x8xbf16>, vector<8x16xbf16>, vector<32x16xf32> -> vector<32x16xf32>
    %325 = arith.addf %270, %324 : vector<32x16xf32>
    %326 = vector.extract_strided_slice %233 {offsets = [0, 1, 0, 0], sizes = [1, 1, 16, 8], strides = [1, 1, 1, 1]} : vector<3x2x16x8xbf16> to vector<1x1x16x8xbf16>
    %327 = vector.shape_cast %326 : vector<1x1x16x8xbf16> to vector<16x8xbf16>
    %328 = arith.truncf %269 : vector<32x16xf32> to vector<32x16xbf16>
    %cst_142 = arith.constant dense<0.000000e+00> : vector<32x8xf32>
    %329 = tpu.matmul %328, %327, %cst_142 {dimension_numbers = #tpu.dot_dimension_numbers<[1], [0], [0], [1], [0, 0, 1, 1], [], []>} : vector<32x16xbf16>, vector<16x8xbf16>, vector<32x8xf32> -> vector<32x8xf32>
    %330 = vector.extract_strided_slice %234 {offsets = [0, 1, 0, 0], sizes = [1, 1, 1, 8], strides = [1, 1, 1, 1]} : vector<3x2x1x8xf32> to vector<1x1x1x8xf32>
    %331 = vector.shape_cast %330 : vector<1x1x1x8xf32> to vector<1x8xf32>
    %332 = vector.broadcast %331 : vector<1x8xf32> to vector<32x8xf32>
    %333 = arith.addf %329, %332 : vector<32x8xf32>
    %cst_143 = arith.constant 0.353553385 : f32
    %334 = vector.broadcast %cst_143 : f32 to vector<32x8xf32>
    %335 = arith.mulf %333, %334 : vector<32x8xf32>
    %336 = vector.extract_strided_slice %233 {offsets = [1, 1, 0, 0], sizes = [1, 1, 16, 8], strides = [1, 1, 1, 1]} : vector<3x2x16x8xbf16> to vector<1x1x16x8xbf16>
    %337 = vector.shape_cast %336 : vector<1x1x16x8xbf16> to vector<16x8xbf16>
    %338 = arith.truncf %269 : vector<32x16xf32> to vector<32x16xbf16>
    %cst_144 = arith.constant dense<0.000000e+00> : vector<32x8xf32>
    %339 = tpu.matmul %338, %337, %cst_144 {dimension_numbers = #tpu.dot_dimension_numbers<[1], [0], [0], [1], [0, 0, 1, 1], [], []>} : vector<32x16xbf16>, vector<16x8xbf16>, vector<32x8xf32> -> vector<32x8xf32>
    %340 = vector.extract_strided_slice %234 {offsets = [1, 1, 0, 0], sizes = [1, 1, 1, 8], strides = [1, 1, 1, 1]} : vector<3x2x1x8xf32> to vector<1x1x1x8xf32>
    %341 = vector.shape_cast %340 : vector<1x1x1x8xf32> to vector<1x8xf32>
    %342 = vector.broadcast %341 : vector<1x8xf32> to vector<32x8xf32>
    %343 = arith.addf %339, %342 : vector<32x8xf32>
    %344 = vector.extract_strided_slice %233 {offsets = [2, 1, 0, 0], sizes = [1, 1, 16, 8], strides = [1, 1, 1, 1]} : vector<3x2x16x8xbf16> to vector<1x1x16x8xbf16>
    %345 = vector.shape_cast %344 : vector<1x1x16x8xbf16> to vector<16x8xbf16>
    %346 = arith.truncf %269 : vector<32x16xf32> to vector<32x16xbf16>
    %cst_145 = arith.constant dense<0.000000e+00> : vector<32x8xf32>
    %347 = tpu.matmul %346, %345, %cst_145 {dimension_numbers = #tpu.dot_dimension_numbers<[1], [0], [0], [1], [0, 0, 1, 1], [], []>} : vector<32x16xbf16>, vector<16x8xbf16>, vector<32x8xf32> -> vector<32x8xf32>
    %348 = vector.extract_strided_slice %234 {offsets = [2, 1, 0, 0], sizes = [1, 1, 1, 8], strides = [1, 1, 1, 1]} : vector<3x2x1x8xf32> to vector<1x1x1x8xf32>
    %349 = vector.shape_cast %348 : vector<1x1x1x8xf32> to vector<1x8xf32>
    %350 = vector.broadcast %349 : vector<1x8xf32> to vector<32x8xf32>
    %351 = arith.addf %347, %350 : vector<32x8xf32>
    %352 = vector.shape_cast %335 : vector<32x8xf32> to vector<4x8x8xf32>
    %353 = vector.shape_cast %343 : vector<32x8xf32> to vector<4x8x8xf32>
    %354 = vector.shape_cast %351 : vector<32x8xf32> to vector<4x8x8xf32>
    %cst_146 = arith.constant dense<0.000000e+00> : vector<4x8x8xf32>
    %355 = tpu.matmul %352, %353, %cst_146 {dimension_numbers = #tpu.dot_dimension_numbers<[2], [2], [1], [1], [0, 0, 0, 1, 1, 1], [0], [0]>} : vector<4x8x8xf32>, vector<4x8x8xf32>, vector<4x8x8xf32> -> vector<4x8x8xf32>
    %356 = vector.extract_strided_slice %235 {offsets = [1, 0, 0], sizes = [1, 8, 8], strides = [1, 1, 1]} : vector<2x8x8xf32> to vector<1x8x8xf32>
    %357 = vector.shape_cast %356 : vector<1x8x8xf32> to vector<8x8xf32>
    %358 = vector.shape_cast %357 : vector<8x8xf32> to vector<1x8x8xf32>
    %359 = vector.broadcast %358 : vector<1x8x8xf32> to vector<4x8x8xf32>
    %360 = arith.addf %355, %359 : vector<4x8x8xf32>
    %361 = arith.addf %360, %236 : vector<4x8x8xf32>
    %cst_147 = arith.constant dense<0xFF800000> : vector<4x8xf32>
    %362 = vector.multi_reduction <maximumf>, %361, %cst_147 [2] : vector<4x8x8xf32> to vector<4x8xf32>
    %363 = vector.shape_cast %362 : vector<4x8xf32> to vector<4x8x1xf32>
    %364 = vector.broadcast %363 : vector<4x8x1xf32> to vector<4x8x8xf32>
    %365 = arith.subf %361, %364 : vector<4x8x8xf32>
    %366 = math.exp %365 : vector<4x8x8xf32>
    %cst_148 = arith.constant dense<0.000000e+00> : vector<4x8xf32>
    %367 = vector.multi_reduction <add>, %366, %cst_148 [2] : vector<4x8x8xf32> to vector<4x8xf32>
    %368 = vector.shape_cast %367 : vector<4x8xf32> to vector<4x8x1xf32>
    %369 = tpu.reciprocal %368 {approx = true} : vector<4x8x1xf32> -> vector<4x8x1xf32>
    %370 = vector.broadcast %369 : vector<4x8x1xf32> to vector<4x8x8xf32>
    %371 = arith.mulf %366, %370 : vector<4x8x8xf32>
    %372 = arith.truncf %371 : vector<4x8x8xf32> to vector<4x8x8xbf16>
    %373 = arith.truncf %354 : vector<4x8x8xf32> to vector<4x8x8xbf16>
    %cst_149 = arith.constant dense<0.000000e+00> : vector<4x8x8xf32>
    %374 = tpu.matmul %372, %373, %cst_149 {dimension_numbers = #tpu.dot_dimension_numbers<[2], [1], [1], [2], [0, 0, 0, 1, 1, 2], [0], [0]>} : vector<4x8x8xbf16>, vector<4x8x8xbf16>, vector<4x8x8xf32> -> vector<4x8x8xf32>
    %375 = vector.shape_cast %374 : vector<4x8x8xf32> to vector<32x8xf32>
    %376 = vector.extract_strided_slice %237 {offsets = [1, 0, 0], sizes = [1, 8, 16], strides = [1, 1, 1]} : vector<2x8x16xbf16> to vector<1x8x16xbf16>
    %377 = vector.shape_cast %376 : vector<1x8x16xbf16> to vector<8x16xbf16>
    %378 = arith.truncf %375 : vector<32x8xf32> to vector<32x8xbf16>
    %cst_150 = arith.constant dense<0.000000e+00> : vector<32x16xf32>
    %379 = tpu.matmul %378, %377, %cst_150 {dimension_numbers = #tpu.dot_dimension_numbers<[1], [0], [0], [1], [0, 0, 1, 1], [], []>} : vector<32x8xbf16>, vector<8x16xbf16>, vector<32x16xf32> -> vector<32x16xf32>
    %380 = arith.addf %325, %379 : vector<32x16xf32>
    %381 = vector.broadcast %238 : vector<1x16xf32> to vector<32x16xf32>
    %382 = arith.addf %380, %381 : vector<32x16xf32>
    %cst_151 = arith.constant dense<0.000000e+00> : vector<32x16xf32>
    %383 = tpu.matmul %228, %382, %cst_151 {dimension_numbers = #tpu.dot_dimension_numbers<[1], [0], [0], [1], [0, 0, 1, 1], [], []>} : vector<32x32xf32>, vector<32x16xf32>, vector<32x16xf32> -> vector<32x16xf32>
    %384 = arith.addf %226, %383 : vector<32x16xf32>
    %cst_152 = arith.constant dense<0.000000e+00> : vector<32xf32>
    %385 = vector.multi_reduction <add>, %384, %cst_152 [1] : vector<32x16xf32> to vector<32xf32>
    %386 = vector.shape_cast %385 : vector<32xf32> to vector<32x1xf32>
    %cst_153 = arith.constant 1.600000e+01 : f32
    %387 = vector.broadcast %cst_153 : f32 to vector<32x1xf32>
    %388 = arith.divf %386, %387 : vector<32x1xf32>
    %389 = vector.broadcast %388 : vector<32x1xf32> to vector<32x16xf32>
    %390 = arith.subf %384, %389 : vector<32x16xf32>
    %391 = arith.mulf %390, %390 : vector<32x16xf32>
    %cst_154 = arith.constant dense<0.000000e+00> : vector<32xf32>
    %392 = vector.multi_reduction <add>, %391, %cst_154 [1] : vector<32x16xf32> to vector<32xf32>
    %393 = vector.shape_cast %392 : vector<32xf32> to vector<32x1xf32>
    %cst_155 = arith.constant 1.600000e+01 : f32
    %394 = vector.broadcast %cst_155 : f32 to vector<32x1xf32>
    %395 = arith.divf %393, %394 : vector<32x1xf32>
    %396 = vector.broadcast %388 : vector<32x1xf32> to vector<32x16xf32>
    %397 = arith.subf %384, %396 : vector<32x16xf32>
    %cst_156 = arith.constant 9.99999974E-6 : f32
    %398 = vector.broadcast %cst_156 : f32 to vector<32x1xf32>
    %399 = arith.addf %395, %398 : vector<32x1xf32>
    %400 = math.rsqrt %399 : vector<32x1xf32>
    %401 = vector.broadcast %400 : vector<32x1xf32> to vector<32x16xf32>
    %402 = arith.mulf %397, %401 : vector<32x16xf32>
    %403 = vector.broadcast %240 : vector<1x16xf32> to vector<32x16xf32>
    %404 = arith.mulf %402, %403 : vector<32x16xf32>
    %405 = vector.broadcast %242 : vector<1x16xf32> to vector<32x16xf32>
    %406 = arith.addf %404, %405 : vector<32x16xf32>
    %407 = arith.truncf %406 : vector<32x16xf32> to vector<32x16xbf16>
    %cst_157 = arith.constant dense<0.000000e+00> : vector<32x64xf32>
    %408 = tpu.matmul %407, %243, %cst_157 {dimension_numbers = #tpu.dot_dimension_numbers<[1], [0], [0], [1], [0, 0, 1, 1], [], []>} : vector<32x16xbf16>, vector<16x64xbf16>, vector<32x64xf32> -> vector<32x64xf32>
    %409 = vector.broadcast %244 : vector<1x64xf32> to vector<32x64xf32>
    %410 = arith.addf %408, %409 : vector<32x64xf32>
    %cst_158 = arith.constant 5.000000e-01 : f32
    %411 = vector.broadcast %cst_158 : f32 to vector<32x64xf32>
    %412 = arith.mulf %411, %410 : vector<32x64xf32>
    %cst_159 = arith.constant 0.707106769 : f32
    %413 = vector.broadcast %cst_159 : f32 to vector<32x64xf32>
    %414 = arith.mulf %410, %413 : vector<32x64xf32>
    %415 = math.erf %414 : vector<32x64xf32>
    %cst_160 = arith.constant 1.000000e+00 : f32
    %416 = vector.broadcast %cst_160 : f32 to vector<32x64xf32>
    %417 = arith.addf %416, %415 : vector<32x64xf32>
    %418 = arith.mulf %412, %417 : vector<32x64xf32>
    %419 = arith.truncf %418 : vector<32x64xf32> to vector<32x64xbf16>
    %cst_161 = arith.constant dense<0.000000e+00> : vector<32x16xf32>
    %420 = tpu.matmul %419, %245, %cst_161 {dimension_numbers = #tpu.dot_dimension_numbers<[1], [0], [0], [1], [0, 0, 1, 1], [], []>} : vector<32x64xbf16>, vector<64x16xbf16>, vector<32x16xf32> -> vector<32x16xf32>
    %421 = vector.broadcast %246 : vector<1x16xf32> to vector<32x16xf32>
    %422 = arith.addf %420, %421 : vector<32x16xf32>
    %423 = arith.addf %384, %422 : vector<32x16xf32>
    %c0_162 = arith.constant 0 : index
    %c0_163 = arith.constant 0 : index
    %c0_164 = arith.constant 0 : index
    %424 = vector.load %arg37[%c0_162, %c0_163, %c0_164] : memref<4x8x32xf32, #tpu.memory_space<vmem>>, vector<4x8x32xf32>
    %c0_165 = arith.constant 0 : index
    %c0_166 = arith.constant 0 : index
    %425 = vector.load %arg38[%c0_165, %c0_166] : memref<4x16xbf16, #tpu.memory_space<vmem>>, vector<4x16xbf16>
    %426 = arith.extf %425 : vector<4x16xbf16> to vector<4x16xf32>
    %c0_167 = arith.constant 0 : index
    %c0_168 = arith.constant 0 : index
    %427 = vector.load %arg39[%c0_167, %c0_168] : memref<4x16xbf16, #tpu.memory_space<vmem>>, vector<4x16xbf16>
    %428 = arith.extf %427 : vector<4x16xbf16> to vector<4x16xf32>
    %c0_169 = arith.constant 0 : index
    %c0_170 = arith.constant 0 : index
    %c0_171 = arith.constant 0 : index
    %429 = vector.load %arg40[%c0_169, %c0_170, %c0_171] : memref<4x16x32xbf16, #tpu.memory_space<vmem>>, vector<4x16x32xbf16>
    %430 = vector.extract_strided_slice %424 {offsets = [0, 0, 0], sizes = [1, 8, 32], strides = [1, 1, 1]} : vector<4x8x32xf32> to vector<1x8x32xf32>
    %431 = vector.shape_cast %430 : vector<1x8x32xf32> to vector<8x32xf32>
    %cst_172 = arith.constant dense<0.000000e+00> : vector<8x16xf32>
    %432 = tpu.matmul %431, %423, %cst_172 {dimension_numbers = #tpu.dot_dimension_numbers<[1], [0], [0], [1], [0, 0, 1, 1], [], []>} : vector<8x32xf32>, vector<32x16xf32>, vector<8x16xf32> -> vector<8x16xf32>
    %433 = vector.extract_strided_slice %424 {offsets = [1, 0, 0], sizes = [1, 8, 32], strides = [1, 1, 1]} : vector<4x8x32xf32> to vector<1x8x32xf32>
    %434 = vector.shape_cast %433 : vector<1x8x32xf32> to vector<8x32xf32>
    %cst_173 = arith.constant dense<0.000000e+00> : vector<8x16xf32>
    %435 = tpu.matmul %434, %423, %cst_173 {dimension_numbers = #tpu.dot_dimension_numbers<[1], [0], [0], [1], [0, 0, 1, 1], [], []>} : vector<8x32xf32>, vector<32x16xf32>, vector<8x16xf32> -> vector<8x16xf32>
    %436 = vector.extract_strided_slice %424 {offsets = [2, 0, 0], sizes = [1, 8, 32], strides = [1, 1, 1]} : vector<4x8x32xf32> to vector<1x8x32xf32>
    %437 = vector.shape_cast %436 : vector<1x8x32xf32> to vector<8x32xf32>
    %cst_174 = arith.constant dense<0.000000e+00> : vector<8x16xf32>
    %438 = tpu.matmul %437, %423, %cst_174 {dimension_numbers = #tpu.dot_dimension_numbers<[1], [0], [0], [1], [0, 0, 1, 1], [], []>} : vector<8x32xf32>, vector<32x16xf32>, vector<8x16xf32> -> vector<8x16xf32>
    %439 = vector.extract_strided_slice %424 {offsets = [3, 0, 0], sizes = [1, 8, 32], strides = [1, 1, 1]} : vector<4x8x32xf32> to vector<1x8x32xf32>
    %440 = vector.shape_cast %439 : vector<1x8x32xf32> to vector<8x32xf32>
    %cst_175 = arith.constant dense<0.000000e+00> : vector<8x16xf32>
    %441 = tpu.matmul %440, %423, %cst_175 {dimension_numbers = #tpu.dot_dimension_numbers<[1], [0], [0], [1], [0, 0, 1, 1], [], []>} : vector<8x32xf32>, vector<32x16xf32>, vector<8x16xf32> -> vector<8x16xf32>
    %cst_176 = arith.constant dense<0.000000e+00> : vector<8xf32>
    %442 = vector.multi_reduction <add>, %432, %cst_176 [1] : vector<8x16xf32> to vector<8xf32>
    %443 = vector.shape_cast %442 : vector<8xf32> to vector<8x1xf32>
    %cst_177 = arith.constant 0.000000e+00 : f32
    %444 = vector.broadcast %cst_177 : f32 to vector<8x1xf32>
    %445 = arith.addf %444, %443 : vector<8x1xf32>
    %cst_178 = arith.constant dense<0.000000e+00> : vector<8xf32>
    %446 = vector.multi_reduction <add>, %435, %cst_178 [1] : vector<8x16xf32> to vector<8xf32>
    %447 = vector.shape_cast %446 : vector<8xf32> to vector<8x1xf32>
    %448 = arith.addf %445, %447 : vector<8x1xf32>
    %cst_179 = arith.constant dense<0.000000e+00> : vector<8xf32>
    %449 = vector.multi_reduction <add>, %438, %cst_179 [1] : vector<8x16xf32> to vector<8xf32>
    %450 = vector.shape_cast %449 : vector<8xf32> to vector<8x1xf32>
    %451 = arith.addf %448, %450 : vector<8x1xf32>
    %cst_180 = arith.constant dense<0.000000e+00> : vector<8xf32>
    %452 = vector.multi_reduction <add>, %441, %cst_180 [1] : vector<8x16xf32> to vector<8xf32>
    %453 = vector.shape_cast %452 : vector<8xf32> to vector<8x1xf32>
    %454 = arith.addf %451, %453 : vector<8x1xf32>
    %cst_181 = arith.constant 6.400000e+01 : f32
    %455 = vector.broadcast %cst_181 : f32 to vector<8x1xf32>
    %456 = arith.divf %454, %455 : vector<8x1xf32>
    %457 = vector.broadcast %456 : vector<8x1xf32> to vector<8x16xf32>
    %458 = arith.subf %432, %457 : vector<8x16xf32>
    %459 = arith.mulf %458, %458 : vector<8x16xf32>
    %cst_182 = arith.constant dense<0.000000e+00> : vector<8xf32>
    %460 = vector.multi_reduction <add>, %459, %cst_182 [1] : vector<8x16xf32> to vector<8xf32>
    %461 = vector.shape_cast %460 : vector<8xf32> to vector<8x1xf32>
    %cst_183 = arith.constant 0.000000e+00 : f32
    %462 = vector.broadcast %cst_183 : f32 to vector<8x1xf32>
    %463 = arith.addf %462, %461 : vector<8x1xf32>
    %464 = vector.broadcast %456 : vector<8x1xf32> to vector<8x16xf32>
    %465 = arith.subf %435, %464 : vector<8x16xf32>
    %466 = arith.mulf %465, %465 : vector<8x16xf32>
    %cst_184 = arith.constant dense<0.000000e+00> : vector<8xf32>
    %467 = vector.multi_reduction <add>, %466, %cst_184 [1] : vector<8x16xf32> to vector<8xf32>
    %468 = vector.shape_cast %467 : vector<8xf32> to vector<8x1xf32>
    %469 = arith.addf %463, %468 : vector<8x1xf32>
    %470 = vector.broadcast %456 : vector<8x1xf32> to vector<8x16xf32>
    %471 = arith.subf %438, %470 : vector<8x16xf32>
    %472 = arith.mulf %471, %471 : vector<8x16xf32>
    %cst_185 = arith.constant dense<0.000000e+00> : vector<8xf32>
    %473 = vector.multi_reduction <add>, %472, %cst_185 [1] : vector<8x16xf32> to vector<8xf32>
    %474 = vector.shape_cast %473 : vector<8xf32> to vector<8x1xf32>
    %475 = arith.addf %469, %474 : vector<8x1xf32>
    %476 = vector.broadcast %456 : vector<8x1xf32> to vector<8x16xf32>
    %477 = arith.subf %441, %476 : vector<8x16xf32>
    %478 = arith.mulf %477, %477 : vector<8x16xf32>
    %cst_186 = arith.constant dense<0.000000e+00> : vector<8xf32>
    %479 = vector.multi_reduction <add>, %478, %cst_186 [1] : vector<8x16xf32> to vector<8xf32>
    %480 = vector.shape_cast %479 : vector<8xf32> to vector<8x1xf32>
    %481 = arith.addf %475, %480 : vector<8x1xf32>
    %cst_187 = arith.constant 6.400000e+01 : f32
    %482 = vector.broadcast %cst_187 : f32 to vector<8x1xf32>
    %483 = arith.divf %481, %482 : vector<8x1xf32>
    %cst_188 = arith.constant 9.99999974E-6 : f32
    %484 = vector.broadcast %cst_188 : f32 to vector<8x1xf32>
    %485 = arith.addf %483, %484 : vector<8x1xf32>
    %486 = math.rsqrt %485 : vector<8x1xf32>
    %cst_189 = arith.constant 0.000000e+00 : f32
    %487 = vector.broadcast %cst_189 : f32 to vector<8x32xf32>
    %488 = vector.broadcast %456 : vector<8x1xf32> to vector<8x16xf32>
    %489 = arith.subf %432, %488 : vector<8x16xf32>
    %490 = vector.broadcast %486 : vector<8x1xf32> to vector<8x16xf32>
    %491 = arith.mulf %489, %490 : vector<8x16xf32>
    %492 = vector.extract_strided_slice %426 {offsets = [0, 0], sizes = [1, 16], strides = [1, 1]} : vector<4x16xf32> to vector<1x16xf32>
    %493 = vector.broadcast %492 : vector<1x16xf32> to vector<8x16xf32>
    %494 = arith.mulf %491, %493 : vector<8x16xf32>
    %495 = vector.extract_strided_slice %428 {offsets = [0, 0], sizes = [1, 16], strides = [1, 1]} : vector<4x16xf32> to vector<1x16xf32>
    %496 = vector.broadcast %495 : vector<1x16xf32> to vector<8x16xf32>
    %497 = arith.addf %494, %496 : vector<8x16xf32>
    %498 = vector.extract_strided_slice %429 {offsets = [0, 0, 0], sizes = [1, 16, 32], strides = [1, 1, 1]} : vector<4x16x32xbf16> to vector<1x16x32xbf16>
    %499 = vector.shape_cast %498 : vector<1x16x32xbf16> to vector<16x32xbf16>
    %500 = arith.truncf %497 : vector<8x16xf32> to vector<8x16xbf16>
    %cst_190 = arith.constant dense<0.000000e+00> : vector<8x32xf32>
    %501 = tpu.matmul %500, %499, %cst_190 {dimension_numbers = #tpu.dot_dimension_numbers<[1], [0], [0], [1], [0, 0, 1, 1], [], []>} : vector<8x16xbf16>, vector<16x32xbf16>, vector<8x32xf32> -> vector<8x32xf32>
    %502 = arith.addf %487, %501 : vector<8x32xf32>
    %503 = vector.broadcast %456 : vector<8x1xf32> to vector<8x16xf32>
    %504 = arith.subf %435, %503 : vector<8x16xf32>
    %505 = vector.broadcast %486 : vector<8x1xf32> to vector<8x16xf32>
    %506 = arith.mulf %504, %505 : vector<8x16xf32>
    %507 = vector.extract_strided_slice %426 {offsets = [1, 0], sizes = [1, 16], strides = [1, 1]} : vector<4x16xf32> to vector<1x16xf32>
    %508 = vector.broadcast %507 : vector<1x16xf32> to vector<8x16xf32>
    %509 = arith.mulf %506, %508 : vector<8x16xf32>
    %510 = vector.extract_strided_slice %428 {offsets = [1, 0], sizes = [1, 16], strides = [1, 1]} : vector<4x16xf32> to vector<1x16xf32>
    %511 = vector.broadcast %510 : vector<1x16xf32> to vector<8x16xf32>
    %512 = arith.addf %509, %511 : vector<8x16xf32>
    %513 = vector.extract_strided_slice %429 {offsets = [1, 0, 0], sizes = [1, 16, 32], strides = [1, 1, 1]} : vector<4x16x32xbf16> to vector<1x16x32xbf16>
    %514 = vector.shape_cast %513 : vector<1x16x32xbf16> to vector<16x32xbf16>
    %515 = arith.truncf %512 : vector<8x16xf32> to vector<8x16xbf16>
    %cst_191 = arith.constant dense<0.000000e+00> : vector<8x32xf32>
    %516 = tpu.matmul %515, %514, %cst_191 {dimension_numbers = #tpu.dot_dimension_numbers<[1], [0], [0], [1], [0, 0, 1, 1], [], []>} : vector<8x16xbf16>, vector<16x32xbf16>, vector<8x32xf32> -> vector<8x32xf32>
    %517 = arith.addf %502, %516 : vector<8x32xf32>
    %518 = vector.broadcast %456 : vector<8x1xf32> to vector<8x16xf32>
    %519 = arith.subf %438, %518 : vector<8x16xf32>
    %520 = vector.broadcast %486 : vector<8x1xf32> to vector<8x16xf32>
    %521 = arith.mulf %519, %520 : vector<8x16xf32>
    %522 = vector.extract_strided_slice %426 {offsets = [2, 0], sizes = [1, 16], strides = [1, 1]} : vector<4x16xf32> to vector<1x16xf32>
    %523 = vector.broadcast %522 : vector<1x16xf32> to vector<8x16xf32>
    %524 = arith.mulf %521, %523 : vector<8x16xf32>
    %525 = vector.extract_strided_slice %428 {offsets = [2, 0], sizes = [1, 16], strides = [1, 1]} : vector<4x16xf32> to vector<1x16xf32>
    %526 = vector.broadcast %525 : vector<1x16xf32> to vector<8x16xf32>
    %527 = arith.addf %524, %526 : vector<8x16xf32>
    %528 = vector.extract_strided_slice %429 {offsets = [2, 0, 0], sizes = [1, 16, 32], strides = [1, 1, 1]} : vector<4x16x32xbf16> to vector<1x16x32xbf16>
    %529 = vector.shape_cast %528 : vector<1x16x32xbf16> to vector<16x32xbf16>
    %530 = arith.truncf %527 : vector<8x16xf32> to vector<8x16xbf16>
    %cst_192 = arith.constant dense<0.000000e+00> : vector<8x32xf32>
    %531 = tpu.matmul %530, %529, %cst_192 {dimension_numbers = #tpu.dot_dimension_numbers<[1], [0], [0], [1], [0, 0, 1, 1], [], []>} : vector<8x16xbf16>, vector<16x32xbf16>, vector<8x32xf32> -> vector<8x32xf32>
    %532 = arith.addf %517, %531 : vector<8x32xf32>
    %533 = vector.broadcast %456 : vector<8x1xf32> to vector<8x16xf32>
    %534 = arith.subf %441, %533 : vector<8x16xf32>
    %535 = vector.broadcast %486 : vector<8x1xf32> to vector<8x16xf32>
    %536 = arith.mulf %534, %535 : vector<8x16xf32>
    %537 = vector.extract_strided_slice %426 {offsets = [3, 0], sizes = [1, 16], strides = [1, 1]} : vector<4x16xf32> to vector<1x16xf32>
    %538 = vector.broadcast %537 : vector<1x16xf32> to vector<8x16xf32>
    %539 = arith.mulf %536, %538 : vector<8x16xf32>
    %540 = vector.extract_strided_slice %428 {offsets = [3, 0], sizes = [1, 16], strides = [1, 1]} : vector<4x16xf32> to vector<1x16xf32>
    %541 = vector.broadcast %540 : vector<1x16xf32> to vector<8x16xf32>
    %542 = arith.addf %539, %541 : vector<8x16xf32>
    %543 = vector.extract_strided_slice %429 {offsets = [3, 0, 0], sizes = [1, 16, 32], strides = [1, 1, 1]} : vector<4x16x32xbf16> to vector<1x16x32xbf16>
    %544 = vector.shape_cast %543 : vector<1x16x32xbf16> to vector<16x32xbf16>
    %545 = arith.truncf %542 : vector<8x16xf32> to vector<8x16xbf16>
    %cst_193 = arith.constant dense<0.000000e+00> : vector<8x32xf32>
    %546 = tpu.matmul %545, %544, %cst_193 {dimension_numbers = #tpu.dot_dimension_numbers<[1], [0], [0], [1], [0, 0, 1, 1], [], []>} : vector<8x16xbf16>, vector<16x32xbf16>, vector<8x32xf32> -> vector<8x32xf32>
    %547 = arith.addf %532, %546 : vector<8x32xf32>
    %c0_194 = arith.constant 0 : index
    %c0_195 = arith.constant 0 : index
    %548 = vector.load %arg41[%c0_194, %c0_195] : memref<1x32xbf16, #tpu.memory_space<vmem>>, vector<1x32xbf16>
    %549 = arith.extf %548 : vector<1x32xbf16> to vector<1x32xf32>
    %c0_196 = arith.constant 0 : index
    %c0_197 = arith.constant 0 : index
    %550 = vector.load %arg42[%c0_196, %c0_197] : memref<1x32xbf16, #tpu.memory_space<vmem>>, vector<1x32xbf16>
    %551 = arith.extf %550 : vector<1x32xbf16> to vector<1x32xf32>
    %c0_198 = arith.constant 0 : index
    %c0_199 = arith.constant 0 : index
    %c0_200 = arith.constant 0 : index
    %c0_201 = arith.constant 0 : index
    %552 = vector.load %arg43[%c0_198, %c0_199, %c0_200, %c0_201] : memref<3x4x32x8xbf16, #tpu.memory_space<vmem>>, vector<3x4x32x8xbf16>
    %c0_202 = arith.constant 0 : index
    %c0_203 = arith.constant 0 : index
    %c0_204 = arith.constant 0 : index
    %c0_205 = arith.constant 0 : index
    %553 = vector.load %arg44[%c0_202, %c0_203, %c0_204, %c0_205] : memref<3x4x1x8xf32, #tpu.memory_space<vmem>>, vector<3x4x1x8xf32>
    %c0_206 = arith.constant 0 : index
    %c0_207 = arith.constant 0 : index
    %c0_208 = arith.constant 0 : index
    %554 = vector.load %arg45[%c0_206, %c0_207, %c0_208] : memref<4x8x8xf32, #tpu.memory_space<vmem>>, vector<4x8x8xf32>
    %c0_209 = arith.constant 0 : index
    %c0_210 = arith.constant 0 : index
    %c0_211 = arith.constant 0 : index
    %555 = vector.load %arg46[%c0_209, %c0_210, %c0_211] : memref<4x8x32xbf16, #tpu.memory_space<vmem>>, vector<4x8x32xbf16>
    %c0_212 = arith.constant 0 : index
    %c0_213 = arith.constant 0 : index
    %556 = vector.load %arg47[%c0_212, %c0_213] : memref<1x32xf32, #tpu.memory_space<vmem>>, vector<1x32xf32>
    %c0_214 = arith.constant 0 : index
    %c0_215 = arith.constant 0 : index
    %557 = vector.load %arg48[%c0_214, %c0_215] : memref<1x32xbf16, #tpu.memory_space<vmem>>, vector<1x32xbf16>
    %558 = arith.extf %557 : vector<1x32xbf16> to vector<1x32xf32>
    %c0_216 = arith.constant 0 : index
    %c0_217 = arith.constant 0 : index
    %559 = vector.load %arg49[%c0_216, %c0_217] : memref<1x32xbf16, #tpu.memory_space<vmem>>, vector<1x32xbf16>
    %560 = arith.extf %559 : vector<1x32xbf16> to vector<1x32xf32>
    %c0_218 = arith.constant 0 : index
    %c0_219 = arith.constant 0 : index
    %561 = vector.load %arg50[%c0_218, %c0_219] : memref<32x128xbf16, #tpu.memory_space<vmem>>, vector<32x128xbf16>
    %c0_220 = arith.constant 0 : index
    %c0_221 = arith.constant 0 : index
    %562 = vector.load %arg51[%c0_220, %c0_221] : memref<1x128xf32, #tpu.memory_space<vmem>>, vector<1x128xf32>
    %c0_222 = arith.constant 0 : index
    %c0_223 = arith.constant 0 : index
    %563 = vector.load %arg52[%c0_222, %c0_223] : memref<128x32xbf16, #tpu.memory_space<vmem>>, vector<128x32xbf16>
    %c0_224 = arith.constant 0 : index
    %c0_225 = arith.constant 0 : index
    %564 = vector.load %arg53[%c0_224, %c0_225] : memref<1x32xf32, #tpu.memory_space<vmem>>, vector<1x32xf32>
    %cst_226 = arith.constant dense<0.000000e+00> : vector<8xf32>
    %565 = vector.multi_reduction <add>, %547, %cst_226 [1] : vector<8x32xf32> to vector<8xf32>
    %566 = vector.shape_cast %565 : vector<8xf32> to vector<8x1xf32>
    %cst_227 = arith.constant 3.200000e+01 : f32
    %567 = vector.broadcast %cst_227 : f32 to vector<8x1xf32>
    %568 = arith.divf %566, %567 : vector<8x1xf32>
    %569 = vector.broadcast %568 : vector<8x1xf32> to vector<8x32xf32>
    %570 = arith.subf %547, %569 : vector<8x32xf32>
    %571 = arith.mulf %570, %570 : vector<8x32xf32>
    %cst_228 = arith.constant dense<0.000000e+00> : vector<8xf32>
    %572 = vector.multi_reduction <add>, %571, %cst_228 [1] : vector<8x32xf32> to vector<8xf32>
    %573 = vector.shape_cast %572 : vector<8xf32> to vector<8x1xf32>
    %cst_229 = arith.constant 3.200000e+01 : f32
    %574 = vector.broadcast %cst_229 : f32 to vector<8x1xf32>
    %575 = arith.divf %573, %574 : vector<8x1xf32>
    %576 = vector.broadcast %568 : vector<8x1xf32> to vector<8x32xf32>
    %577 = arith.subf %547, %576 : vector<8x32xf32>
    %cst_230 = arith.constant 9.99999974E-6 : f32
    %578 = vector.broadcast %cst_230 : f32 to vector<8x1xf32>
    %579 = arith.addf %575, %578 : vector<8x1xf32>
    %580 = math.rsqrt %579 : vector<8x1xf32>
    %581 = vector.broadcast %580 : vector<8x1xf32> to vector<8x32xf32>
    %582 = arith.mulf %577, %581 : vector<8x32xf32>
    %583 = vector.broadcast %549 : vector<1x32xf32> to vector<8x32xf32>
    %584 = arith.mulf %582, %583 : vector<8x32xf32>
    %585 = vector.broadcast %551 : vector<1x32xf32> to vector<8x32xf32>
    %586 = arith.addf %584, %585 : vector<8x32xf32>
    %cst_231 = arith.constant 0.000000e+00 : f32
    %587 = vector.broadcast %cst_231 : f32 to vector<8x32xf32>
    %588 = vector.extract_strided_slice %552 {offsets = [0, 0, 0, 0], sizes = [1, 1, 32, 8], strides = [1, 1, 1, 1]} : vector<3x4x32x8xbf16> to vector<1x1x32x8xbf16>
    %589 = vector.shape_cast %588 : vector<1x1x32x8xbf16> to vector<32x8xbf16>
    %590 = arith.truncf %586 : vector<8x32xf32> to vector<8x32xbf16>
    %cst_232 = arith.constant dense<0.000000e+00> : vector<8x8xf32>
    %591 = tpu.matmul %590, %589, %cst_232 {dimension_numbers = #tpu.dot_dimension_numbers<[1], [0], [0], [1], [0, 0, 1, 1], [], []>} : vector<8x32xbf16>, vector<32x8xbf16>, vector<8x8xf32> -> vector<8x8xf32>
    %592 = vector.extract_strided_slice %553 {offsets = [0, 0, 0, 0], sizes = [1, 1, 1, 8], strides = [1, 1, 1, 1]} : vector<3x4x1x8xf32> to vector<1x1x1x8xf32>
    %593 = vector.shape_cast %592 : vector<1x1x1x8xf32> to vector<1x8xf32>
    %594 = vector.broadcast %593 : vector<1x8xf32> to vector<8x8xf32>
    %595 = arith.addf %591, %594 : vector<8x8xf32>
    %cst_233 = arith.constant 0.353553385 : f32
    %596 = vector.broadcast %cst_233 : f32 to vector<8x8xf32>
    %597 = arith.mulf %595, %596 : vector<8x8xf32>
    %598 = vector.extract_strided_slice %552 {offsets = [1, 0, 0, 0], sizes = [1, 1, 32, 8], strides = [1, 1, 1, 1]} : vector<3x4x32x8xbf16> to vector<1x1x32x8xbf16>
    %599 = vector.shape_cast %598 : vector<1x1x32x8xbf16> to vector<32x8xbf16>
    %600 = arith.truncf %586 : vector<8x32xf32> to vector<8x32xbf16>
    %cst_234 = arith.constant dense<0.000000e+00> : vector<8x8xf32>
    %601 = tpu.matmul %600, %599, %cst_234 {dimension_numbers = #tpu.dot_dimension_numbers<[1], [0], [0], [1], [0, 0, 1, 1], [], []>} : vector<8x32xbf16>, vector<32x8xbf16>, vector<8x8xf32> -> vector<8x8xf32>
    %602 = vector.extract_strided_slice %553 {offsets = [1, 0, 0, 0], sizes = [1, 1, 1, 8], strides = [1, 1, 1, 1]} : vector<3x4x1x8xf32> to vector<1x1x1x8xf32>
    %603 = vector.shape_cast %602 : vector<1x1x1x8xf32> to vector<1x8xf32>
    %604 = vector.broadcast %603 : vector<1x8xf32> to vector<8x8xf32>
    %605 = arith.addf %601, %604 : vector<8x8xf32>
    %606 = vector.extract_strided_slice %552 {offsets = [2, 0, 0, 0], sizes = [1, 1, 32, 8], strides = [1, 1, 1, 1]} : vector<3x4x32x8xbf16> to vector<1x1x32x8xbf16>
    %607 = vector.shape_cast %606 : vector<1x1x32x8xbf16> to vector<32x8xbf16>
    %608 = arith.truncf %586 : vector<8x32xf32> to vector<8x32xbf16>
    %cst_235 = arith.constant dense<0.000000e+00> : vector<8x8xf32>
    %609 = tpu.matmul %608, %607, %cst_235 {dimension_numbers = #tpu.dot_dimension_numbers<[1], [0], [0], [1], [0, 0, 1, 1], [], []>} : vector<8x32xbf16>, vector<32x8xbf16>, vector<8x8xf32> -> vector<8x8xf32>
    %610 = vector.extract_strided_slice %553 {offsets = [2, 0, 0, 0], sizes = [1, 1, 1, 8], strides = [1, 1, 1, 1]} : vector<3x4x1x8xf32> to vector<1x1x1x8xf32>
    %611 = vector.shape_cast %610 : vector<1x1x1x8xf32> to vector<1x8xf32>
    %612 = vector.broadcast %611 : vector<1x8xf32> to vector<8x8xf32>
    %613 = arith.addf %609, %612 : vector<8x8xf32>
    %614 = vector.shape_cast %597 : vector<8x8xf32> to vector<1x8x8xf32>
    %615 = vector.shape_cast %605 : vector<8x8xf32> to vector<1x8x8xf32>
    %616 = vector.shape_cast %613 : vector<8x8xf32> to vector<1x8x8xf32>
    %cst_236 = arith.constant dense<0.000000e+00> : vector<1x8x8xf32>
    %617 = tpu.matmul %614, %615, %cst_236 {dimension_numbers = #tpu.dot_dimension_numbers<[2], [2], [1], [1], [0, 0, 0, 1, 1, 1], [0], [0]>} : vector<1x8x8xf32>, vector<1x8x8xf32>, vector<1x8x8xf32> -> vector<1x8x8xf32>
    %618 = vector.extract_strided_slice %554 {offsets = [0, 0, 0], sizes = [1, 8, 8], strides = [1, 1, 1]} : vector<4x8x8xf32> to vector<1x8x8xf32>
    %619 = vector.shape_cast %618 : vector<1x8x8xf32> to vector<8x8xf32>
    %620 = vector.shape_cast %619 : vector<8x8xf32> to vector<1x8x8xf32>
    %621 = arith.addf %617, %620 : vector<1x8x8xf32>
    %cst_237 = arith.constant dense<0xFF800000> : vector<1x8xf32>
    %622 = vector.multi_reduction <maximumf>, %621, %cst_237 [2] : vector<1x8x8xf32> to vector<1x8xf32>
    %623 = vector.shape_cast %622 : vector<1x8xf32> to vector<1x8x1xf32>
    %624 = vector.broadcast %623 : vector<1x8x1xf32> to vector<1x8x8xf32>
    %625 = arith.subf %621, %624 : vector<1x8x8xf32>
    %626 = math.exp %625 : vector<1x8x8xf32>
    %cst_238 = arith.constant dense<0.000000e+00> : vector<1x8xf32>
    %627 = vector.multi_reduction <add>, %626, %cst_238 [2] : vector<1x8x8xf32> to vector<1x8xf32>
    %628 = vector.shape_cast %627 : vector<1x8xf32> to vector<1x8x1xf32>
    %629 = tpu.reciprocal %628 {approx = true} : vector<1x8x1xf32> -> vector<1x8x1xf32>
    %630 = vector.broadcast %629 : vector<1x8x1xf32> to vector<1x8x8xf32>
    %631 = arith.mulf %626, %630 : vector<1x8x8xf32>
    %632 = arith.truncf %631 : vector<1x8x8xf32> to vector<1x8x8xbf16>
    %633 = arith.truncf %616 : vector<1x8x8xf32> to vector<1x8x8xbf16>
    %cst_239 = arith.constant dense<0.000000e+00> : vector<1x8x8xf32>
    %634 = tpu.matmul %632, %633, %cst_239 {dimension_numbers = #tpu.dot_dimension_numbers<[2], [1], [1], [2], [0, 0, 0, 1, 1, 2], [0], [0]>} : vector<1x8x8xbf16>, vector<1x8x8xbf16>, vector<1x8x8xf32> -> vector<1x8x8xf32>
    %635 = vector.shape_cast %634 : vector<1x8x8xf32> to vector<8x8xf32>
    %636 = vector.extract_strided_slice %555 {offsets = [0, 0, 0], sizes = [1, 8, 32], strides = [1, 1, 1]} : vector<4x8x32xbf16> to vector<1x8x32xbf16>
    %637 = vector.shape_cast %636 : vector<1x8x32xbf16> to vector<8x32xbf16>
    %638 = arith.truncf %635 : vector<8x8xf32> to vector<8x8xbf16>
    %cst_240 = arith.constant dense<0.000000e+00> : vector<8x32xf32>
    %639 = tpu.matmul %638, %637, %cst_240 {dimension_numbers = #tpu.dot_dimension_numbers<[1], [0], [0], [1], [0, 0, 1, 1], [], []>} : vector<8x8xbf16>, vector<8x32xbf16>, vector<8x32xf32> -> vector<8x32xf32>
    %640 = arith.addf %587, %639 : vector<8x32xf32>
    %641 = vector.extract_strided_slice %552 {offsets = [0, 1, 0, 0], sizes = [1, 1, 32, 8], strides = [1, 1, 1, 1]} : vector<3x4x32x8xbf16> to vector<1x1x32x8xbf16>
    %642 = vector.shape_cast %641 : vector<1x1x32x8xbf16> to vector<32x8xbf16>
    %643 = arith.truncf %586 : vector<8x32xf32> to vector<8x32xbf16>
    %cst_241 = arith.constant dense<0.000000e+00> : vector<8x8xf32>
    %644 = tpu.matmul %643, %642, %cst_241 {dimension_numbers = #tpu.dot_dimension_numbers<[1], [0], [0], [1], [0, 0, 1, 1], [], []>} : vector<8x32xbf16>, vector<32x8xbf16>, vector<8x8xf32> -> vector<8x8xf32>
    %645 = vector.extract_strided_slice %553 {offsets = [0, 1, 0, 0], sizes = [1, 1, 1, 8], strides = [1, 1, 1, 1]} : vector<3x4x1x8xf32> to vector<1x1x1x8xf32>
    %646 = vector.shape_cast %645 : vector<1x1x1x8xf32> to vector<1x8xf32>
    %647 = vector.broadcast %646 : vector<1x8xf32> to vector<8x8xf32>
    %648 = arith.addf %644, %647 : vector<8x8xf32>
    %cst_242 = arith.constant 0.353553385 : f32
    %649 = vector.broadcast %cst_242 : f32 to vector<8x8xf32>
    %650 = arith.mulf %648, %649 : vector<8x8xf32>
    %651 = vector.extract_strided_slice %552 {offsets = [1, 1, 0, 0], sizes = [1, 1, 32, 8], strides = [1, 1, 1, 1]} : vector<3x4x32x8xbf16> to vector<1x1x32x8xbf16>
    %652 = vector.shape_cast %651 : vector<1x1x32x8xbf16> to vector<32x8xbf16>
    %653 = arith.truncf %586 : vector<8x32xf32> to vector<8x32xbf16>
    %cst_243 = arith.constant dense<0.000000e+00> : vector<8x8xf32>
    %654 = tpu.matmul %653, %652, %cst_243 {dimension_numbers = #tpu.dot_dimension_numbers<[1], [0], [0], [1], [0, 0, 1, 1], [], []>} : vector<8x32xbf16>, vector<32x8xbf16>, vector<8x8xf32> -> vector<8x8xf32>
    %655 = vector.extract_strided_slice %553 {offsets = [1, 1, 0, 0], sizes = [1, 1, 1, 8], strides = [1, 1, 1, 1]} : vector<3x4x1x8xf32> to vector<1x1x1x8xf32>
    %656 = vector.shape_cast %655 : vector<1x1x1x8xf32> to vector<1x8xf32>
    %657 = vector.broadcast %656 : vector<1x8xf32> to vector<8x8xf32>
    %658 = arith.addf %654, %657 : vector<8x8xf32>
    %659 = vector.extract_strided_slice %552 {offsets = [2, 1, 0, 0], sizes = [1, 1, 32, 8], strides = [1, 1, 1, 1]} : vector<3x4x32x8xbf16> to vector<1x1x32x8xbf16>
    %660 = vector.shape_cast %659 : vector<1x1x32x8xbf16> to vector<32x8xbf16>
    %661 = arith.truncf %586 : vector<8x32xf32> to vector<8x32xbf16>
    %cst_244 = arith.constant dense<0.000000e+00> : vector<8x8xf32>
    %662 = tpu.matmul %661, %660, %cst_244 {dimension_numbers = #tpu.dot_dimension_numbers<[1], [0], [0], [1], [0, 0, 1, 1], [], []>} : vector<8x32xbf16>, vector<32x8xbf16>, vector<8x8xf32> -> vector<8x8xf32>
    %663 = vector.extract_strided_slice %553 {offsets = [2, 1, 0, 0], sizes = [1, 1, 1, 8], strides = [1, 1, 1, 1]} : vector<3x4x1x8xf32> to vector<1x1x1x8xf32>
    %664 = vector.shape_cast %663 : vector<1x1x1x8xf32> to vector<1x8xf32>
    %665 = vector.broadcast %664 : vector<1x8xf32> to vector<8x8xf32>
    %666 = arith.addf %662, %665 : vector<8x8xf32>
    %667 = vector.shape_cast %650 : vector<8x8xf32> to vector<1x8x8xf32>
    %668 = vector.shape_cast %658 : vector<8x8xf32> to vector<1x8x8xf32>
    %669 = vector.shape_cast %666 : vector<8x8xf32> to vector<1x8x8xf32>
    %cst_245 = arith.constant dense<0.000000e+00> : vector<1x8x8xf32>
    %670 = tpu.matmul %667, %668, %cst_245 {dimension_numbers = #tpu.dot_dimension_numbers<[2], [2], [1], [1], [0, 0, 0, 1, 1, 1], [0], [0]>} : vector<1x8x8xf32>, vector<1x8x8xf32>, vector<1x8x8xf32> -> vector<1x8x8xf32>
    %671 = vector.extract_strided_slice %554 {offsets = [1, 0, 0], sizes = [1, 8, 8], strides = [1, 1, 1]} : vector<4x8x8xf32> to vector<1x8x8xf32>
    %672 = vector.shape_cast %671 : vector<1x8x8xf32> to vector<8x8xf32>
    %673 = vector.shape_cast %672 : vector<8x8xf32> to vector<1x8x8xf32>
    %674 = arith.addf %670, %673 : vector<1x8x8xf32>
    %cst_246 = arith.constant dense<0xFF800000> : vector<1x8xf32>
    %675 = vector.multi_reduction <maximumf>, %674, %cst_246 [2] : vector<1x8x8xf32> to vector<1x8xf32>
    %676 = vector.shape_cast %675 : vector<1x8xf32> to vector<1x8x1xf32>
    %677 = vector.broadcast %676 : vector<1x8x1xf32> to vector<1x8x8xf32>
    %678 = arith.subf %674, %677 : vector<1x8x8xf32>
    %679 = math.exp %678 : vector<1x8x8xf32>
    %cst_247 = arith.constant dense<0.000000e+00> : vector<1x8xf32>
    %680 = vector.multi_reduction <add>, %679, %cst_247 [2] : vector<1x8x8xf32> to vector<1x8xf32>
    %681 = vector.shape_cast %680 : vector<1x8xf32> to vector<1x8x1xf32>
    %682 = tpu.reciprocal %681 {approx = true} : vector<1x8x1xf32> -> vector<1x8x1xf32>
    %683 = vector.broadcast %682 : vector<1x8x1xf32> to vector<1x8x8xf32>
    %684 = arith.mulf %679, %683 : vector<1x8x8xf32>
    %685 = arith.truncf %684 : vector<1x8x8xf32> to vector<1x8x8xbf16>
    %686 = arith.truncf %669 : vector<1x8x8xf32> to vector<1x8x8xbf16>
    %cst_248 = arith.constant dense<0.000000e+00> : vector<1x8x8xf32>
    %687 = tpu.matmul %685, %686, %cst_248 {dimension_numbers = #tpu.dot_dimension_numbers<[2], [1], [1], [2], [0, 0, 0, 1, 1, 2], [0], [0]>} : vector<1x8x8xbf16>, vector<1x8x8xbf16>, vector<1x8x8xf32> -> vector<1x8x8xf32>
    %688 = vector.shape_cast %687 : vector<1x8x8xf32> to vector<8x8xf32>
    %689 = vector.extract_strided_slice %555 {offsets = [1, 0, 0], sizes = [1, 8, 32], strides = [1, 1, 1]} : vector<4x8x32xbf16> to vector<1x8x32xbf16>
    %690 = vector.shape_cast %689 : vector<1x8x32xbf16> to vector<8x32xbf16>
    %691 = arith.truncf %688 : vector<8x8xf32> to vector<8x8xbf16>
    %cst_249 = arith.constant dense<0.000000e+00> : vector<8x32xf32>
    %692 = tpu.matmul %691, %690, %cst_249 {dimension_numbers = #tpu.dot_dimension_numbers<[1], [0], [0], [1], [0, 0, 1, 1], [], []>} : vector<8x8xbf16>, vector<8x32xbf16>, vector<8x32xf32> -> vector<8x32xf32>
    %693 = arith.addf %640, %692 : vector<8x32xf32>
    %694 = vector.extract_strided_slice %552 {offsets = [0, 2, 0, 0], sizes = [1, 1, 32, 8], strides = [1, 1, 1, 1]} : vector<3x4x32x8xbf16> to vector<1x1x32x8xbf16>
    %695 = vector.shape_cast %694 : vector<1x1x32x8xbf16> to vector<32x8xbf16>
    %696 = arith.truncf %586 : vector<8x32xf32> to vector<8x32xbf16>
    %cst_250 = arith.constant dense<0.000000e+00> : vector<8x8xf32>
    %697 = tpu.matmul %696, %695, %cst_250 {dimension_numbers = #tpu.dot_dimension_numbers<[1], [0], [0], [1], [0, 0, 1, 1], [], []>} : vector<8x32xbf16>, vector<32x8xbf16>, vector<8x8xf32> -> vector<8x8xf32>
    %698 = vector.extract_strided_slice %553 {offsets = [0, 2, 0, 0], sizes = [1, 1, 1, 8], strides = [1, 1, 1, 1]} : vector<3x4x1x8xf32> to vector<1x1x1x8xf32>
    %699 = vector.shape_cast %698 : vector<1x1x1x8xf32> to vector<1x8xf32>
    %700 = vector.broadcast %699 : vector<1x8xf32> to vector<8x8xf32>
    %701 = arith.addf %697, %700 : vector<8x8xf32>
    %cst_251 = arith.constant 0.353553385 : f32
    %702 = vector.broadcast %cst_251 : f32 to vector<8x8xf32>
    %703 = arith.mulf %701, %702 : vector<8x8xf32>
    %704 = vector.extract_strided_slice %552 {offsets = [1, 2, 0, 0], sizes = [1, 1, 32, 8], strides = [1, 1, 1, 1]} : vector<3x4x32x8xbf16> to vector<1x1x32x8xbf16>
    %705 = vector.shape_cast %704 : vector<1x1x32x8xbf16> to vector<32x8xbf16>
    %706 = arith.truncf %586 : vector<8x32xf32> to vector<8x32xbf16>
    %cst_252 = arith.constant dense<0.000000e+00> : vector<8x8xf32>
    %707 = tpu.matmul %706, %705, %cst_252 {dimension_numbers = #tpu.dot_dimension_numbers<[1], [0], [0], [1], [0, 0, 1, 1], [], []>} : vector<8x32xbf16>, vector<32x8xbf16>, vector<8x8xf32> -> vector<8x8xf32>
    %708 = vector.extract_strided_slice %553 {offsets = [1, 2, 0, 0], sizes = [1, 1, 1, 8], strides = [1, 1, 1, 1]} : vector<3x4x1x8xf32> to vector<1x1x1x8xf32>
    %709 = vector.shape_cast %708 : vector<1x1x1x8xf32> to vector<1x8xf32>
    %710 = vector.broadcast %709 : vector<1x8xf32> to vector<8x8xf32>
    %711 = arith.addf %707, %710 : vector<8x8xf32>
    %712 = vector.extract_strided_slice %552 {offsets = [2, 2, 0, 0], sizes = [1, 1, 32, 8], strides = [1, 1, 1, 1]} : vector<3x4x32x8xbf16> to vector<1x1x32x8xbf16>
    %713 = vector.shape_cast %712 : vector<1x1x32x8xbf16> to vector<32x8xbf16>
    %714 = arith.truncf %586 : vector<8x32xf32> to vector<8x32xbf16>
    %cst_253 = arith.constant dense<0.000000e+00> : vector<8x8xf32>
    %715 = tpu.matmul %714, %713, %cst_253 {dimension_numbers = #tpu.dot_dimension_numbers<[1], [0], [0], [1], [0, 0, 1, 1], [], []>} : vector<8x32xbf16>, vector<32x8xbf16>, vector<8x8xf32> -> vector<8x8xf32>
    %716 = vector.extract_strided_slice %553 {offsets = [2, 2, 0, 0], sizes = [1, 1, 1, 8], strides = [1, 1, 1, 1]} : vector<3x4x1x8xf32> to vector<1x1x1x8xf32>
    %717 = vector.shape_cast %716 : vector<1x1x1x8xf32> to vector<1x8xf32>
    %718 = vector.broadcast %717 : vector<1x8xf32> to vector<8x8xf32>
    %719 = arith.addf %715, %718 : vector<8x8xf32>
    %720 = vector.shape_cast %703 : vector<8x8xf32> to vector<1x8x8xf32>
    %721 = vector.shape_cast %711 : vector<8x8xf32> to vector<1x8x8xf32>
    %722 = vector.shape_cast %719 : vector<8x8xf32> to vector<1x8x8xf32>
    %cst_254 = arith.constant dense<0.000000e+00> : vector<1x8x8xf32>
    %723 = tpu.matmul %720, %721, %cst_254 {dimension_numbers = #tpu.dot_dimension_numbers<[2], [2], [1], [1], [0, 0, 0, 1, 1, 1], [0], [0]>} : vector<1x8x8xf32>, vector<1x8x8xf32>, vector<1x8x8xf32> -> vector<1x8x8xf32>
    %724 = vector.extract_strided_slice %554 {offsets = [2, 0, 0], sizes = [1, 8, 8], strides = [1, 1, 1]} : vector<4x8x8xf32> to vector<1x8x8xf32>
    %725 = vector.shape_cast %724 : vector<1x8x8xf32> to vector<8x8xf32>
    %726 = vector.shape_cast %725 : vector<8x8xf32> to vector<1x8x8xf32>
    %727 = arith.addf %723, %726 : vector<1x8x8xf32>
    %cst_255 = arith.constant dense<0xFF800000> : vector<1x8xf32>
    %728 = vector.multi_reduction <maximumf>, %727, %cst_255 [2] : vector<1x8x8xf32> to vector<1x8xf32>
    %729 = vector.shape_cast %728 : vector<1x8xf32> to vector<1x8x1xf32>
    %730 = vector.broadcast %729 : vector<1x8x1xf32> to vector<1x8x8xf32>
    %731 = arith.subf %727, %730 : vector<1x8x8xf32>
    %732 = math.exp %731 : vector<1x8x8xf32>
    %cst_256 = arith.constant dense<0.000000e+00> : vector<1x8xf32>
    %733 = vector.multi_reduction <add>, %732, %cst_256 [2] : vector<1x8x8xf32> to vector<1x8xf32>
    %734 = vector.shape_cast %733 : vector<1x8xf32> to vector<1x8x1xf32>
    %735 = tpu.reciprocal %734 {approx = true} : vector<1x8x1xf32> -> vector<1x8x1xf32>
    %736 = vector.broadcast %735 : vector<1x8x1xf32> to vector<1x8x8xf32>
    %737 = arith.mulf %732, %736 : vector<1x8x8xf32>
    %738 = arith.truncf %737 : vector<1x8x8xf32> to vector<1x8x8xbf16>
    %739 = arith.truncf %722 : vector<1x8x8xf32> to vector<1x8x8xbf16>
    %cst_257 = arith.constant dense<0.000000e+00> : vector<1x8x8xf32>
    %740 = tpu.matmul %738, %739, %cst_257 {dimension_numbers = #tpu.dot_dimension_numbers<[2], [1], [1], [2], [0, 0, 0, 1, 1, 2], [0], [0]>} : vector<1x8x8xbf16>, vector<1x8x8xbf16>, vector<1x8x8xf32> -> vector<1x8x8xf32>
    %741 = vector.shape_cast %740 : vector<1x8x8xf32> to vector<8x8xf32>
    %742 = vector.extract_strided_slice %555 {offsets = [2, 0, 0], sizes = [1, 8, 32], strides = [1, 1, 1]} : vector<4x8x32xbf16> to vector<1x8x32xbf16>
    %743 = vector.shape_cast %742 : vector<1x8x32xbf16> to vector<8x32xbf16>
    %744 = arith.truncf %741 : vector<8x8xf32> to vector<8x8xbf16>
    %cst_258 = arith.constant dense<0.000000e+00> : vector<8x32xf32>
    %745 = tpu.matmul %744, %743, %cst_258 {dimension_numbers = #tpu.dot_dimension_numbers<[1], [0], [0], [1], [0, 0, 1, 1], [], []>} : vector<8x8xbf16>, vector<8x32xbf16>, vector<8x32xf32> -> vector<8x32xf32>
    %746 = arith.addf %693, %745 : vector<8x32xf32>
    %747 = vector.extract_strided_slice %552 {offsets = [0, 3, 0, 0], sizes = [1, 1, 32, 8], strides = [1, 1, 1, 1]} : vector<3x4x32x8xbf16> to vector<1x1x32x8xbf16>
    %748 = vector.shape_cast %747 : vector<1x1x32x8xbf16> to vector<32x8xbf16>
    %749 = arith.truncf %586 : vector<8x32xf32> to vector<8x32xbf16>
    %cst_259 = arith.constant dense<0.000000e+00> : vector<8x8xf32>
    %750 = tpu.matmul %749, %748, %cst_259 {dimension_numbers = #tpu.dot_dimension_numbers<[1], [0], [0], [1], [0, 0, 1, 1], [], []>} : vector<8x32xbf16>, vector<32x8xbf16>, vector<8x8xf32> -> vector<8x8xf32>
    %751 = vector.extract_strided_slice %553 {offsets = [0, 3, 0, 0], sizes = [1, 1, 1, 8], strides = [1, 1, 1, 1]} : vector<3x4x1x8xf32> to vector<1x1x1x8xf32>
    %752 = vector.shape_cast %751 : vector<1x1x1x8xf32> to vector<1x8xf32>
    %753 = vector.broadcast %752 : vector<1x8xf32> to vector<8x8xf32>
    %754 = arith.addf %750, %753 : vector<8x8xf32>
    %cst_260 = arith.constant 0.353553385 : f32
    %755 = vector.broadcast %cst_260 : f32 to vector<8x8xf32>
    %756 = arith.mulf %754, %755 : vector<8x8xf32>
    %757 = vector.extract_strided_slice %552 {offsets = [1, 3, 0, 0], sizes = [1, 1, 32, 8], strides = [1, 1, 1, 1]} : vector<3x4x32x8xbf16> to vector<1x1x32x8xbf16>
    %758 = vector.shape_cast %757 : vector<1x1x32x8xbf16> to vector<32x8xbf16>
    %759 = arith.truncf %586 : vector<8x32xf32> to vector<8x32xbf16>
    %cst_261 = arith.constant dense<0.000000e+00> : vector<8x8xf32>
    %760 = tpu.matmul %759, %758, %cst_261 {dimension_numbers = #tpu.dot_dimension_numbers<[1], [0], [0], [1], [0, 0, 1, 1], [], []>} : vector<8x32xbf16>, vector<32x8xbf16>, vector<8x8xf32> -> vector<8x8xf32>
    %761 = vector.extract_strided_slice %553 {offsets = [1, 3, 0, 0], sizes = [1, 1, 1, 8], strides = [1, 1, 1, 1]} : vector<3x4x1x8xf32> to vector<1x1x1x8xf32>
    %762 = vector.shape_cast %761 : vector<1x1x1x8xf32> to vector<1x8xf32>
    %763 = vector.broadcast %762 : vector<1x8xf32> to vector<8x8xf32>
    %764 = arith.addf %760, %763 : vector<8x8xf32>
    %765 = vector.extract_strided_slice %552 {offsets = [2, 3, 0, 0], sizes = [1, 1, 32, 8], strides = [1, 1, 1, 1]} : vector<3x4x32x8xbf16> to vector<1x1x32x8xbf16>
    %766 = vector.shape_cast %765 : vector<1x1x32x8xbf16> to vector<32x8xbf16>
    %767 = arith.truncf %586 : vector<8x32xf32> to vector<8x32xbf16>
    %cst_262 = arith.constant dense<0.000000e+00> : vector<8x8xf32>
    %768 = tpu.matmul %767, %766, %cst_262 {dimension_numbers = #tpu.dot_dimension_numbers<[1], [0], [0], [1], [0, 0, 1, 1], [], []>} : vector<8x32xbf16>, vector<32x8xbf16>, vector<8x8xf32> -> vector<8x8xf32>
    %769 = vector.extract_strided_slice %553 {offsets = [2, 3, 0, 0], sizes = [1, 1, 1, 8], strides = [1, 1, 1, 1]} : vector<3x4x1x8xf32> to vector<1x1x1x8xf32>
    %770 = vector.shape_cast %769 : vector<1x1x1x8xf32> to vector<1x8xf32>
    %771 = vector.broadcast %770 : vector<1x8xf32> to vector<8x8xf32>
    %772 = arith.addf %768, %771 : vector<8x8xf32>
    %773 = vector.shape_cast %756 : vector<8x8xf32> to vector<1x8x8xf32>
    %774 = vector.shape_cast %764 : vector<8x8xf32> to vector<1x8x8xf32>
    %775 = vector.shape_cast %772 : vector<8x8xf32> to vector<1x8x8xf32>
    %cst_263 = arith.constant dense<0.000000e+00> : vector<1x8x8xf32>
    %776 = tpu.matmul %773, %774, %cst_263 {dimension_numbers = #tpu.dot_dimension_numbers<[2], [2], [1], [1], [0, 0, 0, 1, 1, 1], [0], [0]>} : vector<1x8x8xf32>, vector<1x8x8xf32>, vector<1x8x8xf32> -> vector<1x8x8xf32>
    %777 = vector.extract_strided_slice %554 {offsets = [3, 0, 0], sizes = [1, 8, 8], strides = [1, 1, 1]} : vector<4x8x8xf32> to vector<1x8x8xf32>
    %778 = vector.shape_cast %777 : vector<1x8x8xf32> to vector<8x8xf32>
    %779 = vector.shape_cast %778 : vector<8x8xf32> to vector<1x8x8xf32>
    %780 = arith.addf %776, %779 : vector<1x8x8xf32>
    %cst_264 = arith.constant dense<0xFF800000> : vector<1x8xf32>
    %781 = vector.multi_reduction <maximumf>, %780, %cst_264 [2] : vector<1x8x8xf32> to vector<1x8xf32>
    %782 = vector.shape_cast %781 : vector<1x8xf32> to vector<1x8x1xf32>
    %783 = vector.broadcast %782 : vector<1x8x1xf32> to vector<1x8x8xf32>
    %784 = arith.subf %780, %783 : vector<1x8x8xf32>
    %785 = math.exp %784 : vector<1x8x8xf32>
    %cst_265 = arith.constant dense<0.000000e+00> : vector<1x8xf32>
    %786 = vector.multi_reduction <add>, %785, %cst_265 [2] : vector<1x8x8xf32> to vector<1x8xf32>
    %787 = vector.shape_cast %786 : vector<1x8xf32> to vector<1x8x1xf32>
    %788 = tpu.reciprocal %787 {approx = true} : vector<1x8x1xf32> -> vector<1x8x1xf32>
    %789 = vector.broadcast %788 : vector<1x8x1xf32> to vector<1x8x8xf32>
    %790 = arith.mulf %785, %789 : vector<1x8x8xf32>
    %791 = arith.truncf %790 : vector<1x8x8xf32> to vector<1x8x8xbf16>
    %792 = arith.truncf %775 : vector<1x8x8xf32> to vector<1x8x8xbf16>
    %cst_266 = arith.constant dense<0.000000e+00> : vector<1x8x8xf32>
    %793 = tpu.matmul %791, %792, %cst_266 {dimension_numbers = #tpu.dot_dimension_numbers<[2], [1], [1], [2], [0, 0, 0, 1, 1, 2], [0], [0]>} : vector<1x8x8xbf16>, vector<1x8x8xbf16>, vector<1x8x8xf32> -> vector<1x8x8xf32>
    %794 = vector.shape_cast %793 : vector<1x8x8xf32> to vector<8x8xf32>
    %795 = vector.extract_strided_slice %555 {offsets = [3, 0, 0], sizes = [1, 8, 32], strides = [1, 1, 1]} : vector<4x8x32xbf16> to vector<1x8x32xbf16>
    %796 = vector.shape_cast %795 : vector<1x8x32xbf16> to vector<8x32xbf16>
    %797 = arith.truncf %794 : vector<8x8xf32> to vector<8x8xbf16>
    %cst_267 = arith.constant dense<0.000000e+00> : vector<8x32xf32>
    %798 = tpu.matmul %797, %796, %cst_267 {dimension_numbers = #tpu.dot_dimension_numbers<[1], [0], [0], [1], [0, 0, 1, 1], [], []>} : vector<8x8xbf16>, vector<8x32xbf16>, vector<8x32xf32> -> vector<8x32xf32>
    %799 = arith.addf %746, %798 : vector<8x32xf32>
    %800 = vector.broadcast %556 : vector<1x32xf32> to vector<8x32xf32>
    %801 = arith.addf %799, %800 : vector<8x32xf32>
    %802 = arith.addf %547, %801 : vector<8x32xf32>
    %cst_268 = arith.constant dense<0.000000e+00> : vector<8xf32>
    %803 = vector.multi_reduction <add>, %802, %cst_268 [1] : vector<8x32xf32> to vector<8xf32>
    %804 = vector.shape_cast %803 : vector<8xf32> to vector<8x1xf32>
    %cst_269 = arith.constant 3.200000e+01 : f32
    %805 = vector.broadcast %cst_269 : f32 to vector<8x1xf32>
    %806 = arith.divf %804, %805 : vector<8x1xf32>
    %807 = vector.broadcast %806 : vector<8x1xf32> to vector<8x32xf32>
    %808 = arith.subf %802, %807 : vector<8x32xf32>
    %809 = arith.mulf %808, %808 : vector<8x32xf32>
    %cst_270 = arith.constant dense<0.000000e+00> : vector<8xf32>
    %810 = vector.multi_reduction <add>, %809, %cst_270 [1] : vector<8x32xf32> to vector<8xf32>
    %811 = vector.shape_cast %810 : vector<8xf32> to vector<8x1xf32>
    %cst_271 = arith.constant 3.200000e+01 : f32
    %812 = vector.broadcast %cst_271 : f32 to vector<8x1xf32>
    %813 = arith.divf %811, %812 : vector<8x1xf32>
    %814 = vector.broadcast %806 : vector<8x1xf32> to vector<8x32xf32>
    %815 = arith.subf %802, %814 : vector<8x32xf32>
    %cst_272 = arith.constant 9.99999974E-6 : f32
    %816 = vector.broadcast %cst_272 : f32 to vector<8x1xf32>
    %817 = arith.addf %813, %816 : vector<8x1xf32>
    %818 = math.rsqrt %817 : vector<8x1xf32>
    %819 = vector.broadcast %818 : vector<8x1xf32> to vector<8x32xf32>
    %820 = arith.mulf %815, %819 : vector<8x32xf32>
    %821 = vector.broadcast %558 : vector<1x32xf32> to vector<8x32xf32>
    %822 = arith.mulf %820, %821 : vector<8x32xf32>
    %823 = vector.broadcast %560 : vector<1x32xf32> to vector<8x32xf32>
    %824 = arith.addf %822, %823 : vector<8x32xf32>
    %825 = arith.truncf %824 : vector<8x32xf32> to vector<8x32xbf16>
    %cst_273 = arith.constant dense<0.000000e+00> : vector<8x128xf32>
    %826 = tpu.matmul %825, %561, %cst_273 {dimension_numbers = #tpu.dot_dimension_numbers<[1], [0], [0], [1], [0, 0, 1, 1], [], []>} : vector<8x32xbf16>, vector<32x128xbf16>, vector<8x128xf32> -> vector<8x128xf32>
    %827 = vector.broadcast %562 : vector<1x128xf32> to vector<8x128xf32>
    %828 = arith.addf %826, %827 : vector<8x128xf32>
    %cst_274 = arith.constant 5.000000e-01 : f32
    %829 = vector.broadcast %cst_274 : f32 to vector<8x128xf32>
    %830 = arith.mulf %829, %828 : vector<8x128xf32>
    %cst_275 = arith.constant 0.707106769 : f32
    %831 = vector.broadcast %cst_275 : f32 to vector<8x128xf32>
    %832 = arith.mulf %828, %831 : vector<8x128xf32>
    %833 = math.erf %832 : vector<8x128xf32>
    %cst_276 = arith.constant 1.000000e+00 : f32
    %834 = vector.broadcast %cst_276 : f32 to vector<8x128xf32>
    %835 = arith.addf %834, %833 : vector<8x128xf32>
    %836 = arith.mulf %830, %835 : vector<8x128xf32>
    %837 = arith.truncf %836 : vector<8x128xf32> to vector<8x128xbf16>
    %cst_277 = arith.constant dense<0.000000e+00> : vector<8x32xf32>
    %838 = tpu.matmul %837, %563, %cst_277 {dimension_numbers = #tpu.dot_dimension_numbers<[1], [0], [0], [1], [0, 0, 1, 1], [], []>} : vector<8x128xbf16>, vector<128x32xbf16>, vector<8x32xf32> -> vector<8x32xf32>
    %839 = vector.broadcast %564 : vector<1x32xf32> to vector<8x32xf32>
    %840 = arith.addf %838, %839 : vector<8x32xf32>
    %841 = arith.addf %802, %840 : vector<8x32xf32>
    %c0_278 = arith.constant 0 : index
    %c0_279 = arith.constant 0 : index
    %842 = vector.load %arg54[%c0_278, %c0_279] : memref<1x32xbf16, #tpu.memory_space<vmem>>, vector<1x32xbf16>
    %843 = arith.extf %842 : vector<1x32xbf16> to vector<1x32xf32>
    %c0_280 = arith.constant 0 : index
    %c0_281 = arith.constant 0 : index
    %844 = vector.load %arg55[%c0_280, %c0_281] : memref<1x32xbf16, #tpu.memory_space<vmem>>, vector<1x32xbf16>
    %845 = arith.extf %844 : vector<1x32xbf16> to vector<1x32xf32>
    %c0_282 = arith.constant 0 : index
    %c0_283 = arith.constant 0 : index
    %c0_284 = arith.constant 0 : index
    %c0_285 = arith.constant 0 : index
    %846 = vector.load %arg56[%c0_282, %c0_283, %c0_284, %c0_285] : memref<3x4x32x8xbf16, #tpu.memory_space<vmem>>, vector<3x4x32x8xbf16>
    %c0_286 = arith.constant 0 : index
    %c0_287 = arith.constant 0 : index
    %c0_288 = arith.constant 0 : index
    %c0_289 = arith.constant 0 : index
    %847 = vector.load %arg57[%c0_286, %c0_287, %c0_288, %c0_289] : memref<3x4x1x8xf32, #tpu.memory_space<vmem>>, vector<3x4x1x8xf32>
    %c0_290 = arith.constant 0 : index
    %c0_291 = arith.constant 0 : index
    %c0_292 = arith.constant 0 : index
    %848 = vector.load %arg58[%c0_290, %c0_291, %c0_292] : memref<4x8x8xf32, #tpu.memory_space<vmem>>, vector<4x8x8xf32>
    %c0_293 = arith.constant 0 : index
    %c0_294 = arith.constant 0 : index
    %c0_295 = arith.constant 0 : index
    %849 = vector.load %arg59[%c0_293, %c0_294, %c0_295] : memref<4x8x32xbf16, #tpu.memory_space<vmem>>, vector<4x8x32xbf16>
    %c0_296 = arith.constant 0 : index
    %c0_297 = arith.constant 0 : index
    %850 = vector.load %arg60[%c0_296, %c0_297] : memref<1x32xf32, #tpu.memory_space<vmem>>, vector<1x32xf32>
    %c0_298 = arith.constant 0 : index
    %c0_299 = arith.constant 0 : index
    %851 = vector.load %arg61[%c0_298, %c0_299] : memref<1x32xbf16, #tpu.memory_space<vmem>>, vector<1x32xbf16>
    %852 = arith.extf %851 : vector<1x32xbf16> to vector<1x32xf32>
    %c0_300 = arith.constant 0 : index
    %c0_301 = arith.constant 0 : index
    %853 = vector.load %arg62[%c0_300, %c0_301] : memref<1x32xbf16, #tpu.memory_space<vmem>>, vector<1x32xbf16>
    %854 = arith.extf %853 : vector<1x32xbf16> to vector<1x32xf32>
    %c0_302 = arith.constant 0 : index
    %c0_303 = arith.constant 0 : index
    %855 = vector.load %arg63[%c0_302, %c0_303] : memref<32x128xbf16, #tpu.memory_space<vmem>>, vector<32x128xbf16>
    %c0_304 = arith.constant 0 : index
    %c0_305 = arith.constant 0 : index
    %856 = vector.load %arg64[%c0_304, %c0_305] : memref<1x128xf32, #tpu.memory_space<vmem>>, vector<1x128xf32>
    %c0_306 = arith.constant 0 : index
    %c0_307 = arith.constant 0 : index
    %857 = vector.load %arg65[%c0_306, %c0_307] : memref<128x32xbf16, #tpu.memory_space<vmem>>, vector<128x32xbf16>
    %c0_308 = arith.constant 0 : index
    %c0_309 = arith.constant 0 : index
    %858 = vector.load %arg66[%c0_308, %c0_309] : memref<1x32xf32, #tpu.memory_space<vmem>>, vector<1x32xf32>
    %cst_310 = arith.constant dense<0.000000e+00> : vector<8xf32>
    %859 = vector.multi_reduction <add>, %841, %cst_310 [1] : vector<8x32xf32> to vector<8xf32>
    %860 = vector.shape_cast %859 : vector<8xf32> to vector<8x1xf32>
    %cst_311 = arith.constant 3.200000e+01 : f32
    %861 = vector.broadcast %cst_311 : f32 to vector<8x1xf32>
    %862 = arith.divf %860, %861 : vector<8x1xf32>
    %863 = vector.broadcast %862 : vector<8x1xf32> to vector<8x32xf32>
    %864 = arith.subf %841, %863 : vector<8x32xf32>
    %865 = arith.mulf %864, %864 : vector<8x32xf32>
    %cst_312 = arith.constant dense<0.000000e+00> : vector<8xf32>
    %866 = vector.multi_reduction <add>, %865, %cst_312 [1] : vector<8x32xf32> to vector<8xf32>
    %867 = vector.shape_cast %866 : vector<8xf32> to vector<8x1xf32>
    %cst_313 = arith.constant 3.200000e+01 : f32
    %868 = vector.broadcast %cst_313 : f32 to vector<8x1xf32>
    %869 = arith.divf %867, %868 : vector<8x1xf32>
    %870 = vector.broadcast %862 : vector<8x1xf32> to vector<8x32xf32>
    %871 = arith.subf %841, %870 : vector<8x32xf32>
    %cst_314 = arith.constant 9.99999974E-6 : f32
    %872 = vector.broadcast %cst_314 : f32 to vector<8x1xf32>
    %873 = arith.addf %869, %872 : vector<8x1xf32>
    %874 = math.rsqrt %873 : vector<8x1xf32>
    %875 = vector.broadcast %874 : vector<8x1xf32> to vector<8x32xf32>
    %876 = arith.mulf %871, %875 : vector<8x32xf32>
    %877 = vector.broadcast %843 : vector<1x32xf32> to vector<8x32xf32>
    %878 = arith.mulf %876, %877 : vector<8x32xf32>
    %879 = vector.broadcast %845 : vector<1x32xf32> to vector<8x32xf32>
    %880 = arith.addf %878, %879 : vector<8x32xf32>
    %cst_315 = arith.constant 0.000000e+00 : f32
    %881 = vector.broadcast %cst_315 : f32 to vector<8x32xf32>
    %882 = vector.extract_strided_slice %846 {offsets = [0, 0, 0, 0], sizes = [1, 1, 32, 8], strides = [1, 1, 1, 1]} : vector<3x4x32x8xbf16> to vector<1x1x32x8xbf16>
    %883 = vector.shape_cast %882 : vector<1x1x32x8xbf16> to vector<32x8xbf16>
    %884 = arith.truncf %880 : vector<8x32xf32> to vector<8x32xbf16>
    %cst_316 = arith.constant dense<0.000000e+00> : vector<8x8xf32>
    %885 = tpu.matmul %884, %883, %cst_316 {dimension_numbers = #tpu.dot_dimension_numbers<[1], [0], [0], [1], [0, 0, 1, 1], [], []>} : vector<8x32xbf16>, vector<32x8xbf16>, vector<8x8xf32> -> vector<8x8xf32>
    %886 = vector.extract_strided_slice %847 {offsets = [0, 0, 0, 0], sizes = [1, 1, 1, 8], strides = [1, 1, 1, 1]} : vector<3x4x1x8xf32> to vector<1x1x1x8xf32>
    %887 = vector.shape_cast %886 : vector<1x1x1x8xf32> to vector<1x8xf32>
    %888 = vector.broadcast %887 : vector<1x8xf32> to vector<8x8xf32>
    %889 = arith.addf %885, %888 : vector<8x8xf32>
    %cst_317 = arith.constant 0.353553385 : f32
    %890 = vector.broadcast %cst_317 : f32 to vector<8x8xf32>
    %891 = arith.mulf %889, %890 : vector<8x8xf32>
    %892 = vector.extract_strided_slice %846 {offsets = [1, 0, 0, 0], sizes = [1, 1, 32, 8], strides = [1, 1, 1, 1]} : vector<3x4x32x8xbf16> to vector<1x1x32x8xbf16>
    %893 = vector.shape_cast %892 : vector<1x1x32x8xbf16> to vector<32x8xbf16>
    %894 = arith.truncf %880 : vector<8x32xf32> to vector<8x32xbf16>
    %cst_318 = arith.constant dense<0.000000e+00> : vector<8x8xf32>
    %895 = tpu.matmul %894, %893, %cst_318 {dimension_numbers = #tpu.dot_dimension_numbers<[1], [0], [0], [1], [0, 0, 1, 1], [], []>} : vector<8x32xbf16>, vector<32x8xbf16>, vector<8x8xf32> -> vector<8x8xf32>
    %896 = vector.extract_strided_slice %847 {offsets = [1, 0, 0, 0], sizes = [1, 1, 1, 8], strides = [1, 1, 1, 1]} : vector<3x4x1x8xf32> to vector<1x1x1x8xf32>
    %897 = vector.shape_cast %896 : vector<1x1x1x8xf32> to vector<1x8xf32>
    %898 = vector.broadcast %897 : vector<1x8xf32> to vector<8x8xf32>
    %899 = arith.addf %895, %898 : vector<8x8xf32>
    %900 = vector.extract_strided_slice %846 {offsets = [2, 0, 0, 0], sizes = [1, 1, 32, 8], strides = [1, 1, 1, 1]} : vector<3x4x32x8xbf16> to vector<1x1x32x8xbf16>
    %901 = vector.shape_cast %900 : vector<1x1x32x8xbf16> to vector<32x8xbf16>
    %902 = arith.truncf %880 : vector<8x32xf32> to vector<8x32xbf16>
    %cst_319 = arith.constant dense<0.000000e+00> : vector<8x8xf32>
    %903 = tpu.matmul %902, %901, %cst_319 {dimension_numbers = #tpu.dot_dimension_numbers<[1], [0], [0], [1], [0, 0, 1, 1], [], []>} : vector<8x32xbf16>, vector<32x8xbf16>, vector<8x8xf32> -> vector<8x8xf32>
    %904 = vector.extract_strided_slice %847 {offsets = [2, 0, 0, 0], sizes = [1, 1, 1, 8], strides = [1, 1, 1, 1]} : vector<3x4x1x8xf32> to vector<1x1x1x8xf32>
    %905 = vector.shape_cast %904 : vector<1x1x1x8xf32> to vector<1x8xf32>
    %906 = vector.broadcast %905 : vector<1x8xf32> to vector<8x8xf32>
    %907 = arith.addf %903, %906 : vector<8x8xf32>
    %908 = vector.shape_cast %891 : vector<8x8xf32> to vector<1x8x8xf32>
    %909 = vector.shape_cast %899 : vector<8x8xf32> to vector<1x8x8xf32>
    %910 = vector.shape_cast %907 : vector<8x8xf32> to vector<1x8x8xf32>
    %cst_320 = arith.constant dense<0.000000e+00> : vector<1x8x8xf32>
    %911 = tpu.matmul %908, %909, %cst_320 {dimension_numbers = #tpu.dot_dimension_numbers<[2], [2], [1], [1], [0, 0, 0, 1, 1, 1], [0], [0]>} : vector<1x8x8xf32>, vector<1x8x8xf32>, vector<1x8x8xf32> -> vector<1x8x8xf32>
    %912 = vector.extract_strided_slice %848 {offsets = [0, 0, 0], sizes = [1, 8, 8], strides = [1, 1, 1]} : vector<4x8x8xf32> to vector<1x8x8xf32>
    %913 = vector.shape_cast %912 : vector<1x8x8xf32> to vector<8x8xf32>
    %914 = vector.shape_cast %913 : vector<8x8xf32> to vector<1x8x8xf32>
    %915 = arith.addf %911, %914 : vector<1x8x8xf32>
    %cst_321 = arith.constant dense<0xFF800000> : vector<1x8xf32>
    %916 = vector.multi_reduction <maximumf>, %915, %cst_321 [2] : vector<1x8x8xf32> to vector<1x8xf32>
    %917 = vector.shape_cast %916 : vector<1x8xf32> to vector<1x8x1xf32>
    %918 = vector.broadcast %917 : vector<1x8x1xf32> to vector<1x8x8xf32>
    %919 = arith.subf %915, %918 : vector<1x8x8xf32>
    %920 = math.exp %919 : vector<1x8x8xf32>
    %cst_322 = arith.constant dense<0.000000e+00> : vector<1x8xf32>
    %921 = vector.multi_reduction <add>, %920, %cst_322 [2] : vector<1x8x8xf32> to vector<1x8xf32>
    %922 = vector.shape_cast %921 : vector<1x8xf32> to vector<1x8x1xf32>
    %923 = tpu.reciprocal %922 {approx = true} : vector<1x8x1xf32> -> vector<1x8x1xf32>
    %924 = vector.broadcast %923 : vector<1x8x1xf32> to vector<1x8x8xf32>
    %925 = arith.mulf %920, %924 : vector<1x8x8xf32>
    %926 = arith.truncf %925 : vector<1x8x8xf32> to vector<1x8x8xbf16>
    %927 = arith.truncf %910 : vector<1x8x8xf32> to vector<1x8x8xbf16>
    %cst_323 = arith.constant dense<0.000000e+00> : vector<1x8x8xf32>
    %928 = tpu.matmul %926, %927, %cst_323 {dimension_numbers = #tpu.dot_dimension_numbers<[2], [1], [1], [2], [0, 0, 0, 1, 1, 2], [0], [0]>} : vector<1x8x8xbf16>, vector<1x8x8xbf16>, vector<1x8x8xf32> -> vector<1x8x8xf32>
    %929 = vector.shape_cast %928 : vector<1x8x8xf32> to vector<8x8xf32>
    %930 = vector.extract_strided_slice %849 {offsets = [0, 0, 0], sizes = [1, 8, 32], strides = [1, 1, 1]} : vector<4x8x32xbf16> to vector<1x8x32xbf16>
    %931 = vector.shape_cast %930 : vector<1x8x32xbf16> to vector<8x32xbf16>
    %932 = arith.truncf %929 : vector<8x8xf32> to vector<8x8xbf16>
    %cst_324 = arith.constant dense<0.000000e+00> : vector<8x32xf32>
    %933 = tpu.matmul %932, %931, %cst_324 {dimension_numbers = #tpu.dot_dimension_numbers<[1], [0], [0], [1], [0, 0, 1, 1], [], []>} : vector<8x8xbf16>, vector<8x32xbf16>, vector<8x32xf32> -> vector<8x32xf32>
    %934 = arith.addf %881, %933 : vector<8x32xf32>
    %935 = vector.extract_strided_slice %846 {offsets = [0, 1, 0, 0], sizes = [1, 1, 32, 8], strides = [1, 1, 1, 1]} : vector<3x4x32x8xbf16> to vector<1x1x32x8xbf16>
    %936 = vector.shape_cast %935 : vector<1x1x32x8xbf16> to vector<32x8xbf16>
    %937 = arith.truncf %880 : vector<8x32xf32> to vector<8x32xbf16>
    %cst_325 = arith.constant dense<0.000000e+00> : vector<8x8xf32>
    %938 = tpu.matmul %937, %936, %cst_325 {dimension_numbers = #tpu.dot_dimension_numbers<[1], [0], [0], [1], [0, 0, 1, 1], [], []>} : vector<8x32xbf16>, vector<32x8xbf16>, vector<8x8xf32> -> vector<8x8xf32>
    %939 = vector.extract_strided_slice %847 {offsets = [0, 1, 0, 0], sizes = [1, 1, 1, 8], strides = [1, 1, 1, 1]} : vector<3x4x1x8xf32> to vector<1x1x1x8xf32>
    %940 = vector.shape_cast %939 : vector<1x1x1x8xf32> to vector<1x8xf32>
    %941 = vector.broadcast %940 : vector<1x8xf32> to vector<8x8xf32>
    %942 = arith.addf %938, %941 : vector<8x8xf32>
    %cst_326 = arith.constant 0.353553385 : f32
    %943 = vector.broadcast %cst_326 : f32 to vector<8x8xf32>
    %944 = arith.mulf %942, %943 : vector<8x8xf32>
    %945 = vector.extract_strided_slice %846 {offsets = [1, 1, 0, 0], sizes = [1, 1, 32, 8], strides = [1, 1, 1, 1]} : vector<3x4x32x8xbf16> to vector<1x1x32x8xbf16>
    %946 = vector.shape_cast %945 : vector<1x1x32x8xbf16> to vector<32x8xbf16>
    %947 = arith.truncf %880 : vector<8x32xf32> to vector<8x32xbf16>
    %cst_327 = arith.constant dense<0.000000e+00> : vector<8x8xf32>
    %948 = tpu.matmul %947, %946, %cst_327 {dimension_numbers = #tpu.dot_dimension_numbers<[1], [0], [0], [1], [0, 0, 1, 1], [], []>} : vector<8x32xbf16>, vector<32x8xbf16>, vector<8x8xf32> -> vector<8x8xf32>
    %949 = vector.extract_strided_slice %847 {offsets = [1, 1, 0, 0], sizes = [1, 1, 1, 8], strides = [1, 1, 1, 1]} : vector<3x4x1x8xf32> to vector<1x1x1x8xf32>
    %950 = vector.shape_cast %949 : vector<1x1x1x8xf32> to vector<1x8xf32>
    %951 = vector.broadcast %950 : vector<1x8xf32> to vector<8x8xf32>
    %952 = arith.addf %948, %951 : vector<8x8xf32>
    %953 = vector.extract_strided_slice %846 {offsets = [2, 1, 0, 0], sizes = [1, 1, 32, 8], strides = [1, 1, 1, 1]} : vector<3x4x32x8xbf16> to vector<1x1x32x8xbf16>
    %954 = vector.shape_cast %953 : vector<1x1x32x8xbf16> to vector<32x8xbf16>
    %955 = arith.truncf %880 : vector<8x32xf32> to vector<8x32xbf16>
    %cst_328 = arith.constant dense<0.000000e+00> : vector<8x8xf32>
    %956 = tpu.matmul %955, %954, %cst_328 {dimension_numbers = #tpu.dot_dimension_numbers<[1], [0], [0], [1], [0, 0, 1, 1], [], []>} : vector<8x32xbf16>, vector<32x8xbf16>, vector<8x8xf32> -> vector<8x8xf32>
    %957 = vector.extract_strided_slice %847 {offsets = [2, 1, 0, 0], sizes = [1, 1, 1, 8], strides = [1, 1, 1, 1]} : vector<3x4x1x8xf32> to vector<1x1x1x8xf32>
    %958 = vector.shape_cast %957 : vector<1x1x1x8xf32> to vector<1x8xf32>
    %959 = vector.broadcast %958 : vector<1x8xf32> to vector<8x8xf32>
    %960 = arith.addf %956, %959 : vector<8x8xf32>
    %961 = vector.shape_cast %944 : vector<8x8xf32> to vector<1x8x8xf32>
    %962 = vector.shape_cast %952 : vector<8x8xf32> to vector<1x8x8xf32>
    %963 = vector.shape_cast %960 : vector<8x8xf32> to vector<1x8x8xf32>
    %cst_329 = arith.constant dense<0.000000e+00> : vector<1x8x8xf32>
    %964 = tpu.matmul %961, %962, %cst_329 {dimension_numbers = #tpu.dot_dimension_numbers<[2], [2], [1], [1], [0, 0, 0, 1, 1, 1], [0], [0]>} : vector<1x8x8xf32>, vector<1x8x8xf32>, vector<1x8x8xf32> -> vector<1x8x8xf32>
    %965 = vector.extract_strided_slice %848 {offsets = [1, 0, 0], sizes = [1, 8, 8], strides = [1, 1, 1]} : vector<4x8x8xf32> to vector<1x8x8xf32>
    %966 = vector.shape_cast %965 : vector<1x8x8xf32> to vector<8x8xf32>
    %967 = vector.shape_cast %966 : vector<8x8xf32> to vector<1x8x8xf32>
    %968 = arith.addf %964, %967 : vector<1x8x8xf32>
    %cst_330 = arith.constant dense<0xFF800000> : vector<1x8xf32>
    %969 = vector.multi_reduction <maximumf>, %968, %cst_330 [2] : vector<1x8x8xf32> to vector<1x8xf32>
    %970 = vector.shape_cast %969 : vector<1x8xf32> to vector<1x8x1xf32>
    %971 = vector.broadcast %970 : vector<1x8x1xf32> to vector<1x8x8xf32>
    %972 = arith.subf %968, %971 : vector<1x8x8xf32>
    %973 = math.exp %972 : vector<1x8x8xf32>
    %cst_331 = arith.constant dense<0.000000e+00> : vector<1x8xf32>
    %974 = vector.multi_reduction <add>, %973, %cst_331 [2] : vector<1x8x8xf32> to vector<1x8xf32>
    %975 = vector.shape_cast %974 : vector<1x8xf32> to vector<1x8x1xf32>
    %976 = tpu.reciprocal %975 {approx = true} : vector<1x8x1xf32> -> vector<1x8x1xf32>
    %977 = vector.broadcast %976 : vector<1x8x1xf32> to vector<1x8x8xf32>
    %978 = arith.mulf %973, %977 : vector<1x8x8xf32>
    %979 = arith.truncf %978 : vector<1x8x8xf32> to vector<1x8x8xbf16>
    %980 = arith.truncf %963 : vector<1x8x8xf32> to vector<1x8x8xbf16>
    %cst_332 = arith.constant dense<0.000000e+00> : vector<1x8x8xf32>
    %981 = tpu.matmul %979, %980, %cst_332 {dimension_numbers = #tpu.dot_dimension_numbers<[2], [1], [1], [2], [0, 0, 0, 1, 1, 2], [0], [0]>} : vector<1x8x8xbf16>, vector<1x8x8xbf16>, vector<1x8x8xf32> -> vector<1x8x8xf32>
    %982 = vector.shape_cast %981 : vector<1x8x8xf32> to vector<8x8xf32>
    %983 = vector.extract_strided_slice %849 {offsets = [1, 0, 0], sizes = [1, 8, 32], strides = [1, 1, 1]} : vector<4x8x32xbf16> to vector<1x8x32xbf16>
    %984 = vector.shape_cast %983 : vector<1x8x32xbf16> to vector<8x32xbf16>
    %985 = arith.truncf %982 : vector<8x8xf32> to vector<8x8xbf16>
    %cst_333 = arith.constant dense<0.000000e+00> : vector<8x32xf32>
    %986 = tpu.matmul %985, %984, %cst_333 {dimension_numbers = #tpu.dot_dimension_numbers<[1], [0], [0], [1], [0, 0, 1, 1], [], []>} : vector<8x8xbf16>, vector<8x32xbf16>, vector<8x32xf32> -> vector<8x32xf32>
    %987 = arith.addf %934, %986 : vector<8x32xf32>
    %988 = vector.extract_strided_slice %846 {offsets = [0, 2, 0, 0], sizes = [1, 1, 32, 8], strides = [1, 1, 1, 1]} : vector<3x4x32x8xbf16> to vector<1x1x32x8xbf16>
    %989 = vector.shape_cast %988 : vector<1x1x32x8xbf16> to vector<32x8xbf16>
    %990 = arith.truncf %880 : vector<8x32xf32> to vector<8x32xbf16>
    %cst_334 = arith.constant dense<0.000000e+00> : vector<8x8xf32>
    %991 = tpu.matmul %990, %989, %cst_334 {dimension_numbers = #tpu.dot_dimension_numbers<[1], [0], [0], [1], [0, 0, 1, 1], [], []>} : vector<8x32xbf16>, vector<32x8xbf16>, vector<8x8xf32> -> vector<8x8xf32>
    %992 = vector.extract_strided_slice %847 {offsets = [0, 2, 0, 0], sizes = [1, 1, 1, 8], strides = [1, 1, 1, 1]} : vector<3x4x1x8xf32> to vector<1x1x1x8xf32>
    %993 = vector.shape_cast %992 : vector<1x1x1x8xf32> to vector<1x8xf32>
    %994 = vector.broadcast %993 : vector<1x8xf32> to vector<8x8xf32>
    %995 = arith.addf %991, %994 : vector<8x8xf32>
    %cst_335 = arith.constant 0.353553385 : f32
    %996 = vector.broadcast %cst_335 : f32 to vector<8x8xf32>
    %997 = arith.mulf %995, %996 : vector<8x8xf32>
    %998 = vector.extract_strided_slice %846 {offsets = [1, 2, 0, 0], sizes = [1, 1, 32, 8], strides = [1, 1, 1, 1]} : vector<3x4x32x8xbf16> to vector<1x1x32x8xbf16>
    %999 = vector.shape_cast %998 : vector<1x1x32x8xbf16> to vector<32x8xbf16>
    %1000 = arith.truncf %880 : vector<8x32xf32> to vector<8x32xbf16>
    %cst_336 = arith.constant dense<0.000000e+00> : vector<8x8xf32>
    %1001 = tpu.matmul %1000, %999, %cst_336 {dimension_numbers = #tpu.dot_dimension_numbers<[1], [0], [0], [1], [0, 0, 1, 1], [], []>} : vector<8x32xbf16>, vector<32x8xbf16>, vector<8x8xf32> -> vector<8x8xf32>
    %1002 = vector.extract_strided_slice %847 {offsets = [1, 2, 0, 0], sizes = [1, 1, 1, 8], strides = [1, 1, 1, 1]} : vector<3x4x1x8xf32> to vector<1x1x1x8xf32>
    %1003 = vector.shape_cast %1002 : vector<1x1x1x8xf32> to vector<1x8xf32>
    %1004 = vector.broadcast %1003 : vector<1x8xf32> to vector<8x8xf32>
    %1005 = arith.addf %1001, %1004 : vector<8x8xf32>
    %1006 = vector.extract_strided_slice %846 {offsets = [2, 2, 0, 0], sizes = [1, 1, 32, 8], strides = [1, 1, 1, 1]} : vector<3x4x32x8xbf16> to vector<1x1x32x8xbf16>
    %1007 = vector.shape_cast %1006 : vector<1x1x32x8xbf16> to vector<32x8xbf16>
    %1008 = arith.truncf %880 : vector<8x32xf32> to vector<8x32xbf16>
    %cst_337 = arith.constant dense<0.000000e+00> : vector<8x8xf32>
    %1009 = tpu.matmul %1008, %1007, %cst_337 {dimension_numbers = #tpu.dot_dimension_numbers<[1], [0], [0], [1], [0, 0, 1, 1], [], []>} : vector<8x32xbf16>, vector<32x8xbf16>, vector<8x8xf32> -> vector<8x8xf32>
    %1010 = vector.extract_strided_slice %847 {offsets = [2, 2, 0, 0], sizes = [1, 1, 1, 8], strides = [1, 1, 1, 1]} : vector<3x4x1x8xf32> to vector<1x1x1x8xf32>
    %1011 = vector.shape_cast %1010 : vector<1x1x1x8xf32> to vector<1x8xf32>
    %1012 = vector.broadcast %1011 : vector<1x8xf32> to vector<8x8xf32>
    %1013 = arith.addf %1009, %1012 : vector<8x8xf32>
    %1014 = vector.shape_cast %997 : vector<8x8xf32> to vector<1x8x8xf32>
    %1015 = vector.shape_cast %1005 : vector<8x8xf32> to vector<1x8x8xf32>
    %1016 = vector.shape_cast %1013 : vector<8x8xf32> to vector<1x8x8xf32>
    %cst_338 = arith.constant dense<0.000000e+00> : vector<1x8x8xf32>
    %1017 = tpu.matmul %1014, %1015, %cst_338 {dimension_numbers = #tpu.dot_dimension_numbers<[2], [2], [1], [1], [0, 0, 0, 1, 1, 1], [0], [0]>} : vector<1x8x8xf32>, vector<1x8x8xf32>, vector<1x8x8xf32> -> vector<1x8x8xf32>
    %1018 = vector.extract_strided_slice %848 {offsets = [2, 0, 0], sizes = [1, 8, 8], strides = [1, 1, 1]} : vector<4x8x8xf32> to vector<1x8x8xf32>
    %1019 = vector.shape_cast %1018 : vector<1x8x8xf32> to vector<8x8xf32>
    %1020 = vector.shape_cast %1019 : vector<8x8xf32> to vector<1x8x8xf32>
    %1021 = arith.addf %1017, %1020 : vector<1x8x8xf32>
    %cst_339 = arith.constant dense<0xFF800000> : vector<1x8xf32>
    %1022 = vector.multi_reduction <maximumf>, %1021, %cst_339 [2] : vector<1x8x8xf32> to vector<1x8xf32>
    %1023 = vector.shape_cast %1022 : vector<1x8xf32> to vector<1x8x1xf32>
    %1024 = vector.broadcast %1023 : vector<1x8x1xf32> to vector<1x8x8xf32>
    %1025 = arith.subf %1021, %1024 : vector<1x8x8xf32>
    %1026 = math.exp %1025 : vector<1x8x8xf32>
    %cst_340 = arith.constant dense<0.000000e+00> : vector<1x8xf32>
    %1027 = vector.multi_reduction <add>, %1026, %cst_340 [2] : vector<1x8x8xf32> to vector<1x8xf32>
    %1028 = vector.shape_cast %1027 : vector<1x8xf32> to vector<1x8x1xf32>
    %1029 = tpu.reciprocal %1028 {approx = true} : vector<1x8x1xf32> -> vector<1x8x1xf32>
    %1030 = vector.broadcast %1029 : vector<1x8x1xf32> to vector<1x8x8xf32>
    %1031 = arith.mulf %1026, %1030 : vector<1x8x8xf32>
    %1032 = arith.truncf %1031 : vector<1x8x8xf32> to vector<1x8x8xbf16>
    %1033 = arith.truncf %1016 : vector<1x8x8xf32> to vector<1x8x8xbf16>
    %cst_341 = arith.constant dense<0.000000e+00> : vector<1x8x8xf32>
    %1034 = tpu.matmul %1032, %1033, %cst_341 {dimension_numbers = #tpu.dot_dimension_numbers<[2], [1], [1], [2], [0, 0, 0, 1, 1, 2], [0], [0]>} : vector<1x8x8xbf16>, vector<1x8x8xbf16>, vector<1x8x8xf32> -> vector<1x8x8xf32>
    %1035 = vector.shape_cast %1034 : vector<1x8x8xf32> to vector<8x8xf32>
    %1036 = vector.extract_strided_slice %849 {offsets = [2, 0, 0], sizes = [1, 8, 32], strides = [1, 1, 1]} : vector<4x8x32xbf16> to vector<1x8x32xbf16>
    %1037 = vector.shape_cast %1036 : vector<1x8x32xbf16> to vector<8x32xbf16>
    %1038 = arith.truncf %1035 : vector<8x8xf32> to vector<8x8xbf16>
    %cst_342 = arith.constant dense<0.000000e+00> : vector<8x32xf32>
    %1039 = tpu.matmul %1038, %1037, %cst_342 {dimension_numbers = #tpu.dot_dimension_numbers<[1], [0], [0], [1], [0, 0, 1, 1], [], []>} : vector<8x8xbf16>, vector<8x32xbf16>, vector<8x32xf32> -> vector<8x32xf32>
    %1040 = arith.addf %987, %1039 : vector<8x32xf32>
    %1041 = vector.extract_strided_slice %846 {offsets = [0, 3, 0, 0], sizes = [1, 1, 32, 8], strides = [1, 1, 1, 1]} : vector<3x4x32x8xbf16> to vector<1x1x32x8xbf16>
    %1042 = vector.shape_cast %1041 : vector<1x1x32x8xbf16> to vector<32x8xbf16>
    %1043 = arith.truncf %880 : vector<8x32xf32> to vector<8x32xbf16>
    %cst_343 = arith.constant dense<0.000000e+00> : vector<8x8xf32>
    %1044 = tpu.matmul %1043, %1042, %cst_343 {dimension_numbers = #tpu.dot_dimension_numbers<[1], [0], [0], [1], [0, 0, 1, 1], [], []>} : vector<8x32xbf16>, vector<32x8xbf16>, vector<8x8xf32> -> vector<8x8xf32>
    %1045 = vector.extract_strided_slice %847 {offsets = [0, 3, 0, 0], sizes = [1, 1, 1, 8], strides = [1, 1, 1, 1]} : vector<3x4x1x8xf32> to vector<1x1x1x8xf32>
    %1046 = vector.shape_cast %1045 : vector<1x1x1x8xf32> to vector<1x8xf32>
    %1047 = vector.broadcast %1046 : vector<1x8xf32> to vector<8x8xf32>
    %1048 = arith.addf %1044, %1047 : vector<8x8xf32>
    %cst_344 = arith.constant 0.353553385 : f32
    %1049 = vector.broadcast %cst_344 : f32 to vector<8x8xf32>
    %1050 = arith.mulf %1048, %1049 : vector<8x8xf32>
    %1051 = vector.extract_strided_slice %846 {offsets = [1, 3, 0, 0], sizes = [1, 1, 32, 8], strides = [1, 1, 1, 1]} : vector<3x4x32x8xbf16> to vector<1x1x32x8xbf16>
    %1052 = vector.shape_cast %1051 : vector<1x1x32x8xbf16> to vector<32x8xbf16>
    %1053 = arith.truncf %880 : vector<8x32xf32> to vector<8x32xbf16>
    %cst_345 = arith.constant dense<0.000000e+00> : vector<8x8xf32>
    %1054 = tpu.matmul %1053, %1052, %cst_345 {dimension_numbers = #tpu.dot_dimension_numbers<[1], [0], [0], [1], [0, 0, 1, 1], [], []>} : vector<8x32xbf16>, vector<32x8xbf16>, vector<8x8xf32> -> vector<8x8xf32>
    %1055 = vector.extract_strided_slice %847 {offsets = [1, 3, 0, 0], sizes = [1, 1, 1, 8], strides = [1, 1, 1, 1]} : vector<3x4x1x8xf32> to vector<1x1x1x8xf32>
    %1056 = vector.shape_cast %1055 : vector<1x1x1x8xf32> to vector<1x8xf32>
    %1057 = vector.broadcast %1056 : vector<1x8xf32> to vector<8x8xf32>
    %1058 = arith.addf %1054, %1057 : vector<8x8xf32>
    %1059 = vector.extract_strided_slice %846 {offsets = [2, 3, 0, 0], sizes = [1, 1, 32, 8], strides = [1, 1, 1, 1]} : vector<3x4x32x8xbf16> to vector<1x1x32x8xbf16>
    %1060 = vector.shape_cast %1059 : vector<1x1x32x8xbf16> to vector<32x8xbf16>
    %1061 = arith.truncf %880 : vector<8x32xf32> to vector<8x32xbf16>
    %cst_346 = arith.constant dense<0.000000e+00> : vector<8x8xf32>
    %1062 = tpu.matmul %1061, %1060, %cst_346 {dimension_numbers = #tpu.dot_dimension_numbers<[1], [0], [0], [1], [0, 0, 1, 1], [], []>} : vector<8x32xbf16>, vector<32x8xbf16>, vector<8x8xf32> -> vector<8x8xf32>
    %1063 = vector.extract_strided_slice %847 {offsets = [2, 3, 0, 0], sizes = [1, 1, 1, 8], strides = [1, 1, 1, 1]} : vector<3x4x1x8xf32> to vector<1x1x1x8xf32>
    %1064 = vector.shape_cast %1063 : vector<1x1x1x8xf32> to vector<1x8xf32>
    %1065 = vector.broadcast %1064 : vector<1x8xf32> to vector<8x8xf32>
    %1066 = arith.addf %1062, %1065 : vector<8x8xf32>
    %1067 = vector.shape_cast %1050 : vector<8x8xf32> to vector<1x8x8xf32>
    %1068 = vector.shape_cast %1058 : vector<8x8xf32> to vector<1x8x8xf32>
    %1069 = vector.shape_cast %1066 : vector<8x8xf32> to vector<1x8x8xf32>
    %cst_347 = arith.constant dense<0.000000e+00> : vector<1x8x8xf32>
    %1070 = tpu.matmul %1067, %1068, %cst_347 {dimension_numbers = #tpu.dot_dimension_numbers<[2], [2], [1], [1], [0, 0, 0, 1, 1, 1], [0], [0]>} : vector<1x8x8xf32>, vector<1x8x8xf32>, vector<1x8x8xf32> -> vector<1x8x8xf32>
    %1071 = vector.extract_strided_slice %848 {offsets = [3, 0, 0], sizes = [1, 8, 8], strides = [1, 1, 1]} : vector<4x8x8xf32> to vector<1x8x8xf32>
    %1072 = vector.shape_cast %1071 : vector<1x8x8xf32> to vector<8x8xf32>
    %1073 = vector.shape_cast %1072 : vector<8x8xf32> to vector<1x8x8xf32>
    %1074 = arith.addf %1070, %1073 : vector<1x8x8xf32>
    %cst_348 = arith.constant dense<0xFF800000> : vector<1x8xf32>
    %1075 = vector.multi_reduction <maximumf>, %1074, %cst_348 [2] : vector<1x8x8xf32> to vector<1x8xf32>
    %1076 = vector.shape_cast %1075 : vector<1x8xf32> to vector<1x8x1xf32>
    %1077 = vector.broadcast %1076 : vector<1x8x1xf32> to vector<1x8x8xf32>
    %1078 = arith.subf %1074, %1077 : vector<1x8x8xf32>
    %1079 = math.exp %1078 : vector<1x8x8xf32>
    %cst_349 = arith.constant dense<0.000000e+00> : vector<1x8xf32>
    %1080 = vector.multi_reduction <add>, %1079, %cst_349 [2] : vector<1x8x8xf32> to vector<1x8xf32>
    %1081 = vector.shape_cast %1080 : vector<1x8xf32> to vector<1x8x1xf32>
    %1082 = tpu.reciprocal %1081 {approx = true} : vector<1x8x1xf32> -> vector<1x8x1xf32>
    %1083 = vector.broadcast %1082 : vector<1x8x1xf32> to vector<1x8x8xf32>
    %1084 = arith.mulf %1079, %1083 : vector<1x8x8xf32>
    %1085 = arith.truncf %1084 : vector<1x8x8xf32> to vector<1x8x8xbf16>
    %1086 = arith.truncf %1069 : vector<1x8x8xf32> to vector<1x8x8xbf16>
    %cst_350 = arith.constant dense<0.000000e+00> : vector<1x8x8xf32>
    %1087 = tpu.matmul %1085, %1086, %cst_350 {dimension_numbers = #tpu.dot_dimension_numbers<[2], [1], [1], [2], [0, 0, 0, 1, 1, 2], [0], [0]>} : vector<1x8x8xbf16>, vector<1x8x8xbf16>, vector<1x8x8xf32> -> vector<1x8x8xf32>
    %1088 = vector.shape_cast %1087 : vector<1x8x8xf32> to vector<8x8xf32>
    %1089 = vector.extract_strided_slice %849 {offsets = [3, 0, 0], sizes = [1, 8, 32], strides = [1, 1, 1]} : vector<4x8x32xbf16> to vector<1x8x32xbf16>
    %1090 = vector.shape_cast %1089 : vector<1x8x32xbf16> to vector<8x32xbf16>
    %1091 = arith.truncf %1088 : vector<8x8xf32> to vector<8x8xbf16>
    %cst_351 = arith.constant dense<0.000000e+00> : vector<8x32xf32>
    %1092 = tpu.matmul %1091, %1090, %cst_351 {dimension_numbers = #tpu.dot_dimension_numbers<[1], [0], [0], [1], [0, 0, 1, 1], [], []>} : vector<8x8xbf16>, vector<8x32xbf16>, vector<8x32xf32> -> vector<8x32xf32>
    %1093 = arith.addf %1040, %1092 : vector<8x32xf32>
    %1094 = vector.broadcast %850 : vector<1x32xf32> to vector<8x32xf32>
    %1095 = arith.addf %1093, %1094 : vector<8x32xf32>
    %1096 = arith.addf %841, %1095 : vector<8x32xf32>
    %cst_352 = arith.constant dense<0.000000e+00> : vector<8xf32>
    %1097 = vector.multi_reduction <add>, %1096, %cst_352 [1] : vector<8x32xf32> to vector<8xf32>
    %1098 = vector.shape_cast %1097 : vector<8xf32> to vector<8x1xf32>
    %cst_353 = arith.constant 3.200000e+01 : f32
    %1099 = vector.broadcast %cst_353 : f32 to vector<8x1xf32>
    %1100 = arith.divf %1098, %1099 : vector<8x1xf32>
    %1101 = vector.broadcast %1100 : vector<8x1xf32> to vector<8x32xf32>
    %1102 = arith.subf %1096, %1101 : vector<8x32xf32>
    %1103 = arith.mulf %1102, %1102 : vector<8x32xf32>
    %cst_354 = arith.constant dense<0.000000e+00> : vector<8xf32>
    %1104 = vector.multi_reduction <add>, %1103, %cst_354 [1] : vector<8x32xf32> to vector<8xf32>
    %1105 = vector.shape_cast %1104 : vector<8xf32> to vector<8x1xf32>
    %cst_355 = arith.constant 3.200000e+01 : f32
    %1106 = vector.broadcast %cst_355 : f32 to vector<8x1xf32>
    %1107 = arith.divf %1105, %1106 : vector<8x1xf32>
    %1108 = vector.broadcast %1100 : vector<8x1xf32> to vector<8x32xf32>
    %1109 = arith.subf %1096, %1108 : vector<8x32xf32>
    %cst_356 = arith.constant 9.99999974E-6 : f32
    %1110 = vector.broadcast %cst_356 : f32 to vector<8x1xf32>
    %1111 = arith.addf %1107, %1110 : vector<8x1xf32>
    %1112 = math.rsqrt %1111 : vector<8x1xf32>
    %1113 = vector.broadcast %1112 : vector<8x1xf32> to vector<8x32xf32>
    %1114 = arith.mulf %1109, %1113 : vector<8x32xf32>
    %1115 = vector.broadcast %852 : vector<1x32xf32> to vector<8x32xf32>
    %1116 = arith.mulf %1114, %1115 : vector<8x32xf32>
    %1117 = vector.broadcast %854 : vector<1x32xf32> to vector<8x32xf32>
    %1118 = arith.addf %1116, %1117 : vector<8x32xf32>
    %1119 = arith.truncf %1118 : vector<8x32xf32> to vector<8x32xbf16>
    %cst_357 = arith.constant dense<0.000000e+00> : vector<8x128xf32>
    %1120 = tpu.matmul %1119, %855, %cst_357 {dimension_numbers = #tpu.dot_dimension_numbers<[1], [0], [0], [1], [0, 0, 1, 1], [], []>} : vector<8x32xbf16>, vector<32x128xbf16>, vector<8x128xf32> -> vector<8x128xf32>
    %1121 = vector.broadcast %856 : vector<1x128xf32> to vector<8x128xf32>
    %1122 = arith.addf %1120, %1121 : vector<8x128xf32>
    %cst_358 = arith.constant 5.000000e-01 : f32
    %1123 = vector.broadcast %cst_358 : f32 to vector<8x128xf32>
    %1124 = arith.mulf %1123, %1122 : vector<8x128xf32>
    %cst_359 = arith.constant 0.707106769 : f32
    %1125 = vector.broadcast %cst_359 : f32 to vector<8x128xf32>
    %1126 = arith.mulf %1122, %1125 : vector<8x128xf32>
    %1127 = math.erf %1126 : vector<8x128xf32>
    %cst_360 = arith.constant 1.000000e+00 : f32
    %1128 = vector.broadcast %cst_360 : f32 to vector<8x128xf32>
    %1129 = arith.addf %1128, %1127 : vector<8x128xf32>
    %1130 = arith.mulf %1124, %1129 : vector<8x128xf32>
    %1131 = arith.truncf %1130 : vector<8x128xf32> to vector<8x128xbf16>
    %cst_361 = arith.constant dense<0.000000e+00> : vector<8x32xf32>
    %1132 = tpu.matmul %1131, %857, %cst_361 {dimension_numbers = #tpu.dot_dimension_numbers<[1], [0], [0], [1], [0, 0, 1, 1], [], []>} : vector<8x128xbf16>, vector<128x32xbf16>, vector<8x32xf32> -> vector<8x32xf32>
    %1133 = vector.broadcast %858 : vector<1x32xf32> to vector<8x32xf32>
    %1134 = arith.addf %1132, %1133 : vector<8x32xf32>
    %1135 = arith.addf %1096, %1134 : vector<8x32xf32>
    %c0_362 = arith.constant 0 : index
    %c0_363 = arith.constant 0 : index
    %1136 = vector.load %arg67[%c0_362, %c0_363] : memref<1x32xbf16, #tpu.memory_space<vmem>>, vector<1x32xbf16>
    %1137 = arith.extf %1136 : vector<1x32xbf16> to vector<1x32xf32>
    %c0_364 = arith.constant 0 : index
    %c0_365 = arith.constant 0 : index
    %1138 = vector.load %arg68[%c0_364, %c0_365] : memref<1x32xbf16, #tpu.memory_space<vmem>>, vector<1x32xbf16>
    %1139 = arith.extf %1138 : vector<1x32xbf16> to vector<1x32xf32>
    %c0_366 = arith.constant 0 : index
    %c0_367 = arith.constant 0 : index
    %1140 = vector.load %arg69[%c0_366, %c0_367] : memref<32x6xf32, #tpu.memory_space<vmem>>, vector<32x6xf32>
    %c0_368 = arith.constant 0 : index
    %c0_369 = arith.constant 0 : index
    %1141 = vector.load %arg70[%c0_368, %c0_369] : memref<1x6xf32, #tpu.memory_space<vmem>>, vector<1x6xf32>
    %cst_370 = arith.constant dense<0.000000e+00> : vector<8xf32>
    %1142 = vector.multi_reduction <add>, %1135, %cst_370 [1] : vector<8x32xf32> to vector<8xf32>
    %1143 = vector.shape_cast %1142 : vector<8xf32> to vector<8x1xf32>
    %cst_371 = arith.constant 3.200000e+01 : f32
    %1144 = vector.broadcast %cst_371 : f32 to vector<8x1xf32>
    %1145 = arith.divf %1143, %1144 : vector<8x1xf32>
    %1146 = vector.broadcast %1145 : vector<8x1xf32> to vector<8x32xf32>
    %1147 = arith.subf %1135, %1146 : vector<8x32xf32>
    %1148 = arith.mulf %1147, %1147 : vector<8x32xf32>
    %cst_372 = arith.constant dense<0.000000e+00> : vector<8xf32>
    %1149 = vector.multi_reduction <add>, %1148, %cst_372 [1] : vector<8x32xf32> to vector<8xf32>
    %1150 = vector.shape_cast %1149 : vector<8xf32> to vector<8x1xf32>
    %cst_373 = arith.constant 3.200000e+01 : f32
    %1151 = vector.broadcast %cst_373 : f32 to vector<8x1xf32>
    %1152 = arith.divf %1150, %1151 : vector<8x1xf32>
    %1153 = vector.broadcast %1145 : vector<8x1xf32> to vector<8x32xf32>
    %1154 = arith.subf %1135, %1153 : vector<8x32xf32>
    %cst_374 = arith.constant 9.99999974E-6 : f32
    %1155 = vector.broadcast %cst_374 : f32 to vector<8x1xf32>
    %1156 = arith.addf %1152, %1155 : vector<8x1xf32>
    %1157 = math.rsqrt %1156 : vector<8x1xf32>
    %1158 = vector.broadcast %1157 : vector<8x1xf32> to vector<8x32xf32>
    %1159 = arith.mulf %1154, %1158 : vector<8x32xf32>
    %1160 = vector.broadcast %1137 : vector<1x32xf32> to vector<8x32xf32>
    %1161 = arith.mulf %1159, %1160 : vector<8x32xf32>
    %1162 = vector.broadcast %1139 : vector<1x32xf32> to vector<8x32xf32>
    %1163 = arith.addf %1161, %1162 : vector<8x32xf32>
    %cst_375 = arith.constant dense<0.000000e+00> : vector<32xf32>
    %1164 = vector.multi_reduction <add>, %1163, %cst_375 [0] : vector<8x32xf32> to vector<32xf32>
    %1165 = vector.shape_cast %1164 : vector<32xf32> to vector<1x32xf32>
    %cst_376 = arith.constant 8.000000e+00 : f32
    %1166 = vector.broadcast %cst_376 : f32 to vector<1x32xf32>
    %1167 = arith.divf %1165, %1166 : vector<1x32xf32>
    %cst_377 = arith.constant dense<0.000000e+00> : vector<1x6xf32>
    %1168 = tpu.matmul %1167, %1140, %cst_377 {dimension_numbers = #tpu.dot_dimension_numbers<[1], [0], [0], [1], [0, 0, 1, 1], [], []>} : vector<1x32xf32>, vector<32x6xf32>, vector<1x6xf32> -> vector<1x6xf32>
    %1169 = arith.addf %1168, %1141 : vector<1x6xf32>
    %1170 = vector.shape_cast %1169 : vector<1x6xf32> to vector<1x1x6xf32>
    %c0_378 = arith.constant 0 : index
    %c0_379 = arith.constant 0 : index
    %c0_380 = arith.constant 0 : index
    %1171 = vector.load %arg71[%c0_378, %c0_379, %c0_380] : memref<1x1x6xf32, #tpu.memory_space<vmem>>, vector<1x1x6xf32>
    tpu.vector_store %arg71[%c0_378, %c0_379, %c0_380], %1170 {strides = array<i32>} : memref<1x1x6xf32, #tpu.memory_space<vmem>>, vector<1x1x6xf32>,
    return
  }
  func.func @transform_0(%arg0: i32) -> (i32, i32, i32) {
    %c0_i32 = arith.constant 0 : i32
    %c0_i32_0 = arith.constant 0 : i32
    %c0_i32_1 = arith.constant 0 : i32
    return %arg0, %c0_i32, %c0_i32_0 : i32, i32, i32
  }
  func.func @transform_1(%arg0: i32) -> (i32, i32) {
    %c0_i32 = arith.constant 0 : i32
    %c0_i32_0 = arith.constant 0 : i32
    %c0_i32_1 = arith.constant 0 : i32
    return %c0_i32, %c0_i32_0 : i32, i32
  }
  func.func @transform_2(%arg0: i32) -> (i32, i32) {
    %c0_i32 = arith.constant 0 : i32
    %c0_i32_0 = arith.constant 0 : i32
    %c0_i32_1 = arith.constant 0 : i32
    return %c0_i32, %c0_i32_0 : i32, i32
  }
  func.func @transform_3(%arg0: i32) -> (i32, i32) {
    %c0_i32 = arith.constant 0 : i32
    %c0_i32_0 = arith.constant 0 : i32
    %c0_i32_1 = arith.constant 0 : i32
    return %c0_i32, %c0_i32_0 : i32, i32
  }
  func.func @transform_4(%arg0: i32) -> (i32, i32) {
    %c0_i32 = arith.constant 0 : i32
    %c0_i32_0 = arith.constant 0 : i32
    %c0_i32_1 = arith.constant 0 : i32
    return %c0_i32, %c0_i32_0 : i32, i32
  }
  func.func @transform_5(%arg0: i32) -> (i32, i32) {
    %c0_i32 = arith.constant 0 : i32
    %c0_i32_0 = arith.constant 0 : i32
    %c0_i32_1 = arith.constant 0 : i32
    return %c0_i32, %c0_i32_0 : i32, i32
  }
  func.func @transform_6(%arg0: i32) -> (i32, i32) {
    %c0_i32 = arith.constant 0 : i32
    %c0_i32_0 = arith.constant 0 : i32
    %c0_i32_1 = arith.constant 0 : i32
    return %c0_i32, %c0_i32_0 : i32, i32
  }
  func.func @transform_7(%arg0: i32) -> (i32, i32) {
    %c0_i32 = arith.constant 0 : i32
    %c0_i32_0 = arith.constant 0 : i32
    %c0_i32_1 = arith.constant 0 : i32
    return %c0_i32, %c0_i32_0 : i32, i32
  }
  func.func @transform_8(%arg0: i32) -> (i32, i32) {
    %c0_i32 = arith.constant 0 : i32
    %c0_i32_0 = arith.constant 0 : i32
    %c0_i32_1 = arith.constant 0 : i32
    return %c0_i32, %c0_i32_0 : i32, i32
  }
  func.func @transform_9(%arg0: i32) -> (i32, i32, i32, i32) {
    %c0_i32 = arith.constant 0 : i32
    %c0_i32_0 = arith.constant 0 : i32
    %c0_i32_1 = arith.constant 0 : i32
    %c0_i32_2 = arith.constant 0 : i32
    %c0_i32_3 = arith.constant 0 : i32
    return %c0_i32, %c0_i32_0, %c0_i32_1, %c0_i32_2 : i32, i32, i32, i32
  }
  func.func @transform_10(%arg0: i32) -> (i32, i32, i32, i32) {
    %c0_i32 = arith.constant 0 : i32
    %c0_i32_0 = arith.constant 0 : i32
    %c0_i32_1 = arith.constant 0 : i32
    %c0_i32_2 = arith.constant 0 : i32
    %c0_i32_3 = arith.constant 0 : i32
    return %c0_i32, %c0_i32_0, %c0_i32_1, %c0_i32_2 : i32, i32, i32, i32
  }
  func.func @transform_11(%arg0: i32) -> (i32, i32, i32) {
    %c0_i32 = arith.constant 0 : i32
    %c0_i32_0 = arith.constant 0 : i32
    %c0_i32_1 = arith.constant 0 : i32
    %c0_i32_2 = arith.constant 0 : i32
    return %c0_i32, %c0_i32_0, %c0_i32_1 : i32, i32, i32
  }
  func.func @transform_12(%arg0: i32) -> (i32, i32, i32) {
    %c0_i32 = arith.constant 0 : i32
    %c0_i32_0 = arith.constant 0 : i32
    %c0_i32_1 = arith.constant 0 : i32
    %c0_i32_2 = arith.constant 0 : i32
    return %c0_i32, %c0_i32_0, %c0_i32_1 : i32, i32, i32
  }
  func.func @transform_13(%arg0: i32) -> (i32, i32) {
    %c0_i32 = arith.constant 0 : i32
    %c0_i32_0 = arith.constant 0 : i32
    %c0_i32_1 = arith.constant 0 : i32
    return %c0_i32, %c0_i32_0 : i32, i32
  }
  func.func @transform_14(%arg0: i32) -> (i32, i32) {
    %c0_i32 = arith.constant 0 : i32
    %c0_i32_0 = arith.constant 0 : i32
    %c0_i32_1 = arith.constant 0 : i32
    return %c0_i32, %c0_i32_0 : i32, i32
  }
  func.func @transform_15(%arg0: i32) -> (i32, i32) {
    %c0_i32 = arith.constant 0 : i32
    %c0_i32_0 = arith.constant 0 : i32
    %c0_i32_1 = arith.constant 0 : i32
    return %c0_i32, %c0_i32_0 : i32, i32
  }
  func.func @transform_16(%arg0: i32) -> (i32, i32) {
    %c0_i32 = arith.constant 0 : i32
    %c0_i32_0 = arith.constant 0 : i32
    %c0_i32_1 = arith.constant 0 : i32
    return %c0_i32, %c0_i32_0 : i32, i32
  }
  func.func @transform_17(%arg0: i32) -> (i32, i32) {
    %c0_i32 = arith.constant 0 : i32
    %c0_i32_0 = arith.constant 0 : i32
    %c0_i32_1 = arith.constant 0 : i32
    return %c0_i32, %c0_i32_0 : i32, i32
  }
  func.func @transform_18(%arg0: i32) -> (i32, i32) {
    %c0_i32 = arith.constant 0 : i32
    %c0_i32_0 = arith.constant 0 : i32
    %c0_i32_1 = arith.constant 0 : i32
    return %c0_i32, %c0_i32_0 : i32, i32
  }
  func.func @transform_19(%arg0: i32) -> (i32, i32) {
    %c0_i32 = arith.constant 0 : i32
    %c0_i32_0 = arith.constant 0 : i32
    %c0_i32_1 = arith.constant 0 : i32
    return %c0_i32, %c0_i32_0 : i32, i32
  }
  func.func @transform_20(%arg0: i32) -> (i32, i32) {
    %c0_i32 = arith.constant 0 : i32
    %c0_i32_0 = arith.constant 0 : i32
    %c0_i32_1 = arith.constant 0 : i32
    return %c0_i32, %c0_i32_0 : i32, i32
  }
  func.func @transform_21(%arg0: i32) -> (i32, i32) {
    %c0_i32 = arith.constant 0 : i32
    %c0_i32_0 = arith.constant 0 : i32
    %c0_i32_1 = arith.constant 0 : i32
    return %c0_i32, %c0_i32_0 : i32, i32
  }
  func.func @transform_22(%arg0: i32) -> (i32, i32) {
    %c0_i32 = arith.constant 0 : i32
    %c0_i32_0 = arith.constant 0 : i32
    %c0_i32_1 = arith.constant 0 : i32
    return %c0_i32, %c0_i32_0 : i32, i32
  }
  func.func @transform_23(%arg0: i32) -> (i32, i32) {
    %c0_i32 = arith.constant 0 : i32
    %c0_i32_0 = arith.constant 0 : i32
    %c0_i32_1 = arith.constant 0 : i32
    return %c0_i32, %c0_i32_0 : i32, i32
  }
  func.func @transform_24(%arg0: i32) -> (i32, i32, i32, i32) {
    %c0_i32 = arith.constant 0 : i32
    %c0_i32_0 = arith.constant 0 : i32
    %c0_i32_1 = arith.constant 0 : i32
    %c0_i32_2 = arith.constant 0 : i32
    %c0_i32_3 = arith.constant 0 : i32
    return %c0_i32, %c0_i32_0, %c0_i32_1, %c0_i32_2 : i32, i32, i32, i32
  }
  func.func @transform_25(%arg0: i32) -> (i32, i32, i32, i32) {
    %c0_i32 = arith.constant 0 : i32
    %c0_i32_0 = arith.constant 0 : i32
    %c0_i32_1 = arith.constant 0 : i32
    %c0_i32_2 = arith.constant 0 : i32
    %c0_i32_3 = arith.constant 0 : i32
    return %c0_i32, %c0_i32_0, %c0_i32_1, %c0_i32_2 : i32, i32, i32, i32
  }
  func.func @transform_26(%arg0: i32) -> (i32, i32, i32) {
    %c0_i32 = arith.constant 0 : i32
    %c0_i32_0 = arith.constant 0 : i32
    %c0_i32_1 = arith.constant 0 : i32
    %c0_i32_2 = arith.constant 0 : i32
    return %c0_i32, %c0_i32_0, %c0_i32_1 : i32, i32, i32
  }
  func.func @transform_27(%arg0: i32) -> (i32, i32, i32) {
    %c0_i32 = arith.constant 0 : i32
    %c0_i32_0 = arith.constant 0 : i32
    %c0_i32_1 = arith.constant 0 : i32
    %c0_i32_2 = arith.constant 0 : i32
    return %c0_i32, %c0_i32_0, %c0_i32_1 : i32, i32, i32
  }
  func.func @transform_28(%arg0: i32) -> (i32, i32, i32) {
    %c0_i32 = arith.constant 0 : i32
    %c0_i32_0 = arith.constant 0 : i32
    %c0_i32_1 = arith.constant 0 : i32
    %c0_i32_2 = arith.constant 0 : i32
    return %c0_i32, %c0_i32_0, %c0_i32_1 : i32, i32, i32
  }
  func.func @transform_29(%arg0: i32) -> (i32, i32) {
    %c0_i32 = arith.constant 0 : i32
    %c0_i32_0 = arith.constant 0 : i32
    %c0_i32_1 = arith.constant 0 : i32
    return %c0_i32, %c0_i32_0 : i32, i32
  }
  func.func @transform_30(%arg0: i32) -> (i32, i32) {
    %c0_i32 = arith.constant 0 : i32
    %c0_i32_0 = arith.constant 0 : i32
    %c0_i32_1 = arith.constant 0 : i32
    return %c0_i32, %c0_i32_0 : i32, i32
  }
  func.func @transform_31(%arg0: i32) -> (i32, i32) {
    %c0_i32 = arith.constant 0 : i32
    %c0_i32_0 = arith.constant 0 : i32
    %c0_i32_1 = arith.constant 0 : i32
    return %c0_i32, %c0_i32_0 : i32, i32
  }
  func.func @transform_32(%arg0: i32) -> (i32, i32) {
    %c0_i32 = arith.constant 0 : i32
    %c0_i32_0 = arith.constant 0 : i32
    %c0_i32_1 = arith.constant 0 : i32
    return %c0_i32, %c0_i32_0 : i32, i32
  }
  func.func @transform_33(%arg0: i32) -> (i32, i32) {
    %c0_i32 = arith.constant 0 : i32
    %c0_i32_0 = arith.constant 0 : i32
    %c0_i32_1 = arith.constant 0 : i32
    return %c0_i32, %c0_i32_0 : i32, i32
  }
  func.func @transform_34(%arg0: i32) -> (i32, i32) {
    %c0_i32 = arith.constant 0 : i32
    %c0_i32_0 = arith.constant 0 : i32
    %c0_i32_1 = arith.constant 0 : i32
    return %c0_i32, %c0_i32_0 : i32, i32
  }
  func.func @transform_35(%arg0: i32) -> (i32, i32) {
    %c0_i32 = arith.constant 0 : i32
    %c0_i32_0 = arith.constant 0 : i32
    %c0_i32_1 = arith.constant 0 : i32
    return %c0_i32, %c0_i32_0 : i32, i32
  }
  func.func @transform_36(%arg0: i32) -> (i32, i32, i32) {
    %c0_i32 = arith.constant 0 : i32
    %c0_i32_0 = arith.constant 0 : i32
    %c0_i32_1 = arith.constant 0 : i32
    %c0_i32_2 = arith.constant 0 : i32
    return %c0_i32, %c0_i32_0, %c0_i32_1 : i32, i32, i32
  }
  func.func @transform_37(%arg0: i32) -> (i32, i32) {
    %c0_i32 = arith.constant 0 : i32
    %c0_i32_0 = arith.constant 0 : i32
    %c0_i32_1 = arith.constant 0 : i32
    return %c0_i32, %c0_i32_0 : i32, i32
  }
  func.func @transform_38(%arg0: i32) -> (i32, i32) {
    %c0_i32 = arith.constant 0 : i32
    %c0_i32_0 = arith.constant 0 : i32
    %c0_i32_1 = arith.constant 0 : i32
    return %c0_i32, %c0_i32_0 : i32, i32
  }
  func.func @transform_39(%arg0: i32) -> (i32, i32, i32) {
    %c0_i32 = arith.constant 0 : i32
    %c0_i32_0 = arith.constant 0 : i32
    %c0_i32_1 = arith.constant 0 : i32
    %c0_i32_2 = arith.constant 0 : i32
    return %c0_i32, %c0_i32_0, %c0_i32_1 : i32, i32, i32
  }
  func.func @transform_40(%arg0: i32) -> (i32, i32) {
    %c0_i32 = arith.constant 0 : i32
    %c0_i32_0 = arith.constant 0 : i32
    %c0_i32_1 = arith.constant 0 : i32
    return %c0_i32, %c0_i32_0 : i32, i32
  }
  func.func @transform_41(%arg0: i32) -> (i32, i32) {
    %c0_i32 = arith.constant 0 : i32
    %c0_i32_0 = arith.constant 0 : i32
    %c0_i32_1 = arith.constant 0 : i32
    return %c0_i32, %c0_i32_0 : i32, i32
  }
  func.func @transform_42(%arg0: i32) -> (i32, i32, i32, i32) {
    %c0_i32 = arith.constant 0 : i32
    %c0_i32_0 = arith.constant 0 : i32
    %c0_i32_1 = arith.constant 0 : i32
    %c0_i32_2 = arith.constant 0 : i32
    %c0_i32_3 = arith.constant 0 : i32
    return %c0_i32, %c0_i32_0, %c0_i32_1, %c0_i32_2 : i32, i32, i32, i32
  }
  func.func @transform_43(%arg0: i32) -> (i32, i32, i32, i32) {
    %c0_i32 = arith.constant 0 : i32
    %c0_i32_0 = arith.constant 0 : i32
    %c0_i32_1 = arith.constant 0 : i32
    %c0_i32_2 = arith.constant 0 : i32
    %c0_i32_3 = arith.constant 0 : i32
    return %c0_i32, %c0_i32_0, %c0_i32_1, %c0_i32_2 : i32, i32, i32, i32
  }
  func.func @transform_44(%arg0: i32) -> (i32, i32, i32) {
    %c0_i32 = arith.constant 0 : i32
    %c0_i32_0 = arith.constant 0 : i32
    %c0_i32_1 = arith.constant 0 : i32
    %c0_i32_2 = arith.constant 0 : i32
    return %c0_i32, %c0_i32_0, %c0_i32_1 : i32, i32, i32
  }
  func.func @transform_45(%arg0: i32) -> (i32, i32, i32) {
    %c0_i32 = arith.constant 0 : i32
    %c0_i32_0 = arith.constant 0 : i32
    %c0_i32_1 = arith.constant 0 : i32
    %c0_i32_2 = arith.constant 0 : i32
    return %c0_i32, %c0_i32_0, %c0_i32_1 : i32, i32, i32
  }
  func.func @transform_46(%arg0: i32) -> (i32, i32) {
    %c0_i32 = arith.constant 0 : i32
    %c0_i32_0 = arith.constant 0 : i32
    %c0_i32_1 = arith.constant 0 : i32
    return %c0_i32, %c0_i32_0 : i32, i32
  }
  func.func @transform_47(%arg0: i32) -> (i32, i32) {
    %c0_i32 = arith.constant 0 : i32
    %c0_i32_0 = arith.constant 0 : i32
    %c0_i32_1 = arith.constant 0 : i32
    return %c0_i32, %c0_i32_0 : i32, i32
  }
  func.func @transform_48(%arg0: i32) -> (i32, i32) {
    %c0_i32 = arith.constant 0 : i32
    %c0_i32_0 = arith.constant 0 : i32
    %c0_i32_1 = arith.constant 0 : i32
    return %c0_i32, %c0_i32_0 : i32, i32
  }
  func.func @transform_49(%arg0: i32) -> (i32, i32) {
    %c0_i32 = arith.constant 0 : i32
    %c0_i32_0 = arith.constant 0 : i32
    %c0_i32_1 = arith.constant 0 : i32
    return %c0_i32, %c0_i32_0 : i32, i32
  }
  func.func @transform_50(%arg0: i32) -> (i32, i32) {
    %c0_i32 = arith.constant 0 : i32
    %c0_i32_0 = arith.constant 0 : i32
    %c0_i32_1 = arith.constant 0 : i32
    return %c0_i32, %c0_i32_0 : i32, i32
  }
  func.func @transform_51(%arg0: i32) -> (i32, i32) {
    %c0_i32 = arith.constant 0 : i32
    %c0_i32_0 = arith.constant 0 : i32
    %c0_i32_1 = arith.constant 0 : i32
    return %c0_i32, %c0_i32_0 : i32, i32
  }
  func.func @transform_52(%arg0: i32) -> (i32, i32) {
    %c0_i32 = arith.constant 0 : i32
    %c0_i32_0 = arith.constant 0 : i32
    %c0_i32_1 = arith.constant 0 : i32
    return %c0_i32, %c0_i32_0 : i32, i32
  }
  func.func @transform_53(%arg0: i32) -> (i32, i32) {
    %c0_i32 = arith.constant 0 : i32
    %c0_i32_0 = arith.constant 0 : i32
    %c0_i32_1 = arith.constant 0 : i32
    return %c0_i32, %c0_i32_0 : i32, i32
  }
  func.func @transform_54(%arg0: i32) -> (i32, i32) {
    %c0_i32 = arith.constant 0 : i32
    %c0_i32_0 = arith.constant 0 : i32
    %c0_i32_1 = arith.constant 0 : i32
    return %c0_i32, %c0_i32_0 : i32, i32
  }
  func.func @transform_55(%arg0: i32) -> (i32, i32, i32, i32) {
    %c0_i32 = arith.constant 0 : i32
    %c0_i32_0 = arith.constant 0 : i32
    %c0_i32_1 = arith.constant 0 : i32
    %c0_i32_2 = arith.constant 0 : i32
    %c0_i32_3 = arith.constant 0 : i32
    return %c0_i32, %c0_i32_0, %c0_i32_1, %c0_i32_2 : i32, i32, i32, i32
  }
  func.func @transform_56(%arg0: i32) -> (i32, i32, i32, i32) {
    %c0_i32 = arith.constant 0 : i32
    %c0_i32_0 = arith.constant 0 : i32
    %c0_i32_1 = arith.constant 0 : i32
    %c0_i32_2 = arith.constant 0 : i32
    %c0_i32_3 = arith.constant 0 : i32
    return %c0_i32, %c0_i32_0, %c0_i32_1, %c0_i32_2 : i32, i32, i32, i32
  }
  func.func @transform_57(%arg0: i32) -> (i32, i32, i32) {
    %c0_i32 = arith.constant 0 : i32
    %c0_i32_0 = arith.constant 0 : i32
    %c0_i32_1 = arith.constant 0 : i32
    %c0_i32_2 = arith.constant 0 : i32
    return %c0_i32, %c0_i32_0, %c0_i32_1 : i32, i32, i32
  }
  func.func @transform_58(%arg0: i32) -> (i32, i32, i32) {
    %c0_i32 = arith.constant 0 : i32
    %c0_i32_0 = arith.constant 0 : i32
    %c0_i32_1 = arith.constant 0 : i32
    %c0_i32_2 = arith.constant 0 : i32
    return %c0_i32, %c0_i32_0, %c0_i32_1 : i32, i32, i32
  }
  func.func @transform_59(%arg0: i32) -> (i32, i32) {
    %c0_i32 = arith.constant 0 : i32
    %c0_i32_0 = arith.constant 0 : i32
    %c0_i32_1 = arith.constant 0 : i32
    return %c0_i32, %c0_i32_0 : i32, i32
  }
  func.func @transform_60(%arg0: i32) -> (i32, i32) {
    %c0_i32 = arith.constant 0 : i32
    %c0_i32_0 = arith.constant 0 : i32
    %c0_i32_1 = arith.constant 0 : i32
    return %c0_i32, %c0_i32_0 : i32, i32
  }
  func.func @transform_61(%arg0: i32) -> (i32, i32) {
    %c0_i32 = arith.constant 0 : i32
    %c0_i32_0 = arith.constant 0 : i32
    %c0_i32_1 = arith.constant 0 : i32
    return %c0_i32, %c0_i32_0 : i32, i32
  }
  func.func @transform_62(%arg0: i32) -> (i32, i32) {
    %c0_i32 = arith.constant 0 : i32
    %c0_i32_0 = arith.constant 0 : i32
    %c0_i32_1 = arith.constant 0 : i32
    return %c0_i32, %c0_i32_0 : i32, i32
  }
  func.func @transform_63(%arg0: i32) -> (i32, i32) {
    %c0_i32 = arith.constant 0 : i32
    %c0_i32_0 = arith.constant 0 : i32
    %c0_i32_1 = arith.constant 0 : i32
    return %c0_i32, %c0_i32_0 : i32, i32
  }
  func.func @transform_64(%arg0: i32) -> (i32, i32) {
    %c0_i32 = arith.constant 0 : i32
    %c0_i32_0 = arith.constant 0 : i32
    %c0_i32_1 = arith.constant 0 : i32
    return %c0_i32, %c0_i32_0 : i32, i32
  }
  func.func @transform_65(%arg0: i32) -> (i32, i32) {
    %c0_i32 = arith.constant 0 : i32
    %c0_i32_0 = arith.constant 0 : i32
    %c0_i32_1 = arith.constant 0 : i32
    return %c0_i32, %c0_i32_0 : i32, i32
  }
  func.func @transform_66(%arg0: i32) -> (i32, i32) {
    %c0_i32 = arith.constant 0 : i32
    %c0_i32_0 = arith.constant 0 : i32
    %c0_i32_1 = arith.constant 0 : i32
    return %c0_i32, %c0_i32_0 : i32, i32
  }
  func.func @transform_67(%arg0: i32) -> (i32, i32) {
    %c0_i32 = arith.constant 0 : i32
    %c0_i32_0 = arith.constant 0 : i32
    %c0_i32_1 = arith.constant 0 : i32
    return %c0_i32, %c0_i32_0 : i32, i32
  }
  func.func @transform_68(%arg0: i32) -> (i32, i32) {
    %c0_i32 = arith.constant 0 : i32
    %c0_i32_0 = arith.constant 0 : i32
    %c0_i32_1 = arith.constant 0 : i32
    return %c0_i32, %c0_i32_0 : i32, i32
  }
  func.func @transform_69(%arg0: i32) -> (i32, i32) {
    %c0_i32 = arith.constant 0 : i32
    %c0_i32_0 = arith.constant 0 : i32
    %c0_i32_1 = arith.constant 0 : i32
    return %c0_i32, %c0_i32_0 : i32, i32
  }
  func.func @transform_70(%arg0: i32) -> (i32, i32, i32) {
    %c0_i32 = arith.constant 0 : i32
    %c0_i32_0 = arith.constant 0 : i32
    %c0_i32_1 = arith.constant 0 : i32
    return %arg0, %c0_i32, %c0_i32_0 : i32, i32, i32
  }
}

</mosaic_0001>

<llo_original>
// kernel: omni_transformer_v3_forward.1
$region0: #{omni_transformer_v3_forward.1}
  #allocation0 [shape = 'u32[]', space=smem, size = 0x4, offset = 0x4, fixed_abs, tag = 'smem constant byte address 0x4 - core index']
  #allocation1 [shape = 'u32[72,128]{1,0:T(1,128)}', space=vmem, size = 0x9000, scoped, tag = 'internal scratch']
  %s0 = inlined_call_operand.smem [shape: u32[71], index: -1, kind: input, shape index: {}]
  %s1 = sld [smem:[%s0]]
  %s2 = scalar_lea.smem %s0, 1
  %s3 = sld [smem:[%s2]]
  %s4 = scalar_lea.smem %s0, 2
  %s5 = sld [smem:[%s4]]
  %s6 = scalar_lea.smem %s0, 3
  %s7 = sld [smem:[%s6]]
  %s8 = scalar_lea.smem %s0, 4
  %s9 = sld [smem:[%s8]]
  %s10 = scalar_lea.smem %s0, 5
  %s11 = sld [smem:[%s10]]
  %s12 = scalar_lea.smem %s0, 6
  %s13 = sld [smem:[%s12]]
  %s14 = scalar_lea.smem %s0, 7
  %s15 = sld [smem:[%s14]]
  %s16 = scalar_lea.smem %s0, 8
  %s17 = sld [smem:[%s16]]
  %s18 = scalar_lea.smem %s0, 9
  %s19 = sld [smem:[%s18]]
  %s20 = scalar_lea.smem %s0, 10
  %s21 = sld [smem:[%s20]]
  %s22 = scalar_lea.smem %s0, 11
  %s23 = sld [smem:[%s22]]
  %s24 = scalar_lea.smem %s0, 12
  %s25 = sld [smem:[%s24]]
  %s26 = scalar_lea.smem %s0, 13
  %s27 = sld [smem:[%s26]]
  %s28 = scalar_lea.smem %s0, 14
  %s29 = sld [smem:[%s28]]
  %s30 = scalar_lea.smem %s0, 15
  %s31 = sld [smem:[%s30]]
  %s32 = scalar_lea.smem %s0, 16
  %s33 = sld [smem:[%s32]]
  %s34 = scalar_lea.smem %s0, 17
  %s35 = sld [smem:[%s34]]
  %s36 = scalar_lea.smem %s0, 18
  %s37 = sld [smem:[%s36]]
  %s38 = scalar_lea.smem %s0, 19
  %s39 = sld [smem:[%s38]]
  %s40 = scalar_lea.smem %s0, 20
  %s41 = sld [smem:[%s40]]
  %s42 = scalar_lea.smem %s0, 21
  %s43 = sld [smem:[%s42]]
  %s44 = scalar_lea.smem %s0, 22
  %s45 = sld [smem:[%s44]]
  %s46 = scalar_lea.smem %s0, 23
  %s47 = sld [smem:[%s46]]
  %s48 = scalar_lea.smem %s0, 24
  %s49 = sld [smem:[%s48]]
  %s50 = scalar_lea.smem %s0, 25
  %s51 = sld [smem:[%s50]]
  %s52 = scalar_lea.smem %s0, 26
  %s53 = sld [smem:[%s52]]
  %s54 = scalar_lea.smem %s0, 27
  %s55 = sld [smem:[%s54]]
  %s56 = scalar_lea.smem %s0, 28
  %s57 = sld [smem:[%s56]]
  %s58 = scalar_lea.smem %s0, 29
  %s59 = sld [smem:[%s58]]
  %s60 = scalar_lea.smem %s0, 30
  %s61 = sld [smem:[%s60]]
  %s62 = scalar_lea.smem %s0, 31
  %s63 = sld [smem:[%s62]]
  %s64 = scalar_lea.smem %s0, 32
  %s65 = sld [smem:[%s64]]
  %s66 = scalar_lea.smem %s0, 33
  %s67 = sld [smem:[%s66]]
  %s68 = scalar_lea.smem %s0, 34
  %s69 = sld [smem:[%s68]]
  %s70 = scalar_lea.smem %s0, 35
  %s71 = sld [smem:[%s70]]
  %s72 = scalar_lea.smem %s0, 36
  %s73 = sld [smem:[%s72]]
  %s74 = scalar_lea.smem %s0, 37
  %s75 = sld [smem:[%s74]]
  %s76 = scalar_lea.smem %s0, 38
  %s77 = sld [smem:[%s76]]
  %s78 = scalar_lea.smem %s0, 39
  %s79 = sld [smem:[%s78]]
  %s80 = scalar_lea.smem %s0, 40
  %s81 = sld [smem:[%s80]]
  %s82 = scalar_lea.smem %s0, 41
  %s83 = sld [smem:[%s82]]
  %s84 = scalar_lea.smem %s0, 42
  %s85 = sld [smem:[%s84]]
  %s86 = scalar_lea.smem %s0, 43
  %s87 = sld [smem:[%s86]]
  %s88 = scalar_lea.smem %s0, 44
  %s89 = sld [smem:[%s88]]
  %s90 = scalar_lea.smem %s0, 45
  %s91 = sld [smem:[%s90]]
  %s92 = scalar_lea.smem %s0, 46
  %s93 = sld [smem:[%s92]]
  %s94 = scalar_lea.smem %s0, 47
  %s95 = sld [smem:[%s94]]
  %s96 = scalar_lea.smem %s0, 48
  %s97 = sld [smem:[%s96]]
  %s98 = scalar_lea.smem %s0, 49
  %s99 = sld [smem:[%s98]]
  %s100 = scalar_lea.smem %s0, 50
  %s101 = sld [smem:[%s100]]
  %s102 = scalar_lea.smem %s0, 51
  %s103 = sld [smem:[%s102]]
  %s104 = scalar_lea.smem %s0, 52
  %s105 = sld [smem:[%s104]]
  %s106 = scalar_lea.smem %s0, 53
  %s107 = sld [smem:[%s106]]
  %s108 = scalar_lea.smem %s0, 54
  %s109 = sld [smem:[%s108]]
  %s110 = scalar_lea.smem %s0, 55
  %s111 = sld [smem:[%s110]]
  %s112 = scalar_lea.smem %s0, 56
  %s113 = sld [smem:[%s112]]
  %s114 = scalar_lea.smem %s0, 57
  %s115 = sld [smem:[%s114]]
  %s116 = scalar_lea.smem %s0, 58
  %s117 = sld [smem:[%s116]]
  %s118 = scalar_lea.smem %s0, 59
  %s119 = sld [smem:[%s118]]
  %s120 = scalar_lea.smem %s0, 60
  %s121 = sld [smem:[%s120]]
  %s122 = scalar_lea.smem %s0, 61
  %s123 = sld [smem:[%s122]]
  %s124 = scalar_lea.smem %s0, 62
  %s125 = sld [smem:[%s124]]
  %s126 = scalar_lea.smem %s0, 63
  %s127 = sld [smem:[%s126]]
  %s128 = scalar_lea.smem %s0, 64
  %s129 = sld [smem:[%s128]]
  %s130 = scalar_lea.smem %s0, 65
  %s131 = sld [smem:[%s130]]
  %s132 = scalar_lea.smem %s0, 66
  %s133 = sld [smem:[%s132]]
  %s134 = scalar_lea.smem %s0, 67
  %s135 = sld [smem:[%s134]]
  %s136 = scalar_lea.smem %s0, 68
  %s137 = sld [smem:[%s136]]
  %s138 = scalar_lea.smem %s0, 69
  %s139 = sld [smem:[%s138]]
  %s140 = scalar_lea.smem %s0, 70
  %s141 = sld [smem:[%s140]]
  %s142 = sld [smem:[#allocation0]]
  $region429: #{omni_transformer_v3_forward.1} parent=0
    _
  %s144 = ssub.s32 1, %s142
  %s145 = scalar_select 0, %s144, %s142
  $region1: #{omni_transformer_v3_forward.1} parent=0
    #allocation2 [shape = 'u8[512]{0}', space=vmem, size = 0x400, scoped, tag = 'input window, operand 13, single buffered']
    #allocation3 [shape = 's32[2]{0}', space=sflag, size = 0x8, scoped, tag = 'scoped memory for omni_transformer_v3_forward.1']
    #allocation4 [shape = 's32[2]{0}', space=sflag, size = 0x8, scoped, tag = 'scoped memory for omni_transformer_v3_forward.1']
    #allocation5 [shape = 'u8[512]{0}', space=vmem, size = 0x400, scoped, tag = 'input window, operand 14, single buffered']
    #allocation6 [shape = 's32[1]{0}', space=sflag, size = 0x4, scoped, tag = 'scoped memory for omni_transformer_v3_forward.1']
    #allocation7 [shape = 'u8[512]{0}', space=vmem, size = 0x400, scoped, tag = 'input window, operand 15, single buffered']
    #allocation8 [shape = 'u8[512]{0}', space=vmem, size = 0x400, scoped, tag = 'input window, operand 17, single buffered']
    #allocation9 [shape = 's32[1]{0}', space=sflag, size = 0x4, scoped, tag = 'scoped memory for omni_transformer_v3_forward.1']
    #allocation10 [shape = 'u8[512]{0}', space=vmem, size = 0x400, scoped, tag = 'input window, operand 19, single buffered']
    #allocation11 [shape = 'u8[512]{0}', space=vmem, size = 0x400, scoped, tag = 'input window, operand 22, single buffered']
    #allocation12 [shape = 's32[1]{0}', space=sflag, size = 0x4, scoped, tag = 'scoped memory for omni_transformer_v3_forward.1']
    #allocation13 [shape = 'u8[512]{0}', space=vmem, size = 0x400, scoped, tag = 'input window, operand 23, single buffered']
    #allocation14 [shape = 'u8[512]{0}', space=vmem, size = 0x400, scoped, tag = 'input window, operand 29, single buffered']
    #allocation15 [shape = 's32[1]{0}', space=sflag, size = 0x4, scoped, tag = 'scoped memory for omni_transformer_v3_forward.1']
    #allocation16 [shape = 'u8[512]{0}', space=vmem, size = 0x400, scoped, tag = 'input window, operand 30, single buffered']
    #allocation17 [shape = 'u8[512]{0}', space=vmem, size = 0x400, scoped, tag = 'input window, operand 31, single buffered']
    #allocation18 [shape = 's32[1]{0}', space=sflag, size = 0x4, scoped, tag = 'scoped memory for omni_transformer_v3_forward.1']
    #allocation19 [shape = 'u8[512]{0}', space=vmem, size = 0x400, scoped, tag = 'input window, operand 33, single buffered']
    #allocation20 [shape = 'u8[512]{0}', space=vmem, size = 0x400, scoped, tag = 'input window, operand 35, single buffered']
    #allocation21 [shape = 's32[1]{0}', space=sflag, size = 0x4, scoped, tag = 'scoped memory for omni_transformer_v3_forward.1']
    #allocation22 [shape = 'u8[512]{0}', space=vmem, size = 0x400, scoped, tag = 'input window, operand 40, single buffered']
    #allocation23 [shape = 'u8[512]{0}', space=vmem, size = 0x400, scoped, tag = 'input window, operand 41, single buffered']
    #allocation24 [shape = 's32[1]{0}', space=sflag, size = 0x4, scoped, tag = 'scoped memory for omni_transformer_v3_forward.1']
    #allocation25 [shape = 'u8[512]{0}', space=vmem, size = 0x400, scoped, tag = 'input window, operand 46, single buffered']
    #allocation26 [shape = 'u8[512]{0}', space=vmem, size = 0x400, scoped, tag = 'input window, operand 47, single buffered']
    #allocation27 [shape = 's32[1]{0}', space=sflag, size = 0x4, scoped, tag = 'scoped memory for omni_transformer_v3_forward.1']
    #allocation28 [shape = 'u8[512]{0}', space=vmem, size = 0x400, scoped, tag = 'input window, operand 48, single buffered']
    #allocation29 [shape = 'u8[512]{0}', space=vmem, size = 0x400, scoped, tag = 'input window, operand 50, single buffered']
    #allocation30 [shape = 's32[1]{0}', space=sflag, size = 0x4, scoped, tag = 'scoped memory for omni_transformer_v3_forward.1']
    #allocation31 [shape = 'u8[512]{0}', space=vmem, size = 0x400, scoped, tag = 'input window, operand 52, single buffered']
    #allocation32 [shape = 'u8[512]{0}', space=vmem, size = 0x400, scoped, tag = 'input window, operand 53, single buffered']
    #allocation33 [shape = 's32[1]{0}', space=sflag, size = 0x4, scoped, tag = 'scoped memory for omni_transformer_v3_forward.1']
    #allocation34 [shape = 'u8[512]{0}', space=vmem, size = 0x400, scoped, tag = 'input window, operand 54, single buffered']
    #allocation35 [shape = 'u8[512]{0}', space=vmem, size = 0x400, scoped, tag = 'input window, operand 59, single buffered']
    #allocation36 [shape = 's32[1]{0}', space=sflag, size = 0x4, scoped, tag = 'scoped memory for omni_transformer_v3_forward.1']
    #allocation37 [shape = 'u8[512]{0}', space=vmem, size = 0x400, scoped, tag = 'input window, operand 60, single buffered']
    #allocation38 [shape = 'u8[512]{0}', space=vmem, size = 0x400, scoped, tag = 'input window, operand 61, single buffered']
    #allocation39 [shape = 's32[1]{0}', space=sflag, size = 0x4, scoped, tag = 'scoped memory for omni_transformer_v3_forward.1']
    #allocation40 [shape = 'u8[512]{0}', space=vmem, size = 0x400, scoped, tag = 'input window, operand 63, single buffered']
    #allocation41 [shape = 'u8[512]{0}', space=vmem, size = 0x400, scoped, tag = 'input window, operand 65, single buffered']
    #allocation42 [shape = 's32[1]{0}', space=sflag, size = 0x4, scoped, tag = 'scoped memory for omni_transformer_v3_forward.1']
    #allocation43 [shape = 'u8[512]{0}', space=vmem, size = 0x400, scoped, tag = 'input window, operand 66, single buffered']
    #allocation44 [shape = 'u8[512]{0}', space=vmem, size = 0x400, scoped, tag = 'input window, operand 67, single buffered']
    #allocation45 [shape = 's32[1]{0}', space=sflag, size = 0x4, scoped, tag = 'scoped memory for omni_transformer_v3_forward.1']
    #allocation46 [shape = 'u8[512]{0}', space=vmem, size = 0x400, scoped, tag = 'input window, operand 69, single buffered']
    #allocation47 [shape = 'u8[1024]{0}', space=vmem, size = 0x400, scoped, tag = 'output window, operand 0']
    %146 = vsyncpa [#allocation3], 0
    %147 = vsyncpa [#allocation6], 0
    %148 = vsyncpa [#allocation9], 0
    %149 = vsyncpa [#allocation12], 0
    %150 = vsyncpa [#allocation15], 0
    %151 = vsyncpa [#allocation18], 0
    %152 = vsyncpa [#allocation21], 0
    %153 = vsyncpa [#allocation24], 0
    %154 = vsyncpa [#allocation27], 0
    %155 = vsyncpa [#allocation30], 0
    %156 = vsyncpa [#allocation33], 0
    %157 = vsyncpa [#allocation36], 0
    %158 = vsyncpa [#allocation39], 0
    %159 = vsyncpa [#allocation42], 0
    %160 = vsyncpa [#allocation45], 0
    %161 = vsyncpa [#allocation4], 0
    %s162 = scalar_lea.sflag [#allocation4], 1
    %163 = vsyncpa %s162, 0
    loop: start=0, step=1, limit=4
    $region2: #{omni_transformer_v3_forward.1} parent=1 // loop_pre_header
      _
    $region3: #{omni_transformer_v3_forward.1} parent=1 // loop_header
      %s165 = sphi 0, %s169
      %p166 = scmp.ge.s32.totalorder %s165, 4
      %s175 = sphi 0, %s177
      %s178 = sphi 0, %s175
      %s179 = sphi 0, %s178
      %s195 = sphi 0, %s179
      %s199 = sphi 0, %s199
      %s201 = sphi 0, %s199
      %s202 = sphi 0, %s201
      %s216 = sphi 0, %s202
      %s220 = sphi 0, %s220
      %s222 = sphi 0, %s220
      %s223 = sphi 0, %s222
      %s237 = sphi 0, %s223
      %s241 = sphi 0, %s241
      %s243 = sphi 0, %s241
      %s244 = sphi 0, %s243
      %s258 = sphi 0, %s244
      %s262 = sphi 0, %s262
      %s264 = sphi 0, %s262
      %s265 = sphi 0, %s264
      %s279 = sphi 0, %s265
      %s283 = sphi 0, %s283
      %s285 = sphi 0, %s283
      %s286 = sphi 0, %s285
      %s300 = sphi 0, %s286
      %s304 = sphi 0, %s304
      %s306 = sphi 0, %s304
      %s307 = sphi 0, %s306
      %s321 = sphi 0, %s307
      %s325 = sphi 0, %s325
      %s327 = sphi 0, %s325
      %s328 = sphi 0, %s327
      %s342 = sphi 0, %s328
      %s346 = sphi 0, %s346
      %s348 = sphi 0, %s346
      %s349 = sphi 0, %s348
      %s363 = sphi 0, %s349
      %s367 = sphi 0, %s367
      %s369 = sphi 0, %s367
      %s370 = sphi 0, %s369
      %s384 = sphi 0, %s370
      %s388 = sphi 0, %s388
      %s390 = sphi 0, %s388
      %s391 = sphi 0, %s390
      %s405 = sphi 0, %s391
      %s409 = sphi 0, %s409
      %s411 = sphi 0, %s409
      %s412 = sphi 0, %s411
      %s426 = sphi 0, %s412
      %s430 = sphi 0, %s430
      %s432 = sphi 0, %s430
      %s433 = sphi 0, %s432
      %s447 = sphi 0, %s433
      %s451 = sphi 0, %s451
      %s453 = sphi 0, %s451
      %s454 = sphi 0, %s453
      %s468 = sphi 0, %s454
      %s472 = sphi 0, %s472
      %s474 = sphi 0, %s472
      %s475 = sphi 0, %s474
      %s489 = sphi 0, %s475
      %s493 = sphi 0, %s493
      %s495 = sphi 0, %s493
      %s496 = sphi 0, %s495
      %s510 = sphi 0, %s496
      %s514 = sphi 0, %s514
      %s516 = sphi 0, %s514
      %s517 = sphi 0, %s516
      %s531 = sphi 0, %s517
      %s535 = sphi 0, %s535
      %s537 = sphi 0, %s535
      %s538 = sphi 0, %s537
      %s552 = sphi 0, %s538
      %s556 = sphi 0, %s556
      %s558 = sphi 0, %s556
      %s559 = sphi 0, %s558
      %s573 = sphi 0, %s559
      %s577 = sphi 0, %s577
      %s579 = sphi 0, %s577
      %s580 = sphi 0, %s579
      %s594 = sphi 0, %s580
      %s598 = sphi 0, %s598
      %s600 = sphi 0, %s598
      %s601 = sphi 0, %s600
      %s615 = sphi 0, %s601
      %s619 = sphi 0, %s619
      %s621 = sphi 0, %s619
      %s622 = sphi 0, %s621
      %s636 = sphi 0, %s622
      %s640 = sphi 0, %s640
      %s642 = sphi 0, %s640
      %s643 = sphi 0, %s642
      %s657 = sphi 0, %s643
      %s661 = sphi 0, %s661
      %s663 = sphi 0, %s661
      %s664 = sphi 0, %s663
      %s678 = sphi 0, %s664
      %s682 = sphi 0, %s682
      %s684 = sphi 0, %s682
      %s685 = sphi 0, %s684
      %s699 = sphi 0, %s685
      %s703 = sphi 0, %s703
      %s705 = sphi 0, %s703
      %s706 = sphi 0, %s705
      %s720 = sphi 0, %s706
      %s724 = sphi 0, %s724
      %s726 = sphi 0, %s724
      %s727 = sphi 0, %s726
      %s741 = sphi 0, %s727
      %s745 = sphi 0, %s745
      %s747 = sphi 0, %s745
      %s748 = sphi 0, %s747
      %s762 = sphi 0, %s748
      %s766 = sphi 0, %s766
      %s768 = sphi 0, %s766
      %s769 = sphi 0, %s768
      %s783 = sphi 0, %s769
      %s787 = sphi 0, %s787
      %s789 = sphi 0, %s787
      %s790 = sphi 0, %s789
      %s804 = sphi 0, %s790
      %s808 = sphi 0, %s808
      %s810 = sphi 0, %s808
      %s811 = sphi 0, %s810
      %s825 = sphi 0, %s811
      %s829 = sphi 0, %s829
      %s831 = sphi 0, %s829
      %s832 = sphi 0, %s831
      %s846 = sphi 0, %s832
      %s850 = sphi 0, %s850
      %s852 = sphi 0, %s850
      %s853 = sphi 0, %s852
      %s867 = sphi 0, %s853
      %s871 = sphi 0, %s871
      %s873 = sphi 0, %s871
      %s874 = sphi 0, %s873
      %s888 = sphi 0, %s874
      %s892 = sphi 0, %s892
      %s894 = sphi 0, %s892
      %s895 = sphi 0, %s894
      %s909 = sphi 0, %s895
      %s913 = sphi 0, %s913
      %s915 = sphi 0, %s913
      %s916 = sphi 0, %s915
      %s930 = sphi 0, %s916
      %s934 = sphi 0, %s934
      %s936 = sphi 0, %s934
      %s937 = sphi 0, %s936
      %s951 = sphi 0, %s937
      %s955 = sphi 0, %s955
      %s957 = sphi 0, %s955
      %s958 = sphi 0, %s957
      %s972 = sphi 0, %s958
      %s976 = sphi 0, %s976
      %s978 = sphi 0, %s976
      %s979 = sphi 0, %s978
      %s993 = sphi 0, %s979
      %s997 = sphi 0, %s997
      %s999 = sphi 0, %s997
      %s1000 = sphi 0, %s999
      %s1014 = sphi 0, %s1000
      %s1018 = sphi 0, %s1018
      %s1020 = sphi 0, %s1018
      %s1021 = sphi 0, %s1020
      %s1035 = sphi 0, %s1021
      %s1039 = sphi 0, %s1039
      %s1041 = sphi 0, %s1039
      %s1042 = sphi 0, %s1041
      %s1056 = sphi 0, %s1042
      %s1060 = sphi 0, %s1060
      %s1062 = sphi 0, %s1060
      %s1063 = sphi 0, %s1062
      %s1077 = sphi 0, %s1063
      %s1081 = sphi 0, %s1081
      %s1083 = sphi 0, %s1081
      %s1084 = sphi 0, %s1083
      %s1098 = sphi 0, %s1084
      %s1102 = sphi 0, %s1102
      %s1104 = sphi 0, %s1102
      %s1105 = sphi 0, %s1104
      %s1119 = sphi 0, %s1105
      %s1123 = sphi 0, %s1123
      %s1125 = sphi 0, %s1123
      %s1126 = sphi 0, %s1125
      %s1140 = sphi 0, %s1126
      %s1144 = sphi 0, %s1144
      %s1146 = sphi 0, %s1144
      %s1147 = sphi 0, %s1146
      %s1161 = sphi 0, %s1147
      %s1165 = sphi 0, %s1165
      %s1167 = sphi 0, %s1165
      %s1168 = sphi 0, %s1167
      %s1182 = sphi 0, %s1168
      %s1186 = sphi 0, %s1186
      %s1188 = sphi 0, %s1186
      %s1189 = sphi 0, %s1188
      %s1203 = sphi 0, %s1189
      %s1207 = sphi 0, %s1207
      %s1209 = sphi 0, %s1207
      %s1210 = sphi 0, %s1209
      %s1224 = sphi 0, %s1210
      %s1228 = sphi 0, %s1228
      %s1230 = sphi 0, %s1228
      %s1231 = sphi 0, %s1230
      %s1245 = sphi 0, %s1231
      %s1249 = sphi 0, %s1249
      %s1251 = sphi 0, %s1249
      %s1252 = sphi 0, %s1251
      %s1266 = sphi 0, %s1252
      %s1270 = sphi 0, %s1270
      %s1272 = sphi 0, %s1270
      %s1273 = sphi 0, %s1272
      %s1287 = sphi 0, %s1273
      %s1291 = sphi 0, %s1291
      %s1293 = sphi 0, %s1291
      %s1294 = sphi 0, %s1293
      %s1308 = sphi 0, %s1294
      %s1312 = sphi 0, %s1312
      %s1314 = sphi 0, %s1312
      %s1315 = sphi 0, %s1314
      %s1329 = sphi 0, %s1315
      %s1333 = sphi 0, %s1333
      %s1335 = sphi 0, %s1333
      %s1336 = sphi 0, %s1335
      %s1350 = sphi 0, %s1336
      %s1354 = sphi 0, %s1354
      %s1356 = sphi 0, %s1354
      %s1357 = sphi 0, %s1356
      %s1371 = sphi 0, %s1357
      %s1375 = sphi 0, %s1375
      %s1377 = sphi 0, %s1375
      %s1378 = sphi 0, %s1377
      %s1392 = sphi 0, %s1378
      %s1396 = sphi 0, %s1396
      %s1398 = sphi 0, %s1396
      %s1399 = sphi 0, %s1398
      %s1413 = sphi 0, %s1399
      %s1417 = sphi 0, %s1417
      %s1419 = sphi 0, %s1417
      %s1420 = sphi 0, %s1419
      %s1434 = sphi 0, %s1420
      %s1438 = sphi 0, %s1438
      %s1440 = sphi 0, %s1438
      %s1441 = sphi 0, %s1440
      %s1455 = sphi 0, %s1441
      %s1459 = sphi 0, %s1459
      %s1461 = sphi 0, %s1459
      %s1462 = sphi 0, %s1461
      %s1476 = sphi 0, %s1462
      %s1480 = sphi 0, %s1480
      %s1482 = sphi 0, %s1480
      %s1483 = sphi 0, %s1482
      %s1497 = sphi 0, %s1483
      %s1501 = sphi 0, %s1501
      %s1503 = sphi 0, %s1501
      %s1504 = sphi 0, %s1503
      %s1518 = sphi 0, %s1504
      %s1522 = sphi 0, %s1522
      %s1524 = sphi 0, %s1522
      %s1525 = sphi 0, %s1524
      %s1539 = sphi 0, %s1525
      %s1543 = sphi 0, %s1543
      %s1545 = sphi 0, %s1543
      %s1546 = sphi 0, %s1545
      %s1560 = sphi 0, %s1546
      %s1564 = sphi 0, %s1564
      %s1566 = sphi 0, %s1564
      %s1567 = sphi 0, %s1566
      %s1581 = sphi 0, %s1567
      %s1585 = sphi 0, %s1585
      %s1587 = sphi 0, %s1585
      %s1588 = sphi 0, %s1587
      %s1602 = sphi 0, %s1588
      %s1606 = sphi 0, %s1606
      %s1608 = sphi 0, %s1606
      %s1609 = sphi 0, %s1608
      %s1623 = sphi 0, %s1609
      %s1627 = sphi 0, %s1627
      %s1629 = sphi 0, %s1627
      %s1630 = sphi 0, %s1629
      %s1644 = sphi 0, %s1630
      %s1650 = sphi 0, %s1652
      %s1653 = sphi 0, %s1650
      %s1654 = sphi 0, %s1653
      %s1670 = sphi 0, %s1654
    $region4: #{omni_transformer_v3_forward.1} parent=1 // loop_header_branch
      %168 = sbr.rel (%p166) target = $region8
    $region5: #{omni_transformer_v3_forward.1} parent=1 // loop_body
      %s170 = ssub.s32 %s165, 1
      %s171 = ssub.s32 %s165, 2
      %s172 = sadd.s32 %s165, 1
      %s173 = ssub.s32 %s165, %s172
      %p174 = scmp.eq.s32.totalorder %s173, 0
      %s176 = sadd.s32 %s175, 1
      %s177 = scalar_select %p174, %s175, %s176
      %p180 = pneg %p174
      %p181 = scmp.eq.s32.totalorder %s165, 1
      %p182 = por %p180, %p181
      %p183 = scmp.ne.s32.totalorder %s175, %s178
      %p184 = scmp.eq.s32.totalorder %s165, 0
      %p185 = por %p183, %p184
      %p186 = scmp.ne.s32.totalorder %s175, %s178
      %p187 = scmp.eq.s32.totalorder %s170, 1
      %p188 = por %p186, %p187
      %p189 = scmp.ne.s32.totalorder %s178, %s179
      %p190 = scmp.eq.s32.totalorder %s170, 0
      %p191 = por %p189, %p190
      %p192 = scmp.ne.s32.totalorder %s178, %s179
      %p193 = scmp.eq.s32.totalorder %s171, 1
      %p194 = por %p192, %p193
      %p196 = scmp.ne.s32.totalorder %s179, %s195
      %p197 = scmp.eq.s32.totalorder %s171, 0
      %p198 = por %p196, %p197
      %s200 = sadd.s32 %s199, 1
      %p203 = scmp.eq.s32.totalorder %s165, 1
      %p204 = scmp.ne.s32.totalorder %s199, %s201
      %p205 = scmp.eq.s32.totalorder %s165, 0
      %p206 = por %p204, %p205
      %p207 = scmp.ne.s32.totalorder %s199, %s201
      %p208 = scmp.eq.s32.totalorder %s170, 1
      %p209 = por %p207, %p208
      %p210 = scmp.ne.s32.totalorder %s201, %s202
      %p211 = scmp.eq.s32.totalorder %s170, 0
      %p212 = por %p210, %p211
      %p213 = scmp.ne.s32.totalorder %s201, %s202
      %p214 = scmp.eq.s32.totalorder %s171, 1
      %p215 = por %p213, %p214
      %p217 = scmp.ne.s32.totalorder %s202, %s216
      %p218 = scmp.eq.s32.totalorder %s171, 0
      %p219 = por %p217, %p218
      %s221 = sadd.s32 %s220, 1
      %p224 = scmp.eq.s32.totalorder %s165, 1
      %p225 = scmp.ne.s32.totalorder %s220, %s222
      %p226 = scmp.eq.s32.totalorder %s165, 0
      %p227 = por %p225, %p226
      %p228 = scmp.ne.s32.totalorder %s220, %s222
      %p229 = scmp.eq.s32.totalorder %s170, 1
      %p230 = por %p228, %p229
      %p231 = scmp.ne.s32.totalorder %s222, %s223
      %p232 = scmp.eq.s32.totalorder %s170, 0
      %p233 = por %p231, %p232
      %p234 = scmp.ne.s32.totalorder %s222, %s223
      %p235 = scmp.eq.s32.totalorder %s171, 1
      %p236 = por %p234, %p235
      %p238 = scmp.ne.s32.totalorder %s223, %s237
      %p239 = scmp.eq.s32.totalorder %s171, 0
      %p240 = por %p238, %p239
      %s242 = sadd.s32 %s241, 1
      %p245 = scmp.eq.s32.totalorder %s165, 1
      %p246 = scmp.ne.s32.totalorder %s241, %s243
      %p247 = scmp.eq.s32.totalorder %s165, 0
      %p248 = por %p246, %p247
      %p249 = scmp.ne.s32.totalorder %s241, %s243
      %p250 = scmp.eq.s32.totalorder %s170, 1
      %p251 = por %p249, %p250
      %p252 = scmp.ne.s32.totalorder %s243, %s244
      %p253 = scmp.eq.s32.totalorder %s170, 0
      %p254 = por %p252, %p253
      %p255 = scmp.ne.s32.totalorder %s243, %s244
      %p256 = scmp.eq.s32.totalorder %s171, 1
      %p257 = por %p255, %p256
      %p259 = scmp.ne.s32.totalorder %s244, %s258
      %p260 = scmp.eq.s32.totalorder %s171, 0
      %p261 = por %p259, %p260
      %s263 = sadd.s32 %s262, 1
      %p266 = scmp.eq.s32.totalorder %s165, 1
      %p267 = scmp.ne.s32.totalorder %s262, %s264
      %p268 = scmp.eq.s32.totalorder %s165, 0
      %p269 = por %p267, %p268
      %p270 = scmp.ne.s32.totalorder %s262, %s264
      %p271 = scmp.eq.s32.totalorder %s170, 1
      %p272 = por %p270, %p271
      %p273 = scmp.ne.s32.totalorder %s264, %s265
      %p274 = scmp.eq.s32.totalorder %s170, 0
      %p275 = por %p273, %p274
      %p276 = scmp.ne.s32.totalorder %s264, %s265
      %p277 = scmp.eq.s32.totalorder %s171, 1
      %p278 = por %p276, %p277
      %p280 = scmp.ne.s32.totalorder %s265, %s279
      %p281 = scmp.eq.s32.totalorder %s171, 0
      %p282 = por %p280, %p281
      %s284 = sadd.s32 %s283, 1
      %p287 = scmp.eq.s32.totalorder %s165, 1
      %p288 = scmp.ne.s32.totalorder %s283, %s285
      %p289 = scmp.eq.s32.totalorder %s165, 0
      %p290 = por %p288, %p289
      %p291 = scmp.ne.s32.totalorder %s283, %s285
      %p292 = scmp.eq.s32.totalorder %s170, 1
      %p293 = por %p291, %p292
      %p294 = scmp.ne.s32.totalorder %s285, %s286
      %p295 = scmp.eq.s32.totalorder %s170, 0
      %p296 = por %p294, %p295
      %p297 = scmp.ne.s32.totalorder %s285, %s286
      %p298 = scmp.eq.s32.totalorder %s171, 1
      %p299 = por %p297, %p298
      %p301 = scmp.ne.s32.totalorder %s286, %s300
      %p302 = scmp.eq.s32.totalorder %s171, 0
      %p303 = por %p301, %p302
      %s305 = sadd.s32 %s304, 1
      %p308 = scmp.eq.s32.totalorder %s165, 1
      %p309 = scmp.ne.s32.totalorder %s304, %s306
      %p310 = scmp.eq.s32.totalorder %s165, 0
      %p311 = por %p309, %p310
      %p312 = scmp.ne.s32.totalorder %s304, %s306
      %p313 = scmp.eq.s32.totalorder %s170, 1
      %p314 = por %p312, %p313
      %p315 = scmp.ne.s32.totalorder %s306, %s307
      %p316 = scmp.eq.s32.totalorder %s170, 0
      %p317 = por %p315, %p316
      %p318 = scmp.ne.s32.totalorder %s306, %s307
      %p319 = scmp.eq.s32.totalorder %s171, 1
      %p320 = por %p318, %p319
      %p322 = scmp.ne.s32.totalorder %s307, %s321
      %p323 = scmp.eq.s32.totalorder %s171, 0
      %p324 = por %p322, %p323
      %s326 = sadd.s32 %s325, 1
      %p329 = scmp.eq.s32.totalorder %s165, 1
      %p330 = scmp.ne.s32.totalorder %s325, %s327
      %p331 = scmp.eq.s32.totalorder %s165, 0
      %p332 = por %p330, %p331
      %p333 = scmp.ne.s32.totalorder %s325, %s327
      %p334 = scmp.eq.s32.totalorder %s170, 1
      %p335 = por %p333, %p334
      %p336 = scmp.ne.s32.totalorder %s327, %s328
      %p337 = scmp.eq.s32.totalorder %s170, 0
      %p338 = por %p336, %p337
      %p339 = scmp.ne.s32.totalorder %s327, %s328
      %p340 = scmp.eq.s32.totalorder %s171, 1
      %p341 = por %p339, %p340
      %p343 = scmp.ne.s32.totalorder %s328, %s342
      %p344 = scmp.eq.s32.totalorder %s171, 0
      %p345 = por %p343, %p344
      %s347 = sadd.s32 %s346, 1
      %p350 = scmp.eq.s32.totalorder %s165, 1
      %p351 = scmp.ne.s32.totalorder %s346, %s348
      %p352 = scmp.eq.s32.totalorder %s165, 0
      %p353 = por %p351, %p352
      %p354 = scmp.ne.s32.totalorder %s346, %s348
      %p355 = scmp.eq.s32.totalorder %s170, 1
      %p356 = por %p354, %p355
      %p357 = scmp.ne.s32.totalorder %s348, %s349
      %p358 = scmp.eq.s32.totalorder %s170, 0
      %p359 = por %p357, %p358
      %p360 = scmp.ne.s32.totalorder %s348, %s349
      %p361 = scmp.eq.s32.totalorder %s171, 1
      %p362 = por %p360, %p361
      %p364 = scmp.ne.s32.totalorder %s349, %s363
      %p365 = scmp.eq.s32.totalorder %s171, 0
      %p366 = por %p364, %p365
      %s368 = sadd.s32 %s367, 1
      %p371 = scmp.eq.s32.totalorder %s165, 1
      %p372 = scmp.ne.s32.totalorder %s367, %s369
      %p373 = scmp.eq.s32.totalorder %s165, 0
      %p374 = por %p372, %p373
      %p375 = scmp.ne.s32.totalorder %s367, %s369
      %p376 = scmp.eq.s32.totalorder %s170, 1
      %p377 = por %p375, %p376
      %p378 = scmp.ne.s32.totalorder %s369, %s370
      %p379 = scmp.eq.s32.totalorder %s170, 0
      %p380 = por %p378, %p379
      %p381 = scmp.ne.s32.totalorder %s369, %s370
      %p382 = scmp.eq.s32.totalorder %s171, 1
      %p383 = por %p381, %p382
      %p385 = scmp.ne.s32.totalorder %s370, %s384
      %p386 = scmp.eq.s32.totalorder %s171, 0
      %p387 = por %p385, %p386
      %s389 = sadd.s32 %s388, 1
      %p392 = scmp.eq.s32.totalorder %s165, 1
      %p393 = scmp.ne.s32.totalorder %s388, %s390
      %p394 = scmp.eq.s32.totalorder %s165, 0
      %p395 = por %p393, %p394
      %p396 = scmp.ne.s32.totalorder %s388, %s390
      %p397 = scmp.eq.s32.totalorder %s170, 1
      %p398 = por %p396, %p397
      %p399 = scmp.ne.s32.totalorder %s390, %s391
      %p400 = scmp.eq.s32.totalorder %s170, 0
      %p401 = por %p399, %p400
      %p402 = scmp.ne.s32.totalorder %s390, %s391
      %p403 = scmp.eq.s32.totalorder %s171, 1
      %p404 = por %p402, %p403
      %p406 = scmp.ne.s32.totalorder %s391, %s405
      %p407 = scmp.eq.s32.totalorder %s171, 0
      %p408 = por %p406, %p407
      %s410 = sadd.s32 %s409, 1
      %p413 = scmp.eq.s32.totalorder %s165, 1
      %p414 = scmp.ne.s32.totalorder %s409, %s411
      %p415 = scmp.eq.s32.totalorder %s165, 0
      %p416 = por %p414, %p415
      %p417 = scmp.ne.s32.totalorder %s409, %s411
      %p418 = scmp.eq.s32.totalorder %s170, 1
      %p419 = por %p417, %p418
      %p420 = scmp.ne.s32.totalorder %s411, %s412
      %p421 = scmp.eq.s32.totalorder %s170, 0
      %p422 = por %p420, %p421
      %p423 = scmp.ne.s32.totalorder %s411, %s412
      %p424 = scmp.eq.s32.totalorder %s171, 1
      %p425 = por %p423, %p424
      %p427 = scmp.ne.s32.totalorder %s412, %s426
      %p428 = scmp.eq.s32.totalorder %s171, 0
      %p429 = por %p427, %p428
      %s431 = sadd.s32 %s430, 1
      %p434 = scmp.eq.s32.totalorder %s165, 1
      %p435 = scmp.ne.s32.totalorder %s430, %s432
      %p436 = scmp.eq.s32.totalorder %s165, 0
      %p437 = por %p435, %p436
      %p438 = scmp.ne.s32.totalorder %s430, %s432
      %p439 = scmp.eq.s32.totalorder %s170, 1
      %p440 = por %p438, %p439
      %p441 = scmp.ne.s32.totalorder %s432, %s433
      %p442 = scmp.eq.s32.totalorder %s170, 0
      %p443 = por %p441, %p442
      %p444 = scmp.ne.s32.totalorder %s432, %s433
      %p445 = scmp.eq.s32.totalorder %s171, 1
      %p446 = por %p444, %p445
      %p448 = scmp.ne.s32.totalorder %s433, %s447
      %p449 = scmp.eq.s32.totalorder %s171, 0
      %p450 = por %p448, %p449
      %s452 = sadd.s32 %s451, 1
      %p455 = scmp.eq.s32.totalorder %s165, 1
      %p456 = scmp.ne.s32.totalorder %s451, %s453
      %p457 = scmp.eq.s32.totalorder %s165, 0
      %p458 = por %p456, %p457
      %p459 = scmp.ne.s32.totalorder %s451, %s453
      %p460 = scmp.eq.s32.totalorder %s170, 1
      %p461 = por %p459, %p460
      %p462 = scmp.ne.s32.totalorder %s453, %s454
      %p463 = scmp.eq.s32.totalorder %s170, 0
      %p464 = por %p462, %p463
      %p465 = scmp.ne.s32.totalorder %s453, %s454
      %p466 = scmp.eq.s32.totalorder %s171, 1
      %p467 = por %p465, %p466
      %p469 = scmp.ne.s32.totalorder %s454, %s468
      %p470 = scmp.eq.s32.totalorder %s171, 0
      %p471 = por %p469, %p470
      %s473 = sadd.s32 %s472, 1
      %p476 = scmp.eq.s32.totalorder %s165, 1
      %p477 = scmp.ne.s32.totalorder %s472, %s474
      %p478 = scmp.eq.s32.totalorder %s165, 0
      %p479 = por %p477, %p478
      %p480 = scmp.ne.s32.totalorder %s472, %s474
      %p481 = scmp.eq.s32.totalorder %s170, 1
      %p482 = por %p480, %p481
      %p483 = scmp.ne.s32.totalorder %s474, %s475
      %p484 = scmp.eq.s32.totalorder %s170, 0
      %p485 = por %p483, %p484
      %p486 = scmp.ne.s32.totalorder %s474, %s475
      %p487 = scmp.eq.s32.totalorder %s171, 1
      %p488 = por %p486, %p487
      %p490 = scmp.ne.s32.totalorder %s475, %s489
      %p491 = scmp.eq.s32.totalorder %s171, 0
      %p492 = por %p490, %p491
      %s494 = sadd.s32 %s493, 1
      %p497 = scmp.eq.s32.totalorder %s165, 1
      %p498 = scmp.ne.s32.totalorder %s493, %s495
      %p499 = scmp.eq.s32.totalorder %s165, 0
      %p500 = por %p498, %p499
      %p501 = scmp.ne.s32.totalorder %s493, %s495
      %p502 = scmp.eq.s32.totalorder %s170, 1
      %p503 = por %p501, %p502
      %p504 = scmp.ne.s32.totalorder %s495, %s496
      %p505 = scmp.eq.s32.totalorder %s170, 0
      %p506 = por %p504, %p505
      %p507 = scmp.ne.s32.totalorder %s495, %s496
      %p508 = scmp.eq.s32.totalorder %s171, 1
      %p509 = por %p507, %p508
      %p511 = scmp.ne.s32.totalorder %s496, %s510
      %p512 = scmp.eq.s32.totalorder %s171, 0
      %p513 = por %p511, %p512
      %s515 = sadd.s32 %s514, 1
      %p518 = scmp.eq.s32.totalorder %s165, 1
      %p519 = scmp.ne.s32.totalorder %s514, %s516
      %p520 = scmp.eq.s32.totalorder %s165, 0
      %p521 = por %p519, %p520
      %p522 = scmp.ne.s32.totalorder %s514, %s516
      %p523 = scmp.eq.s32.totalorder %s170, 1
      %p524 = por %p522, %p523
      %p525 = scmp.ne.s32.totalorder %s516, %s517
      %p526 = scmp.eq.s32.totalorder %s170, 0
      %p527 = por %p525, %p526
      %p528 = scmp.ne.s32.totalorder %s516, %s517
      %p529 = scmp.eq.s32.totalorder %s171, 1
      %p530 = por %p528, %p529
      %p532 = scmp.ne.s32.totalorder %s517, %s531
      %p533 = scmp.eq.s32.totalorder %s171, 0
      %p534 = por %p532, %p533
      %s536 = sadd.s32 %s535, 1
      %p539 = scmp.eq.s32.totalorder %s165, 1
      %p540 = scmp.ne.s32.totalorder %s535, %s537
      %p541 = scmp.eq.s32.totalorder %s165, 0
      %p542 = por %p540, %p541
      %p543 = scmp.ne.s32.totalorder %s535, %s537
      %p544 = scmp.eq.s32.totalorder %s170, 1
      %p545 = por %p543, %p544
      %p546 = scmp.ne.s32.totalorder %s537, %s538
      %p547 = scmp.eq.s32.totalorder %s170, 0
      %p548 = por %p546, %p547
      %p549 = scmp.ne.s32.totalorder %s537, %s538
      %p550 = scmp.eq.s32.totalorder %s171, 1
      %p551 = por %p549, %p550
      %p553 = scmp.ne.s32.totalorder %s538, %s552
      %p554 = scmp.eq.s32.totalorder %s171, 0
      %p555 = por %p553, %p554
      %s557 = sadd.s32 %s556, 1
      %p560 = scmp.eq.s32.totalorder %s165, 1
      %p561 = scmp.ne.s32.totalorder %s556, %s558
      %p562 = scmp.eq.s32.totalorder %s165, 0
      %p563 = por %p561, %p562
      %p564 = scmp.ne.s32.totalorder %s556, %s558
      %p565 = scmp.eq.s32.totalorder %s170, 1
      %p566 = por %p564, %p565
      %p567 = scmp.ne.s32.totalorder %s558, %s559
      %p568 = scmp.eq.s32.totalorder %s170, 0
      %p569 = por %p567, %p568
      %p570 = scmp.ne.s32.totalorder %s558, %s559
      %p571 = scmp.eq.s32.totalorder %s171, 1
      %p572 = por %p570, %p571
      %p574 = scmp.ne.s32.totalorder %s559, %s573
      %p575 = scmp.eq.s32.totalorder %s171, 0
      %p576 = por %p574, %p575
      %s578 = sadd.s32 %s577, 1
      %p581 = scmp.eq.s32.totalorder %s165, 1
      %p582 = scmp.ne.s32.totalorder %s577, %s579
      %p583 = scmp.eq.s32.totalorder %s165, 0
      %p584 = por %p582, %p583
      %p585 = scmp.ne.s32.totalorder %s577, %s579
      %p586 = scmp.eq.s32.totalorder %s170, 1
      %p587 = por %p585, %p586
      %p588 = scmp.ne.s32.totalorder %s579, %s580
      %p589 = scmp.eq.s32.totalorder %s170, 0
      %p590 = por %p588, %p589
      %p591 = scmp.ne.s32.totalorder %s579, %s580
      %p592 = scmp.eq.s32.totalorder %s171, 1
      %p593 = por %p591, %p592
      %p595 = scmp.ne.s32.totalorder %s580, %s594
      %p596 = scmp.eq.s32.totalorder %s171, 0
      %p597 = por %p595, %p596
      %s599 = sadd.s32 %s598, 1
      %p602 = scmp.eq.s32.totalorder %s165, 1
      %p603 = scmp.ne.s32.totalorder %s598, %s600
      %p604 = scmp.eq.s32.totalorder %s165, 0
      %p605 = por %p603, %p604
      %p606 = scmp.ne.s32.totalorder %s598, %s600
      %p607 = scmp.eq.s32.totalorder %s170, 1
      %p608 = por %p606, %p607
      %p609 = scmp.ne.s32.totalorder %s600, %s601
      %p610 = scmp.eq.s32.totalorder %s170, 0
      %p611 = por %p609, %p610
      %p612 = scmp.ne.s32.totalorder %s600, %s601
      %p613 = scmp.eq.s32.totalorder %s171, 1
      %p614 = por %p612, %p613
      %p616 = scmp.ne.s32.totalorder %s601, %s615
      %p617 = scmp.eq.s32.totalorder %s171, 0
      %p618 = por %p616, %p617
      %s620 = sadd.s32 %s619, 1
      %p623 = scmp.eq.s32.totalorder %s165, 1
      %p624 = scmp.ne.s32.totalorder %s619, %s621
      %p625 = scmp.eq.s32.totalorder %s165, 0
      %p626 = por %p624, %p625
      %p627 = scmp.ne.s32.totalorder %s619, %s621
      %p628 = scmp.eq.s32.totalorder %s170, 1
      %p629 = por %p627, %p628
      %p630 = scmp.ne.s32.totalorder %s621, %s622
      %p631 = scmp.eq.s32.totalorder %s170, 0
      %p632 = por %p630, %p631
      %p633 = scmp.ne.s32.totalorder %s621, %s622
      %p634 = scmp.eq.s32.totalorder %s171, 1
      %p635 = por %p633, %p634
      %p637 = scmp.ne.s32.totalorder %s622, %s636
      %p638 = scmp.eq.s32.totalorder %s171, 0
      %p639 = por %p637, %p638
      %s641 = sadd.s32 %s640, 1
      %p644 = scmp.eq.s32.totalorder %s165, 1
      %p645 = scmp.ne.s32.totalorder %s640, %s642
      %p646 = scmp.eq.s32.totalorder %s165, 0
      %p647 = por %p645, %p646
      %p648 = scmp.ne.s32.totalorder %s640, %s642
      %p649 = scmp.eq.s32.totalorder %s170, 1
      %p650 = por %p648, %p649
      %p651 = scmp.ne.s32.totalorder %s642, %s643
      %p652 = scmp.eq.s32.totalorder %s170, 0
      %p653 = por %p651, %p652
      %p654 = scmp.ne.s32.totalorder %s642, %s643
      %p655 = scmp.eq.s32.totalorder %s171, 1
      %p656 = por %p654, %p655
      %p658 = scmp.ne.s32.totalorder %s643, %s657
      %p659 = scmp.eq.s32.totalorder %s171, 0
      %p660 = por %p658, %p659
      %s662 = sadd.s32 %s661, 1
      %p665 = scmp.eq.s32.totalorder %s165, 1
      %p666 = scmp.ne.s32.totalorder %s661, %s663
      %p667 = scmp.eq.s32.totalorder %s165, 0
      %p668 = por %p666, %p667
      %p669 = scmp.ne.s32.totalorder %s661, %s663
      %p670 = scmp.eq.s32.totalorder %s170, 1
      %p671 = por %p669, %p670
      %p672 = scmp.ne.s32.totalorder %s663, %s664
      %p673 = scmp.eq.s32.totalorder %s170, 0
      %p674 = por %p672, %p673
      %p675 = scmp.ne.s32.totalorder %s663, %s664
      %p676 = scmp.eq.s32.totalorder %s171, 1
      %p677 = por %p675, %p676
      %p679 = scmp.ne.s32.totalorder %s664, %s678
      %p680 = scmp.eq.s32.totalorder %s171, 0
      %p681 = por %p679, %p680
      %s683 = sadd.s32 %s682, 1
      %p686 = scmp.eq.s32.totalorder %s165, 1
      %p687 = scmp.ne.s32.totalorder %s682, %s684
      %p688 = scmp.eq.s32.totalorder %s165, 0
      %p689 = por %p687, %p688
      %p690 = scmp.ne.s32.totalorder %s682, %s684
      %p691 = scmp.eq.s32.totalorder %s170, 1
      %p692 = por %p690, %p691
      %p693 = scmp.ne.s32.totalorder %s684, %s685
      %p694 = scmp.eq.s32.totalorder %s170, 0
      %p695 = por %p693, %p694
      %p696 = scmp.ne.s32.totalorder %s684, %s685
      %p697 = scmp.eq.s32.totalorder %s171, 1
      %p698 = por %p696, %p697
      %p700 = scmp.ne.s32.totalorder %s685, %s699
      %p701 = scmp.eq.s32.totalorder %s171, 0
      %p702 = por %p700, %p701
      %s704 = sadd.s32 %s703, 1
      %p707 = scmp.eq.s32.totalorder %s165, 1
      %p708 = scmp.ne.s32.totalorder %s703, %s705
      %p709 = scmp.eq.s32.totalorder %s165, 0
      %p710 = por %p708, %p709
      %p711 = scmp.ne.s32.totalorder %s703, %s705
      %p712 = scmp.eq.s32.totalorder %s170, 1
      %p713 = por %p711, %p712
      %p714 = scmp.ne.s32.totalorder %s705, %s706
      %p715 = scmp.eq.s32.totalorder %s170, 0
      %p716 = por %p714, %p715
      %p717 = scmp.ne.s32.totalorder %s705, %s706
      %p718 = scmp.eq.s32.totalorder %s171, 1
      %p719 = por %p717, %p718
      %p721 = scmp.ne.s32.totalorder %s706, %s720
      %p722 = scmp.eq.s32.totalorder %s171, 0
      %p723 = por %p721, %p722
      %s725 = sadd.s32 %s724, 1
      %p728 = scmp.eq.s32.totalorder %s165, 1
      %p729 = scmp.ne.s32.totalorder %s724, %s726
      %p730 = scmp.eq.s32.totalorder %s165, 0
      %p731 = por %p729, %p730
      %p732 = scmp.ne.s32.totalorder %s724, %s726
      %p733 = scmp.eq.s32.totalorder %s170, 1
      %p734 = por %p732, %p733
      %p735 = scmp.ne.s32.totalorder %s726, %s727
      %p736 = scmp.eq.s32.totalorder %s170, 0
      %p737 = por %p735, %p736
      %p738 = scmp.ne.s32.totalorder %s726, %s727
      %p739 = scmp.eq.s32.totalorder %s171, 1
      %p740 = por %p738, %p739
      %p742 = scmp.ne.s32.totalorder %s727, %s741
      %p743 = scmp.eq.s32.totalorder %s171, 0
      %p744 = por %p742, %p743
      %s746 = sadd.s32 %s745, 1
      %p749 = scmp.eq.s32.totalorder %s165, 1
      %p750 = scmp.ne.s32.totalorder %s745, %s747
      %p751 = scmp.eq.s32.totalorder %s165, 0
      %p752 = por %p750, %p751
      %p753 = scmp.ne.s32.totalorder %s745, %s747
      %p754 = scmp.eq.s32.totalorder %s170, 1
      %p755 = por %p753, %p754
      %p756 = scmp.ne.s32.totalorder %s747, %s748
      %p757 = scmp.eq.s32.totalorder %s170, 0
      %p758 = por %p756, %p757
      %p759 = scmp.ne.s32.totalorder %s747, %s748
      %p760 = scmp.eq.s32.totalorder %s171, 1
      %p761 = por %p759, %p760
      %p763 = scmp.ne.s32.totalorder %s748, %s762
      %p764 = scmp.eq.s32.totalorder %s171, 0
      %p765 = por %p763, %p764
      %s767 = sadd.s32 %s766, 1
      %p770 = scmp.eq.s32.totalorder %s165, 1
      %p771 = scmp.ne.s32.totalorder %s766, %s768
      %p772 = scmp.eq.s32.totalorder %s165, 0
      %p773 = por %p771, %p772
      %p774 = scmp.ne.s32.totalorder %s766, %s768
      %p775 = scmp.eq.s32.totalorder %s170, 1
      %p776 = por %p774, %p775
      %p777 = scmp.ne.s32.totalorder %s768, %s769
      %p778 = scmp.eq.s32.totalorder %s170, 0
      %p779 = por %p777, %p778
      %p780 = scmp.ne.s32.totalorder %s768, %s769
      %p781 = scmp.eq.s32.totalorder %s171, 1
      %p782 = por %p780, %p781
      %p784 = scmp.ne.s32.totalorder %s769, %s783
      %p785 = scmp.eq.s32.totalorder %s171, 0
      %p786 = por %p784, %p785
      %s788 = sadd.s32 %s787, 1
      %p791 = scmp.eq.s32.totalorder %s165, 1
      %p792 = scmp.ne.s32.totalorder %s787, %s789
      %p793 = scmp.eq.s32.totalorder %s165, 0
      %p794 = por %p792, %p793
      %p795 = scmp.ne.s32.totalorder %s787, %s789
      %p796 = scmp.eq.s32.totalorder %s170, 1
      %p797 = por %p795, %p796
      %p798 = scmp.ne.s32.totalorder %s789, %s790
      %p799 = scmp.eq.s32.totalorder %s170, 0
      %p800 = por %p798, %p799
      %p801 = scmp.ne.s32.totalorder %s789, %s790
      %p802 = scmp.eq.s32.totalorder %s171, 1
      %p803 = por %p801, %p802
      %p805 = scmp.ne.s32.totalorder %s790, %s804
      %p806 = scmp.eq.s32.totalorder %s171, 0
      %p807 = por %p805, %p806
      %s809 = sadd.s32 %s808, 1
      %p812 = scmp.eq.s32.totalorder %s165, 1
      %p813 = scmp.ne.s32.totalorder %s808, %s810
      %p814 = scmp.eq.s32.totalorder %s165, 0
      %p815 = por %p813, %p814
      %p816 = scmp.ne.s32.totalorder %s808, %s810
      %p817 = scmp.eq.s32.totalorder %s170, 1
      %p818 = por %p816, %p817
      %p819 = scmp.ne.s32.totalorder %s810, %s811
      %p820 = scmp.eq.s32.totalorder %s170, 0
      %p821 = por %p819, %p820
      %p822 = scmp.ne.s32.totalorder %s810, %s811
      %p823 = scmp.eq.s32.totalorder %s171, 1
      %p824 = por %p822, %p823
      %p826 = scmp.ne.s32.totalorder %s811, %s825
      %p827 = scmp.eq.s32.totalorder %s171, 0
      %p828 = por %p826, %p827
      %s830 = sadd.s32 %s829, 1
      %p833 = scmp.eq.s32.totalorder %s165, 1
      %p834 = scmp.ne.s32.totalorder %s829, %s831
      %p835 = scmp.eq.s32.totalorder %s165, 0
      %p836 = por %p834, %p835
      %p837 = scmp.ne.s32.totalorder %s829, %s831
      %p838 = scmp.eq.s32.totalorder %s170, 1
      %p839 = por %p837, %p838
      %p840 = scmp.ne.s32.totalorder %s831, %s832
      %p841 = scmp.eq.s32.totalorder %s170, 0
      %p842 = por %p840, %p841
      %p843 = scmp.ne.s32.totalorder %s831, %s832
      %p844 = scmp.eq.s32.totalorder %s171, 1
      %p845 = por %p843, %p844
      %p847 = scmp.ne.s32.totalorder %s832, %s846
      %p848 = scmp.eq.s32.totalorder %s171, 0
      %p849 = por %p847, %p848
      %s851 = sadd.s32 %s850, 1
      %p854 = scmp.eq.s32.totalorder %s165, 1
      %p855 = scmp.ne.s32.totalorder %s850, %s852
      %p856 = scmp.eq.s32.totalorder %s165, 0
      %p857 = por %p855, %p856
      %p858 = scmp.ne.s32.totalorder %s850, %s852
      %p859 = scmp.eq.s32.totalorder %s170, 1
      %p860 = por %p858, %p859
      %p861 = scmp.ne.s32.totalorder %s852, %s853
      %p862 = scmp.eq.s32.totalorder %s170, 0
      %p863 = por %p861, %p862
      %p864 = scmp.ne.s32.totalorder %s852, %s853
      %p865 = scmp.eq.s32.totalorder %s171, 1
      %p866 = por %p864, %p865
      %p868 = scmp.ne.s32.totalorder %s853, %s867
      %p869 = scmp.eq.s32.totalorder %s171, 0
      %p870 = por %p868, %p869
      %s872 = sadd.s32 %s871, 1
      %p875 = scmp.eq.s32.totalorder %s165, 1
      %p876 = scmp.ne.s32.totalorder %s871, %s873
      %p877 = scmp.eq.s32.totalorder %s165, 0
      %p878 = por %p876, %p877
      %p879 = scmp.ne.s32.totalorder %s871, %s873
      %p880 = scmp.eq.s32.totalorder %s170, 1
      %p881 = por %p879, %p880
      %p882 = scmp.ne.s32.totalorder %s873, %s874
      %p883 = scmp.eq.s32.totalorder %s170, 0
      %p884 = por %p882, %p883
      %p885 = scmp.ne.s32.totalorder %s873, %s874
      %p886 = scmp.eq.s32.totalorder %s171, 1
      %p887 = por %p885, %p886
      %p889 = scmp.ne.s32.totalorder %s874, %s888
      %p890 = scmp.eq.s32.totalorder %s171, 0
      %p891 = por %p889, %p890
      %s893 = sadd.s32 %s892, 1
      %p896 = scmp.eq.s32.totalorder %s165, 1
      %p897 = scmp.ne.s32.totalorder %s892, %s894
      %p898 = scmp.eq.s32.totalorder %s165, 0
      %p899 = por %p897, %p898
      %p900 = scmp.ne.s32.totalorder %s892, %s894
      %p901 = scmp.eq.s32.totalorder %s170, 1
      %p902 = por %p900, %p901
      %p903 = scmp.ne.s32.totalorder %s894, %s895
      %p904 = scmp.eq.s32.totalorder %s170, 0
      %p905 = por %p903, %p904
      %p906 = scmp.ne.s32.totalorder %s894, %s895
      %p907 = scmp.eq.s32.totalorder %s171, 1
      %p908 = por %p906, %p907
      %p910 = scmp.ne.s32.totalorder %s895, %s909
      %p911 = scmp.eq.s32.totalorder %s171, 0
      %p912 = por %p910, %p911
      %s914 = sadd.s32 %s913, 1
      %p917 = scmp.eq.s32.totalorder %s165, 1
      %p918 = scmp.ne.s32.totalorder %s913, %s915
      %p919 = scmp.eq.s32.totalorder %s165, 0
      %p920 = por %p918, %p919
      %p921 = scmp.ne.s32.totalorder %s913, %s915
      %p922 = scmp.eq.s32.totalorder %s170, 1
      %p923 = por %p921, %p922
      %p924 = scmp.ne.s32.totalorder %s915, %s916
      %p925 = scmp.eq.s32.totalorder %s170, 0
      %p926 = por %p924, %p925
      %p927 = scmp.ne.s32.totalorder %s915, %s916
      %p928 = scmp.eq.s32.totalorder %s171, 1
      %p929 = por %p927, %p928
      %p931 = scmp.ne.s32.totalorder %s916, %s930
      %p932 = scmp.eq.s32.totalorder %s171, 0
      %p933 = por %p931, %p932
      %s935 = sadd.s32 %s934, 1
      %p938 = scmp.eq.s32.totalorder %s165, 1
      %p939 = scmp.ne.s32.totalorder %s934, %s936
      %p940 = scmp.eq.s32.totalorder %s165, 0
      %p941 = por %p939, %p940
      %p942 = scmp.ne.s32.totalorder %s934, %s936
      %p943 = scmp.eq.s32.totalorder %s170, 1
      %p944 = por %p942, %p943
      %p945 = scmp.ne.s32.totalorder %s936, %s937
      %p946 = scmp.eq.s32.totalorder %s170, 0
      %p947 = por %p945, %p946
      %p948 = scmp.ne.s32.totalorder %s936, %s937
      %p949 = scmp.eq.s32.totalorder %s171, 1
      %p950 = por %p948, %p949
      %p952 = scmp.ne.s32.totalorder %s937, %s951
      %p953 = scmp.eq.s32.totalorder %s171, 0
      %p954 = por %p952, %p953
      %s956 = sadd.s32 %s955, 1
      %p959 = scmp.eq.s32.totalorder %s165, 1
      %p960 = scmp.ne.s32.totalorder %s955, %s957
      %p961 = scmp.eq.s32.totalorder %s165, 0
      %p962 = por %p960, %p961
      %p963 = scmp.ne.s32.totalorder %s955, %s957
      %p964 = scmp.eq.s32.totalorder %s170, 1
      %p965 = por %p963, %p964
      %p966 = scmp.ne.s32.totalorder %s957, %s958
      %p967 = scmp.eq.s32.totalorder %s170, 0
      %p968 = por %p966, %p967
      %p969 = scmp.ne.s32.totalorder %s957, %s958
      %p970 = scmp.eq.s32.totalorder %s171, 1
      %p971 = por %p969, %p970
      %p973 = scmp.ne.s32.totalorder %s958, %s972
      %p974 = scmp.eq.s32.totalorder %s171, 0
      %p975 = por %p973, %p974
      %s977 = sadd.s32 %s976, 1
      %p980 = scmp.eq.s32.totalorder %s165, 1
      %p981 = scmp.ne.s32.totalorder %s976, %s978
      %p982 = scmp.eq.s32.totalorder %s165, 0
      %p983 = por %p981, %p982
      %p984 = scmp.ne.s32.totalorder %s976, %s978
      %p985 = scmp.eq.s32.totalorder %s170, 1
      %p986 = por %p984, %p985
      %p987 = scmp.ne.s32.totalorder %s978, %s979
      %p988 = scmp.eq.s32.totalorder %s170, 0
      %p989 = por %p987, %p988
      %p990 = scmp.ne.s32.totalorder %s978, %s979
      %p991 = scmp.eq.s32.totalorder %s171, 1
      %p992 = por %p990, %p991
      %p994 = scmp.ne.s32.totalorder %s979, %s993
      %p995 = scmp.eq.s32.totalorder %s171, 0
      %p996 = por %p994, %p995
      %s998 = sadd.s32 %s997, 1
      %p1001 = scmp.eq.s32.totalorder %s165, 1
      %p1002 = scmp.ne.s32.totalorder %s997, %s999
      %p1003 = scmp.eq.s32.totalorder %s165, 0
      %p1004 = por %p1002, %p1003
      %p1005 = scmp.ne.s32.totalorder %s997, %s999
      %p1006 = scmp.eq.s32.totalorder %s170, 1
      %p1007 = por %p1005, %p1006
      %p1008 = scmp.ne.s32.totalorder %s999, %s1000
      %p1009 = scmp.eq.s32.totalorder %s170, 0
      %p1010 = por %p1008, %p1009
      %p1011 = scmp.ne.s32.totalorder %s999, %s1000
      %p1012 = scmp.eq.s32.totalorder %s171, 1
      %p1013 = por %p1011, %p1012
      %p1015 = scmp.ne.s32.totalorder %s1000, %s1014
      %p1016 = scmp.eq.s32.totalorder %s171, 0
      %p1017 = por %p1015, %p1016
      %s1019 = sadd.s32 %s1018, 1
      %p1022 = scmp.eq.s32.totalorder %s165, 1
      %p1023 = scmp.ne.s32.totalorder %s1018, %s1020
      %p1024 = scmp.eq.s32.totalorder %s165, 0
      %p1025 = por %p1023, %p1024
      %p1026 = scmp.ne.s32.totalorder %s1018, %s1020
      %p1027 = scmp.eq.s32.totalorder %s170, 1
      %p1028 = por %p1026, %p1027
      %p1029 = scmp.ne.s32.totalorder %s1020, %s1021
      %p1030 = scmp.eq.s32.totalorder %s170, 0
      %p1031 = por %p1029, %p1030
      %p1032 = scmp.ne.s32.totalorder %s1020, %s1021
      %p1033 = scmp.eq.s32.totalorder %s171, 1
      %p1034 = por %p1032, %p1033
      %p1036 = scmp.ne.s32.totalorder %s1021, %s1035
      %p1037 = scmp.eq.s32.totalorder %s171, 0
      %p1038 = por %p1036, %p1037
      %s1040 = sadd.s32 %s1039, 1
      %p1043 = scmp.eq.s32.totalorder %s165, 1
      %p1044 = scmp.ne.s32.totalorder %s1039, %s1041
      %p1045 = scmp.eq.s32.totalorder %s165, 0
      %p1046 = por %p1044, %p1045
      %p1047 = scmp.ne.s32.totalorder %s1039, %s1041
      %p1048 = scmp.eq.s32.totalorder %s170, 1
      %p1049 = por %p1047, %p1048
      %p1050 = scmp.ne.s32.totalorder %s1041, %s1042
      %p1051 = scmp.eq.s32.totalorder %s170, 0
      %p1052 = por %p1050, %p1051
      %p1053 = scmp.ne.s32.totalorder %s1041, %s1042
      %p1054 = scmp.eq.s32.totalorder %s171, 1
      %p1055 = por %p1053, %p1054
      %p1057 = scmp.ne.s32.totalorder %s1042, %s1056
      %p1058 = scmp.eq.s32.totalorder %s171, 0
      %p1059 = por %p1057, %p1058
      %s1061 = sadd.s32 %s1060, 1
      %p1064 = scmp.eq.s32.totalorder %s165, 1
      %p1065 = scmp.ne.s32.totalorder %s1060, %s1062
      %p1066 = scmp.eq.s32.totalorder %s165, 0
      %p1067 = por %p1065, %p1066
      %p1068 = scmp.ne.s32.totalorder %s1060, %s1062
      %p1069 = scmp.eq.s32.totalorder %s170, 1
      %p1070 = por %p1068, %p1069
      %p1071 = scmp.ne.s32.totalorder %s1062, %s1063
      %p1072 = scmp.eq.s32.totalorder %s170, 0
      %p1073 = por %p1071, %p1072
      %p1074 = scmp.ne.s32.totalorder %s1062, %s1063
      %p1075 = scmp.eq.s32.totalorder %s171, 1
      %p1076 = por %p1074, %p1075
      %p1078 = scmp.ne.s32.totalorder %s1063, %s1077
      %p1079 = scmp.eq.s32.totalorder %s171, 0
      %p1080 = por %p1078, %p1079
      %s1082 = sadd.s32 %s1081, 1
      %p1085 = scmp.eq.s32.totalorder %s165, 1
      %p1086 = scmp.ne.s32.totalorder %s1081, %s1083
      %p1087 = scmp.eq.s32.totalorder %s165, 0
      %p1088 = por %p1086, %p1087
      %p1089 = scmp.ne.s32.totalorder %s1081, %s1083
      %p1090 = scmp.eq.s32.totalorder %s170, 1
      %p1091 = por %p1089, %p1090
      %p1092 = scmp.ne.s32.totalorder %s1083, %s1084
      %p1093 = scmp.eq.s32.totalorder %s170, 0
      %p1094 = por %p1092, %p1093
      %p1095 = scmp.ne.s32.totalorder %s1083, %s1084
      %p1096 = scmp.eq.s32.totalorder %s171, 1
      %p1097 = por %p1095, %p1096
      %p1099 = scmp.ne.s32.totalorder %s1084, %s1098
      %p1100 = scmp.eq.s32.totalorder %s171, 0
      %p1101 = por %p1099, %p1100
      %s1103 = sadd.s32 %s1102, 1
      %p1106 = scmp.eq.s32.totalorder %s165, 1
      %p1107 = scmp.ne.s32.totalorder %s1102, %s1104
      %p1108 = scmp.eq.s32.totalorder %s165, 0
      %p1109 = por %p1107, %p1108
      %p1110 = scmp.ne.s32.totalorder %s1102, %s1104
      %p1111 = scmp.eq.s32.totalorder %s170, 1
      %p1112 = por %p1110, %p1111
      %p1113 = scmp.ne.s32.totalorder %s1104, %s1105
      %p1114 = scmp.eq.s32.totalorder %s170, 0
      %p1115 = por %p1113, %p1114
      %p1116 = scmp.ne.s32.totalorder %s1104, %s1105
      %p1117 = scmp.eq.s32.totalorder %s171, 1
      %p1118 = por %p1116, %p1117
      %p1120 = scmp.ne.s32.totalorder %s1105, %s1119
      %p1121 = scmp.eq.s32.totalorder %s171, 0
      %p1122 = por %p1120, %p1121
      %s1124 = sadd.s32 %s1123, 1
      %p1127 = scmp.eq.s32.totalorder %s165, 1
      %p1128 = scmp.ne.s32.totalorder %s1123, %s1125
      %p1129 = scmp.eq.s32.totalorder %s165, 0
      %p1130 = por %p1128, %p1129
      %p1131 = scmp.ne.s32.totalorder %s1123, %s1125
      %p1132 = scmp.eq.s32.totalorder %s170, 1
      %p1133 = por %p1131, %p1132
      %p1134 = scmp.ne.s32.totalorder %s1125, %s1126
      %p1135 = scmp.eq.s32.totalorder %s170, 0
      %p1136 = por %p1134, %p1135
      %p1137 = scmp.ne.s32.totalorder %s1125, %s1126
      %p1138 = scmp.eq.s32.totalorder %s171, 1
      %p1139 = por %p1137, %p1138
      %p1141 = scmp.ne.s32.totalorder %s1126, %s1140
      %p1142 = scmp.eq.s32.totalorder %s171, 0
      %p1143 = por %p1141, %p1142
      %s1145 = sadd.s32 %s1144, 1
      %p1148 = scmp.eq.s32.totalorder %s165, 1
      %p1149 = scmp.ne.s32.totalorder %s1144, %s1146
      %p1150 = scmp.eq.s32.totalorder %s165, 0
      %p1151 = por %p1149, %p1150
      %p1152 = scmp.ne.s32.totalorder %s1144, %s1146
      %p1153 = scmp.eq.s32.totalorder %s170, 1
      %p1154 = por %p1152, %p1153
      %p1155 = scmp.ne.s32.totalorder %s1146, %s1147
      %p1156 = scmp.eq.s32.totalorder %s170, 0
      %p1157 = por %p1155, %p1156
      %p1158 = scmp.ne.s32.totalorder %s1146, %s1147
      %p1159 = scmp.eq.s32.totalorder %s171, 1
      %p1160 = por %p1158, %p1159
      %p1162 = scmp.ne.s32.totalorder %s1147, %s1161
      %p1163 = scmp.eq.s32.totalorder %s171, 0
      %p1164 = por %p1162, %p1163
      %s1166 = sadd.s32 %s1165, 1
      %p1169 = scmp.eq.s32.totalorder %s165, 1
      %p1170 = scmp.ne.s32.totalorder %s1165, %s1167
      %p1171 = scmp.eq.s32.totalorder %s165, 0
      %p1172 = por %p1170, %p1171
      %p1173 = scmp.ne.s32.totalorder %s1165, %s1167
      %p1174 = scmp.eq.s32.totalorder %s170, 1
      %p1175 = por %p1173, %p1174
      %p1176 = scmp.ne.s32.totalorder %s1167, %s1168
      %p1177 = scmp.eq.s32.totalorder %s170, 0
      %p1178 = por %p1176, %p1177
      %p1179 = scmp.ne.s32.totalorder %s1167, %s1168
      %p1180 = scmp.eq.s32.totalorder %s171, 1
      %p1181 = por %p1179, %p1180
      %p1183 = scmp.ne.s32.totalorder %s1168, %s1182
      %p1184 = scmp.eq.s32.totalorder %s171, 0
      %p1185 = por %p1183, %p1184
      %s1187 = sadd.s32 %s1186, 1
      %p1190 = scmp.eq.s32.totalorder %s165, 1
      %p1191 = scmp.ne.s32.totalorder %s1186, %s1188
      %p1192 = scmp.eq.s32.totalorder %s165, 0
      %p1193 = por %p1191, %p1192
      %p1194 = scmp.ne.s32.totalorder %s1186, %s1188
      %p1195 = scmp.eq.s32.totalorder %s170, 1
      %p1196 = por %p1194, %p1195
      %p1197 = scmp.ne.s32.totalorder %s1188, %s1189
      %p1198 = scmp.eq.s32.totalorder %s170, 0
      %p1199 = por %p1197, %p1198
      %p1200 = scmp.ne.s32.totalorder %s1188, %s1189
      %p1201 = scmp.eq.s32.totalorder %s171, 1
      %p1202 = por %p1200, %p1201
      %p1204 = scmp.ne.s32.totalorder %s1189, %s1203
      %p1205 = scmp.eq.s32.totalorder %s171, 0
      %p1206 = por %p1204, %p1205
      %s1208 = sadd.s32 %s1207, 1
      %p1211 = scmp.eq.s32.totalorder %s165, 1
      %p1212 = scmp.ne.s32.totalorder %s1207, %s1209
      %p1213 = scmp.eq.s32.totalorder %s165, 0
      %p1214 = por %p1212, %p1213
      %p1215 = scmp.ne.s32.totalorder %s1207, %s1209
      %p1216 = scmp.eq.s32.totalorder %s170, 1
      %p1217 = por %p1215, %p1216
      %p1218 = scmp.ne.s32.totalorder %s1209, %s1210
      %p1219 = scmp.eq.s32.totalorder %s170, 0
      %p1220 = por %p1218, %p1219
      %p1221 = scmp.ne.s32.totalorder %s1209, %s1210
      %p1222 = scmp.eq.s32.totalorder %s171, 1
      %p1223 = por %p1221, %p1222
      %p1225 = scmp.ne.s32.totalorder %s1210, %s1224
      %p1226 = scmp.eq.s32.totalorder %s171, 0
      %p1227 = por %p1225, %p1226
      %s1229 = sadd.s32 %s1228, 1
      %p1232 = scmp.eq.s32.totalorder %s165, 1
      %p1233 = scmp.ne.s32.totalorder %s1228, %s1230
      %p1234 = scmp.eq.s32.totalorder %s165, 0
      %p1235 = por %p1233, %p1234
      %p1236 = scmp.ne.s32.totalorder %s1228, %s1230
      %p1237 = scmp.eq.s32.totalorder %s170, 1
      %p1238 = por %p1236, %p1237
      %p1239 = scmp.ne.s32.totalorder %s1230, %s1231
      %p1240 = scmp.eq.s32.totalorder %s170, 0
      %p1241 = por %p1239, %p1240
      %p1242 = scmp.ne.s32.totalorder %s1230, %s1231
      %p1243 = scmp.eq.s32.totalorder %s171, 1
      %p1244 = por %p1242, %p1243
      %p1246 = scmp.ne.s32.totalorder %s1231, %s1245
      %p1247 = scmp.eq.s32.totalorder %s171, 0
      %p1248 = por %p1246, %p1247
      %s1250 = sadd.s32 %s1249, 1
      %p1253 = scmp.eq.s32.totalorder %s165, 1
      %p1254 = scmp.ne.s32.totalorder %s1249, %s1251
      %p1255 = scmp.eq.s32.totalorder %s165, 0
      %p1256 = por %p1254, %p1255
      %p1257 = scmp.ne.s32.totalorder %s1249, %s1251
      %p1258 = scmp.eq.s32.totalorder %s170, 1
      %p1259 = por %p1257, %p1258
      %p1260 = scmp.ne.s32.totalorder %s1251, %s1252
      %p1261 = scmp.eq.s32.totalorder %s170, 0
      %p1262 = por %p1260, %p1261
      %p1263 = scmp.ne.s32.totalorder %s1251, %s1252
      %p1264 = scmp.eq.s32.totalorder %s171, 1
      %p1265 = por %p1263, %p1264
      %p1267 = scmp.ne.s32.totalorder %s1252, %s1266
      %p1268 = scmp.eq.s32.totalorder %s171, 0
      %p1269 = por %p1267, %p1268
      %s1271 = sadd.s32 %s1270, 1
      %p1274 = scmp.eq.s32.totalorder %s165, 1
      %p1275 = scmp.ne.s32.totalorder %s1270, %s1272
      %p1276 = scmp.eq.s32.totalorder %s165, 0
      %p1277 = por %p1275, %p1276
      %p1278 = scmp.ne.s32.totalorder %s1270, %s1272
      %p1279 = scmp.eq.s32.totalorder %s170, 1
      %p1280 = por %p1278, %p1279
      %p1281 = scmp.ne.s32.totalorder %s1272, %s1273
      %p1282 = scmp.eq.s32.totalorder %s170, 0
      %p1283 = por %p1281, %p1282
      %p1284 = scmp.ne.s32.totalorder %s1272, %s1273
      %p1285 = scmp.eq.s32.totalorder %s171, 1
      %p1286 = por %p1284, %p1285
      %p1288 = scmp.ne.s32.totalorder %s1273, %s1287
      %p1289 = scmp.eq.s32.totalorder %s171, 0
      %p1290 = por %p1288, %p1289
      %s1292 = sadd.s32 %s1291, 1
      %p1295 = scmp.eq.s32.totalorder %s165, 1
      %p1296 = scmp.ne.s32.totalorder %s1291, %s1293
      %p1297 = scmp.eq.s32.totalorder %s165, 0
      %p1298 = por %p1296, %p1297
      %p1299 = scmp.ne.s32.totalorder %s1291, %s1293
      %p1300 = scmp.eq.s32.totalorder %s170, 1
      %p1301 = por %p1299, %p1300
      %p1302 = scmp.ne.s32.totalorder %s1293, %s1294
      %p1303 = scmp.eq.s32.totalorder %s170, 0
      %p1304 = por %p1302, %p1303
      %p1305 = scmp.ne.s32.totalorder %s1293, %s1294
      %p1306 = scmp.eq.s32.totalorder %s171, 1
      %p1307 = por %p1305, %p1306
      %p1309 = scmp.ne.s32.totalorder %s1294, %s1308
      %p1310 = scmp.eq.s32.totalorder %s171, 0
      %p1311 = por %p1309, %p1310
      %s1313 = sadd.s32 %s1312, 1
      %p1316 = scmp.eq.s32.totalorder %s165, 1
      %p1317 = scmp.ne.s32.totalorder %s1312, %s1314
      %p1318 = scmp.eq.s32.totalorder %s165, 0
      %p1319 = por %p1317, %p1318
      %p1320 = scmp.ne.s32.totalorder %s1312, %s1314
      %p1321 = scmp.eq.s32.totalorder %s170, 1
      %p1322 = por %p1320, %p1321
      %p1323 = scmp.ne.s32.totalorder %s1314, %s1315
      %p1324 = scmp.eq.s32.totalorder %s170, 0
      %p1325 = por %p1323, %p1324
      %p1326 = scmp.ne.s32.totalorder %s1314, %s1315
      %p1327 = scmp.eq.s32.totalorder %s171, 1
      %p1328 = por %p1326, %p1327
      %p1330 = scmp.ne.s32.totalorder %s1315, %s1329
      %p1331 = scmp.eq.s32.totalorder %s171, 0
      %p1332 = por %p1330, %p1331
      %s1334 = sadd.s32 %s1333, 1
      %p1337 = scmp.eq.s32.totalorder %s165, 1
      %p1338 = scmp.ne.s32.totalorder %s1333, %s1335
      %p1339 = scmp.eq.s32.totalorder %s165, 0
      %p1340 = por %p1338, %p1339
      %p1341 = scmp.ne.s32.totalorder %s1333, %s1335
      %p1342 = scmp.eq.s32.totalorder %s170, 1
      %p1343 = por %p1341, %p1342
      %p1344 = scmp.ne.s32.totalorder %s1335, %s1336
      %p1345 = scmp.eq.s32.totalorder %s170, 0
      %p1346 = por %p1344, %p1345
      %p1347 = scmp.ne.s32.totalorder %s1335, %s1336
      %p1348 = scmp.eq.s32.totalorder %s171, 1
      %p1349 = por %p1347, %p1348
      %p1351 = scmp.ne.s32.totalorder %s1336, %s1350
      %p1352 = scmp.eq.s32.totalorder %s171, 0
      %p1353 = por %p1351, %p1352
      %s1355 = sadd.s32 %s1354, 1
      %p1358 = scmp.eq.s32.totalorder %s165, 1
      %p1359 = scmp.ne.s32.totalorder %s1354, %s1356
      %p1360 = scmp.eq.s32.totalorder %s165, 0
      %p1361 = por %p1359, %p1360
      %p1362 = scmp.ne.s32.totalorder %s1354, %s1356
      %p1363 = scmp.eq.s32.totalorder %s170, 1
      %p1364 = por %p1362, %p1363
      %p1365 = scmp.ne.s32.totalorder %s1356, %s1357
      %p1366 = scmp.eq.s32.totalorder %s170, 0
      %p1367 = por %p1365, %p1366
      %p1368 = scmp.ne.s32.totalorder %s1356, %s1357
      %p1369 = scmp.eq.s32.totalorder %s171, 1
      %p1370 = por %p1368, %p1369
      %p1372 = scmp.ne.s32.totalorder %s1357, %s1371
      %p1373 = scmp.eq.s32.totalorder %s171, 0
      %p1374 = por %p1372, %p1373
      %s1376 = sadd.s32 %s1375, 1
      %p1379 = scmp.eq.s32.totalorder %s165, 1
      %p1380 = scmp.ne.s32.totalorder %s1375, %s1377
      %p1381 = scmp.eq.s32.totalorder %s165, 0
      %p1382 = por %p1380, %p1381
      %p1383 = scmp.ne.s32.totalorder %s1375, %s1377
      %p1384 = scmp.eq.s32.totalorder %s170, 1
      %p1385 = por %p1383, %p1384
      %p1386 = scmp.ne.s32.totalorder %s1377, %s1378
      %p1387 = scmp.eq.s32.totalorder %s170, 0
      %p1388 = por %p1386, %p1387
      %p1389 = scmp.ne.s32.totalorder %s1377, %s1378
      %p1390 = scmp.eq.s32.totalorder %s171, 1
      %p1391 = por %p1389, %p1390
      %p1393 = scmp.ne.s32.totalorder %s1378, %s1392
      %p1394 = scmp.eq.s32.totalorder %s171, 0
      %p1395 = por %p1393, %p1394
      %s1397 = sadd.s32 %s1396, 1
      %p1400 = scmp.eq.s32.totalorder %s165, 1
      %p1401 = scmp.ne.s32.totalorder %s1396, %s1398
      %p1402 = scmp.eq.s32.totalorder %s165, 0
      %p1403 = por %p1401, %p1402
      %p1404 = scmp.ne.s32.totalorder %s1396, %s1398
      %p1405 = scmp.eq.s32.totalorder %s170, 1
      %p1406 = por %p1404, %p1405
      %p1407 = scmp.ne.s32.totalorder %s1398, %s1399
      %p1408 = scmp.eq.s32.totalorder %s170, 0
      %p1409 = por %p1407, %p1408
      %p1410 = scmp.ne.s32.totalorder %s1398, %s1399
      %p1411 = scmp.eq.s32.totalorder %s171, 1
      %p1412 = por %p1410, %p1411
      %p1414 = scmp.ne.s32.totalorder %s1399, %s1413
      %p1415 = scmp.eq.s32.totalorder %s171, 0
      %p1416 = por %p1414, %p1415
      %s1418 = sadd.s32 %s1417, 1
      %p1421 = scmp.eq.s32.totalorder %s165, 1
      %p1422 = scmp.ne.s32.totalorder %s1417, %s1419
      %p1423 = scmp.eq.s32.totalorder %s165, 0
      %p1424 = por %p1422, %p1423
      %p1425 = scmp.ne.s32.totalorder %s1417, %s1419
      %p1426 = scmp.eq.s32.totalorder %s170, 1
      %p1427 = por %p1425, %p1426
      %p1428 = scmp.ne.s32.totalorder %s1419, %s1420
      %p1429 = scmp.eq.s32.totalorder %s170, 0
      %p1430 = por %p1428, %p1429
      %p1431 = scmp.ne.s32.totalorder %s1419, %s1420
      %p1432 = scmp.eq.s32.totalorder %s171, 1
      %p1433 = por %p1431, %p1432
      %p1435 = scmp.ne.s32.totalorder %s1420, %s1434
      %p1436 = scmp.eq.s32.totalorder %s171, 0
      %p1437 = por %p1435, %p1436
      %s1439 = sadd.s32 %s1438, 1
      %p1442 = scmp.eq.s32.totalorder %s165, 1
      %p1443 = scmp.ne.s32.totalorder %s1438, %s1440
      %p1444 = scmp.eq.s32.totalorder %s165, 0
      %p1445 = por %p1443, %p1444
      %p1446 = scmp.ne.s32.totalorder %s1438, %s1440
      %p1447 = scmp.eq.s32.totalorder %s170, 1
      %p1448 = por %p1446, %p1447
      %p1449 = scmp.ne.s32.totalorder %s1440, %s1441
      %p1450 = scmp.eq.s32.totalorder %s170, 0
      %p1451 = por %p1449, %p1450
      %p1452 = scmp.ne.s32.totalorder %s1440, %s1441
      %p1453 = scmp.eq.s32.totalorder %s171, 1
      %p1454 = por %p1452, %p1453
      %p1456 = scmp.ne.s32.totalorder %s1441, %s1455
      %p1457 = scmp.eq.s32.totalorder %s171, 0
      %p1458 = por %p1456, %p1457
      %s1460 = sadd.s32 %s1459, 1
      %p1463 = scmp.eq.s32.totalorder %s165, 1
      %p1464 = scmp.ne.s32.totalorder %s1459, %s1461
      %p1465 = scmp.eq.s32.totalorder %s165, 0
      %p1466 = por %p1464, %p1465
      %p1467 = scmp.ne.s32.totalorder %s1459, %s1461
      %p1468 = scmp.eq.s32.totalorder %s170, 1
      %p1469 = por %p1467, %p1468
      %p1470 = scmp.ne.s32.totalorder %s1461, %s1462
      %p1471 = scmp.eq.s32.totalorder %s170, 0
      %p1472 = por %p1470, %p1471
      %p1473 = scmp.ne.s32.totalorder %s1461, %s1462
      %p1474 = scmp.eq.s32.totalorder %s171, 1
      %p1475 = por %p1473, %p1474
      %p1477 = scmp.ne.s32.totalorder %s1462, %s1476
      %p1478 = scmp.eq.s32.totalorder %s171, 0
      %p1479 = por %p1477, %p1478
      %s1481 = sadd.s32 %s1480, 1
      %p1484 = scmp.eq.s32.totalorder %s165, 1
      %p1485 = scmp.ne.s32.totalorder %s1480, %s1482
      %p1486 = scmp.eq.s32.totalorder %s165, 0
      %p1487 = por %p1485, %p1486
      %p1488 = scmp.ne.s32.totalorder %s1480, %s1482
      %p1489 = scmp.eq.s32.totalorder %s170, 1
      %p1490 = por %p1488, %p1489
      %p1491 = scmp.ne.s32.totalorder %s1482, %s1483
      %p1492 = scmp.eq.s32.totalorder %s170, 0
      %p1493 = por %p1491, %p1492
      %p1494 = scmp.ne.s32.totalorder %s1482, %s1483
      %p1495 = scmp.eq.s32.totalorder %s171, 1
      %p1496 = por %p1494, %p1495
      %p1498 = scmp.ne.s32.totalorder %s1483, %s1497
      %p1499 = scmp.eq.s32.totalorder %s171, 0
      %p1500 = por %p1498, %p1499
      %s1502 = sadd.s32 %s1501, 1
      %p1505 = scmp.eq.s32.totalorder %s165, 1
      %p1506 = scmp.ne.s32.totalorder %s1501, %s1503
      %p1507 = scmp.eq.s32.totalorder %s165, 0
      %p1508 = por %p1506, %p1507
      %p1509 = scmp.ne.s32.totalorder %s1501, %s1503
      %p1510 = scmp.eq.s32.totalorder %s170, 1
      %p1511 = por %p1509, %p1510
      %p1512 = scmp.ne.s32.totalorder %s1503, %s1504
      %p1513 = scmp.eq.s32.totalorder %s170, 0
      %p1514 = por %p1512, %p1513
      %p1515 = scmp.ne.s32.totalorder %s1503, %s1504
      %p1516 = scmp.eq.s32.totalorder %s171, 1
      %p1517 = por %p1515, %p1516
      %p1519 = scmp.ne.s32.totalorder %s1504, %s1518
      %p1520 = scmp.eq.s32.totalorder %s171, 0
      %p1521 = por %p1519, %p1520
      %s1523 = sadd.s32 %s1522, 1
      %p1526 = scmp.eq.s32.totalorder %s165, 1
      %p1527 = scmp.ne.s32.totalorder %s1522, %s1524
      %p1528 = scmp.eq.s32.totalorder %s165, 0
      %p1529 = por %p1527, %p1528
      %p1530 = scmp.ne.s32.totalorder %s1522, %s1524
      %p1531 = scmp.eq.s32.totalorder %s170, 1
      %p1532 = por %p1530, %p1531
      %p1533 = scmp.ne.s32.totalorder %s1524, %s1525
      %p1534 = scmp.eq.s32.totalorder %s170, 0
      %p1535 = por %p1533, %p1534
      %p1536 = scmp.ne.s32.totalorder %s1524, %s1525
      %p1537 = scmp.eq.s32.totalorder %s171, 1
      %p1538 = por %p1536, %p1537
      %p1540 = scmp.ne.s32.totalorder %s1525, %s1539
      %p1541 = scmp.eq.s32.totalorder %s171, 0
      %p1542 = por %p1540, %p1541
      %s1544 = sadd.s32 %s1543, 1
      %p1547 = scmp.eq.s32.totalorder %s165, 1
      %p1548 = scmp.ne.s32.totalorder %s1543, %s1545
      %p1549 = scmp.eq.s32.totalorder %s165, 0
      %p1550 = por %p1548, %p1549
      %p1551 = scmp.ne.s32.totalorder %s1543, %s1545
      %p1552 = scmp.eq.s32.totalorder %s170, 1
      %p1553 = por %p1551, %p1552
      %p1554 = scmp.ne.s32.totalorder %s1545, %s1546
      %p1555 = scmp.eq.s32.totalorder %s170, 0
      %p1556 = por %p1554, %p1555
      %p1557 = scmp.ne.s32.totalorder %s1545, %s1546
      %p1558 = scmp.eq.s32.totalorder %s171, 1
      %p1559 = por %p1557, %p1558
      %p1561 = scmp.ne.s32.totalorder %s1546, %s1560
      %p1562 = scmp.eq.s32.totalorder %s171, 0
      %p1563 = por %p1561, %p1562
      %s1565 = sadd.s32 %s1564, 1
      %p1568 = scmp.eq.s32.totalorder %s165, 1
      %p1569 = scmp.ne.s32.totalorder %s1564, %s1566
      %p1570 = scmp.eq.s32.totalorder %s165, 0
      %p1571 = por %p1569, %p1570
      %p1572 = scmp.ne.s32.totalorder %s1564, %s1566
      %p1573 = scmp.eq.s32.totalorder %s170, 1
      %p1574 = por %p1572, %p1573
      %p1575 = scmp.ne.s32.totalorder %s1566, %s1567
      %p1576 = scmp.eq.s32.totalorder %s170, 0
      %p1577 = por %p1575, %p1576
      %p1578 = scmp.ne.s32.totalorder %s1566, %s1567
      %p1579 = scmp.eq.s32.totalorder %s171, 1
      %p1580 = por %p1578, %p1579
      %p1582 = scmp.ne.s32.totalorder %s1567, %s1581
      %p1583 = scmp.eq.s32.totalorder %s171, 0
      %p1584 = por %p1582, %p1583
      %s1586 = sadd.s32 %s1585, 1
      %p1589 = scmp.eq.s32.totalorder %s165, 1
      %p1590 = scmp.ne.s32.totalorder %s1585, %s1587
      %p1591 = scmp.eq.s32.totalorder %s165, 0
      %p1592 = por %p1590, %p1591
      %p1593 = scmp.ne.s32.totalorder %s1585, %s1587
      %p1594 = scmp.eq.s32.totalorder %s170, 1
      %p1595 = por %p1593, %p1594
      %p1596 = scmp.ne.s32.totalorder %s1587, %s1588
      %p1597 = scmp.eq.s32.totalorder %s170, 0
      %p1598 = por %p1596, %p1597
      %p1599 = scmp.ne.s32.totalorder %s1587, %s1588
      %p1600 = scmp.eq.s32.totalorder %s171, 1
      %p1601 = por %p1599, %p1600
      %p1603 = scmp.ne.s32.totalorder %s1588, %s1602
      %p1604 = scmp.eq.s32.totalorder %s171, 0
      %p1605 = por %p1603, %p1604
      %s1607 = sadd.s32 %s1606, 1
      %p1610 = scmp.eq.s32.totalorder %s165, 1
      %p1611 = scmp.ne.s32.totalorder %s1606, %s1608
      %p1612 = scmp.eq.s32.totalorder %s165, 0
      %p1613 = por %p1611, %p1612
      %p1614 = scmp.ne.s32.totalorder %s1606, %s1608
      %p1615 = scmp.eq.s32.totalorder %s170, 1
      %p1616 = por %p1614, %p1615
      %p1617 = scmp.ne.s32.totalorder %s1608, %s1609
      %p1618 = scmp.eq.s32.totalorder %s170, 0
      %p1619 = por %p1617, %p1618
      %p1620 = scmp.ne.s32.totalorder %s1608, %s1609
      %p1621 = scmp.eq.s32.totalorder %s171, 1
      %p1622 = por %p1620, %p1621
      %p1624 = scmp.ne.s32.totalorder %s1609, %s1623
      %p1625 = scmp.eq.s32.totalorder %s171, 0
      %p1626 = por %p1624, %p1625
      %s1628 = sadd.s32 %s1627, 1
      %p1631 = scmp.eq.s32.totalorder %s165, 1
      %p1632 = scmp.ne.s32.totalorder %s1627, %s1629
      %p1633 = scmp.eq.s32.totalorder %s165, 0
      %p1634 = por %p1632, %p1633
      %p1635 = scmp.ne.s32.totalorder %s1627, %s1629
      %p1636 = scmp.eq.s32.totalorder %s170, 1
      %p1637 = por %p1635, %p1636
      %p1638 = scmp.ne.s32.totalorder %s1629, %s1630
      %p1639 = scmp.eq.s32.totalorder %s170, 0
      %p1640 = por %p1638, %p1639
      %p1641 = scmp.ne.s32.totalorder %s1629, %s1630
      %p1642 = scmp.eq.s32.totalorder %s171, 1
      %p1643 = por %p1641, %p1642
      %p1645 = scmp.ne.s32.totalorder %s1630, %s1644
      %p1646 = scmp.eq.s32.totalorder %s171, 0
      %p1647 = por %p1645, %p1646
      %s1648 = ssub.s32 %s165, %s172
      %p1649 = scmp.eq.s32.totalorder %s1648, 0
      %s1651 = sadd.s32 %s1650, 1
      %s1652 = scalar_select %p1649, %s1650, %s1651
      %p1655 = pneg %p1649
      %p1656 = scmp.eq.s32.totalorder %s165, 1
      %p1657 = por %p1655, %p1656
      %p1658 = scmp.ne.s32.totalorder %s1650, %s1653
      %p1659 = scmp.eq.s32.totalorder %s165, 0
      %p1660 = por %p1658, %p1659
      %p1661 = scmp.ne.s32.totalorder %s1650, %s1653
      %p1662 = scmp.eq.s32.totalorder %s170, 1
      %p1663 = por %p1661, %p1662
      %p1664 = scmp.ne.s32.totalorder %s1653, %s1654
      %p1665 = scmp.eq.s32.totalorder %s170, 0
      %p1666 = por %p1664, %p1665
      %p1667 = scmp.ne.s32.totalorder %s1653, %s1654
      %p1668 = scmp.eq.s32.totalorder %s171, 1
      %p1669 = por %p1667, %p1668
      %p1671 = scmp.ne.s32.totalorder %s1654, %s1670
      %p1672 = scmp.eq.s32.totalorder %s171, 0
      %p1673 = por %p1671, %p1672
      %p1674 = scmp.le.s32.totalorder 1, %s165
      %p1675 = scmp.lt.s32.totalorder %s165, 3
      %p1676 = pnand %p1674, %p1675
      %p1677 = pneg %p1676
      // Predicated region
      $region9: #{omni_transformer_v3_forward.1} parent=5 // pred_check
        _
      $region10: #{omni_transformer_v3_forward.1} parent=5 // pred_check_branch
        %1679 = sbr.rel (%p1676) target = $region12
      $region11: #{omni_transformer_v3_forward.1} parent=5 // pred_region
        %s1680 = ssub.s32 %s165, 1
        // Predicated region
        $region13: #{omni_transformer_v3_forward.1} parent=11 // pred_check
          %p1681 = pneg %p212
        $region14: #{omni_transformer_v3_forward.1} parent=11 // pred_check_branch
          %1683 = sbr.rel (%p1681) target = $region16
        $region15: #{omni_transformer_v3_forward.1} parent=11 // pred_region
          _
        $region16: #{omni_transformer_v3_forward.1} parent=11 // pred_fallthru
          _
        // Predicated region
        $region17: #{omni_transformer_v3_forward.1} parent=11 // pred_check
          %p1684 = pneg %p233
        $region18: #{omni_transformer_v3_forward.1} parent=11 // pred_check_branch
          %1686 = sbr.rel (%p1684) target = $region20
        $region19: #{omni_transformer_v3_forward.1} parent=11 // pred_region
          _
        $region20: #{omni_transformer_v3_forward.1} parent=11 // pred_fallthru
          _
        // Predicated region
        $region21: #{omni_transformer_v3_forward.1} parent=11 // pred_check
          %p1687 = pneg %p254
        $region22: #{omni_transformer_v3_forward.1} parent=11 // pred_check_branch
          %1689 = sbr.rel (%p1687) target = $region24
        $region23: #{omni_transformer_v3_forward.1} parent=11 // pred_region
          _
        $region24: #{omni_transformer_v3_forward.1} parent=11 // pred_fallthru
          _
        // Predicated region
        $region25: #{omni_transformer_v3_forward.1} parent=11 // pred_check
          %p1690 = pneg %p275
        $region26: #{omni_transformer_v3_forward.1} parent=11 // pred_check_branch
          %1692 = sbr.rel (%p1690) target = $region28
        $region27: #{omni_transformer_v3_forward.1} parent=11 // pred_region
          _
        $region28: #{omni_transformer_v3_forward.1} parent=11 // pred_fallthru
          _
        // Predicated region
        $region29: #{omni_transformer_v3_forward.1} parent=11 // pred_check
          %p1693 = pneg %p296
        $region30: #{omni_transformer_v3_forward.1} parent=11 // pred_check_branch
          %1695 = sbr.rel (%p1693) target = $region32
        $region31: #{omni_transformer_v3_forward.1} parent=11 // pred_region
          _
        $region32: #{omni_transformer_v3_forward.1} parent=11 // pred_fallthru
          _
        // Predicated region
        $region33: #{omni_transformer_v3_forward.1} parent=11 // pred_check
          %p1696 = pneg %p317
        $region34: #{omni_transformer_v3_forward.1} parent=11 // pred_check_branch
          %1698 = sbr.rel (%p1696) target = $region36
        $region35: #{omni_transformer_v3_forward.1} parent=11 // pred_region
          _
        $region36: #{omni_transformer_v3_forward.1} parent=11 // pred_fallthru
          _
        // Predicated region
        $region37: #{omni_transformer_v3_forward.1} parent=11 // pred_check
          %p1699 = pneg %p338
        $region38: #{omni_transformer_v3_forward.1} parent=11 // pred_check_branch
          %1701 = sbr.rel (%p1699) target = $region40
        $region39: #{omni_transformer_v3_forward.1} parent=11 // pred_region
          _
        $region40: #{omni_transformer_v3_forward.1} parent=11 // pred_fallthru
          _
        // Predicated region
        $region41: #{omni_transformer_v3_forward.1} parent=11 // pred_check
          %p1702 = pneg %p359
        $region42: #{omni_transformer_v3_forward.1} parent=11 // pred_check_branch
          %1704 = sbr.rel (%p1702) target = $region44
        $region43: #{omni_transformer_v3_forward.1} parent=11 // pred_region
          _
        $region44: #{omni_transformer_v3_forward.1} parent=11 // pred_fallthru
          _
        // Predicated region
        $region45: #{omni_transformer_v3_forward.1} parent=11 // pred_check
          %p1705 = pneg %p380
        $region46: #{omni_transformer_v3_forward.1} parent=11 // pred_check_branch
          %1707 = sbr.rel (%p1705) target = $region48
        $region47: #{omni_transformer_v3_forward.1} parent=11 // pred_region
          _
        $region48: #{omni_transformer_v3_forward.1} parent=11 // pred_fallthru
          _
        // Predicated region
        $region49: #{omni_transformer_v3_forward.1} parent=11 // pred_check
          %p1708 = pneg %p401
        $region50: #{omni_transformer_v3_forward.1} parent=11 // pred_check_branch
          %1710 = sbr.rel (%p1708) target = $region52
        $region51: #{omni_transformer_v3_forward.1} parent=11 // pred_region
          _
        $region52: #{omni_transformer_v3_forward.1} parent=11 // pred_fallthru
          _
        // Predicated region
        $region53: #{omni_transformer_v3_forward.1} parent=11 // pred_check
          %p1711 = pneg %p422
        $region54: #{omni_transformer_v3_forward.1} parent=11 // pred_check_branch
          %1713 = sbr.rel (%p1711) target = $region56
        $region55: #{omni_transformer_v3_forward.1} parent=11 // pred_region
          _
        $region56: #{omni_transformer_v3_forward.1} parent=11 // pred_fallthru
          _
        // Predicated region
        $region57: #{omni_transformer_v3_forward.1} parent=11 // pred_check
          %p1714 = pneg %p443
        $region58: #{omni_transformer_v3_forward.1} parent=11 // pred_check_branch
          %1716 = sbr.rel (%p1714) target = $region60
        $region59: #{omni_transformer_v3_forward.1} parent=11 // pred_region
          _
        $region60: #{omni_transformer_v3_forward.1} parent=11 // pred_fallthru
          _
        // Predicated region
        $region61: #{omni_transformer_v3_forward.1} parent=11 // pred_check
          %p1717 = pneg %p464
        $region62: #{omni_transformer_v3_forward.1} parent=11 // pred_check_branch
          %1719 = sbr.rel (%p1717) target = $region64
        $region63: #{omni_transformer_v3_forward.1} parent=11 // pred_region
          %1721 = vsyncadd [#allocation3], 0
          %s1723 = sshll.u32 %s27, 4
          %s1724 = int_to_ptr.hbm [resolvable:$true] %s1723
          %s1725 = sshll.u32 [#allocation2], 4
          %s1726 = int_to_ptr.vmem [resolvable:$true] %s1725
          %1728 = dma.hbm_to_vmem [thread:$0]  %s1724, 16, %s1726, [#allocation3]
        $region64: #{omni_transformer_v3_forward.1} parent=11 // pred_fallthru
          _
        // Predicated region
        $region65: #{omni_transformer_v3_forward.1} parent=11 // pred_check
          %p1729 = pneg %p485
        $region66: #{omni_transformer_v3_forward.1} parent=11 // pred_check_branch
          %1731 = sbr.rel (%p1729) target = $region68
        $region67: #{omni_transformer_v3_forward.1} parent=11 // pred_region
          %1733 = vsyncadd [#allocation6], 0
          %s1735 = sshll.u32 %s29, 4
          %s1736 = int_to_ptr.hbm [resolvable:$true] %s1735
          %s1737 = sshll.u32 [#allocation5], 4
          %s1738 = int_to_ptr.vmem [resolvable:$true] %s1737
          %1740 = dma.hbm_to_vmem [thread:$0]  %s1736, 16, %s1738, [#allocation6]
        $region68: #{omni_transformer_v3_forward.1} parent=11 // pred_fallthru
          _
        // Predicated region
        $region69: #{omni_transformer_v3_forward.1} parent=11 // pred_check
          %p1741 = pneg %p506
        $region70: #{omni_transformer_v3_forward.1} parent=11 // pred_check_branch
          %1743 = sbr.rel (%p1741) target = $region72
        $region71: #{omni_transformer_v3_forward.1} parent=11 // pred_region
          %1745 = vsyncadd [#allocation6], 0
          %s1747 = sshll.u32 %s31, 4
          %s1748 = int_to_ptr.hbm [resolvable:$true] %s1747
          %s1749 = sshll.u32 [#allocation7], 4
          %s1750 = int_to_ptr.vmem [resolvable:$true] %s1749
          %1752 = dma.hbm_to_vmem [thread:$0]  %s1748, 16, %s1750, [#allocation6]
        $region72: #{omni_transformer_v3_forward.1} parent=11 // pred_fallthru
          _
        // Predicated region
        $region73: #{omni_transformer_v3_forward.1} parent=11 // pred_check
          %p1753 = pneg %p527
        $region74: #{omni_transformer_v3_forward.1} parent=11 // pred_check_branch
          %1755 = sbr.rel (%p1753) target = $region76
        $region75: #{omni_transformer_v3_forward.1} parent=11 // pred_region
          _
        $region76: #{omni_transformer_v3_forward.1} parent=11 // pred_fallthru
          _
        // Predicated region
        $region77: #{omni_transformer_v3_forward.1} parent=11 // pred_check
          %p1756 = pneg %p548
        $region78: #{omni_transformer_v3_forward.1} parent=11 // pred_check_branch
          %1758 = sbr.rel (%p1756) target = $region80
        $region79: #{omni_transformer_v3_forward.1} parent=11 // pred_region
          %1760 = vsyncadd [#allocation9], 0
          %s1762 = sshll.u32 %s35, 4
          %s1763 = int_to_ptr.hbm [resolvable:$true] %s1762
          %s1764 = sshll.u32 [#allocation8], 4
          %s1765 = int_to_ptr.vmem [resolvable:$true] %s1764
          %1767 = dma.hbm_to_vmem [thread:$0]  %s1763, 16, %s1765, [#allocation9]
        $region80: #{omni_transformer_v3_forward.1} parent=11 // pred_fallthru
          _
        // Predicated region
        $region81: #{omni_transformer_v3_forward.1} parent=11 // pred_check
          %p1768 = pneg %p569
        $region82: #{omni_transformer_v3_forward.1} parent=11 // pred_check_branch
          %1770 = sbr.rel (%p1768) target = $region84
        $region83: #{omni_transformer_v3_forward.1} parent=11 // pred_region
          _
        $region84: #{omni_transformer_v3_forward.1} parent=11 // pred_fallthru
          _
        // Predicated region
        $region85: #{omni_transformer_v3_forward.1} parent=11 // pred_check
          %p1771 = pneg %p590
        $region86: #{omni_transformer_v3_forward.1} parent=11 // pred_check_branch
          %1773 = sbr.rel (%p1771) target = $region88
        $region87: #{omni_transformer_v3_forward.1} parent=11 // pred_region
          %1775 = vsyncadd [#allocation9], 0
          %s1777 = sshll.u32 %s39, 4
          %s1778 = int_to_ptr.hbm [resolvable:$true] %s1777
          %s1779 = sshll.u32 [#allocation10], 4
          %s1780 = int_to_ptr.vmem [resolvable:$true] %s1779
          %1782 = dma.hbm_to_vmem [thread:$0]  %s1778, 16, %s1780, [#allocation9]
        $region88: #{omni_transformer_v3_forward.1} parent=11 // pred_fallthru
          _
        // Predicated region
        $region89: #{omni_transformer_v3_forward.1} parent=11 // pred_check
          %p1783 = pneg %p611
        $region90: #{omni_transformer_v3_forward.1} parent=11 // pred_check_branch
          %1785 = sbr.rel (%p1783) target = $region92
        $region91: #{omni_transformer_v3_forward.1} parent=11 // pred_region
          _
        $region92: #{omni_transformer_v3_forward.1} parent=11 // pred_fallthru
          _
        // Predicated region
        $region93: #{omni_transformer_v3_forward.1} parent=11 // pred_check
          %p1786 = pneg %p632
        $region94: #{omni_transformer_v3_forward.1} parent=11 // pred_check_branch
          %1788 = sbr.rel (%p1786) target = $region96
        $region95: #{omni_transformer_v3_forward.1} parent=11 // pred_region
          _
        $region96: #{omni_transformer_v3_forward.1} parent=11 // pred_fallthru
          _
        // Predicated region
        $region97: #{omni_transformer_v3_forward.1} parent=11 // pred_check
          %p1789 = pneg %p653
        $region98: #{omni_transformer_v3_forward.1} parent=11 // pred_check_branch
          %1791 = sbr.rel (%p1789) target = $region100
        $region99: #{omni_transformer_v3_forward.1} parent=11 // pred_region
          %1793 = vsyncadd [#allocation12], 0
          %s1795 = sshll.u32 %s45, 4
          %s1796 = int_to_ptr.hbm [resolvable:$true] %s1795
          %s1797 = sshll.u32 [#allocation11], 4
          %s1798 = int_to_ptr.vmem [resolvable:$true] %s1797
          %1800 = dma.hbm_to_vmem [thread:$0]  %s1796, 16, %s1798, [#allocation12]
        $region100: #{omni_transformer_v3_forward.1} parent=11 // pred_fallthru
          _
        // Predicated region
        $region101: #{omni_transformer_v3_forward.1} parent=11 // pred_check
          %p1801 = pneg %p674
        $region102: #{omni_transformer_v3_forward.1} parent=11 // pred_check_branch
          %1803 = sbr.rel (%p1801) target = $region104
        $region103: #{omni_transformer_v3_forward.1} parent=11 // pred_region
          %1805 = vsyncadd [#allocation12], 0
          %s1807 = sshll.u32 %s47, 4
          %s1808 = int_to_ptr.hbm [resolvable:$true] %s1807
          %s1809 = sshll.u32 [#allocation13], 4
          %s1810 = int_to_ptr.vmem [resolvable:$true] %s1809
          %1812 = dma.hbm_to_vmem [thread:$0]  %s1808, 16, %s1810, [#allocation12]
        $region104: #{omni_transformer_v3_forward.1} parent=11 // pred_fallthru
          _
        // Predicated region
        $region105: #{omni_transformer_v3_forward.1} parent=11 // pred_check
          %p1813 = pneg %p695
        $region106: #{omni_transformer_v3_forward.1} parent=11 // pred_check_branch
          %1815 = sbr.rel (%p1813) target = $region108
        $region107: #{omni_transformer_v3_forward.1} parent=11 // pred_region
          _
        $region108: #{omni_transformer_v3_forward.1} parent=11 // pred_fallthru
          _
        // Predicated region
        $region109: #{omni_transformer_v3_forward.1} parent=11 // pred_check
          %p1816 = pneg %p716
        $region110: #{omni_transformer_v3_forward.1} parent=11 // pred_check_branch
          %1818 = sbr.rel (%p1816) target = $region112
        $region111: #{omni_transformer_v3_forward.1} parent=11 // pred_region
          _
        $region112: #{omni_transformer_v3_forward.1} parent=11 // pred_fallthru
          _
        // Predicated region
        $region113: #{omni_transformer_v3_forward.1} parent=11 // pred_check
          %p1819 = pneg %p737
        $region114: #{omni_transformer_v3_forward.1} parent=11 // pred_check_branch
          %1821 = sbr.rel (%p1819) target = $region116
        $region115: #{omni_transformer_v3_forward.1} parent=11 // pred_region
          _
        $region116: #{omni_transformer_v3_forward.1} parent=11 // pred_fallthru
          _
        // Predicated region
        $region117: #{omni_transformer_v3_forward.1} parent=11 // pred_check
          %p1822 = pneg %p758
        $region118: #{omni_transformer_v3_forward.1} parent=11 // pred_check_branch
          %1824 = sbr.rel (%p1822) target = $region120
        $region119: #{omni_transformer_v3_forward.1} parent=11 // pred_region
          _
        $region120: #{omni_transformer_v3_forward.1} parent=11 // pred_fallthru
          _
        // Predicated region
        $region121: #{omni_transformer_v3_forward.1} parent=11 // pred_check
          %p1825 = pneg %p779
        $region122: #{omni_transformer_v3_forward.1} parent=11 // pred_check_branch
          %1827 = sbr.rel (%p1825) target = $region124
        $region123: #{omni_transformer_v3_forward.1} parent=11 // pred_region
          _
        $region124: #{omni_transformer_v3_forward.1} parent=11 // pred_fallthru
          _
        // Predicated region
        $region125: #{omni_transformer_v3_forward.1} parent=11 // pred_check
          %p1828 = pneg %p800
        $region126: #{omni_transformer_v3_forward.1} parent=11 // pred_check_branch
          %1830 = sbr.rel (%p1828) target = $region128
        $region127: #{omni_transformer_v3_forward.1} parent=11 // pred_region
          %1832 = vsyncadd [#allocation15], 0
          %s1834 = sshll.u32 %s59, 4
          %s1835 = int_to_ptr.hbm [resolvable:$true] %s1834
          %s1836 = sshll.u32 [#allocation14], 4
          %s1837 = int_to_ptr.vmem [resolvable:$true] %s1836
          %1839 = dma.hbm_to_vmem [thread:$0]  %s1835, 16, %s1837, [#allocation15]
        $region128: #{omni_transformer_v3_forward.1} parent=11 // pred_fallthru
          _
        // Predicated region
        $region129: #{omni_transformer_v3_forward.1} parent=11 // pred_check
          %p1840 = pneg %p821
        $region130: #{omni_transformer_v3_forward.1} parent=11 // pred_check_branch
          %1842 = sbr.rel (%p1840) target = $region132
        $region131: #{omni_transformer_v3_forward.1} parent=11 // pred_region
          %1844 = vsyncadd [#allocation15], 0
          %s1846 = sshll.u32 %s61, 4
          %s1847 = int_to_ptr.hbm [resolvable:$true] %s1846
          %s1848 = sshll.u32 [#allocation16], 4
          %s1849 = int_to_ptr.vmem [resolvable:$true] %s1848
          %1851 = dma.hbm_to_vmem [thread:$0]  %s1847, 16, %s1849, [#allocation15]
        $region132: #{omni_transformer_v3_forward.1} parent=11 // pred_fallthru
          _
        // Predicated region
        $region133: #{omni_transformer_v3_forward.1} parent=11 // pred_check
          %p1852 = pneg %p842
        $region134: #{omni_transformer_v3_forward.1} parent=11 // pred_check_branch
          %1854 = sbr.rel (%p1852) target = $region136
        $region135: #{omni_transformer_v3_forward.1} parent=11 // pred_region
          %1856 = vsyncadd [#allocation18], 0
          %s1858 = sshll.u32 %s63, 4
          %s1859 = int_to_ptr.hbm [resolvable:$true] %s1858
          %s1860 = sshll.u32 [#allocation17], 4
          %s1861 = int_to_ptr.vmem [resolvable:$true] %s1860
          %1863 = dma.hbm_to_vmem [thread:$0]  %s1859, 16, %s1861, [#allocation18]
        $region136: #{omni_transformer_v3_forward.1} parent=11 // pred_fallthru
          _
        // Predicated region
        $region137: #{omni_transformer_v3_forward.1} parent=11 // pred_check
          %p1864 = pneg %p863
        $region138: #{omni_transformer_v3_forward.1} parent=11 // pred_check_branch
          %1866 = sbr.rel (%p1864) target = $region140
        $region139: #{omni_transformer_v3_forward.1} parent=11 // pred_region
          _
        $region140: #{omni_transformer_v3_forward.1} parent=11 // pred_fallthru
          _
        // Predicated region
        $region141: #{omni_transformer_v3_forward.1} parent=11 // pred_check
          %p1867 = pneg %p884
        $region142: #{omni_transformer_v3_forward.1} parent=11 // pred_check_branch
          %1869 = sbr.rel (%p1867) target = $region144
        $region143: #{omni_transformer_v3_forward.1} parent=11 // pred_region
          %1871 = vsyncadd [#allocation18], 0
          %s1873 = sshll.u32 %s67, 4
          %s1874 = int_to_ptr.hbm [resolvable:$true] %s1873
          %s1875 = sshll.u32 [#allocation19], 4
          %s1876 = int_to_ptr.vmem [resolvable:$true] %s1875
          %1878 = dma.hbm_to_vmem [thread:$0]  %s1874, 16, %s1876, [#allocation18]
        $region144: #{omni_transformer_v3_forward.1} parent=11 // pred_fallthru
          _
        // Predicated region
        $region145: #{omni_transformer_v3_forward.1} parent=11 // pred_check
          %p1879 = pneg %p905
        $region146: #{omni_transformer_v3_forward.1} parent=11 // pred_check_branch
          %1881 = sbr.rel (%p1879) target = $region148
        $region147: #{omni_transformer_v3_forward.1} parent=11 // pred_region
          _
        $region148: #{omni_transformer_v3_forward.1} parent=11 // pred_fallthru
          _
        // Predicated region
        $region149: #{omni_transformer_v3_forward.1} parent=11 // pred_check
          %p1882 = pneg %p926
        $region150: #{omni_transformer_v3_forward.1} parent=11 // pred_check_branch
          %1884 = sbr.rel (%p1882) target = $region152
        $region151: #{omni_transformer_v3_forward.1} parent=11 // pred_region
          %1886 = vsyncadd [#allocation21], 0
          %s1888 = sshll.u32 %s71, 4
          %s1889 = int_to_ptr.hbm [resolvable:$true] %s1888
          %s1890 = sshll.u32 [#allocation20], 4
          %s1891 = int_to_ptr.vmem [resolvable:$true] %s1890
          %1893 = dma.hbm_to_vmem [thread:$0]  %s1889, 16, %s1891, [#allocation21]
        $region152: #{omni_transformer_v3_forward.1} parent=11 // pred_fallthru
          _
        // Predicated region
        $region153: #{omni_transformer_v3_forward.1} parent=11 // pred_check
          %p1894 = pneg %p947
        $region154: #{omni_transformer_v3_forward.1} parent=11 // pred_check_branch
          %1896 = sbr.rel (%p1894) target = $region156
        $region155: #{omni_transformer_v3_forward.1} parent=11 // pred_region
          _
        $region156: #{omni_transformer_v3_forward.1} parent=11 // pred_fallthru
          _
        // Predicated region
        $region157: #{omni_transformer_v3_forward.1} parent=11 // pred_check
          %p1897 = pneg %p968
        $region158: #{omni_transformer_v3_forward.1} parent=11 // pred_check_branch
          %1899 = sbr.rel (%p1897) target = $region160
        $region159: #{omni_transformer_v3_forward.1} parent=11 // pred_region
          _
        $region160: #{omni_transformer_v3_forward.1} parent=11 // pred_fallthru
          _
        // Predicated region
        $region161: #{omni_transformer_v3_forward.1} parent=11 // pred_check
          %p1900 = pneg %p989
        $region162: #{omni_transformer_v3_forward.1} parent=11 // pred_check_branch
          %1902 = sbr.rel (%p1900) target = $region164
        $region163: #{omni_transformer_v3_forward.1} parent=11 // pred_region
          _
        $region164: #{omni_transformer_v3_forward.1} parent=11 // pred_fallthru
          _
        // Predicated region
        $region165: #{omni_transformer_v3_forward.1} parent=11 // pred_check
          %p1903 = pneg %p1010
        $region166: #{omni_transformer_v3_forward.1} parent=11 // pred_check_branch
          %1905 = sbr.rel (%p1903) target = $region168
        $region167: #{omni_transformer_v3_forward.1} parent=11 // pred_region
          _
        $region168: #{omni_transformer_v3_forward.1} parent=11 // pred_fallthru
          _
        // Predicated region
        $region169: #{omni_transformer_v3_forward.1} parent=11 // pred_check
          %p1906 = pneg %p1031
        $region170: #{omni_transformer_v3_forward.1} parent=11 // pred_check_branch
          %1908 = sbr.rel (%p1906) target = $region172
        $region171: #{omni_transformer_v3_forward.1} parent=11 // pred_region
          %1910 = vsyncadd [#allocation21], 0
          %s1912 = sshll.u32 %s81, 4
          %s1913 = int_to_ptr.hbm [resolvable:$true] %s1912
          %s1914 = sshll.u32 [#allocation22], 4
          %s1915 = int_to_ptr.vmem [resolvable:$true] %s1914
          %1917 = dma.hbm_to_vmem [thread:$0]  %s1913, 16, %s1915, [#allocation21]
        $region172: #{omni_transformer_v3_forward.1} parent=11 // pred_fallthru
          _
        // Predicated region
        $region173: #{omni_transformer_v3_forward.1} parent=11 // pred_check
          %p1918 = pneg %p1052
        $region174: #{omni_transformer_v3_forward.1} parent=11 // pred_check_branch
          %1920 = sbr.rel (%p1918) target = $region176
        $region175: #{omni_transformer_v3_forward.1} parent=11 // pred_region
          %1922 = vsyncadd [#allocation24], 0
          %s1924 = sshll.u32 %s83, 4
          %s1925 = int_to_ptr.hbm [resolvable:$true] %s1924
          %s1926 = sshll.u32 [#allocation23], 4
          %s1927 = int_to_ptr.vmem [resolvable:$true] %s1926
          %1929 = dma.hbm_to_vmem [thread:$0]  %s1925, 16, %s1927, [#allocation24]
        $region176: #{omni_transformer_v3_forward.1} parent=11 // pred_fallthru
          _
        // Predicated region
        $region177: #{omni_transformer_v3_forward.1} parent=11 // pred_check
          %p1930 = pneg %p1073
        $region178: #{omni_transformer_v3_forward.1} parent=11 // pred_check_branch
          %1932 = sbr.rel (%p1930) target = $region180
        $region179: #{omni_transformer_v3_forward.1} parent=11 // pred_region
          _
        $region180: #{omni_transformer_v3_forward.1} parent=11 // pred_fallthru
          _
        // Predicated region
        $region181: #{omni_transformer_v3_forward.1} parent=11 // pred_check
          %p1933 = pneg %p1094
        $region182: #{omni_transformer_v3_forward.1} parent=11 // pred_check_branch
          %1935 = sbr.rel (%p1933) target = $region184
        $region183: #{omni_transformer_v3_forward.1} parent=11 // pred_region
          _
        $region184: #{omni_transformer_v3_forward.1} parent=11 // pred_fallthru
          _
        // Predicated region
        $region185: #{omni_transformer_v3_forward.1} parent=11 // pred_check
          %p1936 = pneg %p1115
        $region186: #{omni_transformer_v3_forward.1} parent=11 // pred_check_branch
          %1938 = sbr.rel (%p1936) target = $region188
        $region187: #{omni_transformer_v3_forward.1} parent=11 // pred_region
          _
        $region188: #{omni_transformer_v3_forward.1} parent=11 // pred_fallthru
          _
        // Predicated region
        $region189: #{omni_transformer_v3_forward.1} parent=11 // pred_check
          %p1939 = pneg %p1136
        $region190: #{omni_transformer_v3_forward.1} parent=11 // pred_check_branch
          %1941 = sbr.rel (%p1939) target = $region192
        $region191: #{omni_transformer_v3_forward.1} parent=11 // pred_region
          _
        $region192: #{omni_transformer_v3_forward.1} parent=11 // pred_fallthru
          _
        // Predicated region
        $region193: #{omni_transformer_v3_forward.1} parent=11 // pred_check
          %p1942 = pneg %p1157
        $region194: #{omni_transformer_v3_forward.1} parent=11 // pred_check_branch
          %1944 = sbr.rel (%p1942) target = $region196
        $region195: #{omni_transformer_v3_forward.1} parent=11 // pred_region
          %1946 = vsyncadd [#allocation24], 0
          %s1948 = sshll.u32 %s93, 4
          %s1949 = int_to_ptr.hbm [resolvable:$true] %s1948
          %s1950 = sshll.u32 [#allocation25], 4
          %s1951 = int_to_ptr.vmem [resolvable:$true] %s1950
          %1953 = dma.hbm_to_vmem [thread:$0]  %s1949, 16, %s1951, [#allocation24]
        $region196: #{omni_transformer_v3_forward.1} parent=11 // pred_fallthru
          _
        // Predicated region
        $region197: #{omni_transformer_v3_forward.1} parent=11 // pred_check
          %p1954 = pneg %p1178
        $region198: #{omni_transformer_v3_forward.1} parent=11 // pred_check_branch
          %1956 = sbr.rel (%p1954) target = $region200
        $region199: #{omni_transformer_v3_forward.1} parent=11 // pred_region
          %1958 = vsyncadd [#allocation27], 0
          %s1960 = sshll.u32 %s95, 4
          %s1961 = int_to_ptr.hbm [resolvable:$true] %s1960
          %s1962 = sshll.u32 [#allocation26], 4
          %s1963 = int_to_ptr.vmem [resolvable:$true] %s1962
          %1965 = dma.hbm_to_vmem [thread:$0]  %s1961, 16, %s1963, [#allocation27]
        $region200: #{omni_transformer_v3_forward.1} parent=11 // pred_fallthru
          _
        // Predicated region
        $region201: #{omni_transformer_v3_forward.1} parent=11 // pred_check
          %p1966 = pneg %p1199
        $region202: #{omni_transformer_v3_forward.1} parent=11 // pred_check_branch
          %1968 = sbr.rel (%p1966) target = $region204
        $region203: #{omni_transformer_v3_forward.1} parent=11 // pred_region
          %1970 = vsyncadd [#allocation27], 0
          %s1972 = sshll.u32 %s97, 4
          %s1973 = int_to_ptr.hbm [resolvable:$true] %s1972
          %s1974 = sshll.u32 [#allocation28], 4
          %s1975 = int_to_ptr.vmem [resolvable:$true] %s1974
          %1977 = dma.hbm_to_vmem [thread:$0]  %s1973, 16, %s1975, [#allocation27]
        $region204: #{omni_transformer_v3_forward.1} parent=11 // pred_fallthru
          _
        // Predicated region
        $region205: #{omni_transformer_v3_forward.1} parent=11 // pred_check
          %p1978 = pneg %p1220
        $region206: #{omni_transformer_v3_forward.1} parent=11 // pred_check_branch
          %1980 = sbr.rel (%p1978) target = $region208
        $region207: #{omni_transformer_v3_forward.1} parent=11 // pred_region
          _
        $region208: #{omni_transformer_v3_forward.1} parent=11 // pred_fallthru
          _
        // Predicated region
        $region209: #{omni_transformer_v3_forward.1} parent=11 // pred_check
          %p1981 = pneg %p1241
        $region210: #{omni_transformer_v3_forward.1} parent=11 // pred_check_branch
          %1983 = sbr.rel (%p1981) target = $region212
        $region211: #{omni_transformer_v3_forward.1} parent=11 // pred_region
          %1985 = vsyncadd [#allocation30], 0
          %s1987 = sshll.u32 %s101, 4
          %s1988 = int_to_ptr.hbm [resolvable:$true] %s1987
          %s1989 = sshll.u32 [#allocation29], 4
          %s1990 = int_to_ptr.vmem [resolvable:$true] %s1989
          %1992 = dma.hbm_to_vmem [thread:$0]  %s1988, 16, %s1990, [#allocation30]
        $region212: #{omni_transformer_v3_forward.1} parent=11 // pred_fallthru
          _
        // Predicated region
        $region213: #{omni_transformer_v3_forward.1} parent=11 // pred_check
          %p1993 = pneg %p1262
        $region214: #{omni_transformer_v3_forward.1} parent=11 // pred_check_branch
          %1995 = sbr.rel (%p1993) target = $region216
        $region215: #{omni_transformer_v3_forward.1} parent=11 // pred_region
          _
        $region216: #{omni_transformer_v3_forward.1} parent=11 // pred_fallthru
          _
        // Predicated region
        $region217: #{omni_transformer_v3_forward.1} parent=11 // pred_check
          %p1996 = pneg %p1283
        $region218: #{omni_transformer_v3_forward.1} parent=11 // pred_check_branch
          %1998 = sbr.rel (%p1996) target = $region220
        $region219: #{omni_transformer_v3_forward.1} parent=11 // pred_region
          %2000 = vsyncadd [#allocation30], 0
          %s2002 = sshll.u32 %s105, 4
          %s2003 = int_to_ptr.hbm [resolvable:$true] %s2002
          %s2004 = sshll.u32 [#allocation31], 4
          %s2005 = int_to_ptr.vmem [resolvable:$true] %s2004
          %2007 = dma.hbm_to_vmem [thread:$0]  %s2003, 16, %s2005, [#allocation30]
        $region220: #{omni_transformer_v3_forward.1} parent=11 // pred_fallthru
          _
        // Predicated region
        $region221: #{omni_transformer_v3_forward.1} parent=11 // pred_check
          %p2008 = pneg %p1304
        $region222: #{omni_transformer_v3_forward.1} parent=11 // pred_check_branch
          %2010 = sbr.rel (%p2008) target = $region224
        $region223: #{omni_transformer_v3_forward.1} parent=11 // pred_region
          %2012 = vsyncadd [#allocation33], 0
          %s2014 = sshll.u32 %s107, 4
          %s2015 = int_to_ptr.hbm [resolvable:$true] %s2014
          %s2016 = sshll.u32 [#allocation32], 4
          %s2017 = int_to_ptr.vmem [resolvable:$true] %s2016
          %2019 = dma.hbm_to_vmem [thread:$0]  %s2015, 16, %s2017, [#allocation33]
        $region224: #{omni_transformer_v3_forward.1} parent=11 // pred_fallthru
          _
        // Predicated region
        $region225: #{omni_transformer_v3_forward.1} parent=11 // pred_check
          %p2020 = pneg %p1325
        $region226: #{omni_transformer_v3_forward.1} parent=11 // pred_check_branch
          %2022 = sbr.rel (%p2020) target = $region228
        $region227: #{omni_transformer_v3_forward.1} parent=11 // pred_region
          %2024 = vsyncadd [#allocation33], 0
          %s2026 = sshll.u32 %s109, 4
          %s2027 = int_to_ptr.hbm [resolvable:$true] %s2026
          %s2028 = sshll.u32 [#allocation34], 4
          %s2029 = int_to_ptr.vmem [resolvable:$true] %s2028
          %2031 = dma.hbm_to_vmem [thread:$0]  %s2027, 16, %s2029, [#allocation33]
        $region228: #{omni_transformer_v3_forward.1} parent=11 // pred_fallthru
          _
        // Predicated region
        $region229: #{omni_transformer_v3_forward.1} parent=11 // pred_check
          %p2032 = pneg %p1346
        $region230: #{omni_transformer_v3_forward.1} parent=11 // pred_check_branch
          %2034 = sbr.rel (%p2032) target = $region232
        $region231: #{omni_transformer_v3_forward.1} parent=11 // pred_region
          _
        $region232: #{omni_transformer_v3_forward.1} parent=11 // pred_fallthru
          _
        // Predicated region
        $region233: #{omni_transformer_v3_forward.1} parent=11 // pred_check
          %p2035 = pneg %p1367
        $region234: #{omni_transformer_v3_forward.1} parent=11 // pred_check_branch
          %2037 = sbr.rel (%p2035) target = $region236
        $region235: #{omni_transformer_v3_forward.1} parent=11 // pred_region
          _
        $region236: #{omni_transformer_v3_forward.1} parent=11 // pred_fallthru
          _
        // Predicated region
        $region237: #{omni_transformer_v3_forward.1} parent=11 // pred_check
          %p2038 = pneg %p1388
        $region238: #{omni_transformer_v3_forward.1} parent=11 // pred_check_branch
          %2040 = sbr.rel (%p2038) target = $region240
        $region239: #{omni_transformer_v3_forward.1} parent=11 // pred_region
          _
        $region240: #{omni_transformer_v3_forward.1} parent=11 // pred_fallthru
          _
        // Predicated region
        $region241: #{omni_transformer_v3_forward.1} parent=11 // pred_check
          %p2041 = pneg %p1409
        $region242: #{omni_transformer_v3_forward.1} parent=11 // pred_check_branch
          %2043 = sbr.rel (%p2041) target = $region244
        $region243: #{omni_transformer_v3_forward.1} parent=11 // pred_region
          _
        $region244: #{omni_transformer_v3_forward.1} parent=11 // pred_fallthru
          _
        // Predicated region
        $region245: #{omni_transformer_v3_forward.1} parent=11 // pred_check
          %p2044 = pneg %p1430
        $region246: #{omni_transformer_v3_forward.1} parent=11 // pred_check_branch
          %2046 = sbr.rel (%p2044) target = $region248
        $region247: #{omni_transformer_v3_forward.1} parent=11 // pred_region
          %2048 = vsyncadd [#allocation36], 0
          %s2050 = sshll.u32 %s119, 4
          %s2051 = int_to_ptr.hbm [resolvable:$true] %s2050
          %s2052 = sshll.u32 [#allocation35], 4
          %s2053 = int_to_ptr.vmem [resolvable:$true] %s2052
          %2055 = dma.hbm_to_vmem [thread:$0]  %s2051, 16, %s2053, [#allocation36]
        $region248: #{omni_transformer_v3_forward.1} parent=11 // pred_fallthru
          _
        // Predicated region
        $region249: #{omni_transformer_v3_forward.1} parent=11 // pred_check
          %p2056 = pneg %p1451
        $region250: #{omni_transformer_v3_forward.1} parent=11 // pred_check_branch
          %2058 = sbr.rel (%p2056) target = $region252
        $region251: #{omni_transformer_v3_forward.1} parent=11 // pred_region
          %2060 = vsyncadd [#allocation36], 0
          %s2062 = sshll.u32 %s121, 4
          %s2063 = int_to_ptr.hbm [resolvable:$true] %s2062
          %s2064 = sshll.u32 [#allocation37], 4
          %s2065 = int_to_ptr.vmem [resolvable:$true] %s2064
          %2067 = dma.hbm_to_vmem [thread:$0]  %s2063, 16, %s2065, [#allocation36]
        $region252: #{omni_transformer_v3_forward.1} parent=11 // pred_fallthru
          _
        // Predicated region
        $region253: #{omni_transformer_v3_forward.1} parent=11 // pred_check
          %p2068 = pneg %p1472
        $region254: #{omni_transformer_v3_forward.1} parent=11 // pred_check_branch
          %2070 = sbr.rel (%p2068) target = $region256
        $region255: #{omni_transformer_v3_forward.1} parent=11 // pred_region
          %2072 = vsyncadd [#allocation39], 0
          %s2074 = sshll.u32 %s123, 4
          %s2075 = int_to_ptr.hbm [resolvable:$true] %s2074
          %s2076 = sshll.u32 [#allocation38], 4
          %s2077 = int_to_ptr.vmem [resolvable:$true] %s2076
          %2079 = dma.hbm_to_vmem [thread:$0]  %s2075, 16, %s2077, [#allocation39]
        $region256: #{omni_transformer_v3_forward.1} parent=11 // pred_fallthru
          _
        // Predicated region
        $region257: #{omni_transformer_v3_forward.1} parent=11 // pred_check
          %p2080 = pneg %p1493
        $region258: #{omni_transformer_v3_forward.1} parent=11 // pred_check_branch
          %2082 = sbr.rel (%p2080) target = $region260
        $region259: #{omni_transformer_v3_forward.1} parent=11 // pred_region
          _
        $region260: #{omni_transformer_v3_forward.1} parent=11 // pred_fallthru
          _
        // Predicated region
        $region261: #{omni_transformer_v3_forward.1} parent=11 // pred_check
          %p2083 = pneg %p1514
        $region262: #{omni_transformer_v3_forward.1} parent=11 // pred_check_branch
          %2085 = sbr.rel (%p2083) target = $region264
        $region263: #{omni_transformer_v3_forward.1} parent=11 // pred_region
          %2087 = vsyncadd [#allocation39], 0
          %s2089 = sshll.u32 %s127, 4
          %s2090 = int_to_ptr.hbm [resolvable:$true] %s2089
          %s2091 = sshll.u32 [#allocation40], 4
          %s2092 = int_to_ptr.vmem [resolvable:$true] %s2091
          %2094 = dma.hbm_to_vmem [thread:$0]  %s2090, 16, %s2092, [#allocation39]
        $region264: #{omni_transformer_v3_forward.1} parent=11 // pred_fallthru
          _
        // Predicated region
        $region265: #{omni_transformer_v3_forward.1} parent=11 // pred_check
          %p2095 = pneg %p1535
        $region266: #{omni_transformer_v3_forward.1} parent=11 // pred_check_branch
          %2097 = sbr.rel (%p2095) target = $region268
        $region267: #{omni_transformer_v3_forward.1} parent=11 // pred_region
          _
        $region268: #{omni_transformer_v3_forward.1} parent=11 // pred_fallthru
          _
        // Predicated region
        $region269: #{omni_transformer_v3_forward.1} parent=11 // pred_check
          %p2098 = pneg %p1556
        $region270: #{omni_transformer_v3_forward.1} parent=11 // pred_check_branch
          %2100 = sbr.rel (%p2098) target = $region272
        $region271: #{omni_transformer_v3_forward.1} parent=11 // pred_region
          %2102 = vsyncadd [#allocation42], 0
          %s2104 = sshll.u32 %s131, 4
          %s2105 = int_to_ptr.hbm [resolvable:$true] %s2104
          %s2106 = sshll.u32 [#allocation41], 4
          %s2107 = int_to_ptr.vmem [resolvable:$true] %s2106
          %2109 = dma.hbm_to_vmem [thread:$0]  %s2105, 16, %s2107, [#allocation42]
        $region272: #{omni_transformer_v3_forward.1} parent=11 // pred_fallthru
          _
        // Predicated region
        $region273: #{omni_transformer_v3_forward.1} parent=11 // pred_check
          %p2110 = pneg %p1577
        $region274: #{omni_transformer_v3_forward.1} parent=11 // pred_check_branch
          %2112 = sbr.rel (%p2110) target = $region276
        $region275: #{omni_transformer_v3_forward.1} parent=11 // pred_region
          %2114 = vsyncadd [#allocation42], 0
          %s2116 = sshll.u32 %s133, 4
          %s2117 = int_to_ptr.hbm [resolvable:$true] %s2116
          %s2118 = sshll.u32 [#allocation43], 4
          %s2119 = int_to_ptr.vmem [resolvable:$true] %s2118
          %2121 = dma.hbm_to_vmem [thread:$0]  %s2117, 16, %s2119, [#allocation42]
        $region276: #{omni_transformer_v3_forward.1} parent=11 // pred_fallthru
          _
        // Predicated region
        $region277: #{omni_transformer_v3_forward.1} parent=11 // pred_check
          %p2122 = pneg %p1598
        $region278: #{omni_transformer_v3_forward.1} parent=11 // pred_check_branch
          %2124 = sbr.rel (%p2122) target = $region280
        $region279: #{omni_transformer_v3_forward.1} parent=11 // pred_region
          %2126 = vsyncadd [#allocation45], 0
          %s2128 = sshll.u32 %s135, 4
          %s2129 = int_to_ptr.hbm [resolvable:$true] %s2128
          %s2130 = sshll.u32 [#allocation44], 4
          %s2131 = int_to_ptr.vmem [resolvable:$true] %s2130
          %2133 = dma.hbm_to_vmem [thread:$0]  %s2129, 16, %s2131, [#allocation45]
        $region280: #{omni_transformer_v3_forward.1} parent=11 // pred_fallthru
          _
        // Predicated region
        $region281: #{omni_transformer_v3_forward.1} parent=11 // pred_check
          %p2134 = pneg %p1619
        $region282: #{omni_transformer_v3_forward.1} parent=11 // pred_check_branch
          %2136 = sbr.rel (%p2134) target = $region284
        $region283: #{omni_transformer_v3_forward.1} parent=11 // pred_region
          _
        $region284: #{omni_transformer_v3_forward.1} parent=11 // pred_fallthru
          _
        // Predicated region
        $region285: #{omni_transformer_v3_forward.1} parent=11 // pred_check
          %p2137 = pneg %p1640
        $region286: #{omni_transformer_v3_forward.1} parent=11 // pred_check_branch
          %2139 = sbr.rel (%p2137) target = $region288
        $region287: #{omni_transformer_v3_forward.1} parent=11 // pred_region
          %2141 = vsyncadd [#allocation45], 0
          %s2143 = sshll.u32 %s139, 4
          %s2144 = int_to_ptr.hbm [resolvable:$true] %s2143
          %s2145 = sshll.u32 [#allocation46], 4
          %s2146 = int_to_ptr.vmem [resolvable:$true] %s2145
          %2148 = dma.hbm_to_vmem [thread:$0]  %s2144, 16, %s2146, [#allocation45]
        $region288: #{omni_transformer_v3_forward.1} parent=11 // pred_fallthru
          _
      $region12: #{omni_transformer_v3_forward.1} parent=5 // pred_fallthru
        _
      %p2149 = scmp.lt.s32.totalorder %s165, 2
      // Predicated region
      $region289: #{omni_transformer_v3_forward.1} parent=5 // pred_check
        %p2150 = pneg %p2149
      $region290: #{omni_transformer_v3_forward.1} parent=5 // pred_check_branch
        %2152 = sbr.rel (%p2150) target = $region292
      $region291: #{omni_transformer_v3_forward.1} parent=5 // pred_region
        // Predicated region
        $region293: #{omni_transformer_v3_forward.1} parent=291 // pred_check
          %p2153 = pneg %p185
        $region294: #{omni_transformer_v3_forward.1} parent=291 // pred_check_branch
          %2155 = sbr.rel (%p2153) target = $region296
        $region295: #{omni_transformer_v3_forward.1} parent=291 // pred_region
          %p2156 = scmp.lt.s32.totalorder %s165, 1
          %s2157 = scalar_select %p2156, %s165, 1
          %s2158 = smul.addr %s2157, 4
          %s2159 = smul.addr %s2158, 4
          %s2160 = scalar_lea.vmem %s1, %s2159
        $region296: #{omni_transformer_v3_forward.1} parent=291 // pred_fallthru
          _
      $region292: #{omni_transformer_v3_forward.1} parent=5 // pred_fallthru
        _
      %p2161 = scmp.le.s32.totalorder 1, %s165
      %p2162 = scmp.lt.s32.totalorder %s165, 3
      %p2163 = pnand %p2161, %p2162
      %p2164 = pneg %p2163
      // Predicated region
      $region297: #{omni_transformer_v3_forward.1} parent=5 // pred_check
        _
      $region298: #{omni_transformer_v3_forward.1} parent=5 // pred_check_branch
        %2166 = sbr.rel (%p2163) target = $region300
      $region299: #{omni_transformer_v3_forward.1} parent=5 // pred_region
        %s2167 = ssub.s32 %s165, 1
        // Predicated region
        $region301: #{omni_transformer_v3_forward.1} parent=299 // pred_check
          %p2168 = pneg %p464
        $region302: #{omni_transformer_v3_forward.1} parent=299 // pred_check_branch
          %2170 = sbr.rel (%p2168) target = $region304
        $region303: #{omni_transformer_v3_forward.1} parent=299 // pred_region
          %2172 = dma.done [#allocation3], 16
        $region304: #{omni_transformer_v3_forward.1} parent=299 // pred_fallthru
          _
        // Predicated region
        $region305: #{omni_transformer_v3_forward.1} parent=299 // pred_check
          %p2173 = pneg %p485
        $region306: #{omni_transformer_v3_forward.1} parent=299 // pred_check_branch
          %2175 = sbr.rel (%p2173) target = $region308
        $region307: #{omni_transformer_v3_forward.1} parent=299 // pred_region
          %2177 = dma.done [#allocation6], 16
        $region308: #{omni_transformer_v3_forward.1} parent=299 // pred_fallthru
          _
        // Predicated region
        $region309: #{omni_transformer_v3_forward.1} parent=299 // pred_check
          %p2178 = pneg %p506
        $region310: #{omni_transformer_v3_forward.1} parent=299 // pred_check_branch
          %2180 = sbr.rel (%p2178) target = $region312
        $region311: #{omni_transformer_v3_forward.1} parent=299 // pred_region
          %2182 = dma.done [#allocation6], 16
        $region312: #{omni_transformer_v3_forward.1} parent=299 // pred_fallthru
          _
        // Predicated region
        $region313: #{omni_transformer_v3_forward.1} parent=299 // pred_check
          %p2183 = pneg %p548
        $region314: #{omni_transformer_v3_forward.1} parent=299 // pred_check_branch
          %2185 = sbr.rel (%p2183) target = $region316
        $region315: #{omni_transformer_v3_forward.1} parent=299 // pred_region
          %2187 = dma.done [#allocation9], 16
        $region316: #{omni_transformer_v3_forward.1} parent=299 // pred_fallthru
          _
        // Predicated region
        $region317: #{omni_transformer_v3_forward.1} parent=299 // pred_check
          %p2188 = pneg %p590
        $region318: #{omni_transformer_v3_forward.1} parent=299 // pred_check_branch
          %2190 = sbr.rel (%p2188) target = $region320
        $region319: #{omni_transformer_v3_forward.1} parent=299 // pred_region
          %2192 = dma.done [#allocation9], 16
        $region320: #{omni_transformer_v3_forward.1} parent=299 // pred_fallthru
          _
        // Predicated region
        $region321: #{omni_transformer_v3_forward.1} parent=299 // pred_check
          %p2193 = pneg %p653
        $region322: #{omni_transformer_v3_forward.1} parent=299 // pred_check_branch
          %2195 = sbr.rel (%p2193) target = $region324
        $region323: #{omni_transformer_v3_forward.1} parent=299 // pred_region
          %2197 = dma.done [#allocation12], 16
        $region324: #{omni_transformer_v3_forward.1} parent=299 // pred_fallthru
          _
        // Predicated region
        $region325: #{omni_transformer_v3_forward.1} parent=299 // pred_check
          %p2198 = pneg %p674
        $region326: #{omni_transformer_v3_forward.1} parent=299 // pred_check_branch
          %2200 = sbr.rel (%p2198) target = $region328
        $region327: #{omni_transformer_v3_forward.1} parent=299 // pred_region
          %2202 = dma.done [#allocation12], 16
        $region328: #{omni_transformer_v3_forward.1} parent=299 // pred_fallthru
          _
        // Predicated region
        $region329: #{omni_transformer_v3_forward.1} parent=299 // pred_check
          %p2203 = pneg %p800
        $region330: #{omni_transformer_v3_forward.1} parent=299 // pred_check_branch
          %2205 = sbr.rel (%p2203) target = $region332
        $region331: #{omni_transformer_v3_forward.1} parent=299 // pred_region
          %2207 = dma.done [#allocation15], 16
        $region332: #{omni_transformer_v3_forward.1} parent=299 // pred_fallthru
          _
        // Predicated region
        $region333: #{omni_transformer_v3_forward.1} parent=299 // pred_check
          %p2208 = pneg %p821
        $region334: #{omni_transformer_v3_forward.1} parent=299 // pred_check_branch
          %2210 = sbr.rel (%p2208) target = $region336
        $region335: #{omni_transformer_v3_forward.1} parent=299 // pred_region
          %2212 = dma.done [#allocation15], 16
        $region336: #{omni_transformer_v3_forward.1} parent=299 // pred_fallthru
          _
        // Predicated region
        $region337: #{omni_transformer_v3_forward.1} parent=299 // pred_check
          %p2213 = pneg %p842
        $region338: #{omni_transformer_v3_forward.1} parent=299 // pred_check_branch
          %2215 = sbr.rel (%p2213) target = $region340
        $region339: #{omni_transformer_v3_forward.1} parent=299 // pred_region
          %2217 = dma.done [#allocation18], 16
        $region340: #{omni_transformer_v3_forward.1} parent=299 // pred_fallthru
          _
        // Predicated region
        $region341: #{omni_transformer_v3_forward.1} parent=299 // pred_check
          %p2218 = pneg %p884
        $region342: #{omni_transformer_v3_forward.1} parent=299 // pred_check_branch
          %2220 = sbr.rel (%p2218) target = $region344
        $region343: #{omni_transformer_v3_forward.1} parent=299 // pred_region
          %2222 = dma.done [#allocation18], 16
        $region344: #{omni_transformer_v3_forward.1} parent=299 // pred_fallthru
          _
        // Predicated region
        $region345: #{omni_transformer_v3_forward.1} parent=299 // pred_check
          %p2223 = pneg %p926
        $region346: #{omni_transformer_v3_forward.1} parent=299 // pred_check_branch
          %2225 = sbr.rel (%p2223) target = $region348
        $region347: #{omni_transformer_v3_forward.1} parent=299 // pred_region
          %2227 = dma.done [#allocation21], 16
        $region348: #{omni_transformer_v3_forward.1} parent=299 // pred_fallthru
          _
        // Predicated region
        $region349: #{omni_transformer_v3_forward.1} parent=299 // pred_check
          %p2228 = pneg %p1031
        $region350: #{omni_transformer_v3_forward.1} parent=299 // pred_check_branch
          %2230 = sbr.rel (%p2228) target = $region352
        $region351: #{omni_transformer_v3_forward.1} parent=299 // pred_region
          %2232 = dma.done [#allocation21], 16
        $region352: #{omni_transformer_v3_forward.1} parent=299 // pred_fallthru
          _
        // Predicated region
        $region353: #{omni_transformer_v3_forward.1} parent=299 // pred_check
          %p2233 = pneg %p1052
        $region354: #{omni_transformer_v3_forward.1} parent=299 // pred_check_branch
          %2235 = sbr.rel (%p2233) target = $region356
        $region355: #{omni_transformer_v3_forward.1} parent=299 // pred_region
          %2237 = dma.done [#allocation24], 16
        $region356: #{omni_transformer_v3_forward.1} parent=299 // pred_fallthru
          _
        // Predicated region
        $region357: #{omni_transformer_v3_forward.1} parent=299 // pred_check
          %p2238 = pneg %p1157
        $region358: #{omni_transformer_v3_forward.1} parent=299 // pred_check_branch
          %2240 = sbr.rel (%p2238) target = $region360
        $region359: #{omni_transformer_v3_forward.1} parent=299 // pred_region
          %2242 = dma.done [#allocation24], 16
        $region360: #{omni_transformer_v3_forward.1} parent=299 // pred_fallthru
          _
        // Predicated region
        $region361: #{omni_transformer_v3_forward.1} parent=299 // pred_check
          %p2243 = pneg %p1178
        $region362: #{omni_transformer_v3_forward.1} parent=299 // pred_check_branch
          %2245 = sbr.rel (%p2243) target = $region364
        $region363: #{omni_transformer_v3_forward.1} parent=299 // pred_region
          %2247 = dma.done [#allocation27], 16
        $region364: #{omni_transformer_v3_forward.1} parent=299 // pred_fallthru
          _
        // Predicated region
        $region365: #{omni_transformer_v3_forward.1} parent=299 // pred_check
          %p2248 = pneg %p1199
        $region366: #{omni_transformer_v3_forward.1} parent=299 // pred_check_branch
          %2250 = sbr.rel (%p2248) target = $region368
        $region367: #{omni_transformer_v3_forward.1} parent=299 // pred_region
          %2252 = dma.done [#allocation27], 16
        $region368: #{omni_transformer_v3_forward.1} parent=299 // pred_fallthru
          _
        // Predicated region
        $region369: #{omni_transformer_v3_forward.1} parent=299 // pred_check
          %p2253 = pneg %p1241
        $region370: #{omni_transformer_v3_forward.1} parent=299 // pred_check_branch
          %2255 = sbr.rel (%p2253) target = $region372
        $region371: #{omni_transformer_v3_forward.1} parent=299 // pred_region
          %2257 = dma.done [#allocation30], 16
        $region372: #{omni_transformer_v3_forward.1} parent=299 // pred_fallthru
          _
        // Predicated region
        $region373: #{omni_transformer_v3_forward.1} parent=299 // pred_check
          %p2258 = pneg %p1283
        $region374: #{omni_transformer_v3_forward.1} parent=299 // pred_check_branch
          %2260 = sbr.rel (%p2258) target = $region376
        $region375: #{omni_transformer_v3_forward.1} parent=299 // pred_region
          %2262 = dma.done [#allocation30], 16
        $region376: #{omni_transformer_v3_forward.1} parent=299 // pred_fallthru
          _
        // Predicated region
        $region377: #{omni_transformer_v3_forward.1} parent=299 // pred_check
          %p2263 = pneg %p1304
        $region378: #{omni_transformer_v3_forward.1} parent=299 // pred_check_branch
          %2265 = sbr.rel (%p2263) target = $region380
        $region379: #{omni_transformer_v3_forward.1} parent=299 // pred_region
          %2267 = dma.done [#allocation33], 16
        $region380: #{omni_transformer_v3_forward.1} parent=299 // pred_fallthru
          _
        // Predicated region
        $region381: #{omni_transformer_v3_forward.1} parent=299 // pred_check
          %p2268 = pneg %p1325
        $region382: #{omni_transformer_v3_forward.1} parent=299 // pred_check_branch
          %2270 = sbr.rel (%p2268) target = $region384
        $region383: #{omni_transformer_v3_forward.1} parent=299 // pred_region
          %2272 = dma.done [#allocation33], 16
        $region384: #{omni_transformer_v3_forward.1} parent=299 // pred_fallthru
          _
        // Predicated region
        $region385: #{omni_transformer_v3_forward.1} parent=299 // pred_check
          %p2273 = pneg %p1430
        $region386: #{omni_transformer_v3_forward.1} parent=299 // pred_check_branch
          %2275 = sbr.rel (%p2273) target = $region388
        $region387: #{omni_transformer_v3_forward.1} parent=299 // pred_region
          %2277 = dma.done [#allocation36], 16
        $region388: #{omni_transformer_v3_forward.1} parent=299 // pred_fallthru
          _
        // Predicated region
        $region389: #{omni_transformer_v3_forward.1} parent=299 // pred_check
          %p2278 = pneg %p1451
        $region390: #{omni_transformer_v3_forward.1} parent=299 // pred_check_branch
          %2280 = sbr.rel (%p2278) target = $region392
        $region391: #{omni_transformer_v3_forward.1} parent=299 // pred_region
          %2282 = dma.done [#allocation36], 16
        $region392: #{omni_transformer_v3_forward.1} parent=299 // pred_fallthru
          _
        // Predicated region
        $region393: #{omni_transformer_v3_forward.1} parent=299 // pred_check
          %p2283 = pneg %p1472
        $region394: #{omni_transformer_v3_forward.1} parent=299 // pred_check_branch
          %2285 = sbr.rel (%p2283) target = $region396
        $region395: #{omni_transformer_v3_forward.1} parent=299 // pred_region
          %2287 = dma.done [#allocation39], 16
        $region396: #{omni_transformer_v3_forward.1} parent=299 // pred_fallthru
          _
        // Predicated region
        $region397: #{omni_transformer_v3_forward.1} parent=299 // pred_check
          %p2288 = pneg %p1514
        $region398: #{omni_transformer_v3_forward.1} parent=299 // pred_check_branch
          %2290 = sbr.rel (%p2288) target = $region400
        $region399: #{omni_transformer_v3_forward.1} parent=299 // pred_region
          %2292 = dma.done [#allocation39], 16
        $region400: #{omni_transformer_v3_forward.1} parent=299 // pred_fallthru
          _
        // Predicated region
        $region401: #{omni_transformer_v3_forward.1} parent=299 // pred_check
          %p2293 = pneg %p1556
        $region402: #{omni_transformer_v3_forward.1} parent=299 // pred_check_branch
          %2295 = sbr.rel (%p2293) target = $region404
        $region403: #{omni_transformer_v3_forward.1} parent=299 // pred_region
          %2297 = dma.done [#allocation42], 16
        $region404: #{omni_transformer_v3_forward.1} parent=299 // pred_fallthru
          _
        // Predicated region
        $region405: #{omni_transformer_v3_forward.1} parent=299 // pred_check
          %p2298 = pneg %p1577
        $region406: #{omni_transformer_v3_forward.1} parent=299 // pred_check_branch
          %2300 = sbr.rel (%p2298) target = $region408
        $region407: #{omni_transformer_v3_forward.1} parent=299 // pred_region
          %2302 = dma.done [#allocation42], 16
        $region408: #{omni_transformer_v3_forward.1} parent=299 // pred_fallthru
          _
        // Predicated region
        $region409: #{omni_transformer_v3_forward.1} parent=299 // pred_check
          %p2303 = pneg %p1598
        $region410: #{omni_transformer_v3_forward.1} parent=299 // pred_check_branch
          %2305 = sbr.rel (%p2303) target = $region412
        $region411: #{omni_transformer_v3_forward.1} parent=299 // pred_region
          %2307 = dma.done [#allocation45], 16
        $region412: #{omni_transformer_v3_forward.1} parent=299 // pred_fallthru
          _
        // Predicated region
        $region413: #{omni_transformer_v3_forward.1} parent=299 // pred_check
          %p2308 = pneg %p1640
        $region414: #{omni_transformer_v3_forward.1} parent=299 // pred_check_branch
          %2310 = sbr.rel (%p2308) target = $region416
        $region415: #{omni_transformer_v3_forward.1} parent=299 // pred_region
          %2312 = dma.done [#allocation45], 16
        $region416: #{omni_transformer_v3_forward.1} parent=299 // pred_fallthru
          _
        %p2313 = scmp.lt.s32.totalorder %s170, 1
        %s2314 = scalar_select %p2313, %s170, 1
        %s2315 = smul.addr %s2314, 4
        %s2316 = smul.addr %s2315, 4
        %s2317 = scalar_lea.vmem %s1, %s2316
        %p2318 = pneg %p191
        %p2319 = pneg %p188
        %p2320 = pneg %p212
        %p2321 = pneg %p209
        %p2322 = pneg %p233
        %p2323 = pneg %p230
        %p2324 = pneg %p254
        %p2325 = pneg %p251
        %p2326 = pneg %p275
        %p2327 = pneg %p272
        %p2328 = pneg %p296
        %p2329 = pneg %p293
        %p2330 = pneg %p317
        %p2331 = pneg %p314
        %p2332 = pneg %p338
        %p2333 = pneg %p335
        %p2334 = pneg %p359
        %p2335 = pneg %p356
        %p2336 = pneg %p380
        %p2337 = pneg %p377
        %p2338 = pneg %p401
        %p2339 = pneg %p398
        %p2340 = pneg %p422
        %p2341 = pneg %p419
        %p2342 = pneg %p443
        %p2343 = pneg %p440
        %p2344 = pneg %p464
        %p2345 = pneg %p461
        %p2346 = pneg %p485
        %p2347 = pneg %p482
        %p2348 = pneg %p506
        %p2349 = pneg %p503
        %p2350 = pneg %p527
        %p2351 = pneg %p524
        %p2352 = pneg %p548
        %p2353 = pneg %p545
        %p2354 = pneg %p569
        %p2355 = pneg %p566
        %p2356 = pneg %p590
        %p2357 = pneg %p587
        %p2358 = pneg %p611
        %p2359 = pneg %p608
        %p2360 = pneg %p632
        %p2361 = pneg %p629
        %p2362 = pneg %p653
        %p2363 = pneg %p650
        %p2364 = pneg %p674
        %p2365 = pneg %p671
        %p2366 = pneg %p695
        %p2367 = pneg %p692
        %p2368 = pneg %p716
        %p2369 = pneg %p713
        %p2370 = pneg %p737
        %p2371 = pneg %p734
        %p2372 = pneg %p758
        %p2373 = pneg %p755
        %p2374 = pneg %p779
        %p2375 = pneg %p776
        %p2376 = pneg %p800
        %p2377 = pneg %p797
        %p2378 = pneg %p821
        %p2379 = pneg %p818
        %p2380 = pneg %p842
        %p2381 = pneg %p839
        %p2382 = pneg %p863
        %p2383 = pneg %p860
        %p2384 = pneg %p884
        %p2385 = pneg %p881
        %p2386 = pneg %p905
        %p2387 = pneg %p902
        %p2388 = pneg %p926
        %p2389 = pneg %p923
        %p2390 = pneg %p947
        %p2391 = pneg %p944
        %p2392 = pneg %p968
        %p2393 = pneg %p965
        %p2394 = pneg %p989
        %p2395 = pneg %p986
        %p2396 = pneg %p1010
        %p2397 = pneg %p1007
        %p2398 = pneg %p1031
        %p2399 = pneg %p1028
        %p2400 = pneg %p1052
        %p2401 = pneg %p1049
        %p2402 = pneg %p1073
        %p2403 = pneg %p1070
        %p2404 = pneg %p1094
        %p2405 = pneg %p1091
        %p2406 = pneg %p1115
        %p2407 = pneg %p1112
        %p2408 = pneg %p1136
        %p2409 = pneg %p1133
        %p2410 = pneg %p1157
        %p2411 = pneg %p1154
        %p2412 = pneg %p1178
        %p2413 = pneg %p1175
        %p2414 = pneg %p1199
        %p2415 = pneg %p1196
        %p2416 = pneg %p1220
        %p2417 = pneg %p1217
        %p2418 = pneg %p1241
        %p2419 = pneg %p1238
        %p2420 = pneg %p1262
        %p2421 = pneg %p1259
        %p2422 = pneg %p1283
        %p2423 = pneg %p1280
        %p2424 = pneg %p1304
        %p2425 = pneg %p1301
        %p2426 = pneg %p1325
        %p2427 = pneg %p1322
        %p2428 = pneg %p1346
        %p2429 = pneg %p1343
        %p2430 = pneg %p1367
        %p2431 = pneg %p1364
        %p2432 = pneg %p1388
        %p2433 = pneg %p1385
        %p2434 = pneg %p1409
        %p2435 = pneg %p1406
        %p2436 = pneg %p1430
        %p2437 = pneg %p1427
        %p2438 = pneg %p1451
        %p2439 = pneg %p1448
        %p2440 = pneg %p1472
        %p2441 = pneg %p1469
        %p2442 = pneg %p1493
        %p2443 = pneg %p1490
        %p2444 = pneg %p1514
        %p2445 = pneg %p1511
        %p2446 = pneg %p1535
        %p2447 = pneg %p1532
        %p2448 = pneg %p1556
        %p2449 = pneg %p1553
        %p2450 = pneg %p1577
        %p2451 = pneg %p1574
        %p2452 = pneg %p1598
        %p2453 = pneg %p1595
        %p2454 = pneg %p1619
        %p2455 = pneg %p1616
        %p2456 = pneg %p1640
        %p2457 = pneg %p1637
        %p2458 = pneg %p1666
        %p2459 = pneg %p1663
        %s2460 = sand.u32 %s1653, 1
        %s2461 = scalar_lea.sflag [#allocation4], %s2460
        %s2462 = sand.u32 %s1653, 1
        %s2463 = scalar_lea.vmem [#allocation47], %s2462
        %p2464 = scmp.lt.s32.totalorder %s170, 1
        %s2465 = scalar_select %p2464, %s170, 1
        %s2466 = smul.addr %s2465, 4
        %s2467 = smul.addr %s2466, 4
        %s2468 = scalar_lea.vmem %s1, %s2467
        %v2470 = vld [vmem:[%s2468] sm:$0xf]
        %v2471 = vld [vmem:[%s2468 + $0x4] sm:$0xf]
        %v2472 = vld [vmem:[%s2468 + $0x8] sm:$0xf]
        %v2473 = vld [vmem:[%s2468 + $0xc] sm:$0xf]
        %v2474 = vld [vmem:[%s3] sm:$0xf]
        %v2475 = vld [vmem:[%s3 + $0x4] sm:$0xf]
        %v2476 = vld [vmem:[%s3 + $0x8] sm:$0xf]
        %v2477 = vld [vmem:[%s3 + $0xc] sm:$0xf]
        %v2478 = vld [vmem:[%s3 + $0x10] sm:$0xf]
        %v2479 = vld [vmem:[%s3 + $0x14] sm:$0xf]
        %v2480 = vld [vmem:[%s3 + $0x18] sm:$0xf]
        %v2481 = vld [vmem:[%s3 + $0x1c] sm:$0xf]
        %v2482 = vld [vmem:[%s3 + $0x20] sm:$0xf]
        %v2483 = vld [vmem:[%s3 + $0x24] sm:$0xf]
        %v2484 = vld [vmem:[%s3 + $0x28] sm:$0xf]
        %v2485 = vld [vmem:[%s3 + $0x2c] sm:$0xf]
        %v2486 = vld [vmem:[%s5] sm:$0x1]
        %v2487 = vld [vmem:[%s7] sm:$0x1]
        %v2488 = vunpack.c.l.bf16 %v2487
        %v2489 = vld [vmem:[%s9] sm:$0x1]
        %v2490 = vunpack.c.l.bf16 %v2489
        %v2492 = vperm.slane %v2486, 0
        %v2498 = vunpack.c.l.b16 %v2470
        %v2499 = vunpack.c.l.b16 %v2471
        %v2500 = vunpack.c.l.b16 %v2472
        %v2501 = vunpack.c.l.b16 %v2473
        %v2502 = vpack.c.b16 %v2499, %v2498
        %v2503 = vpack.c.b16 %v2501, %v2500
        %v2516 = vunpack.c.l.b16 %v2474
        %v2517 = vunpack.c.l.b16 %v2475
        %v2518 = vunpack.c.l.b16 %v2476
        %v2519 = vunpack.c.l.b16 %v2477
        %v2520 = vunpack.c.l.b16 %v2478
        %v2521 = vunpack.c.l.b16 %v2479
        %v2522 = vunpack.c.l.b16 %v2480
        %v2523 = vunpack.c.l.b16 %v2481
        %v2524 = vunpack.c.l.b16 %v2482
        %v2525 = vunpack.c.l.b16 %v2483
        %v2526 = vunpack.c.l.b16 %v2484
        %v2527 = vunpack.c.l.b16 %v2485
        %v2528 = vpack.c.b16 %v2517, %v2516
        %v2529 = vpack.c.b16 %v2519, %v2518
        %v2530 = vpack.c.b16 %v2521, %v2520
        %v2531 = vpack.c.b16 %v2523, %v2522
        %v2532 = vpack.c.b16 %v2525, %v2524
        %v2533 = vpack.c.b16 %v2527, %v2526
        %vm2540 = vcmask 785408
        %v2542 = vsel %vm2540, %v2502, 0
        %v2545 = vsel %vm2540, %v2503, 0
        %2547 = vmatpush.bf16.msra.mxu0 0
        %2548 = vmatpush.bf16.msra.mxu0 0
        %2549 = vmatpush.bf16.msra.mxu0 %v2533
        %2550 = vmatpush.bf16.msra.mxu0 %v2532
        %2551 = vmatpush.bf16.msra.mxu0 %v2531
        %2552 = vmatpush.bf16.msra.mxu0 %v2530
        %2553 = vmatpush.bf16.msra.mxu0 %v2529
        %2554 = vmatpush.bf16.msra.mxu0 %v2528
        %2555 = vmatmul.bf16.gmra.mxu0 %v2542
        %v2556 = vpop.f32.mrf.mxu0
        %v2557 = vadd.f32 %v2492, %v2556
        %v2558 = vpop.f32.mrf.mxu0
        %v2559 = vadd.f32 %v2492, %v2558
        %2560 = vmatmul.bf16.gmra.mxu0 %v2545
        %v2561 = vpop.f32.mrf.mxu0
        %v2562 = vadd.f32 %v2492, %v2561
        %v2563 = vpop.f32.mrf.mxu0
        %v2564 = vadd.f32 %v2492, %v2563
        %2565 = vdwg.mxu0
        %vm2566 = vcmask 130048
        %v2567 = vsel %vm2566, %v2557, 0.0
        %2568 = vadd.xlane.f32.xlu0 %v2567
        %v2569 = vpop.xlane.xlu0 %2568
        %v2570 = vsel %vm2566, %v2559, 0.0
        %2571 = vadd.xlane.f32.xlu0 %v2570
        %v2572 = vpop.xlane.xlu0 %2571
        %v2573 = vsel %vm2566, %v2562, 0.0
        %2574 = vadd.xlane.f32.xlu0 %v2573
        %v2575 = vpop.xlane.xlu0 %2574
        %v2576 = vsel %vm2566, %v2564, 0.0
        %2577 = vadd.xlane.f32.xlu0 %v2576
        %v2578 = vpop.xlane.xlu0 %2577
        %v2579 = vrcp.pop 16.0
        %v2580 = vmul.f32 16.0, %v2579
        %v2581 = vsub.f32 1.0, %v2580
        %v2582 = vmul.f32 %v2579, %v2581
        %v2583 = vadd.f32 %v2579, %v2582
        %vm2584 = vweird.f32 %v2579
        %v2585 = vsel %vm2584, %v2579, %v2583
        %v2586 = vmul.f32 %v2569, %v2585
        %v2587 = vmul.f32 %v2572, %v2585
        %v2588 = vmul.f32 %v2575, %v2585
        %v2589 = vmul.f32 %v2578, %v2585
        %v2590 = vsub.f32 %v2557, %v2586
        %v2591 = vsub.f32 %v2559, %v2587
        %v2592 = vsub.f32 %v2562, %v2588
        %v2593 = vsub.f32 %v2564, %v2589
        %v2594 = vmul.f32 %v2590, %v2590
        %v2595 = vmul.f32 %v2591, %v2591
        %v2596 = vmul.f32 %v2592, %v2592
        %v2597 = vmul.f32 %v2593, %v2593
        %v2598 = vsel %vm2566, %v2594, 0.0
        %2599 = vadd.xlane.f32.xlu0 %v2598
        %v2600 = vpop.xlane.xlu0 %2599
        %v2601 = vsel %vm2566, %v2595, 0.0
        %2602 = vadd.xlane.f32.xlu0 %v2601
        %v2603 = vpop.xlane.xlu0 %2602
        %v2604 = vsel %vm2566, %v2596, 0.0
        %2605 = vadd.xlane.f32.xlu0 %v2604
        %v2606 = vpop.xlane.xlu0 %2605
        %v2607 = vsel %vm2566, %v2597, 0.0
        %2608 = vadd.xlane.f32.xlu0 %v2607
        %v2609 = vpop.xlane.xlu0 %2608
        %v2610 = vmul.f32 %v2600, %v2585
        %v2611 = vmul.f32 %v2603, %v2585
        %v2612 = vmul.f32 %v2606, %v2585
        %v2613 = vmul.f32 %v2609, %v2585
        %v2614 = vadd.f32 %v2610, 1e-05
        %v2615 = vadd.f32 %v2611, 1e-05
        %v2616 = vadd.f32 %v2612, 1e-05
        %v2617 = vadd.f32 %v2613, 1e-05
        %v2618 = vrsqrt.pop %v2614
        %v2619 = vmul.f32 %v2618, %v2614
        %v2620 = vmul.f32 %v2619, %v2618
        %v2621 = vmul.f32 0.5, %v2620
        %v2622 = vsub.f32 1.5, %v2621
        %v2623 = vmul.f32 %v2618, %v2622
        %vm2624 = vweird.f32 %v2614
        %vm2625 = vweird.f32 %v2618
        %vm2626 = vmor %vm2624, %vm2625
        %v2627 = vsel %vm2626, %v2618, %v2623
        %v2628 = vrsqrt.pop %v2615
        %v2629 = vmul.f32 %v2628, %v2615
        %v2630 = vmul.f32 %v2629, %v2628
        %v2631 = vmul.f32 0.5, %v2630
        %v2632 = vsub.f32 1.5, %v2631
        %v2633 = vmul.f32 %v2628, %v2632
        %vm2634 = vweird.f32 %v2615
        %vm2635 = vweird.f32 %v2628
        %vm2636 = vmor %vm2634, %vm2635
        %v2637 = vsel %vm2636, %v2628, %v2633
        %v2638 = vrsqrt.pop %v2616
        %v2639 = vmul.f32 %v2638, %v2616
        %v2640 = vmul.f32 %v2639, %v2638
        %v2641 = vmul.f32 0.5, %v2640
        %v2642 = vsub.f32 1.5, %v2641
        %v2643 = vmul.f32 %v2638, %v2642
        %vm2644 = vweird.f32 %v2616
        %vm2645 = vweird.f32 %v2638
        %vm2646 = vmor %vm2644, %vm2645
        %v2647 = vsel %vm2646, %v2638, %v2643
        %v2648 = vrsqrt.pop %v2617
        %v2649 = vmul.f32 %v2648, %v2617
        %v2650 = vmul.f32 %v2649, %v2648
        %v2651 = vmul.f32 0.5, %v2650
        %v2652 = vsub.f32 1.5, %v2651
        %v2653 = vmul.f32 %v2648, %v2652
        %vm2654 = vweird.f32 %v2617
        %vm2655 = vweird.f32 %v2648
        %vm2656 = vmor %vm2654, %vm2655
        %v2657 = vsel %vm2656, %v2648, %v2653
        %v2658 = vmul.f32 %v2590, %v2627
        %v2659 = vmul.f32 %v2591, %v2637
        %v2660 = vmul.f32 %v2592, %v2647
        %v2661 = vmul.f32 %v2593, %v2657
        %v2662 = vperm.slane %v2488, 0
        %v2663 = vmul.f32 %v2658, %v2662
        %v2664 = vmul.f32 %v2659, %v2662
        %v2665 = vmul.f32 %v2660, %v2662
        %v2666 = vmul.f32 %v2661, %v2662
        %v2667 = vperm.slane %v2490, 0
        %v2668 = vadd.f32 %v2663, %v2667
        %v2669 = vadd.f32 %v2664, %v2667
        %v2670 = vadd.f32 %v2665, %v2667
        %v2671 = vadd.f32 %v2666, %v2667
        %v2672 = vld [vmem:[%s11] sm:$0xff]
        %v2673 = vld [vmem:[%s11 + $0x8] sm:$0xff]
        %v2674 = vld [vmem:[%s11 + $0x10] sm:$0xff]
        %v2675 = vld [vmem:[%s11 + $0x18] sm:$0xff]
        %v2676 = vld [vmem:[%s13] sm:$0xff]
        %v2677 = vld [vmem:[%s13 + $0x8] sm:$0xff]
        %v2678 = vld [vmem:[%s13 + $0x10] sm:$0xff]
        %v2679 = vld [vmem:[%s13 + $0x18] sm:$0xff]
        %v2680 = vld [vmem:[%s15] sm:$0x1]
        %v2681 = vunpack.c.l.bf16 %v2680
        %v2682 = vld [vmem:[%s17] sm:$0x1]
        %v2683 = vunpack.c.l.bf16 %v2682
        %v2684 = vld [vmem:[%s19] sm:$0xf]
        %v2685 = vld [vmem:[%s19 + $0x4] sm:$0xf]
        %v2686 = vld [vmem:[%s19 + $0x8] sm:$0xf]
        %v2687 = vld [vmem:[%s19 + $0xc] sm:$0xf]
        %v2688 = vld [vmem:[%s19 + $0x10] sm:$0xf]
        %v2689 = vld [vmem:[%s19 + $0x14] sm:$0xf]
        %v2690 = vld [vmem:[%s19 + $0x18] sm:$0xf]
        %v2691 = vld [vmem:[%s19 + $0x1c] sm:$0xf]
        %v2692 = vld [vmem:[%s19 + $0x20] sm:$0xf]
        %v2693 = vld [vmem:[%s19 + $0x24] sm:$0xf]
        %v2694 = vld [vmem:[%s19 + $0x28] sm:$0xf]
        %v2695 = vld [vmem:[%s19 + $0x2c] sm:$0xf]
        %v2696 = vld [vmem:[%s21] sm:$0x1]
        %v2697 = vld [vmem:[%s21 + $0x1] sm:$0x1]
        %v2698 = vld [vmem:[%s21 + $0x2] sm:$0x1]
        %v2699 = vld [vmem:[%s21 + $0x3] sm:$0x1]
        %v2700 = vld [vmem:[%s21 + $0x4] sm:$0x1]
        %v2701 = vld [vmem:[%s21 + $0x5] sm:$0x1]
        %v2702 = vld [vmem:[%s23] sm:$0xff]
        %v2703 = vld [vmem:[%s23 + $0x8] sm:$0xff]
        %v2704 = vld [vmem:[%s25] sm:$0xf]
        %v2705 = vld [vmem:[%s25 + $0x4] sm:$0xf]
        %v2706 = vld [vmem:[#allocation2] sm:$0x1]
        %v2707 = vld [vmem:[#allocation5] sm:$0x1]
        %v2708 = vunpack.c.l.bf16 %v2707
        %v2709 = vld [vmem:[#allocation7] sm:$0x1]
        %v2710 = vunpack.c.l.bf16 %v2709
        %v2711 = vld [vmem:[%s33] sm:$0xf]
        %v2712 = vld [vmem:[%s33 + $0x4] sm:$0xf]
        %v2713 = vld [vmem:[#allocation8] sm:$0x1]
        %v2714 = vld [vmem:[%s37] sm:$0xf]
        %v2715 = vld [vmem:[%s37 + $0x4] sm:$0xf]
        %v2716 = vld [vmem:[%s37 + $0x8] sm:$0xf]
        %v2717 = vld [vmem:[%s37 + $0xc] sm:$0xf]
        %v2718 = vld [vmem:[%s37 + $0x10] sm:$0xf]
        %v2719 = vld [vmem:[%s37 + $0x14] sm:$0xf]
        %v2720 = vld [vmem:[%s37 + $0x18] sm:$0xf]
        %v2721 = vld [vmem:[%s37 + $0x1c] sm:$0xf]
        %v2722 = vld [vmem:[#allocation10] sm:$0x1]
        %vm2723 = vcmask 261120
        %v2725 = vsel %vm2723, %v2672, 0
        %v2728 = vsel %vm2723, %v2673, 0
        %v2731 = vsel %vm2723, %v2674, 0
        %v2734 = vsel %vm2723, %v2675, 0
        %2736 = vmatpush.msra.mxu0 0.0
        %2737 = vmatpush.msra.mxu0 0.0
        %2738 = vmatpush.msra.mxu0 0.0
        %2739 = vmatpush.msra.mxu0 0.0
        %2740 = vmatpush.msra.mxu0 0.0
        %2741 = vmatpush.msra.mxu0 0.0
        %2742 = vmatpush.msra.mxu0 0.0
        %2743 = vmatpush.msra.mxu0 0.0
        %2744 = vmatpush.msra.mxu0 0.0
        %2745 = vmatpush.msra.mxu0 0.0
        %2746 = vmatpush.msra.mxu0 0.0
        %2747 = vmatpush.msra.mxu0 0.0
        %2748 = vmatpush.msra.mxu0 %v2671
        %2749 = vmatpush.msra.mxu0 %v2670
        %2750 = vmatpush.msra.mxu0 %v2669
        %2751 = vmatpush.msra.mxu0 %v2668
        %2752 = vmatmul.f32.gmra.mxu0 %v2725
        %v2753 = vpop.f32.mrf.mxu0
        %v2754 = vadd.f32 0.0, %v2753
        %2755 = vmatmul.f32.gmra.mxu0 %v2728
        %v2756 = vpop.f32.mrf.mxu0
        %v2757 = vadd.f32 0.0, %v2756
        %2758 = vmatmul.f32.gmra.mxu0 %v2731
        %v2759 = vpop.f32.mrf.mxu0
        %v2760 = vadd.f32 0.0, %v2759
        %2761 = vmatmul.f32.gmra.mxu0 %v2734
        %v2762 = vpop.f32.mrf.mxu0
        %v2763 = vadd.f32 0.0, %v2762
        %2764 = vdwg.mxu0
        %v2765 = vsel %vm2566, %v2754, 0.0
        %2766 = vadd.xlane.f32.xlu0 %v2765
        %v2767 = vpop.xlane.xlu0 %2766
        %v2768 = vsel %vm2566, %v2757, 0.0
        %2769 = vadd.xlane.f32.xlu0 %v2768
        %v2770 = vpop.xlane.xlu0 %2769
        %v2771 = vsel %vm2566, %v2760, 0.0
        %2772 = vadd.xlane.f32.xlu0 %v2771
        %v2773 = vpop.xlane.xlu0 %2772
        %v2774 = vsel %vm2566, %v2763, 0.0
        %2775 = vadd.xlane.f32.xlu0 %v2774
        %v2776 = vpop.xlane.xlu0 %2775
        %v2777 = vmul.f32 %v2767, %v2585
        %v2778 = vmul.f32 %v2770, %v2585
        %v2779 = vmul.f32 %v2773, %v2585
        %v2780 = vmul.f32 %v2776, %v2585
        %v2781 = vsub.f32 %v2754, %v2777
        %v2782 = vsub.f32 %v2757, %v2778
        %v2783 = vsub.f32 %v2760, %v2779
        %v2784 = vsub.f32 %v2763, %v2780
        %v2785 = vmul.f32 %v2781, %v2781
        %v2786 = vmul.f32 %v2782, %v2782
        %v2787 = vmul.f32 %v2783, %v2783
        %v2788 = vmul.f32 %v2784, %v2784
        %v2789 = vsel %vm2566, %v2785, 0.0
        %2790 = vadd.xlane.f32.xlu0 %v2789
        %v2791 = vpop.xlane.xlu0 %2790
        %v2792 = vsel %vm2566, %v2786, 0.0
        %2793 = vadd.xlane.f32.xlu0 %v2792
        %v2794 = vpop.xlane.xlu0 %2793
        %v2795 = vsel %vm2566, %v2787, 0.0
        %2796 = vadd.xlane.f32.xlu0 %v2795
        %v2797 = vpop.xlane.xlu0 %2796
        %v2798 = vsel %vm2566, %v2788, 0.0
        %2799 = vadd.xlane.f32.xlu0 %v2798
        %v2800 = vpop.xlane.xlu0 %2799
        %v2801 = vmul.f32 %v2791, %v2585
        %v2802 = vmul.f32 %v2794, %v2585
        %v2803 = vmul.f32 %v2797, %v2585
        %v2804 = vmul.f32 %v2800, %v2585
        %v2805 = vadd.f32 %v2801, 1e-05
        %v2806 = vadd.f32 %v2802, 1e-05
        %v2807 = vadd.f32 %v2803, 1e-05
        %v2808 = vadd.f32 %v2804, 1e-05
        %v2809 = vrsqrt.pop %v2805
        %v2810 = vmul.f32 %v2809, %v2805
        %v2811 = vmul.f32 %v2810, %v2809
        %v2812 = vmul.f32 0.5, %v2811
        %v2813 = vsub.f32 1.5, %v2812
        %v2814 = vmul.f32 %v2809, %v2813
        %vm2815 = vweird.f32 %v2805
        %vm2816 = vweird.f32 %v2809
        %vm2817 = vmor %vm2815, %vm2816
        %v2818 = vsel %vm2817, %v2809, %v2814
        %v2819 = vrsqrt.pop %v2806
        %v2820 = vmul.f32 %v2819, %v2806
        %v2821 = vmul.f32 %v2820, %v2819
        %v2822 = vmul.f32 0.5, %v2821
        %v2823 = vsub.f32 1.5, %v2822
        %v2824 = vmul.f32 %v2819, %v2823
        %vm2825 = vweird.f32 %v2806
        %vm2826 = vweird.f32 %v2819
        %vm2827 = vmor %vm2825, %vm2826
        %v2828 = vsel %vm2827, %v2819, %v2824
        %v2829 = vrsqrt.pop %v2807
        %v2830 = vmul.f32 %v2829, %v2807
        %v2831 = vmul.f32 %v2830, %v2829
        %v2832 = vmul.f32 0.5, %v2831
        %v2833 = vsub.f32 1.5, %v2832
        %v2834 = vmul.f32 %v2829, %v2833
        %vm2835 = vweird.f32 %v2807
        %vm2836 = vweird.f32 %v2829
        %vm2837 = vmor %vm2835, %vm2836
        %v2838 = vsel %vm2837, %v2829, %v2834
        %v2839 = vrsqrt.pop %v2808
        %v2840 = vmul.f32 %v2839, %v2808
        %v2841 = vmul.f32 %v2840, %v2839
        %v2842 = vmul.f32 0.5, %v2841
        %v2843 = vsub.f32 1.5, %v2842
        %v2844 = vmul.f32 %v2839, %v2843
        %vm2845 = vweird.f32 %v2808
        %vm2846 = vweird.f32 %v2839
        %vm2847 = vmor %vm2845, %vm2846
        %v2848 = vsel %vm2847, %v2839, %v2844
        %v2849 = vmul.f32 %v2781, %v2818
        %v2850 = vmul.f32 %v2782, %v2828
        %v2851 = vmul.f32 %v2783, %v2838
        %v2852 = vmul.f32 %v2784, %v2848
        %v2853 = vperm.slane %v2681, 0
        %v2854 = vmul.f32 %v2849, %v2853
        %v2855 = vmul.f32 %v2850, %v2853
        %v2856 = vmul.f32 %v2851, %v2853
        %v2857 = vmul.f32 %v2852, %v2853
        %v2858 = vperm.slane %v2683, 0
        %v2859 = vadd.f32 %v2854, %v2858
        %v2860 = vadd.f32 %v2855, %v2858
        %v2861 = vadd.f32 %v2856, %v2858
        %v2862 = vadd.f32 %v2857, %v2858
        %v2863 = vpack.c.bf16 %v2860, %v2859
        %v2864 = vpack.c.bf16 %v2862, %v2861
        %v2866 = vperm.slane %v2696, 0
        %v2870 = vunpack.c.l.b16 %v2684
        %v2871 = vunpack.c.l.b16 %v2685
        %v2872 = vpack.c.b16 %v2871, %v2870
        %v2875 = vsel %vm2566, %v2863, 0
        %v2878 = vsel %vm2566, %v2864, 0
        %2880 = vmatpush.bf16.msra.mxu0 0
        %2881 = vmatpush.bf16.msra.mxu0 0
        %2882 = vmatpush.bf16.msra.mxu0 0
        %2883 = vmatpush.bf16.msra.mxu0 0
        %2884 = vmatpush.bf16.msra.mxu0 0
        %2885 = vmatpush.bf16.msra.mxu0 0
        %2886 = vmatpush.bf16.msra.mxu0 0
        %2887 = vmatpush.bf16.msra.mxu0 %v2872
        %2888 = vmatmul.bf16.gmra.mxu0 %v2875
        %v2889 = vpop.f32.mrf.mxu0
        %v2890 = vadd.f32 %v2866, %v2889
        %v2891 = vpop.f32.mrf.mxu0
        %v2892 = vadd.f32 %v2866, %v2891
        %2893 = vmatmul.bf16.gmra.mxu0 %v2878
        %v2894 = vpop.f32.mrf.mxu0
        %v2895 = vadd.f32 %v2866, %v2894
        %v2896 = vpop.f32.mrf.mxu0
        %v2897 = vadd.f32 %v2866, %v2896
        %2898 = vdwg.mxu0
        %v2899 = vmul.f32 %v2890, 0.35355338
        %v2900 = vmul.f32 %v2892, 0.35355338
        %v2901 = vmul.f32 %v2895, 0.35355338
        %v2902 = vmul.f32 %v2897, 0.35355338
        %v2904 = vperm.slane %v2698, 0
        %v2908 = vunpack.c.l.b16 %v2688
        %v2909 = vunpack.c.l.b16 %v2689
        %v2910 = vpack.c.b16 %v2909, %v2908
        %2912 = vmatpush.bf16.msra.mxu0 0
        %2913 = vmatpush.bf16.msra.mxu0 0
        %2914 = vmatpush.bf16.msra.mxu0 0
        %2915 = vmatpush.bf16.msra.mxu0 0
        %2916 = vmatpush.bf16.msra.mxu0 0
        %2917 = vmatpush.bf16.msra.mxu0 0
        %2918 = vmatpush.bf16.msra.mxu0 0
        %2919 = vmatpush.bf16.msra.mxu0 %v2910
        %2920 = vmatmul.bf16.gmra.mxu0 %v2875
        %v2921 = vpop.f32.mrf.mxu0
        %v2922 = vadd.f32 %v2904, %v2921
        %v2923 = vpop.f32.mrf.mxu0
        %v2924 = vadd.f32 %v2904, %v2923
        %2925 = vmatmul.bf16.gmra.mxu0 %v2878
        %v2926 = vpop.f32.mrf.mxu0
        %v2927 = vadd.f32 %v2904, %v2926
        %v2928 = vpop.f32.mrf.mxu0
        %v2929 = vadd.f32 %v2904, %v2928
        %2930 = vdwg.mxu0
        %v2932 = vperm.slane %v2700, 0
        %v2936 = vunpack.c.l.b16 %v2692
        %v2937 = vunpack.c.l.b16 %v2693
        %v2938 = vpack.c.b16 %v2937, %v2936
        %2940 = vmatpush.bf16.msra.mxu0 0
        %2941 = vmatpush.bf16.msra.mxu0 0
        %2942 = vmatpush.bf16.msra.mxu0 0
        %2943 = vmatpush.bf16.msra.mxu0 0
        %2944 = vmatpush.bf16.msra.mxu0 0
        %2945 = vmatpush.bf16.msra.mxu0 0
        %2946 = vmatpush.bf16.msra.mxu0 0
        %2947 = vmatpush.bf16.msra.mxu0 %v2938
        %2948 = vmatmul.bf16.gmra.mxu0 %v2875
        %v2949 = vpop.f32.mrf.mxu0
        %v2950 = vadd.f32 %v2932, %v2949
        %v2951 = vpop.f32.mrf.mxu0
        %v2952 = vadd.f32 %v2932, %v2951
        %2953 = vmatmul.bf16.gmra.mxu0 %v2878
        %v2954 = vpop.f32.mrf.mxu0
        %v2955 = vadd.f32 %v2932, %v2954
        %v2956 = vpop.f32.mrf.mxu0
        %v2957 = vadd.f32 %v2932, %v2956
        %2958 = vdwg.mxu0
        %vm2959 = vcmask 64512
        %v2961 = vsel %vm2959, %v2899, 0
        %v2964 = vsel %vm2959, %v2922, 0
        %2966 = vmatpush.xpose.msra.mxu0 0.0
        %2967 = vmatpush.xpose.msra.mxu0 0.0
        %2968 = vmatpush.xpose.msra.mxu0 0.0
        %2969 = vmatpush.xpose.msra.mxu0 0.0
        %2970 = vmatpush.xpose.msra.mxu0 0.0
        %2971 = vmatpush.xpose.msra.mxu0 0.0
        %2972 = vmatpush.xpose.msra.mxu0 0.0
        %2973 = vmatpush.xpose.msra.mxu0 0.0
        %2974 = vmatpush.xpose.msra.mxu0 0.0
        %2975 = vmatpush.xpose.msra.mxu0 0.0
        %2976 = vmatpush.xpose.msra.mxu0 0.0
        %2977 = vmatpush.xpose.msra.mxu0 0.0
        %2978 = vmatpush.xpose.msra.mxu0 0.0
        %2979 = vmatpush.xpose.msra.mxu0 0.0
        %2980 = vmatpush.xpose.msra.mxu0 0.0
        %2981 = vmatpush.xpose.msra.mxu0 %v2964
        %2982 = vmatmul.f32.gmra.mxu0 %v2961
        %v2983 = vpop.f32.mrf.mxu0
        %v2984 = vadd.f32 %v2702, %v2983
        %2985 = vdwg.mxu0
        %v2987 = vsel %vm2959, %v2900, 0
        %v2990 = vsel %vm2959, %v2924, 0
        %2992 = vmatpush.xpose.msra.mxu0 0.0
        %2993 = vmatpush.xpose.msra.mxu0 0.0
        %2994 = vmatpush.xpose.msra.mxu0 0.0
        %2995 = vmatpush.xpose.msra.mxu0 0.0
        %2996 = vmatpush.xpose.msra.mxu0 0.0
        %2997 = vmatpush.xpose.msra.mxu0 0.0
        %2998 = vmatpush.xpose.msra.mxu0 0.0
        %2999 = vmatpush.xpose.msra.mxu0 0.0
        %3000 = vmatpush.xpose.msra.mxu0 0.0
        %3001 = vmatpush.xpose.msra.mxu0 0.0
        %3002 = vmatpush.xpose.msra.mxu0 0.0
        %3003 = vmatpush.xpose.msra.mxu0 0.0
        %3004 = vmatpush.xpose.msra.mxu0 0.0
        %3005 = vmatpush.xpose.msra.mxu0 0.0
        %3006 = vmatpush.xpose.msra.mxu0 0.0
        %3007 = vmatpush.xpose.msra.mxu0 %v2990
        %3008 = vmatmul.f32.gmra.mxu0 %v2987
        %v3009 = vpop.f32.mrf.mxu0
        %v3010 = vadd.f32 %v2702, %v3009
        %3011 = vdwg.mxu0
        %v3013 = vsel %vm2959, %v2901, 0
        %v3016 = vsel %vm2959, %v2927, 0
        %3018 = vmatpush.xpose.msra.mxu0 0.0
        %3019 = vmatpush.xpose.msra.mxu0 0.0
        %3020 = vmatpush.xpose.msra.mxu0 0.0
        %3021 = vmatpush.xpose.msra.mxu0 0.0
        %3022 = vmatpush.xpose.msra.mxu0 0.0
        %3023 = vmatpush.xpose.msra.mxu0 0.0
        %3024 = vmatpush.xpose.msra.mxu0 0.0
        %3025 = vmatpush.xpose.msra.mxu0 0.0
        %3026 = vmatpush.xpose.msra.mxu0 0.0
        %3027 = vmatpush.xpose.msra.mxu0 0.0
        %3028 = vmatpush.xpose.msra.mxu0 0.0
        %3029 = vmatpush.xpose.msra.mxu0 0.0
        %3030 = vmatpush.xpose.msra.mxu0 0.0
        %3031 = vmatpush.xpose.msra.mxu0 0.0
        %3032 = vmatpush.xpose.msra.mxu0 0.0
        %3033 = vmatpush.xpose.msra.mxu0 %v3016
        %3034 = vmatmul.f32.gmra.mxu0 %v3013
        %v3035 = vpop.f32.mrf.mxu0
        %v3036 = vadd.f32 %v2702, %v3035
        %3037 = vdwg.mxu0
        %v3039 = vsel %vm2959, %v2902, 0
        %v3042 = vsel %vm2959, %v2929, 0
        %3044 = vmatpush.xpose.msra.mxu0 0.0
        %3045 = vmatpush.xpose.msra.mxu0 0.0
        %3046 = vmatpush.xpose.msra.mxu0 0.0
        %3047 = vmatpush.xpose.msra.mxu0 0.0
        %3048 = vmatpush.xpose.msra.mxu0 0.0
        %3049 = vmatpush.xpose.msra.mxu0 0.0
        %3050 = vmatpush.xpose.msra.mxu0 0.0
        %3051 = vmatpush.xpose.msra.mxu0 0.0
        %3052 = vmatpush.xpose.msra.mxu0 0.0
        %3053 = vmatpush.xpose.msra.mxu0 0.0
        %3054 = vmatpush.xpose.msra.mxu0 0.0
        %3055 = vmatpush.xpose.msra.mxu0 0.0
        %3056 = vmatpush.xpose.msra.mxu0 0.0
        %3057 = vmatpush.xpose.msra.mxu0 0.0
        %3058 = vmatpush.xpose.msra.mxu0 0.0
        %3059 = vmatpush.xpose.msra.mxu0 %v3042
        %3060 = vmatmul.f32.gmra.mxu0 %v3039
        %v3061 = vpop.f32.mrf.mxu0
        %v3062 = vadd.f32 %v2702, %v3061
        %3063 = vdwg.mxu0
        %v3064 = vsel %vm2959, %v2984, -inf
        %3065 = vmax.xlane.f32.xlu0 %v3064
        %v3066 = vpop.xlane.xlu0 %3065
        %v3067 = vsel %vm2959, %v3010, -inf
        %3068 = vmax.xlane.f32.xlu0 %v3067
        %v3069 = vpop.xlane.xlu0 %3068
        %v3070 = vsel %vm2959, %v3036, -inf
        %3071 = vmax.xlane.f32.xlu0 %v3070
        %v3072 = vpop.xlane.xlu0 %3071
        %v3073 = vsel %vm2959, %v3062, -inf
        %3074 = vmax.xlane.f32.xlu0 %v3073
        %v3075 = vpop.xlane.xlu0 %3074
        %v3076 = vsub.f32 %v2984, %v3066
        %v3077 = vsub.f32 %v3010, %v3069
        %v3078 = vsub.f32 %v3036, %v3072
        %v3079 = vsub.f32 %v3062, %v3075
        %v3080 = vmul.f32 %v3076, 1.442695
        %v3081 = vpow.pop %v3080
        %v3082 = vmul.f32 %v3077, 1.442695
        %v3083 = vpow.pop %v3082
        %v3084 = vmul.f32 %v3078, 1.442695
        %v3085 = vpow.pop %v3084
        %v3086 = vmul.f32 %v3079, 1.442695
        %v3087 = vpow.pop %v3086
        %v3088 = vsel %vm2959, %v3081, 0.0
        %3089 = vadd.xlane.f32.xlu0 %v3088
        %v3090 = vpop.xlane.xlu0 %3089
        %v3091 = vsel %vm2959, %v3083, 0.0
        %3092 = vadd.xlane.f32.xlu0 %v3091
        %v3093 = vpop.xlane.xlu0 %3092
        %v3094 = vsel %vm2959, %v3085, 0.0
        %3095 = vadd.xlane.f32.xlu0 %v3094
        %v3096 = vpop.xlane.xlu0 %3095
        %v3097 = vsel %vm2959, %v3087, 0.0
        %3098 = vadd.xlane.f32.xlu0 %v3097
        %v3099 = vpop.xlane.xlu0 %3098
        %v3100 = vrcp.pop %v3090
        %v3101 = vrcp.pop %v3093
        %v3102 = vrcp.pop %v3096
        %v3103 = vrcp.pop %v3099
        %v3104 = vmul.f32 %v3081, %v3100
        %v3105 = vmul.f32 %v3083, %v3101
        %v3106 = vmul.f32 %v3085, %v3102
        %v3107 = vmul.f32 %v3087, %v3103
        %v3108 = vpack.c.bf16 %v3104, %v3104
        %v3109 = vpack.c.bf16 %v3105, %v3105
        %v3110 = vpack.c.bf16 %v3106, %v3106
        %v3111 = vpack.c.bf16 %v3107, %v3107
        %v3112 = vpack.c.bf16 %v2950, %v2950
        %v3113 = vpack.c.bf16 %v2952, %v2952
        %v3114 = vpack.c.bf16 %v2955, %v2955
        %v3115 = vpack.c.bf16 %v2957, %v2957
        %v3117 = vsel %vm2959, %v3108, 0
        %vm3119 = vcmask 1043456
        %v3121 = vsel %vm3119, %v3112, 0
        %3123 = vmatpush.bf16.msra.mxu0 0
        %3124 = vmatpush.bf16.msra.mxu0 0
        %3125 = vmatpush.bf16.msra.mxu0 0
        %3126 = vmatpush.bf16.msra.mxu0 0
        %3127 = vmatpush.bf16.msra.mxu0 0
        %3128 = vmatpush.bf16.msra.mxu0 0
        %3129 = vmatpush.bf16.msra.mxu0 0
        %3130 = vmatpush.bf16.msra.mxu0 %v3121
        %3131 = vmatmul.bf16.gmra.mxu0 %v3117
        %v3132 = vpop.f32.mrf.mxu0
        %v3133 = vadd.f32 0.0, %v3132
        %v3134 = vpop.f32.mrf.mxu0
        %3135 = vdwg.mxu0
        %v3137 = vsel %vm2959, %v3109, 0
        %v3140 = vsel %vm3119, %v3113, 0
        %3142 = vmatpush.bf16.msra.mxu0 0
        %3143 = vmatpush.bf16.msra.mxu0 0
        %3144 = vmatpush.bf16.msra.mxu0 0
        %3145 = vmatpush.bf16.msra.mxu0 0
        %3146 = vmatpush.bf16.msra.mxu0 0
        %3147 = vmatpush.bf16.msra.mxu0 0
        %3148 = vmatpush.bf16.msra.mxu0 0
        %3149 = vmatpush.bf16.msra.mxu0 %v3140
        %3150 = vmatmul.bf16.gmra.mxu0 %v3137
        %v3151 = vpop.f32.mrf.mxu0
        %v3152 = vadd.f32 0.0, %v3151
        %v3153 = vpop.f32.mrf.mxu0
        %3154 = vdwg.mxu0
        %v3156 = vsel %vm2959, %v3110, 0
        %v3159 = vsel %vm3119, %v3114, 0
        %3161 = vmatpush.bf16.msra.mxu0 0
        %3162 = vmatpush.bf16.msra.mxu0 0
        %3163 = vmatpush.bf16.msra.mxu0 0
        %3164 = vmatpush.bf16.msra.mxu0 0
        %3165 = vmatpush.bf16.msra.mxu0 0
        %3166 = vmatpush.bf16.msra.mxu0 0
        %3167 = vmatpush.bf16.msra.mxu0 0
        %3168 = vmatpush.bf16.msra.mxu0 %v3159
        %3169 = vmatmul.bf16.gmra.mxu0 %v3156
        %v3170 = vpop.f32.mrf.mxu0
        %v3171 = vadd.f32 0.0, %v3170
        %v3172 = vpop.f32.mrf.mxu0
        %3173 = vdwg.mxu0
        %v3175 = vsel %vm2959, %v3111, 0
        %v3178 = vsel %vm3119, %v3115, 0
        %3180 = vmatpush.bf16.msra.mxu0 0
        %3181 = vmatpush.bf16.msra.mxu0 0
        %3182 = vmatpush.bf16.msra.mxu0 0
        %3183 = vmatpush.bf16.msra.mxu0 0
        %3184 = vmatpush.bf16.msra.mxu0 0
        %3185 = vmatpush.bf16.msra.mxu0 0
        %3186 = vmatpush.bf16.msra.mxu0 0
        %3187 = vmatpush.bf16.msra.mxu0 %v3178
        %3188 = vmatmul.bf16.gmra.mxu0 %v3175
        %v3189 = vpop.f32.mrf.mxu0
        %v3190 = vadd.f32 0.0, %v3189
        %v3191 = vpop.f32.mrf.mxu0
        %3192 = vdwg.mxu0
        %v3193 = vpack.c.bf16 %v3152, %v3133
        %v3194 = vpack.c.bf16 %v3190, %v3171
        %v3196 = vperm.slane %v2697, 0
        %v3200 = vunpack.c.l.b16 %v2686
        %v3201 = vunpack.c.l.b16 %v2687
        %v3202 = vpack.c.b16 %v3201, %v3200
        %3204 = vmatpush.bf16.msra.mxu0 0
        %3205 = vmatpush.bf16.msra.mxu0 0
        %3206 = vmatpush.bf16.msra.mxu0 0
        %3207 = vmatpush.bf16.msra.mxu0 0
        %3208 = vmatpush.bf16.msra.mxu0 0
        %3209 = vmatpush.bf16.msra.mxu0 0
        %3210 = vmatpush.bf16.msra.mxu0 0
        %3211 = vmatpush.bf16.msra.mxu0 %v3202
        %3212 = vmatmul.bf16.gmra.mxu0 %v2875
        %v3213 = vpop.f32.mrf.mxu0
        %v3214 = vadd.f32 %v3196, %v3213
        %v3215 = vpop.f32.mrf.mxu0
        %v3216 = vadd.f32 %v3196, %v3215
        %3217 = vmatmul.bf16.gmra.mxu0 %v2878
        %v3218 = vpop.f32.mrf.mxu0
        %v3219 = vadd.f32 %v3196, %v3218
        %v3220 = vpop.f32.mrf.mxu0
        %v3221 = vadd.f32 %v3196, %v3220
        %3222 = vdwg.mxu0
        %v3223 = vmul.f32 %v3214, 0.35355338
        %v3224 = vmul.f32 %v3216, 0.35355338
        %v3225 = vmul.f32 %v3219, 0.35355338
        %v3226 = vmul.f32 %v3221, 0.35355338
        %v3228 = vperm.slane %v2699, 0
        %v3232 = vunpack.c.l.b16 %v2690
        %v3233 = vunpack.c.l.b16 %v2691
        %v3234 = vpack.c.b16 %v3233, %v3232
        %3236 = vmatpush.bf16.msra.mxu0 0
        %3237 = vmatpush.bf16.msra.mxu0 0
        %3238 = vmatpush.bf16.msra.mxu0 0
        %3239 = vmatpush.bf16.msra.mxu0 0
        %3240 = vmatpush.bf16.msra.mxu0 0
        %3241 = vmatpush.bf16.msra.mxu0 0
        %3242 = vmatpush.bf16.msra.mxu0 0
        %3243 = vmatpush.bf16.msra.mxu0 %v3234
        %3244 = vmatmul.bf16.gmra.mxu0 %v2875
        %v3245 = vpop.f32.mrf.mxu0
        %v3246 = vadd.f32 %v3228, %v3245
        %v3247 = vpop.f32.mrf.mxu0
        %v3248 = vadd.f32 %v3228, %v3247
        %3249 = vmatmul.bf16.gmra.mxu0 %v2878
        %v3250 = vpop.f32.mrf.mxu0
        %v3251 = vadd.f32 %v3228, %v3250
        %v3252 = vpop.f32.mrf.mxu0
        %v3253 = vadd.f32 %v3228, %v3252
        %3254 = vdwg.mxu0
        %v3256 = vperm.slane %v2701, 0
        %v3260 = vunpack.c.l.b16 %v2694
        %v3261 = vunpack.c.l.b16 %v2695
        %v3262 = vpack.c.b16 %v3261, %v3260
        %3264 = vmatpush.bf16.msra.mxu0 0
        %3265 = vmatpush.bf16.msra.mxu0 0
        %3266 = vmatpush.bf16.msra.mxu0 0
        %3267 = vmatpush.bf16.msra.mxu0 0
        %3268 = vmatpush.bf16.msra.mxu0 0
        %3269 = vmatpush.bf16.msra.mxu0 0
        %3270 = vmatpush.bf16.msra.mxu0 0
        %3271 = vmatpush.bf16.msra.mxu0 %v3262
        %3272 = vmatmul.bf16.gmra.mxu0 %v2875
        %v3273 = vpop.f32.mrf.mxu0
        %v3274 = vadd.f32 %v3256, %v3273
        %v3275 = vpop.f32.mrf.mxu0
        %v3276 = vadd.f32 %v3256, %v3275
        %3277 = vmatmul.bf16.gmra.mxu0 %v2878
        %v3278 = vpop.f32.mrf.mxu0
        %v3279 = vadd.f32 %v3256, %v3278
        %v3280 = vpop.f32.mrf.mxu0
        %v3281 = vadd.f32 %v3256, %v3280
        %3282 = vdwg.mxu0
        %v3284 = vsel %vm2959, %v3223, 0
        %v3287 = vsel %vm2959, %v3246, 0
        %3289 = vmatpush.xpose.msra.mxu0 0.0
        %3290 = vmatpush.xpose.msra.mxu0 0.0
        %3291 = vmatpush.xpose.msra.mxu0 0.0
        %3292 = vmatpush.xpose.msra.mxu0 0.0
        %3293 = vmatpush.xpose.msra.mxu0 0.0
        %3294 = vmatpush.xpose.msra.mxu0 0.0
        %3295 = vmatpush.xpose.msra.mxu0 0.0
        %3296 = vmatpush.xpose.msra.mxu0 0.0
        %3297 = vmatpush.xpose.msra.mxu0 0.0
        %3298 = vmatpush.xpose.msra.mxu0 0.0
        %3299 = vmatpush.xpose.msra.mxu0 0.0
        %3300 = vmatpush.xpose.msra.mxu0 0.0
        %3301 = vmatpush.xpose.msra.mxu0 0.0
        %3302 = vmatpush.xpose.msra.mxu0 0.0
        %3303 = vmatpush.xpose.msra.mxu0 0.0
        %3304 = vmatpush.xpose.msra.mxu0 %v3287
        %3305 = vmatmul.f32.gmra.mxu0 %v3284
        %v3306 = vpop.f32.mrf.mxu0
        %v3307 = vadd.f32 %v2703, %v3306
        %3308 = vdwg.mxu0
        %v3310 = vsel %vm2959, %v3224, 0
        %v3313 = vsel %vm2959, %v3248, 0
        %3315 = vmatpush.xpose.msra.mxu0 0.0
        %3316 = vmatpush.xpose.msra.mxu0 0.0
        %3317 = vmatpush.xpose.msra.mxu0 0.0
        %3318 = vmatpush.xpose.msra.mxu0 0.0
        %3319 = vmatpush.xpose.msra.mxu0 0.0
        %3320 = vmatpush.xpose.msra.mxu0 0.0
        %3321 = vmatpush.xpose.msra.mxu0 0.0
        %3322 = vmatpush.xpose.msra.mxu0 0.0
        %3323 = vmatpush.xpose.msra.mxu0 0.0
        %3324 = vmatpush.xpose.msra.mxu0 0.0
        %3325 = vmatpush.xpose.msra.mxu0 0.0
        %3326 = vmatpush.xpose.msra.mxu0 0.0
        %3327 = vmatpush.xpose.msra.mxu0 0.0
        %3328 = vmatpush.xpose.msra.mxu0 0.0
        %3329 = vmatpush.xpose.msra.mxu0 0.0
        %3330 = vmatpush.xpose.msra.mxu0 %v3313
        %3331 = vmatmul.f32.gmra.mxu0 %v3310
        %v3332 = vpop.f32.mrf.mxu0
        %v3333 = vadd.f32 %v2703, %v3332
        %3334 = vdwg.mxu0
        %v3336 = vsel %vm2959, %v3225, 0
        %v3339 = vsel %vm2959, %v3251, 0
        %3341 = vmatpush.xpose.msra.mxu0 0.0
        %3342 = vmatpush.xpose.msra.mxu0 0.0
        %3343 = vmatpush.xpose.msra.mxu0 0.0
        %3344 = vmatpush.xpose.msra.mxu0 0.0
        %3345 = vmatpush.xpose.msra.mxu0 0.0
        %3346 = vmatpush.xpose.msra.mxu0 0.0
        %3347 = vmatpush.xpose.msra.mxu0 0.0
        %3348 = vmatpush.xpose.msra.mxu0 0.0
        %3349 = vmatpush.xpose.msra.mxu0 0.0
        %3350 = vmatpush.xpose.msra.mxu0 0.0
        %3351 = vmatpush.xpose.msra.mxu0 0.0
        %3352 = vmatpush.xpose.msra.mxu0 0.0
        %3353 = vmatpush.xpose.msra.mxu0 0.0
        %3354 = vmatpush.xpose.msra.mxu0 0.0
        %3355 = vmatpush.xpose.msra.mxu0 0.0
        %3356 = vmatpush.xpose.msra.mxu0 %v3339
        %3357 = vmatmul.f32.gmra.mxu0 %v3336
        %v3358 = vpop.f32.mrf.mxu0
        %v3359 = vadd.f32 %v2703, %v3358
        %3360 = vdwg.mxu0
        %v3362 = vsel %vm2959, %v3226, 0
        %v3365 = vsel %vm2959, %v3253, 0
        %3367 = vmatpush.xpose.msra.mxu0 0.0
        %3368 = vmatpush.xpose.msra.mxu0 0.0
        %3369 = vmatpush.xpose.msra.mxu0 0.0
        %3370 = vmatpush.xpose.msra.mxu0 0.0
        %3371 = vmatpush.xpose.msra.mxu0 0.0
        %3372 = vmatpush.xpose.msra.mxu0 0.0
        %3373 = vmatpush.xpose.msra.mxu0 0.0
        %3374 = vmatpush.xpose.msra.mxu0 0.0
        %3375 = vmatpush.xpose.msra.mxu0 0.0
        %3376 = vmatpush.xpose.msra.mxu0 0.0
        %3377 = vmatpush.xpose.msra.mxu0 0.0
        %3378 = vmatpush.xpose.msra.mxu0 0.0
        %3379 = vmatpush.xpose.msra.mxu0 0.0
        %3380 = vmatpush.xpose.msra.mxu0 0.0
        %3381 = vmatpush.xpose.msra.mxu0 0.0
        %3382 = vmatpush.xpose.msra.mxu0 %v3365
        %3383 = vmatmul.f32.gmra.mxu0 %v3362
        %v3384 = vpop.f32.mrf.mxu0
        %v3385 = vadd.f32 %v2703, %v3384
        %3386 = vdwg.mxu0
        %v3387 = vsel %vm2959, %v3307, -inf
        %3388 = vmax.xlane.f32.xlu0 %v3387
        %v3389 = vpop.xlane.xlu0 %3388
        %v3390 = vsel %vm2959, %v3333, -inf
        %3391 = vmax.xlane.f32.xlu0 %v3390
        %v3392 = vpop.xlane.xlu0 %3391
        %v3393 = vsel %vm2959, %v3359, -inf
        %3394 = vmax.xlane.f32.xlu0 %v3393
        %v3395 = vpop.xlane.xlu0 %3394
        %v3396 = vsel %vm2959, %v3385, -inf
        %3397 = vmax.xlane.f32.xlu0 %v3396
        %v3398 = vpop.xlane.xlu0 %3397
        %v3399 = vsub.f32 %v3307, %v3389
        %v3400 = vsub.f32 %v3333, %v3392
        %v3401 = vsub.f32 %v3359, %v3395
        %v3402 = vsub.f32 %v3385, %v3398
        %v3403 = vmul.f32 %v3399, 1.442695
        %v3404 = vpow.pop %v3403
        %v3405 = vmul.f32 %v3400, 1.442695
        %v3406 = vpow.pop %v3405
        %v3407 = vmul.f32 %v3401, 1.442695
        %v3408 = vpow.pop %v3407
        %v3409 = vmul.f32 %v3402, 1.442695
        %v3410 = vpow.pop %v3409
        %v3411 = vsel %vm2959, %v3404, 0.0
        %3412 = vadd.xlane.f32.xlu0 %v3411
        %v3413 = vpop.xlane.xlu0 %3412
        %v3414 = vsel %vm2959, %v3406, 0.0
        %3415 = vadd.xlane.f32.xlu0 %v3414
        %v3416 = vpop.xlane.xlu0 %3415
        %v3417 = vsel %vm2959, %v3408, 0.0
        %3418 = vadd.xlane.f32.xlu0 %v3417
        %v3419 = vpop.xlane.xlu0 %3418
        %v3420 = vsel %vm2959, %v3410, 0.0
        %3421 = vadd.xlane.f32.xlu0 %v3420
        %v3422 = vpop.xlane.xlu0 %3421
        %v3423 = vrcp.pop %v3413
        %v3424 = vrcp.pop %v3416
        %v3425 = vrcp.pop %v3419
        %v3426 = vrcp.pop %v3422
        %v3427 = vmul.f32 %v3404, %v3423
        %v3428 = vmul.f32 %v3406, %v3424
        %v3429 = vmul.f32 %v3408, %v3425
        %v3430 = vmul.f32 %v3410, %v3426
        %v3431 = vpack.c.bf16 %v3427, %v3427
        %v3432 = vpack.c.bf16 %v3428, %v3428
        %v3433 = vpack.c.bf16 %v3429, %v3429
        %v3434 = vpack.c.bf16 %v3430, %v3430
        %v3435 = vpack.c.bf16 %v3274, %v3274
        %v3436 = vpack.c.bf16 %v3276, %v3276
        %v3437 = vpack.c.bf16 %v3279, %v3279
        %v3438 = vpack.c.bf16 %v3281, %v3281
        %v3440 = vsel %vm2959, %v3431, 0
        %v3443 = vsel %vm3119, %v3435, 0
        %3445 = vmatpush.bf16.msra.mxu0 0
        %3446 = vmatpush.bf16.msra.mxu0 0
        %3447 = vmatpush.bf16.msra.mxu0 0
        %3448 = vmatpush.bf16.msra.mxu0 0
        %3449 = vmatpush.bf16.msra.mxu0 0
        %3450 = vmatpush.bf16.msra.mxu0 0
        %3451 = vmatpush.bf16.msra.mxu0 0
        %3452 = vmatpush.bf16.msra.mxu0 %v3443
        %3453 = vmatmul.bf16.gmra.mxu0 %v3440
        %v3454 = vpop.f32.mrf.mxu0
        %v3455 = vadd.f32 0.0, %v3454
        %v3456 = vpop.f32.mrf.mxu0
        %3457 = vdwg.mxu0
        %v3459 = vsel %vm2959, %v3432, 0
        %v3462 = vsel %vm3119, %v3436, 0
        %3464 = vmatpush.bf16.msra.mxu0 0
        %3465 = vmatpush.bf16.msra.mxu0 0
        %3466 = vmatpush.bf16.msra.mxu0 0
        %3467 = vmatpush.bf16.msra.mxu0 0
        %3468 = vmatpush.bf16.msra.mxu0 0
        %3469 = vmatpush.bf16.msra.mxu0 0
        %3470 = vmatpush.bf16.msra.mxu0 0
        %3471 = vmatpush.bf16.msra.mxu0 %v3462
        %3472 = vmatmul.bf16.gmra.mxu0 %v3459
        %v3473 = vpop.f32.mrf.mxu0
        %v3474 = vadd.f32 0.0, %v3473
        %v3475 = vpop.f32.mrf.mxu0
        %3476 = vdwg.mxu0
        %v3478 = vsel %vm2959, %v3433, 0
        %v3481 = vsel %vm3119, %v3437, 0
        %3483 = vmatpush.bf16.msra.mxu0 0
        %3484 = vmatpush.bf16.msra.mxu0 0
        %3485 = vmatpush.bf16.msra.mxu0 0
        %3486 = vmatpush.bf16.msra.mxu0 0
        %3487 = vmatpush.bf16.msra.mxu0 0
        %3488 = vmatpush.bf16.msra.mxu0 0
        %3489 = vmatpush.bf16.msra.mxu0 0
        %3490 = vmatpush.bf16.msra.mxu0 %v3481
        %3491 = vmatmul.bf16.gmra.mxu0 %v3478
        %v3492 = vpop.f32.mrf.mxu0
        %v3493 = vadd.f32 0.0, %v3492
        %v3494 = vpop.f32.mrf.mxu0
        %3495 = vdwg.mxu0
        %v3497 = vsel %vm2959, %v3434, 0
        %v3500 = vsel %vm3119, %v3438, 0
        %3502 = vmatpush.bf16.msra.mxu0 0
        %3503 = vmatpush.bf16.msra.mxu0 0
        %3504 = vmatpush.bf16.msra.mxu0 0
        %3505 = vmatpush.bf16.msra.mxu0 0
        %3506 = vmatpush.bf16.msra.mxu0 0
        %3507 = vmatpush.bf16.msra.mxu0 0
        %3508 = vmatpush.bf16.msra.mxu0 0
        %3509 = vmatpush.bf16.msra.mxu0 %v3500
        %3510 = vmatmul.bf16.gmra.mxu0 %v3497
        %v3511 = vpop.f32.mrf.mxu0
        %v3512 = vadd.f32 0.0, %v3511
        %v3513 = vpop.f32.mrf.mxu0
        %3514 = vdwg.mxu0
        %v3515 = vpack.c.bf16 %v3474, %v3455
        %v3516 = vpack.c.bf16 %v3512, %v3493
        %v3518 = vsel %vm2959, %v3515, 0
        %v3521 = vsel %vm2959, %v3516, 0
        %v3524 = vsel %vm3119, %v2705, 0
        %3526 = vmatpush.bf16.msra.mxu0 0
        %3527 = vmatpush.bf16.msra.mxu0 0
        %3528 = vmatpush.bf16.msra.mxu0 0
        %3529 = vmatpush.bf16.msra.mxu0 0
        %3530 = vmatpush.bf16.msra.mxu0 0
        %3531 = vmatpush.bf16.msra.mxu0 0
        %3532 = vmatpush.bf16.msra.mxu0 0
        %3533 = vmatpush.bf16.msra.mxu0 %v3524
        %3534 = vmatmul.bf16.gmra.mxu0 %v3518
        %v3535 = vpop.f32.mrf.mxu0
        %v3536 = vadd.f32 0.0, %v3535
        %v3537 = vpop.f32.mrf.mxu0
        %v3538 = vadd.f32 0.0, %v3537
        %3539 = vmatmul.bf16.gmra.mxu0 %v3521
        %v3540 = vpop.f32.mrf.mxu0
        %v3541 = vadd.f32 0.0, %v3540
        %v3542 = vpop.f32.mrf.mxu0
        %v3543 = vadd.f32 0.0, %v3542
        %3544 = vdwg.mxu0
        %v3546 = vsel %vm2959, %v3193, 0
        %v3549 = vsel %vm2959, %v3194, 0
        %v3552 = vsel %vm3119, %v2704, 0
        %3554 = vmatpush.bf16.msra.mxu0 0
        %3555 = vmatpush.bf16.msra.mxu0 0
        %3556 = vmatpush.bf16.msra.mxu0 0
        %3557 = vmatpush.bf16.msra.mxu0 0
        %3558 = vmatpush.bf16.msra.mxu0 0
        %3559 = vmatpush.bf16.msra.mxu0 0
        %3560 = vmatpush.bf16.msra.mxu0 0
        %3561 = vmatpush.bf16.msra.mxu0 %v3552
        %3562 = vmatmul.bf16.gmra.mxu0 %v3546
        %v3563 = vpop.f32.mrf.mxu0
        %v3564 = vadd.f32 %v3536, %v3563
        %v3565 = vpop.f32.mrf.mxu0
        %v3566 = vadd.f32 %v3538, %v3565
        %3567 = vmatmul.bf16.gmra.mxu0 %v3549
        %v3568 = vpop.f32.mrf.mxu0
        %v3569 = vadd.f32 %v3541, %v3568
        %v3570 = vpop.f32.mrf.mxu0
        %v3571 = vadd.f32 %v3543, %v3570
        %3572 = vdwg.mxu0
        %v3574 = vperm.slane %v2706, 0
        %v3576 = vadd.f32 %v3564, %v3574
        %v3577 = vadd.f32 %v3566, %v3574
        %v3578 = vadd.f32 %v3569, %v3574
        %v3579 = vadd.f32 %v3571, %v3574
        %v3581 = vsel %vm2723, %v2676, 0
        %v3584 = vsel %vm2723, %v2677, 0
        %v3587 = vsel %vm2723, %v2678, 0
        %v3590 = vsel %vm2723, %v2679, 0
        %3592 = vmatpush.msra.mxu0 0.0
        %3593 = vmatpush.msra.mxu0 0.0
        %3594 = vmatpush.msra.mxu0 0.0
        %3595 = vmatpush.msra.mxu0 0.0
        %3596 = vmatpush.msra.mxu0 0.0
        %3597 = vmatpush.msra.mxu0 0.0
        %3598 = vmatpush.msra.mxu0 0.0
        %3599 = vmatpush.msra.mxu0 0.0
        %3600 = vmatpush.msra.mxu0 0.0
        %3601 = vmatpush.msra.mxu0 0.0
        %3602 = vmatpush.msra.mxu0 0.0
        %3603 = vmatpush.msra.mxu0 0.0
        %3604 = vmatpush.msra.mxu0 %v3579
        %3605 = vmatpush.msra.mxu0 %v3578
        %3606 = vmatpush.msra.mxu0 %v3577
        %3607 = vmatpush.msra.mxu0 %v3576
        %3608 = vmatmul.f32.gmra.mxu0 %v3581
        %v3609 = vpop.f32.mrf.mxu0
        %v3610 = vadd.f32 0.0, %v3609
        %3611 = vmatmul.f32.gmra.mxu0 %v3584
        %v3612 = vpop.f32.mrf.mxu0
        %v3613 = vadd.f32 0.0, %v3612
        %3614 = vmatmul.f32.gmra.mxu0 %v3587
        %v3615 = vpop.f32.mrf.mxu0
        %v3616 = vadd.f32 0.0, %v3615
        %3617 = vmatmul.f32.gmra.mxu0 %v3590
        %v3618 = vpop.f32.mrf.mxu0
        %v3619 = vadd.f32 0.0, %v3618
        %3620 = vdwg.mxu0
        %v3621 = vadd.f32 %v2668, %v3610
        %v3622 = vadd.f32 %v2669, %v3613
        %v3623 = vadd.f32 %v2670, %v3616
        %v3624 = vadd.f32 %v2671, %v3619
        %v3625 = vsel %vm2566, %v3621, 0.0
        %3626 = vadd.xlane.f32.xlu0 %v3625
        %v3627 = vpop.xlane.xlu0 %3626
        %v3628 = vsel %vm2566, %v3622, 0.0
        %3629 = vadd.xlane.f32.xlu0 %v3628
        %v3630 = vpop.xlane.xlu0 %3629
        %v3631 = vsel %vm2566, %v3623, 0.0
        %3632 = vadd.xlane.f32.xlu0 %v3631
        %v3633 = vpop.xlane.xlu0 %3632
        %v3634 = vsel %vm2566, %v3624, 0.0
        %3635 = vadd.xlane.f32.xlu0 %v3634
        %v3636 = vpop.xlane.xlu0 %3635
        %v3637 = vmul.f32 %v3627, %v2585
        %v3638 = vmul.f32 %v3630, %v2585
        %v3639 = vmul.f32 %v3633, %v2585
        %v3640 = vmul.f32 %v3636, %v2585
        %v3641 = vsub.f32 %v3621, %v3637
        %v3642 = vsub.f32 %v3622, %v3638
        %v3643 = vsub.f32 %v3623, %v3639
        %v3644 = vsub.f32 %v3624, %v3640
        %v3645 = vmul.f32 %v3641, %v3641
        %v3646 = vmul.f32 %v3642, %v3642
        %v3647 = vmul.f32 %v3643, %v3643
        %v3648 = vmul.f32 %v3644, %v3644
        %v3649 = vsel %vm2566, %v3645, 0.0
        %3650 = vadd.xlane.f32.xlu0 %v3649
        %v3651 = vpop.xlane.xlu0 %3650
        %v3652 = vsel %vm2566, %v3646, 0.0
        %3653 = vadd.xlane.f32.xlu0 %v3652
        %v3654 = vpop.xlane.xlu0 %3653
        %v3655 = vsel %vm2566, %v3647, 0.0
        %3656 = vadd.xlane.f32.xlu0 %v3655
        %v3657 = vpop.xlane.xlu0 %3656
        %v3658 = vsel %vm2566, %v3648, 0.0
        %3659 = vadd.xlane.f32.xlu0 %v3658
        %v3660 = vpop.xlane.xlu0 %3659
        %v3661 = vmul.f32 %v3651, %v2585
        %v3662 = vmul.f32 %v3654, %v2585
        %v3663 = vmul.f32 %v3657, %v2585
        %v3664 = vmul.f32 %v3660, %v2585
        %v3665 = vadd.f32 %v3661, 1e-05
        %v3666 = vadd.f32 %v3662, 1e-05
        %v3667 = vadd.f32 %v3663, 1e-05
        %v3668 = vadd.f32 %v3664, 1e-05
        %v3669 = vrsqrt.pop %v3665
        %v3670 = vmul.f32 %v3669, %v3665
        %v3671 = vmul.f32 %v3670, %v3669
        %v3672 = vmul.f32 0.5, %v3671
        %v3673 = vsub.f32 1.5, %v3672
        %v3674 = vmul.f32 %v3669, %v3673
        %vm3675 = vweird.f32 %v3665
        %vm3676 = vweird.f32 %v3669
        %vm3677 = vmor %vm3675, %vm3676
        %v3678 = vsel %vm3677, %v3669, %v3674
        %v3679 = vrsqrt.pop %v3666
        %v3680 = vmul.f32 %v3679, %v3666
        %v3681 = vmul.f32 %v3680, %v3679
        %v3682 = vmul.f32 0.5, %v3681
        %v3683 = vsub.f32 1.5, %v3682
        %v3684 = vmul.f32 %v3679, %v3683
        %vm3685 = vweird.f32 %v3666
        %vm3686 = vweird.f32 %v3679
        %vm3687 = vmor %vm3685, %vm3686
        %v3688 = vsel %vm3687, %v3679, %v3684
        %v3689 = vrsqrt.pop %v3667
        %v3690 = vmul.f32 %v3689, %v3667
        %v3691 = vmul.f32 %v3690, %v3689
        %v3692 = vmul.f32 0.5, %v3691
        %v3693 = vsub.f32 1.5, %v3692
        %v3694 = vmul.f32 %v3689, %v3693
        %vm3695 = vweird.f32 %v3667
        %vm3696 = vweird.f32 %v3689
        %vm3697 = vmor %vm3695, %vm3696
        %v3698 = vsel %vm3697, %v3689, %v3694
        %v3699 = vrsqrt.pop %v3668
        %v3700 = vmul.f32 %v3699, %v3668
        %v3701 = vmul.f32 %v3700, %v3699
        %v3702 = vmul.f32 0.5, %v3701
        %v3703 = vsub.f32 1.5, %v3702
        %v3704 = vmul.f32 %v3699, %v3703
        %vm3705 = vweird.f32 %v3668
        %vm3706 = vweird.f32 %v3699
        %vm3707 = vmor %vm3705, %vm3706
        %v3708 = vsel %vm3707, %v3699, %v3704
        %v3709 = vmul.f32 %v3641, %v3678
        %v3710 = vmul.f32 %v3642, %v3688
        %v3711 = vmul.f32 %v3643, %v3698
        %v3712 = vmul.f32 %v3644, %v3708
        %v3713 = vperm.slane %v2708, 0
        %v3714 = vmul.f32 %v3709, %v3713
        %v3715 = vmul.f32 %v3710, %v3713
        %v3716 = vmul.f32 %v3711, %v3713
        %v3717 = vmul.f32 %v3712, %v3713
        %v3718 = vperm.slane %v2710, 0
        %v3719 = vadd.f32 %v3714, %v3718
        %v3720 = vadd.f32 %v3715, %v3718
        %v3721 = vadd.f32 %v3716, %v3718
        %v3722 = vadd.f32 %v3717, %v3718
        %v3723 = vpack.c.bf16 %v3720, %v3719
        %v3724 = vpack.c.bf16 %v3722, %v3721
        %v3726 = vperm.slane %v2713, 0
        %v3730 = vunpack.c.l.b16 %v2711
        %v3731 = vunpack.c.l.b16 %v2712
        %v3732 = vpack.c.b16 %v3731, %v3730
        %v3735 = vsel %vm2566, %v3723, 0
        %v3738 = vsel %vm2566, %v3724, 0
        %3740 = vmatpush.bf16.msra.mxu0 0
        %3741 = vmatpush.bf16.msra.mxu0 0
        %3742 = vmatpush.bf16.msra.mxu0 0
        %3743 = vmatpush.bf16.msra.mxu0 0
        %3744 = vmatpush.bf16.msra.mxu0 0
        %3745 = vmatpush.bf16.msra.mxu0 0
        %3746 = vmatpush.bf16.msra.mxu0 0
        %3747 = vmatpush.bf16.msra.mxu0 %v3732
        %3748 = vmatmul.bf16.gmra.mxu0 %v3735
        %v3749 = vpop.f32.mrf.mxu0
        %v3750 = vadd.f32 %v3726, %v3749
        %v3751 = vpop.f32.mrf.mxu0
        %v3752 = vadd.f32 %v3726, %v3751
        %3753 = vmatmul.bf16.gmra.mxu0 %v3738
        %v3754 = vpop.f32.mrf.mxu0
        %v3755 = vadd.f32 %v3726, %v3754
        %v3756 = vpop.f32.mrf.mxu0
        %v3757 = vadd.f32 %v3726, %v3756
        %3758 = vdwg.mxu0
        %v3759 = vmul.f32 %v3750, 0.5
        %v3760 = vmul.f32 %v3752, 0.5
        %v3761 = vmul.f32 %v3755, 0.5
        %v3762 = vmul.f32 %v3757, 0.5
        %v3763 = vmul.f32 %v3750, 0.70710677
        %v3764 = vmul.f32 %v3752, 0.70710677
        %v3765 = vmul.f32 %v3755, 0.70710677
        %v3766 = vmul.f32 %v3757, 0.70710677
        %v3767 = vmul.f32 %v3763, %v3763
        %v3768 = vmin.f32 16.0, %v3767
        %v3769 = vmul.f32 %v3768, 2.1237322e-06
        %v3770 = vadd.f32 %v3769, 0.00028619796
        %v3771 = vmul.f32 %v3768, %v3770
        %v3772 = vadd.f32 %v3771, 0.0036580483
        %v3773 = vmul.f32 %v3768, %v3772
        %v3774 = vadd.f32 %v3773, 0.05243302
        %v3775 = vmul.f32 %v3768, %v3774
        %v3776 = vadd.f32 %v3775, 0.18741608
        %v3777 = vmul.f32 %v3768, %v3776
        %v3778 = vadd.f32 %v3777, 1.1283791
        %v3779 = vmul.f32 %v3763, %v3778
        %v3780 = vmul.f32 %v3768, 3.8918573e-05
        %v3781 = vadd.f32 %v3780, 0.001143296
        %v3782 = vmul.f32 %v3768, %v3781
        %v3783 = vadd.f32 %v3782, 0.014752088
        %v3784 = vmul.f32 %v3768, %v3783
        %v3785 = vadd.f32 %v3784, 0.112945676
        %v3786 = vmul.f32 %v3768, %v3785
        %v3787 = vadd.f32 %v3786, 0.4994258
        %v3788 = vmul.f32 %v3768, %v3787
        %v3789 = vadd.f32 %v3788, 1.0
        %v3790 = vrcp.pop %v3789
        %v3791 = vmul.f32 %v3789, %v3790
        %v3792 = vsub.f32 1.0, %v3791
        %v3793 = vmul.f32 %v3790, %v3792
        %v3794 = vadd.f32 %v3790, %v3793
        %vm3795 = vweird.f32 %v3789
        %vm3796 = vweird.f32 %v3790
        %vm3797 = vmor %vm3795, %vm3796
        %v3798 = vsel %vm3797, %v3790, %v3794
        %v3799 = vand.u32 2147483647, %v3789
        %vm3800 = vcmp.eq.f32.partialorder %v3799, 8.507059e+37
        %v3801 = vand.u32 %v3789, 2147483648
        %v3802 = vor.u32 1.1754944e-38, %v3801
        %v3803 = vsel %vm3800, %v3802, %v3798
        %v3804 = vmul.f32 %v3779, %v3803
        %v3805 = vmin.f32 %v3804, 1.0
        %v3806 = vmax.f32 %v3805, -1.0
        %v3807 = vmul.f32 %v3764, %v3764
        %v3808 = vmin.f32 16.0, %v3807
        %v3809 = vmul.f32 %v3808, 2.1237322e-06
        %v3810 = vadd.f32 %v3809, 0.00028619796
        %v3811 = vmul.f32 %v3808, %v3810
        %v3812 = vadd.f32 %v3811, 0.0036580483
        %v3813 = vmul.f32 %v3808, %v3812
        %v3814 = vadd.f32 %v3813, 0.05243302
        %v3815 = vmul.f32 %v3808, %v3814
        %v3816 = vadd.f32 %v3815, 0.18741608
        %v3817 = vmul.f32 %v3808, %v3816
        %v3818 = vadd.f32 %v3817, 1.1283791
        %v3819 = vmul.f32 %v3764, %v3818
        %v3820 = vmul.f32 %v3808, 3.8918573e-05
        %v3821 = vadd.f32 %v3820, 0.001143296
        %v3822 = vmul.f32 %v3808, %v3821
        %v3823 = vadd.f32 %v3822, 0.014752088
        %v3824 = vmul.f32 %v3808, %v3823
        %v3825 = vadd.f32 %v3824, 0.112945676
        %v3826 = vmul.f32 %v3808, %v3825
        %v3827 = vadd.f32 %v3826, 0.4994258
        %v3828 = vmul.f32 %v3808, %v3827
        %v3829 = vadd.f32 %v3828, 1.0
        %v3830 = vrcp.pop %v3829
        %v3831 = vmul.f32 %v3829, %v3830
        %v3832 = vsub.f32 1.0, %v3831
        %v3833 = vmul.f32 %v3830, %v3832
        %v3834 = vadd.f32 %v3830, %v3833
        %vm3835 = vweird.f32 %v3829
        %vm3836 = vweird.f32 %v3830
        %vm3837 = vmor %vm3835, %vm3836
        %v3838 = vsel %vm3837, %v3830, %v3834
        %v3839 = vand.u32 2147483647, %v3829
        %vm3840 = vcmp.eq.f32.partialorder %v3839, 8.507059e+37
        %v3841 = vand.u32 %v3829, 2147483648
        %v3842 = vor.u32 1.1754944e-38, %v3841
        %v3843 = vsel %vm3840, %v3842, %v3838
        %v3844 = vmul.f32 %v3819, %v3843
        %v3845 = vmin.f32 %v3844, 1.0
        %v3846 = vmax.f32 %v3845, -1.0
        %v3847 = vmul.f32 %v3765, %v3765
        %v3848 = vmin.f32 16.0, %v3847
        %v3849 = vmul.f32 %v3848, 2.1237322e-06
        %v3850 = vadd.f32 %v3849, 0.00028619796
        %v3851 = vmul.f32 %v3848, %v3850
        %v3852 = vadd.f32 %v3851, 0.0036580483
        %v3853 = vmul.f32 %v3848, %v3852
        %v3854 = vadd.f32 %v3853, 0.05243302
        %v3855 = vmul.f32 %v3848, %v3854
        %v3856 = vadd.f32 %v3855, 0.18741608
        %v3857 = vmul.f32 %v3848, %v3856
        %v3858 = vadd.f32 %v3857, 1.1283791
        %v3859 = vmul.f32 %v3765, %v3858
        %v3860 = vmul.f32 %v3848, 3.8918573e-05
        %v3861 = vadd.f32 %v3860, 0.001143296
        %v3862 = vmul.f32 %v3848, %v3861
        %v3863 = vadd.f32 %v3862, 0.014752088
        %v3864 = vmul.f32 %v3848, %v3863
        %v3865 = vadd.f32 %v3864, 0.112945676
        %v3866 = vmul.f32 %v3848, %v3865
        %v3867 = vadd.f32 %v3866, 0.4994258
        %v3868 = vmul.f32 %v3848, %v3867
        %v3869 = vadd.f32 %v3868, 1.0
        %v3870 = vrcp.pop %v3869
        %v3871 = vmul.f32 %v3869, %v3870
        %v3872 = vsub.f32 1.0, %v3871
        %v3873 = vmul.f32 %v3870, %v3872
        %v3874 = vadd.f32 %v3870, %v3873
        %vm3875 = vweird.f32 %v3869
        %vm3876 = vweird.f32 %v3870
        %vm3877 = vmor %vm3875, %vm3876
        %v3878 = vsel %vm3877, %v3870, %v3874
        %v3879 = vand.u32 2147483647, %v3869
        %vm3880 = vcmp.eq.f32.partialorder %v3879, 8.507059e+37
        %v3881 = vand.u32 %v3869, 2147483648
        %v3882 = vor.u32 1.1754944e-38, %v3881
        %v3883 = vsel %vm3880, %v3882, %v3878
        %v3884 = vmul.f32 %v3859, %v3883
        %v3885 = vmin.f32 %v3884, 1.0
        %v3886 = vmax.f32 %v3885, -1.0
        %v3887 = vmul.f32 %v3766, %v3766
        %v3888 = vmin.f32 16.0, %v3887
        %v3889 = vmul.f32 %v3888, 2.1237322e-06
        %v3890 = vadd.f32 %v3889, 0.00028619796
        %v3891 = vmul.f32 %v3888, %v3890
        %v3892 = vadd.f32 %v3891, 0.0036580483
        %v3893 = vmul.f32 %v3888, %v3892
        %v3894 = vadd.f32 %v3893, 0.05243302
        %v3895 = vmul.f32 %v3888, %v3894
        %v3896 = vadd.f32 %v3895, 0.18741608
        %v3897 = vmul.f32 %v3888, %v3896
        %v3898 = vadd.f32 %v3897, 1.1283791
        %v3899 = vmul.f32 %v3766, %v3898
        %v3900 = vmul.f32 %v3888, 3.8918573e-05
        %v3901 = vadd.f32 %v3900, 0.001143296
        %v3902 = vmul.f32 %v3888, %v3901
        %v3903 = vadd.f32 %v3902, 0.014752088
        %v3904 = vmul.f32 %v3888, %v3903
        %v3905 = vadd.f32 %v3904, 0.112945676
        %v3906 = vmul.f32 %v3888, %v3905
        %v3907 = vadd.f32 %v3906, 0.4994258
        %v3908 = vmul.f32 %v3888, %v3907
        %v3909 = vadd.f32 %v3908, 1.0
        %v3910 = vrcp.pop %v3909
        %v3911 = vmul.f32 %v3909, %v3910
        %v3912 = vsub.f32 1.0, %v3911
        %v3913 = vmul.f32 %v3910, %v3912
        %v3914 = vadd.f32 %v3910, %v3913
        %vm3915 = vweird.f32 %v3909
        %vm3916 = vweird.f32 %v3910
        %vm3917 = vmor %vm3915, %vm3916
        %v3918 = vsel %vm3917, %v3910, %v3914
        %v3919 = vand.u32 2147483647, %v3909
        %vm3920 = vcmp.eq.f32.partialorder %v3919, 8.507059e+37
        %v3921 = vand.u32 %v3909, 2147483648
        %v3922 = vor.u32 1.1754944e-38, %v3921
        %v3923 = vsel %vm3920, %v3922, %v3918
        %v3924 = vmul.f32 %v3899, %v3923
        %v3925 = vmin.f32 %v3924, 1.0
        %v3926 = vmax.f32 %v3925, -1.0
        %v3927 = vadd.f32 %v3806, 1.0
        %v3928 = vadd.f32 %v3846, 1.0
        %v3929 = vadd.f32 %v3886, 1.0
        %v3930 = vadd.f32 %v3926, 1.0
        %v3931 = vmul.f32 %v3759, %v3927
        %v3932 = vmul.f32 %v3760, %v3928
        %v3933 = vmul.f32 %v3761, %v3929
        %v3934 = vmul.f32 %v3762, %v3930
        %v3935 = vpack.c.bf16 %v3932, %v3931
        %v3936 = vpack.c.bf16 %v3934, %v3933
        %v3938 = vperm.slane %v2722, 0
        %v3948 = vunpack.c.l.b16 %v2714
        %v3949 = vunpack.c.l.b16 %v2715
        %v3950 = vunpack.c.l.b16 %v2716
        %v3951 = vunpack.c.l.b16 %v2717
        %v3952 = vunpack.c.l.b16 %v2718
        %v3953 = vunpack.c.l.b16 %v2719
        %v3954 = vunpack.c.l.b16 %v2720
        %v3955 = vunpack.c.l.b16 %v2721
        %v3956 = vpack.c.b16 %v3949, %v3948
        %v3957 = vpack.c.b16 %v3951, %v3950
        %v3958 = vpack.c.b16 %v3953, %v3952
        %v3959 = vpack.c.b16 %v3955, %v3954
        %vm3964 = vcmask 523264
        %v3966 = vsel %vm3964, %v3935, 0
        %v3969 = vsel %vm3964, %v3936, 0
        %3971 = vmatpush.bf16.msra.mxu0 0
        %3972 = vmatpush.bf16.msra.mxu0 0
        %3973 = vmatpush.bf16.msra.mxu0 0
        %3974 = vmatpush.bf16.msra.mxu0 0
        %3975 = vmatpush.bf16.msra.mxu0 %v3959
        %3976 = vmatpush.bf16.msra.mxu0 %v3958
        %3977 = vmatpush.bf16.msra.mxu0 %v3957
        %3978 = vmatpush.bf16.msra.mxu0 %v3956
        %3979 = vmatmul.bf16.gmra.mxu0 %v3966
        %v3980 = vpop.f32.mrf.mxu0
        %v3981 = vadd.f32 %v3938, %v3980
        %v3982 = vpop.f32.mrf.mxu0
        %v3983 = vadd.f32 %v3938, %v3982
        %3984 = vmatmul.bf16.gmra.mxu0 %v3969
        %v3985 = vpop.f32.mrf.mxu0
        %v3986 = vadd.f32 %v3938, %v3985
        %v3987 = vpop.f32.mrf.mxu0
        %v3988 = vadd.f32 %v3938, %v3987
        %3989 = vdwg.mxu0
        %v3990 = vadd.f32 %v3621, %v3981
        %v3991 = vadd.f32 %v3622, %v3983
        %v3992 = vadd.f32 %v3623, %v3986
        %v3993 = vadd.f32 %v3624, %v3988
        %v3994 = vld [vmem:[%s41] sm:$0xff]
        %v3995 = vld [vmem:[%s41 + $0x8] sm:$0xff]
        %v3996 = vld [vmem:[%s41 + $0x10] sm:$0xff]
        %v3997 = vld [vmem:[%s41 + $0x18] sm:$0xff]
        %v3998 = vld [vmem:[%s43] sm:$0xff]
        %v3999 = vld [vmem:[%s43 + $0x8] sm:$0xff]
        %v4000 = vld [vmem:[%s43 + $0x10] sm:$0xff]
        %v4001 = vld [vmem:[%s43 + $0x18] sm:$0xff]
        %v4002 = vld [vmem:[#allocation11] sm:$0x1]
        %v4003 = vunpack.c.l.bf16 %v4002
        %v4004 = vld [vmem:[#allocation13] sm:$0x1]
        %v4005 = vunpack.c.l.bf16 %v4004
        %v4006 = vld [vmem:[%s49] sm:$0xf]
        %v4007 = vld [vmem:[%s49 + $0x4] sm:$0xf]
        %v4008 = vld [vmem:[%s49 + $0x8] sm:$0xf]
        %v4009 = vld [vmem:[%s49 + $0xc] sm:$0xf]
        %v4010 = vld [vmem:[%s49 + $0x10] sm:$0xf]
        %v4011 = vld [vmem:[%s49 + $0x14] sm:$0xf]
        %v4012 = vld [vmem:[%s49 + $0x18] sm:$0xf]
        %v4013 = vld [vmem:[%s49 + $0x1c] sm:$0xf]
        %v4014 = vld [vmem:[%s49 + $0x20] sm:$0xf]
        %v4015 = vld [vmem:[%s49 + $0x24] sm:$0xf]
        %v4016 = vld [vmem:[%s49 + $0x28] sm:$0xf]
        %v4017 = vld [vmem:[%s49 + $0x2c] sm:$0xf]
        %v4018 = vld [vmem:[%s51] sm:$0x1]
        %v4019 = vld [vmem:[%s51 + $0x1] sm:$0x1]
        %v4020 = vld [vmem:[%s51 + $0x2] sm:$0x1]
        %v4021 = vld [vmem:[%s51 + $0x3] sm:$0x1]
        %v4022 = vld [vmem:[%s51 + $0x4] sm:$0x1]
        %v4023 = vld [vmem:[%s51 + $0x5] sm:$0x1]
        %v4024 = vld [vmem:[%s53] sm:$0xff]
        %v4025 = vld [vmem:[%s53 + $0x8] sm:$0xff]
        %v4026 = vld [vmem:[%s55] sm:$0xff]
        %v4027 = vld [vmem:[%s55 + $0x8] sm:$0xff]
        %v4028 = vld [vmem:[%s55 + $0x10] sm:$0xff]
        %v4029 = vld [vmem:[%s55 + $0x18] sm:$0xff]
        %v4030 = vld [vmem:[%s57] sm:$0xf]
        %v4031 = vld [vmem:[%s57 + $0x4] sm:$0xf]
        %v4032 = vld [vmem:[#allocation14] sm:$0x1]
        %v4033 = vld [vmem:[#allocation16] sm:$0x1]
        %v4034 = vunpack.c.l.bf16 %v4033
        %v4035 = vld [vmem:[#allocation17] sm:$0x1]
        %v4036 = vunpack.c.l.bf16 %v4035
        %v4037 = vld [vmem:[%s65] sm:$0xf]
        %v4038 = vld [vmem:[%s65 + $0x4] sm:$0xf]
        %v4039 = vld [vmem:[#allocation19] sm:$0x1]
        %v4040 = vld [vmem:[%s69] sm:$0xf]
        %v4041 = vld [vmem:[%s69 + $0x4] sm:$0xf]
        %v4042 = vld [vmem:[%s69 + $0x8] sm:$0xf]
        %v4043 = vld [vmem:[%s69 + $0xc] sm:$0xf]
        %v4044 = vld [vmem:[%s69 + $0x10] sm:$0xf]
        %v4045 = vld [vmem:[%s69 + $0x14] sm:$0xf]
        %v4046 = vld [vmem:[%s69 + $0x18] sm:$0xf]
        %v4047 = vld [vmem:[%s69 + $0x1c] sm:$0xf]
        %v4048 = vld [vmem:[#allocation20] sm:$0x1]
        %v4050 = vsel %vm2723, %v3994, 0
        %v4053 = vsel %vm2723, %v3995, 0
        %v4056 = vsel %vm2723, %v3996, 0
        %v4059 = vsel %vm2723, %v3997, 0
        %4061 = vmatpush.msra.mxu0 0.0
        %4062 = vmatpush.msra.mxu0 0.0
        %4063 = vmatpush.msra.mxu0 0.0
        %4064 = vmatpush.msra.mxu0 0.0
        %4065 = vmatpush.msra.mxu0 0.0
        %4066 = vmatpush.msra.mxu0 0.0
        %4067 = vmatpush.msra.mxu0 0.0
        %4068 = vmatpush.msra.mxu0 0.0
        %4069 = vmatpush.msra.mxu0 0.0
        %4070 = vmatpush.msra.mxu0 0.0
        %4071 = vmatpush.msra.mxu0 0.0
        %4072 = vmatpush.msra.mxu0 0.0
        %4073 = vmatpush.msra.mxu0 %v3993
        %4074 = vmatpush.msra.mxu0 %v3992
        %4075 = vmatpush.msra.mxu0 %v3991
        %4076 = vmatpush.msra.mxu0 %v3990
        %4077 = vmatmul.f32.gmra.mxu0 %v4050
        %v4078 = vpop.f32.mrf.mxu0
        %v4079 = vadd.f32 0.0, %v4078
        %4080 = vmatmul.f32.gmra.mxu0 %v4053
        %v4081 = vpop.f32.mrf.mxu0
        %v4082 = vadd.f32 0.0, %v4081
        %4083 = vmatmul.f32.gmra.mxu0 %v4056
        %v4084 = vpop.f32.mrf.mxu0
        %v4085 = vadd.f32 0.0, %v4084
        %4086 = vmatmul.f32.gmra.mxu0 %v4059
        %v4087 = vpop.f32.mrf.mxu0
        %v4088 = vadd.f32 0.0, %v4087
        %4089 = vdwg.mxu0
        %v4090 = vsel %vm2566, %v4079, 0.0
        %4091 = vadd.xlane.f32.xlu0 %v4090
        %v4092 = vpop.xlane.xlu0 %4091
        %v4093 = vsel %vm2566, %v4082, 0.0
        %4094 = vadd.xlane.f32.xlu0 %v4093
        %v4095 = vpop.xlane.xlu0 %4094
        %v4096 = vsel %vm2566, %v4085, 0.0
        %4097 = vadd.xlane.f32.xlu0 %v4096
        %v4098 = vpop.xlane.xlu0 %4097
        %v4099 = vsel %vm2566, %v4088, 0.0
        %4100 = vadd.xlane.f32.xlu0 %v4099
        %v4101 = vpop.xlane.xlu0 %4100
        %v4102 = vmul.f32 %v4092, %v2585
        %v4103 = vmul.f32 %v4095, %v2585
        %v4104 = vmul.f32 %v4098, %v2585
        %v4105 = vmul.f32 %v4101, %v2585
        %v4106 = vsub.f32 %v4079, %v4102
        %v4107 = vsub.f32 %v4082, %v4103
        %v4108 = vsub.f32 %v4085, %v4104
        %v4109 = vsub.f32 %v4088, %v4105
        %v4110 = vmul.f32 %v4106, %v4106
        %v4111 = vmul.f32 %v4107, %v4107
        %v4112 = vmul.f32 %v4108, %v4108
        %v4113 = vmul.f32 %v4109, %v4109
        %v4114 = vsel %vm2566, %v4110, 0.0
        %4115 = vadd.xlane.f32.xlu0 %v4114
        %v4116 = vpop.xlane.xlu0 %4115
        %v4117 = vsel %vm2566, %v4111, 0.0
        %4118 = vadd.xlane.f32.xlu0 %v4117
        %v4119 = vpop.xlane.xlu0 %4118
        %v4120 = vsel %vm2566, %v4112, 0.0
        %4121 = vadd.xlane.f32.xlu0 %v4120
        %v4122 = vpop.xlane.xlu0 %4121
        %v4123 = vsel %vm2566, %v4113, 0.0
        %4124 = vadd.xlane.f32.xlu0 %v4123
        %v4125 = vpop.xlane.xlu0 %4124
        %v4126 = vmul.f32 %v4116, %v2585
        %v4127 = vmul.f32 %v4119, %v2585
        %v4128 = vmul.f32 %v4122, %v2585
        %v4129 = vmul.f32 %v4125, %v2585
        %v4130 = vadd.f32 %v4126, 1e-05
        %v4131 = vadd.f32 %v4127, 1e-05
        %v4132 = vadd.f32 %v4128, 1e-05
        %v4133 = vadd.f32 %v4129, 1e-05
        %v4134 = vrsqrt.pop %v4130
        %v4135 = vmul.f32 %v4134, %v4130
        %v4136 = vmul.f32 %v4135, %v4134
        %v4137 = vmul.f32 0.5, %v4136
        %v4138 = vsub.f32 1.5, %v4137
        %v4139 = vmul.f32 %v4134, %v4138
        %vm4140 = vweird.f32 %v4130
        %vm4141 = vweird.f32 %v4134
        %vm4142 = vmor %vm4140, %vm4141
        %v4143 = vsel %vm4142, %v4134, %v4139
        %v4144 = vrsqrt.pop %v4131
        %v4145 = vmul.f32 %v4144, %v4131
        %v4146 = vmul.f32 %v4145, %v4144
        %v4147 = vmul.f32 0.5, %v4146
        %v4148 = vsub.f32 1.5, %v4147
        %v4149 = vmul.f32 %v4144, %v4148
        %vm4150 = vweird.f32 %v4131
        %vm4151 = vweird.f32 %v4144
        %vm4152 = vmor %vm4150, %vm4151
        %v4153 = vsel %vm4152, %v4144, %v4149
        %v4154 = vrsqrt.pop %v4132
        %v4155 = vmul.f32 %v4154, %v4132
        %v4156 = vmul.f32 %v4155, %v4154
        %v4157 = vmul.f32 0.5, %v4156
        %v4158 = vsub.f32 1.5, %v4157
        %v4159 = vmul.f32 %v4154, %v4158
        %vm4160 = vweird.f32 %v4132
        %vm4161 = vweird.f32 %v4154
        %vm4162 = vmor %vm4160, %vm4161
        %v4163 = vsel %vm4162, %v4154, %v4159
        %v4164 = vrsqrt.pop %v4133
        %v4165 = vmul.f32 %v4164, %v4133
        %v4166 = vmul.f32 %v4165, %v4164
        %v4167 = vmul.f32 0.5, %v4166
        %v4168 = vsub.f32 1.5, %v4167
        %v4169 = vmul.f32 %v4164, %v4168
        %vm4170 = vweird.f32 %v4133
        %vm4171 = vweird.f32 %v4164
        %vm4172 = vmor %vm4170, %vm4171
        %v4173 = vsel %vm4172, %v4164, %v4169
        %v4174 = vmul.f32 %v4106, %v4143
        %v4175 = vmul.f32 %v4107, %v4153
        %v4176 = vmul.f32 %v4108, %v4163
        %v4177 = vmul.f32 %v4109, %v4173
        %v4178 = vperm.slane %v4003, 0
        %v4179 = vmul.f32 %v4174, %v4178
        %v4180 = vmul.f32 %v4175, %v4178
        %v4181 = vmul.f32 %v4176, %v4178
        %v4182 = vmul.f32 %v4177, %v4178
        %v4183 = vperm.slane %v4005, 0
        %v4184 = vadd.f32 %v4179, %v4183
        %v4185 = vadd.f32 %v4180, %v4183
        %v4186 = vadd.f32 %v4181, %v4183
        %v4187 = vadd.f32 %v4182, %v4183
        %v4188 = vpack.c.bf16 %v4185, %v4184
        %v4189 = vpack.c.bf16 %v4187, %v4186
        %v4191 = vperm.slane %v4018, 0
        %v4195 = vunpack.c.l.b16 %v4006
        %v4196 = vunpack.c.l.b16 %v4007
        %v4197 = vpack.c.b16 %v4196, %v4195
        %v4200 = vsel %vm2566, %v4188, 0
        %v4203 = vsel %vm2566, %v4189, 0
        %4205 = vmatpush.bf16.msra.mxu0 0
        %4206 = vmatpush.bf16.msra.mxu0 0
        %4207 = vmatpush.bf16.msra.mxu0 0
        %4208 = vmatpush.bf16.msra.mxu0 0
        %4209 = vmatpush.bf16.msra.mxu0 0
        %4210 = vmatpush.bf16.msra.mxu0 0
        %4211 = vmatpush.bf16.msra.mxu0 0
        %4212 = vmatpush.bf16.msra.mxu0 %v4197
        %4213 = vmatmul.bf16.gmra.mxu0 %v4200
        %v4214 = vpop.f32.mrf.mxu0
        %v4215 = vadd.f32 %v4191, %v4214
        %v4216 = vpop.f32.mrf.mxu0
        %v4217 = vadd.f32 %v4191, %v4216
        %4218 = vmatmul.bf16.gmra.mxu0 %v4203
        %v4219 = vpop.f32.mrf.mxu0
        %v4220 = vadd.f32 %v4191, %v4219
        %v4221 = vpop.f32.mrf.mxu0
        %v4222 = vadd.f32 %v4191, %v4221
        %4223 = vdwg.mxu0
        %v4224 = vmul.f32 %v4215, 0.35355338
        %v4225 = vmul.f32 %v4217, 0.35355338
        %v4226 = vmul.f32 %v4220, 0.35355338
        %v4227 = vmul.f32 %v4222, 0.35355338
        %v4229 = vperm.slane %v4020, 0
        %v4233 = vunpack.c.l.b16 %v4010
        %v4234 = vunpack.c.l.b16 %v4011
        %v4235 = vpack.c.b16 %v4234, %v4233
        %4237 = vmatpush.bf16.msra.mxu0 0
        %4238 = vmatpush.bf16.msra.mxu0 0
        %4239 = vmatpush.bf16.msra.mxu0 0
        %4240 = vmatpush.bf16.msra.mxu0 0
        %4241 = vmatpush.bf16.msra.mxu0 0
        %4242 = vmatpush.bf16.msra.mxu0 0
        %4243 = vmatpush.bf16.msra.mxu0 0
        %4244 = vmatpush.bf16.msra.mxu0 %v4235
        %4245 = vmatmul.bf16.gmra.mxu0 %v4200
        %v4246 = vpop.f32.mrf.mxu0
        %v4247 = vadd.f32 %v4229, %v4246
        %v4248 = vpop.f32.mrf.mxu0
        %v4249 = vadd.f32 %v4229, %v4248
        %4250 = vmatmul.bf16.gmra.mxu0 %v4203
        %v4251 = vpop.f32.mrf.mxu0
        %v4252 = vadd.f32 %v4229, %v4251
        %v4253 = vpop.f32.mrf.mxu0
        %v4254 = vadd.f32 %v4229, %v4253
        %4255 = vdwg.mxu0
        %v4257 = vperm.slane %v4022, 0
        %v4261 = vunpack.c.l.b16 %v4014
        %v4262 = vunpack.c.l.b16 %v4015
        %v4263 = vpack.c.b16 %v4262, %v4261
        %4265 = vmatpush.bf16.msra.mxu0 0
        %4266 = vmatpush.bf16.msra.mxu0 0
        %4267 = vmatpush.bf16.msra.mxu0 0
        %4268 = vmatpush.bf16.msra.mxu0 0
        %4269 = vmatpush.bf16.msra.mxu0 0
        %4270 = vmatpush.bf16.msra.mxu0 0
        %4271 = vmatpush.bf16.msra.mxu0 0
        %4272 = vmatpush.bf16.msra.mxu0 %v4263
        %4273 = vmatmul.bf16.gmra.mxu0 %v4200
        %v4274 = vpop.f32.mrf.mxu0
        %v4275 = vadd.f32 %v4257, %v4274
        %v4276 = vpop.f32.mrf.mxu0
        %v4277 = vadd.f32 %v4257, %v4276
        %4278 = vmatmul.bf16.gmra.mxu0 %v4203
        %v4279 = vpop.f32.mrf.mxu0
        %v4280 = vadd.f32 %v4257, %v4279
        %v4281 = vpop.f32.mrf.mxu0
        %v4282 = vadd.f32 %v4257, %v4281
        %4283 = vdwg.mxu0
        %v4285 = vsel %vm2959, %v4224, 0
        %v4288 = vsel %vm2959, %v4247, 0
        %4290 = vmatpush.xpose.msra.mxu0 0.0
        %4291 = vmatpush.xpose.msra.mxu0 0.0
        %4292 = vmatpush.xpose.msra.mxu0 0.0
        %4293 = vmatpush.xpose.msra.mxu0 0.0
        %4294 = vmatpush.xpose.msra.mxu0 0.0
        %4295 = vmatpush.xpose.msra.mxu0 0.0
        %4296 = vmatpush.xpose.msra.mxu0 0.0
        %4297 = vmatpush.xpose.msra.mxu0 0.0
        %4298 = vmatpush.xpose.msra.mxu0 0.0
        %4299 = vmatpush.xpose.msra.mxu0 0.0
        %4300 = vmatpush.xpose.msra.mxu0 0.0
        %4301 = vmatpush.xpose.msra.mxu0 0.0
        %4302 = vmatpush.xpose.msra.mxu0 0.0
        %4303 = vmatpush.xpose.msra.mxu0 0.0
        %4304 = vmatpush.xpose.msra.mxu0 0.0
        %4305 = vmatpush.xpose.msra.mxu0 %v4288
        %4306 = vmatmul.f32.gmra.mxu0 %v4285
        %v4307 = vpop.f32.mrf.mxu0
        %v4308 = vadd.f32 %v4024, %v4307
        %4309 = vdwg.mxu0
        %v4311 = vsel %vm2959, %v4225, 0
        %v4314 = vsel %vm2959, %v4249, 0
        %4316 = vmatpush.xpose.msra.mxu0 0.0
        %4317 = vmatpush.xpose.msra.mxu0 0.0
        %4318 = vmatpush.xpose.msra.mxu0 0.0
        %4319 = vmatpush.xpose.msra.mxu0 0.0
        %4320 = vmatpush.xpose.msra.mxu0 0.0
        %4321 = vmatpush.xpose.msra.mxu0 0.0
        %4322 = vmatpush.xpose.msra.mxu0 0.0
        %4323 = vmatpush.xpose.msra.mxu0 0.0
        %4324 = vmatpush.xpose.msra.mxu0 0.0
        %4325 = vmatpush.xpose.msra.mxu0 0.0
        %4326 = vmatpush.xpose.msra.mxu0 0.0
        %4327 = vmatpush.xpose.msra.mxu0 0.0
        %4328 = vmatpush.xpose.msra.mxu0 0.0
        %4329 = vmatpush.xpose.msra.mxu0 0.0
        %4330 = vmatpush.xpose.msra.mxu0 0.0
        %4331 = vmatpush.xpose.msra.mxu0 %v4314
        %4332 = vmatmul.f32.gmra.mxu0 %v4311
        %v4333 = vpop.f32.mrf.mxu0
        %v4334 = vadd.f32 %v4024, %v4333
        %4335 = vdwg.mxu0
        %v4337 = vsel %vm2959, %v4226, 0
        %v4340 = vsel %vm2959, %v4252, 0
        %4342 = vmatpush.xpose.msra.mxu0 0.0
        %4343 = vmatpush.xpose.msra.mxu0 0.0
        %4344 = vmatpush.xpose.msra.mxu0 0.0
        %4345 = vmatpush.xpose.msra.mxu0 0.0
        %4346 = vmatpush.xpose.msra.mxu0 0.0
        %4347 = vmatpush.xpose.msra.mxu0 0.0
        %4348 = vmatpush.xpose.msra.mxu0 0.0
        %4349 = vmatpush.xpose.msra.mxu0 0.0
        %4350 = vmatpush.xpose.msra.mxu0 0.0
        %4351 = vmatpush.xpose.msra.mxu0 0.0
        %4352 = vmatpush.xpose.msra.mxu0 0.0
        %4353 = vmatpush.xpose.msra.mxu0 0.0
        %4354 = vmatpush.xpose.msra.mxu0 0.0
        %4355 = vmatpush.xpose.msra.mxu0 0.0
        %4356 = vmatpush.xpose.msra.mxu0 0.0
        %4357 = vmatpush.xpose.msra.mxu0 %v4340
        %4358 = vmatmul.f32.gmra.mxu0 %v4337
        %v4359 = vpop.f32.mrf.mxu0
        %v4360 = vadd.f32 %v4024, %v4359
        %4361 = vdwg.mxu0
        %v4363 = vsel %vm2959, %v4227, 0
        %v4366 = vsel %vm2959, %v4254, 0
        %4368 = vmatpush.xpose.msra.mxu0 0.0
        %4369 = vmatpush.xpose.msra.mxu0 0.0
        %4370 = vmatpush.xpose.msra.mxu0 0.0
        %4371 = vmatpush.xpose.msra.mxu0 0.0
        %4372 = vmatpush.xpose.msra.mxu0 0.0
        %4373 = vmatpush.xpose.msra.mxu0 0.0
        %4374 = vmatpush.xpose.msra.mxu0 0.0
        %4375 = vmatpush.xpose.msra.mxu0 0.0
        %4376 = vmatpush.xpose.msra.mxu0 0.0
        %4377 = vmatpush.xpose.msra.mxu0 0.0
        %4378 = vmatpush.xpose.msra.mxu0 0.0
        %4379 = vmatpush.xpose.msra.mxu0 0.0
        %4380 = vmatpush.xpose.msra.mxu0 0.0
        %4381 = vmatpush.xpose.msra.mxu0 0.0
        %4382 = vmatpush.xpose.msra.mxu0 0.0
        %4383 = vmatpush.xpose.msra.mxu0 %v4366
        %4384 = vmatmul.f32.gmra.mxu0 %v4363
        %v4385 = vpop.f32.mrf.mxu0
        %v4386 = vadd.f32 %v4024, %v4385
        %4387 = vdwg.mxu0
        %v4388 = vadd.f32 %v4308, %v4026
        %v4389 = vadd.f32 %v4334, %v4027
        %v4390 = vadd.f32 %v4360, %v4028
        %v4391 = vadd.f32 %v4386, %v4029
        %v4392 = vsel %vm2959, %v4388, -inf
        %4393 = vmax.xlane.f32.xlu0 %v4392
        %v4394 = vpop.xlane.xlu0 %4393
        %v4395 = vsel %vm2959, %v4389, -inf
        %4396 = vmax.xlane.f32.xlu0 %v4395
        %v4397 = vpop.xlane.xlu0 %4396
        %v4398 = vsel %vm2959, %v4390, -inf
        %4399 = vmax.xlane.f32.xlu0 %v4398
        %v4400 = vpop.xlane.xlu0 %4399
        %v4401 = vsel %vm2959, %v4391, -inf
        %4402 = vmax.xlane.f32.xlu0 %v4401
        %v4403 = vpop.xlane.xlu0 %4402
        %v4404 = vsub.f32 %v4388, %v4394
        %v4405 = vsub.f32 %v4389, %v4397
        %v4406 = vsub.f32 %v4390, %v4400
        %v4407 = vsub.f32 %v4391, %v4403
        %v4408 = vmul.f32 %v4404, 1.442695
        %v4409 = vpow.pop %v4408
        %v4410 = vmul.f32 %v4405, 1.442695
        %v4411 = vpow.pop %v4410
        %v4412 = vmul.f32 %v4406, 1.442695
        %v4413 = vpow.pop %v4412
        %v4414 = vmul.f32 %v4407, 1.442695
        %v4415 = vpow.pop %v4414
        %v4416 = vsel %vm2959, %v4409, 0.0
        %4417 = vadd.xlane.f32.xlu0 %v4416
        %v4418 = vpop.xlane.xlu0 %4417
        %v4419 = vsel %vm2959, %v4411, 0.0
        %4420 = vadd.xlane.f32.xlu0 %v4419
        %v4421 = vpop.xlane.xlu0 %4420
        %v4422 = vsel %vm2959, %v4413, 0.0
        %4423 = vadd.xlane.f32.xlu0 %v4422
        %v4424 = vpop.xlane.xlu0 %4423
        %v4425 = vsel %vm2959, %v4415, 0.0
        %4426 = vadd.xlane.f32.xlu0 %v4425
        %v4427 = vpop.xlane.xlu0 %4426
        %v4428 = vrcp.pop %v4418
        %v4429 = vrcp.pop %v4421
        %v4430 = vrcp.pop %v4424
        %v4431 = vrcp.pop %v4427
        %v4432 = vmul.f32 %v4409, %v4428
        %v4433 = vmul.f32 %v4411, %v4429
        %v4434 = vmul.f32 %v4413, %v4430
        %v4435 = vmul.f32 %v4415, %v4431
        %v4436 = vpack.c.bf16 %v4432, %v4432
        %v4437 = vpack.c.bf16 %v4433, %v4433
        %v4438 = vpack.c.bf16 %v4434, %v4434
        %v4439 = vpack.c.bf16 %v4435, %v4435
        %v4440 = vpack.c.bf16 %v4275, %v4275
        %v4441 = vpack.c.bf16 %v4277, %v4277
        %v4442 = vpack.c.bf16 %v4280, %v4280
        %v4443 = vpack.c.bf16 %v4282, %v4282
        %v4445 = vsel %vm2959, %v4436, 0
        %v4448 = vsel %vm3119, %v4440, 0
        %4450 = vmatpush.bf16.msra.mxu0 0
        %4451 = vmatpush.bf16.msra.mxu0 0
        %4452 = vmatpush.bf16.msra.mxu0 0
        %4453 = vmatpush.bf16.msra.mxu0 0
        %4454 = vmatpush.bf16.msra.mxu0 0
        %4455 = vmatpush.bf16.msra.mxu0 0
        %4456 = vmatpush.bf16.msra.mxu0 0
        %4457 = vmatpush.bf16.msra.mxu0 %v4448
        %4458 = vmatmul.bf16.gmra.mxu0 %v4445
        %v4459 = vpop.f32.mrf.mxu0
        %v4460 = vadd.f32 0.0, %v4459
        %v4461 = vpop.f32.mrf.mxu0
        %4462 = vdwg.mxu0
        %v4464 = vsel %vm2959, %v4437, 0
        %v4467 = vsel %vm3119, %v4441, 0
        %4469 = vmatpush.bf16.msra.mxu0 0
        %4470 = vmatpush.bf16.msra.mxu0 0
        %4471 = vmatpush.bf16.msra.mxu0 0
        %4472 = vmatpush.bf16.msra.mxu0 0
        %4473 = vmatpush.bf16.msra.mxu0 0
        %4474 = vmatpush.bf16.msra.mxu0 0
        %4475 = vmatpush.bf16.msra.mxu0 0
        %4476 = vmatpush.bf16.msra.mxu0 %v4467
        %4477 = vmatmul.bf16.gmra.mxu0 %v4464
        %v4478 = vpop.f32.mrf.mxu0
        %v4479 = vadd.f32 0.0, %v4478
        %v4480 = vpop.f32.mrf.mxu0
        %4481 = vdwg.mxu0
        %v4483 = vsel %vm2959, %v4438, 0
        %v4486 = vsel %vm3119, %v4442, 0
        %4488 = vmatpush.bf16.msra.mxu0 0
        %4489 = vmatpush.bf16.msra.mxu0 0
        %4490 = vmatpush.bf16.msra.mxu0 0
        %4491 = vmatpush.bf16.msra.mxu0 0
        %4492 = vmatpush.bf16.msra.mxu0 0
        %4493 = vmatpush.bf16.msra.mxu0 0
        %4494 = vmatpush.bf16.msra.mxu0 0
        %4495 = vmatpush.bf16.msra.mxu0 %v4486
        %4496 = vmatmul.bf16.gmra.mxu0 %v4483
        %v4497 = vpop.f32.mrf.mxu0
        %v4498 = vadd.f32 0.0, %v4497
        %v4499 = vpop.f32.mrf.mxu0
        %4500 = vdwg.mxu0
        %v4502 = vsel %vm2959, %v4439, 0
        %v4505 = vsel %vm3119, %v4443, 0
        %4507 = vmatpush.bf16.msra.mxu0 0
        %4508 = vmatpush.bf16.msra.mxu0 0
        %4509 = vmatpush.bf16.msra.mxu0 0
        %4510 = vmatpush.bf16.msra.mxu0 0
        %4511 = vmatpush.bf16.msra.mxu0 0
        %4512 = vmatpush.bf16.msra.mxu0 0
        %4513 = vmatpush.bf16.msra.mxu0 0
        %4514 = vmatpush.bf16.msra.mxu0 %v4505
        %4515 = vmatmul.bf16.gmra.mxu0 %v4502
        %v4516 = vpop.f32.mrf.mxu0
        %v4517 = vadd.f32 0.0, %v4516
        %v4518 = vpop.f32.mrf.mxu0
        %4519 = vdwg.mxu0
        %v4520 = vpack.c.bf16 %v4479, %v4460
        %v4521 = vpack.c.bf16 %v4517, %v4498
        %v4523 = vperm.slane %v4019, 0
        %v4527 = vunpack.c.l.b16 %v4008
        %v4528 = vunpack.c.l.b16 %v4009
        %v4529 = vpack.c.b16 %v4528, %v4527
        %4531 = vmatpush.bf16.msra.mxu0 0
        %4532 = vmatpush.bf16.msra.mxu0 0
        %4533 = vmatpush.bf16.msra.mxu0 0
        %4534 = vmatpush.bf16.msra.mxu0 0
        %4535 = vmatpush.bf16.msra.mxu0 0
        %4536 = vmatpush.bf16.msra.mxu0 0
        %4537 = vmatpush.bf16.msra.mxu0 0
        %4538 = vmatpush.bf16.msra.mxu0 %v4529
        %4539 = vmatmul.bf16.gmra.mxu0 %v4200
        %v4540 = vpop.f32.mrf.mxu0
        %v4541 = vadd.f32 %v4523, %v4540
        %v4542 = vpop.f32.mrf.mxu0
        %v4543 = vadd.f32 %v4523, %v4542
        %4544 = vmatmul.bf16.gmra.mxu0 %v4203
        %v4545 = vpop.f32.mrf.mxu0
        %v4546 = vadd.f32 %v4523, %v4545
        %v4547 = vpop.f32.mrf.mxu0
        %v4548 = vadd.f32 %v4523, %v4547
        %4549 = vdwg.mxu0
        %v4550 = vmul.f32 %v4541, 0.35355338
        %v4551 = vmul.f32 %v4543, 0.35355338
        %v4552 = vmul.f32 %v4546, 0.35355338
        %v4553 = vmul.f32 %v4548, 0.35355338
        %v4555 = vperm.slane %v4021, 0
        %v4559 = vunpack.c.l.b16 %v4012
        %v4560 = vunpack.c.l.b16 %v4013
        %v4561 = vpack.c.b16 %v4560, %v4559
        %4563 = vmatpush.bf16.msra.mxu0 0
        %4564 = vmatpush.bf16.msra.mxu0 0
        %4565 = vmatpush.bf16.msra.mxu0 0
        %4566 = vmatpush.bf16.msra.mxu0 0
        %4567 = vmatpush.bf16.msra.mxu0 0
        %4568 = vmatpush.bf16.msra.mxu0 0
        %4569 = vmatpush.bf16.msra.mxu0 0
        %4570 = vmatpush.bf16.msra.mxu0 %v4561
        %4571 = vmatmul.bf16.gmra.mxu0 %v4200
        %v4572 = vpop.f32.mrf.mxu0
        %v4573 = vadd.f32 %v4555, %v4572
        %v4574 = vpop.f32.mrf.mxu0
        %v4575 = vadd.f32 %v4555, %v4574
        %4576 = vmatmul.bf16.gmra.mxu0 %v4203
        %v4577 = vpop.f32.mrf.mxu0
        %v4578 = vadd.f32 %v4555, %v4577
        %v4579 = vpop.f32.mrf.mxu0
        %v4580 = vadd.f32 %v4555, %v4579
        %4581 = vdwg.mxu0
        %v4583 = vperm.slane %v4023, 0
        %v4587 = vunpack.c.l.b16 %v4016
        %v4588 = vunpack.c.l.b16 %v4017
        %v4589 = vpack.c.b16 %v4588, %v4587
        %4591 = vmatpush.bf16.msra.mxu0 0
        %4592 = vmatpush.bf16.msra.mxu0 0
        %4593 = vmatpush.bf16.msra.mxu0 0
        %4594 = vmatpush.bf16.msra.mxu0 0
        %4595 = vmatpush.bf16.msra.mxu0 0
        %4596 = vmatpush.bf16.msra.mxu0 0
        %4597 = vmatpush.bf16.msra.mxu0 0
        %4598 = vmatpush.bf16.msra.mxu0 %v4589
        %4599 = vmatmul.bf16.gmra.mxu0 %v4200
        %v4600 = vpop.f32.mrf.mxu0
        %v4601 = vadd.f32 %v4583, %v4600
        %v4602 = vpop.f32.mrf.mxu0
        %v4603 = vadd.f32 %v4583, %v4602
        %4604 = vmatmul.bf16.gmra.mxu0 %v4203
        %v4605 = vpop.f32.mrf.mxu0
        %v4606 = vadd.f32 %v4583, %v4605
        %v4607 = vpop.f32.mrf.mxu0
        %v4608 = vadd.f32 %v4583, %v4607
        %4609 = vdwg.mxu0
        %v4611 = vsel %vm2959, %v4550, 0
        %v4614 = vsel %vm2959, %v4573, 0
        %4616 = vmatpush.xpose.msra.mxu0 0.0
        %4617 = vmatpush.xpose.msra.mxu0 0.0
        %4618 = vmatpush.xpose.msra.mxu0 0.0
        %4619 = vmatpush.xpose.msra.mxu0 0.0
        %4620 = vmatpush.xpose.msra.mxu0 0.0
        %4621 = vmatpush.xpose.msra.mxu0 0.0
        %4622 = vmatpush.xpose.msra.mxu0 0.0
        %4623 = vmatpush.xpose.msra.mxu0 0.0
        %4624 = vmatpush.xpose.msra.mxu0 0.0
        %4625 = vmatpush.xpose.msra.mxu0 0.0
        %4626 = vmatpush.xpose.msra.mxu0 0.0
        %4627 = vmatpush.xpose.msra.mxu0 0.0
        %4628 = vmatpush.xpose.msra.mxu0 0.0
        %4629 = vmatpush.xpose.msra.mxu0 0.0
        %4630 = vmatpush.xpose.msra.mxu0 0.0
        %4631 = vmatpush.xpose.msra.mxu0 %v4614
        %4632 = vmatmul.f32.gmra.mxu0 %v4611
        %v4633 = vpop.f32.mrf.mxu0
        %v4634 = vadd.f32 %v4025, %v4633
        %4635 = vdwg.mxu0
        %v4637 = vsel %vm2959, %v4551, 0
        %v4640 = vsel %vm2959, %v4575, 0
        %4642 = vmatpush.xpose.msra.mxu0 0.0
        %4643 = vmatpush.xpose.msra.mxu0 0.0
        %4644 = vmatpush.xpose.msra.mxu0 0.0
        %4645 = vmatpush.xpose.msra.mxu0 0.0
        %4646 = vmatpush.xpose.msra.mxu0 0.0
        %4647 = vmatpush.xpose.msra.mxu0 0.0
        %4648 = vmatpush.xpose.msra.mxu0 0.0
        %4649 = vmatpush.xpose.msra.mxu0 0.0
        %4650 = vmatpush.xpose.msra.mxu0 0.0
        %4651 = vmatpush.xpose.msra.mxu0 0.0
        %4652 = vmatpush.xpose.msra.mxu0 0.0
        %4653 = vmatpush.xpose.msra.mxu0 0.0
        %4654 = vmatpush.xpose.msra.mxu0 0.0
        %4655 = vmatpush.xpose.msra.mxu0 0.0
        %4656 = vmatpush.xpose.msra.mxu0 0.0
        %4657 = vmatpush.xpose.msra.mxu0 %v4640
        %4658 = vmatmul.f32.gmra.mxu0 %v4637
        %v4659 = vpop.f32.mrf.mxu0
        %v4660 = vadd.f32 %v4025, %v4659
        %4661 = vdwg.mxu0
        %v4663 = vsel %vm2959, %v4552, 0
        %v4666 = vsel %vm2959, %v4578, 0
        %4668 = vmatpush.xpose.msra.mxu0 0.0
        %4669 = vmatpush.xpose.msra.mxu0 0.0
        %4670 = vmatpush.xpose.msra.mxu0 0.0
        %4671 = vmatpush.xpose.msra.mxu0 0.0
        %4672 = vmatpush.xpose.msra.mxu0 0.0
        %4673 = vmatpush.xpose.msra.mxu0 0.0
        %4674 = vmatpush.xpose.msra.mxu0 0.0
        %4675 = vmatpush.xpose.msra.mxu0 0.0
        %4676 = vmatpush.xpose.msra.mxu0 0.0
        %4677 = vmatpush.xpose.msra.mxu0 0.0
        %4678 = vmatpush.xpose.msra.mxu0 0.0
        %4679 = vmatpush.xpose.msra.mxu0 0.0
        %4680 = vmatpush.xpose.msra.mxu0 0.0
        %4681 = vmatpush.xpose.msra.mxu0 0.0
        %4682 = vmatpush.xpose.msra.mxu0 0.0
        %4683 = vmatpush.xpose.msra.mxu0 %v4666
        %4684 = vmatmul.f32.gmra.mxu0 %v4663
        %v4685 = vpop.f32.mrf.mxu0
        %v4686 = vadd.f32 %v4025, %v4685
        %4687 = vdwg.mxu0
        %v4689 = vsel %vm2959, %v4553, 0
        %v4692 = vsel %vm2959, %v4580, 0
        %4694 = vmatpush.xpose.msra.mxu0 0.0
        %4695 = vmatpush.xpose.msra.mxu0 0.0
        %4696 = vmatpush.xpose.msra.mxu0 0.0
        %4697 = vmatpush.xpose.msra.mxu0 0.0
        %4698 = vmatpush.xpose.msra.mxu0 0.0
        %4699 = vmatpush.xpose.msra.mxu0 0.0
        %4700 = vmatpush.xpose.msra.mxu0 0.0
        %4701 = vmatpush.xpose.msra.mxu0 0.0
        %4702 = vmatpush.xpose.msra.mxu0 0.0
        %4703 = vmatpush.xpose.msra.mxu0 0.0
        %4704 = vmatpush.xpose.msra.mxu0 0.0
        %4705 = vmatpush.xpose.msra.mxu0 0.0
        %4706 = vmatpush.xpose.msra.mxu0 0.0
        %4707 = vmatpush.xpose.msra.mxu0 0.0
        %4708 = vmatpush.xpose.msra.mxu0 0.0
        %4709 = vmatpush.xpose.msra.mxu0 %v4692
        %4710 = vmatmul.f32.gmra.mxu0 %v4689
        %v4711 = vpop.f32.mrf.mxu0
        %v4712 = vadd.f32 %v4025, %v4711
        %4713 = vdwg.mxu0
        %v4714 = vadd.f32 %v4634, %v4026
        %v4715 = vadd.f32 %v4660, %v4027
        %v4716 = vadd.f32 %v4686, %v4028
        %v4717 = vadd.f32 %v4712, %v4029
        %v4718 = vsel %vm2959, %v4714, -inf
        %4719 = vmax.xlane.f32.xlu0 %v4718
        %v4720 = vpop.xlane.xlu0 %4719
        %v4721 = vsel %vm2959, %v4715, -inf
        %4722 = vmax.xlane.f32.xlu0 %v4721
        %v4723 = vpop.xlane.xlu0 %4722
        %v4724 = vsel %vm2959, %v4716, -inf
        %4725 = vmax.xlane.f32.xlu0 %v4724
        %v4726 = vpop.xlane.xlu0 %4725
        %v4727 = vsel %vm2959, %v4717, -inf
        %4728 = vmax.xlane.f32.xlu0 %v4727
        %v4729 = vpop.xlane.xlu0 %4728
        %v4730 = vsub.f32 %v4714, %v4720
        %v4731 = vsub.f32 %v4715, %v4723
        %v4732 = vsub.f32 %v4716, %v4726
        %v4733 = vsub.f32 %v4717, %v4729
        %v4734 = vmul.f32 %v4730, 1.442695
        %v4735 = vpow.pop %v4734
        %v4736 = vmul.f32 %v4731, 1.442695
        %v4737 = vpow.pop %v4736
        %v4738 = vmul.f32 %v4732, 1.442695
        %v4739 = vpow.pop %v4738
        %v4740 = vmul.f32 %v4733, 1.442695
        %v4741 = vpow.pop %v4740
        %v4742 = vsel %vm2959, %v4735, 0.0
        %4743 = vadd.xlane.f32.xlu0 %v4742
        %v4744 = vpop.xlane.xlu0 %4743
        %v4745 = vsel %vm2959, %v4737, 0.0
        %4746 = vadd.xlane.f32.xlu0 %v4745
        %v4747 = vpop.xlane.xlu0 %4746
        %v4748 = vsel %vm2959, %v4739, 0.0
        %4749 = vadd.xlane.f32.xlu0 %v4748
        %v4750 = vpop.xlane.xlu0 %4749
        %v4751 = vsel %vm2959, %v4741, 0.0
        %4752 = vadd.xlane.f32.xlu0 %v4751
        %v4753 = vpop.xlane.xlu0 %4752
        %v4754 = vrcp.pop %v4744
        %v4755 = vrcp.pop %v4747
        %v4756 = vrcp.pop %v4750
        %v4757 = vrcp.pop %v4753
        %v4758 = vmul.f32 %v4735, %v4754
        %v4759 = vmul.f32 %v4737, %v4755
        %v4760 = vmul.f32 %v4739, %v4756
        %v4761 = vmul.f32 %v4741, %v4757
        %v4762 = vpack.c.bf16 %v4758, %v4758
        %v4763 = vpack.c.bf16 %v4759, %v4759
        %v4764 = vpack.c.bf16 %v4760, %v4760
        %v4765 = vpack.c.bf16 %v4761, %v4761
        %v4766 = vpack.c.bf16 %v4601, %v4601
        %v4767 = vpack.c.bf16 %v4603, %v4603
        %v4768 = vpack.c.bf16 %v4606, %v4606
        %v4769 = vpack.c.bf16 %v4608, %v4608
        %v4771 = vsel %vm2959, %v4762, 0
        %v4774 = vsel %vm3119, %v4766, 0
        %4776 = vmatpush.bf16.msra.mxu0 0
        %4777 = vmatpush.bf16.msra.mxu0 0
        %4778 = vmatpush.bf16.msra.mxu0 0
        %4779 = vmatpush.bf16.msra.mxu0 0
        %4780 = vmatpush.bf16.msra.mxu0 0
        %4781 = vmatpush.bf16.msra.mxu0 0
        %4782 = vmatpush.bf16.msra.mxu0 0
        %4783 = vmatpush.bf16.msra.mxu0 %v4774
        %4784 = vmatmul.bf16.gmra.mxu0 %v4771
        %v4785 = vpop.f32.mrf.mxu0
        %v4786 = vadd.f32 0.0, %v4785
        %v4787 = vpop.f32.mrf.mxu0
        %4788 = vdwg.mxu0
        %v4790 = vsel %vm2959, %v4763, 0
        %v4793 = vsel %vm3119, %v4767, 0
        %4795 = vmatpush.bf16.msra.mxu0 0
        %4796 = vmatpush.bf16.msra.mxu0 0
        %4797 = vmatpush.bf16.msra.mxu0 0
        %4798 = vmatpush.bf16.msra.mxu0 0
        %4799 = vmatpush.bf16.msra.mxu0 0
        %4800 = vmatpush.bf16.msra.mxu0 0
        %4801 = vmatpush.bf16.msra.mxu0 0
        %4802 = vmatpush.bf16.msra.mxu0 %v4793
        %4803 = vmatmul.bf16.gmra.mxu0 %v4790
        %v4804 = vpop.f32.mrf.mxu0
        %v4805 = vadd.f32 0.0, %v4804
        %v4806 = vpop.f32.mrf.mxu0
        %4807 = vdwg.mxu0
        %v4809 = vsel %vm2959, %v4764, 0
        %v4812 = vsel %vm3119, %v4768, 0
        %4814 = vmatpush.bf16.msra.mxu0 0
        %4815 = vmatpush.bf16.msra.mxu0 0
        %4816 = vmatpush.bf16.msra.mxu0 0
        %4817 = vmatpush.bf16.msra.mxu0 0
        %4818 = vmatpush.bf16.msra.mxu0 0
        %4819 = vmatpush.bf16.msra.mxu0 0
        %4820 = vmatpush.bf16.msra.mxu0 0
        %4821 = vmatpush.bf16.msra.mxu0 %v4812
        %4822 = vmatmul.bf16.gmra.mxu0 %v4809
        %v4823 = vpop.f32.mrf.mxu0
        %v4824 = vadd.f32 0.0, %v4823
        %v4825 = vpop.f32.mrf.mxu0
        %4826 = vdwg.mxu0
        %v4828 = vsel %vm2959, %v4765, 0
        %v4831 = vsel %vm3119, %v4769, 0
        %4833 = vmatpush.bf16.msra.mxu0 0
        %4834 = vmatpush.bf16.msra.mxu0 0
        %4835 = vmatpush.bf16.msra.mxu0 0
        %4836 = vmatpush.bf16.msra.mxu0 0
        %4837 = vmatpush.bf16.msra.mxu0 0
        %4838 = vmatpush.bf16.msra.mxu0 0
        %4839 = vmatpush.bf16.msra.mxu0 0
        %4840 = vmatpush.bf16.msra.mxu0 %v4831
        %4841 = vmatmul.bf16.gmra.mxu0 %v4828
        %v4842 = vpop.f32.mrf.mxu0
        %v4843 = vadd.f32 0.0, %v4842
        %v4844 = vpop.f32.mrf.mxu0
        %4845 = vdwg.mxu0
        %v4846 = vpack.c.bf16 %v4805, %v4786
        %v4847 = vpack.c.bf16 %v4843, %v4824
        %v4849 = vsel %vm2959, %v4846, 0
        %v4852 = vsel %vm2959, %v4847, 0
        %v4855 = vsel %vm3119, %v4031, 0
        %4857 = vmatpush.bf16.msra.mxu0 0
        %4858 = vmatpush.bf16.msra.mxu0 0
        %4859 = vmatpush.bf16.msra.mxu0 0
        %4860 = vmatpush.bf16.msra.mxu0 0
        %4861 = vmatpush.bf16.msra.mxu0 0
        %4862 = vmatpush.bf16.msra.mxu0 0
        %4863 = vmatpush.bf16.msra.mxu0 0
        %4864 = vmatpush.bf16.msra.mxu0 %v4855
        %4865 = vmatmul.bf16.gmra.mxu0 %v4849
        %v4866 = vpop.f32.mrf.mxu0
        %v4867 = vadd.f32 0.0, %v4866
        %v4868 = vpop.f32.mrf.mxu0
        %v4869 = vadd.f32 0.0, %v4868
        %4870 = vmatmul.bf16.gmra.mxu0 %v4852
        %v4871 = vpop.f32.mrf.mxu0
        %v4872 = vadd.f32 0.0, %v4871
        %v4873 = vpop.f32.mrf.mxu0
        %v4874 = vadd.f32 0.0, %v4873
        %4875 = vdwg.mxu0
        %v4877 = vsel %vm2959, %v4520, 0
        %v4880 = vsel %vm2959, %v4521, 0
        %v4883 = vsel %vm3119, %v4030, 0
        %4885 = vmatpush.bf16.msra.mxu0 0
        %4886 = vmatpush.bf16.msra.mxu0 0
        %4887 = vmatpush.bf16.msra.mxu0 0
        %4888 = vmatpush.bf16.msra.mxu0 0
        %4889 = vmatpush.bf16.msra.mxu0 0
        %4890 = vmatpush.bf16.msra.mxu0 0
        %4891 = vmatpush.bf16.msra.mxu0 0
        %4892 = vmatpush.bf16.msra.mxu0 %v4883
        %4893 = vmatmul.bf16.gmra.mxu0 %v4877
        %v4894 = vpop.f32.mrf.mxu0
        %v4895 = vadd.f32 %v4867, %v4894
        %v4896 = vpop.f32.mrf.mxu0
        %v4897 = vadd.f32 %v4869, %v4896
        %4898 = vmatmul.bf16.gmra.mxu0 %v4880
        %v4899 = vpop.f32.mrf.mxu0
        %v4900 = vadd.f32 %v4872, %v4899
        %v4901 = vpop.f32.mrf.mxu0
        %v4902 = vadd.f32 %v4874, %v4901
        %4903 = vdwg.mxu0
        %v4905 = vperm.slane %v4032, 0
        %v4907 = vadd.f32 %v4895, %v4905
        %v4908 = vadd.f32 %v4897, %v4905
        %v4909 = vadd.f32 %v4900, %v4905
        %v4910 = vadd.f32 %v4902, %v4905
        %v4912 = vsel %vm2723, %v3998, 0
        %v4915 = vsel %vm2723, %v3999, 0
        %v4918 = vsel %vm2723, %v4000, 0
        %v4921 = vsel %vm2723, %v4001, 0
        %4923 = vmatpush.msra.mxu0 0.0
        %4924 = vmatpush.msra.mxu0 0.0
        %4925 = vmatpush.msra.mxu0 0.0
        %4926 = vmatpush.msra.mxu0 0.0
        %4927 = vmatpush.msra.mxu0 0.0
        %4928 = vmatpush.msra.mxu0 0.0
        %4929 = vmatpush.msra.mxu0 0.0
        %4930 = vmatpush.msra.mxu0 0.0
        %4931 = vmatpush.msra.mxu0 0.0
        %4932 = vmatpush.msra.mxu0 0.0
        %4933 = vmatpush.msra.mxu0 0.0
        %4934 = vmatpush.msra.mxu0 0.0
        %4935 = vmatpush.msra.mxu0 %v4910
        %4936 = vmatpush.msra.mxu0 %v4909
        %4937 = vmatpush.msra.mxu0 %v4908
        %4938 = vmatpush.msra.mxu0 %v4907
        %4939 = vmatmul.f32.gmra.mxu0 %v4912
        %v4940 = vpop.f32.mrf.mxu0
        %v4941 = vadd.f32 0.0, %v4940
        %4942 = vmatmul.f32.gmra.mxu0 %v4915
        %v4943 = vpop.f32.mrf.mxu0
        %v4944 = vadd.f32 0.0, %v4943
        %4945 = vmatmul.f32.gmra.mxu0 %v4918
        %v4946 = vpop.f32.mrf.mxu0
        %v4947 = vadd.f32 0.0, %v4946
        %4948 = vmatmul.f32.gmra.mxu0 %v4921
        %v4949 = vpop.f32.mrf.mxu0
        %v4950 = vadd.f32 0.0, %v4949
        %4951 = vdwg.mxu0
        %v4952 = vadd.f32 %v3990, %v4941
        %v4953 = vadd.f32 %v3991, %v4944
        %v4954 = vadd.f32 %v3992, %v4947
        %v4955 = vadd.f32 %v3993, %v4950
        %v4956 = vsel %vm2566, %v4952, 0.0
        %4957 = vadd.xlane.f32.xlu0 %v4956
        %v4958 = vpop.xlane.xlu0 %4957
        %v4959 = vsel %vm2566, %v4953, 0.0
        %4960 = vadd.xlane.f32.xlu0 %v4959
        %v4961 = vpop.xlane.xlu0 %4960
        %v4962 = vsel %vm2566, %v4954, 0.0
        %4963 = vadd.xlane.f32.xlu0 %v4962
        %v4964 = vpop.xlane.xlu0 %4963
        %v4965 = vsel %vm2566, %v4955, 0.0
        %4966 = vadd.xlane.f32.xlu0 %v4965
        %v4967 = vpop.xlane.xlu0 %4966
        %v4968 = vmul.f32 %v4958, %v2585
        %v4969 = vmul.f32 %v4961, %v2585
        %v4970 = vmul.f32 %v4964, %v2585
        %v4971 = vmul.f32 %v4967, %v2585
        %v4972 = vsub.f32 %v4952, %v4968
        %v4973 = vsub.f32 %v4953, %v4969
        %v4974 = vsub.f32 %v4954, %v4970
        %v4975 = vsub.f32 %v4955, %v4971
        %v4976 = vmul.f32 %v4972, %v4972
        %v4977 = vmul.f32 %v4973, %v4973
        %v4978 = vmul.f32 %v4974, %v4974
        %v4979 = vmul.f32 %v4975, %v4975
        %v4980 = vsel %vm2566, %v4976, 0.0
        %4981 = vadd.xlane.f32.xlu0 %v4980
        %v4982 = vpop.xlane.xlu0 %4981
        %v4983 = vsel %vm2566, %v4977, 0.0
        %4984 = vadd.xlane.f32.xlu0 %v4983
        %v4985 = vpop.xlane.xlu0 %4984
        %v4986 = vsel %vm2566, %v4978, 0.0
        %4987 = vadd.xlane.f32.xlu0 %v4986
        %v4988 = vpop.xlane.xlu0 %4987
        %v4989 = vsel %vm2566, %v4979, 0.0
        %4990 = vadd.xlane.f32.xlu0 %v4989
        %v4991 = vpop.xlane.xlu0 %4990
        %v4992 = vmul.f32 %v4982, %v2585
        %v4993 = vmul.f32 %v4985, %v2585
        %v4994 = vmul.f32 %v4988, %v2585
        %v4995 = vmul.f32 %v4991, %v2585
        %v4996 = vadd.f32 %v4992, 1e-05
        %v4997 = vadd.f32 %v4993, 1e-05
        %v4998 = vadd.f32 %v4994, 1e-05
        %v4999 = vadd.f32 %v4995, 1e-05
        %v5000 = vrsqrt.pop %v4996
        %v5001 = vmul.f32 %v5000, %v4996
        %v5002 = vmul.f32 %v5001, %v5000
        %v5003 = vmul.f32 0.5, %v5002
        %v5004 = vsub.f32 1.5, %v5003
        %v5005 = vmul.f32 %v5000, %v5004
        %vm5006 = vweird.f32 %v4996
        %vm5007 = vweird.f32 %v5000
        %vm5008 = vmor %vm5006, %vm5007
        %v5009 = vsel %vm5008, %v5000, %v5005
        %v5010 = vrsqrt.pop %v4997
        %v5011 = vmul.f32 %v5010, %v4997
        %v5012 = vmul.f32 %v5011, %v5010
        %v5013 = vmul.f32 0.5, %v5012
        %v5014 = vsub.f32 1.5, %v5013
        %v5015 = vmul.f32 %v5010, %v5014
        %vm5016 = vweird.f32 %v4997
        %vm5017 = vweird.f32 %v5010
        %vm5018 = vmor %vm5016, %vm5017
        %v5019 = vsel %vm5018, %v5010, %v5015
        %v5020 = vrsqrt.pop %v4998
        %v5021 = vmul.f32 %v5020, %v4998
        %v5022 = vmul.f32 %v5021, %v5020
        %v5023 = vmul.f32 0.5, %v5022
        %v5024 = vsub.f32 1.5, %v5023
        %v5025 = vmul.f32 %v5020, %v5024
        %vm5026 = vweird.f32 %v4998
        %vm5027 = vweird.f32 %v5020
        %vm5028 = vmor %vm5026, %vm5027
        %v5029 = vsel %vm5028, %v5020, %v5025
        %v5030 = vrsqrt.pop %v4999
        %v5031 = vmul.f32 %v5030, %v4999
        %v5032 = vmul.f32 %v5031, %v5030
        %v5033 = vmul.f32 0.5, %v5032
        %v5034 = vsub.f32 1.5, %v5033
        %v5035 = vmul.f32 %v5030, %v5034
        %vm5036 = vweird.f32 %v4999
        %vm5037 = vweird.f32 %v5030
        %vm5038 = vmor %vm5036, %vm5037
        %v5039 = vsel %vm5038, %v5030, %v5035
        %v5040 = vmul.f32 %v4972, %v5009
        %v5041 = vmul.f32 %v4973, %v5019
        %v5042 = vmul.f32 %v4974, %v5029
        %v5043 = vmul.f32 %v4975, %v5039
        %v5044 = vperm.slane %v4034, 0
        %v5045 = vmul.f32 %v5040, %v5044
        %v5046 = vmul.f32 %v5041, %v5044
        %v5047 = vmul.f32 %v5042, %v5044
        %v5048 = vmul.f32 %v5043, %v5044
        %v5049 = vperm.slane %v4036, 0
        %v5050 = vadd.f32 %v5045, %v5049
        %v5051 = vadd.f32 %v5046, %v5049
        %v5052 = vadd.f32 %v5047, %v5049
        %v5053 = vadd.f32 %v5048, %v5049
        %v5054 = vpack.c.bf16 %v5051, %v5050
        %v5055 = vpack.c.bf16 %v5053, %v5052
        %v5057 = vperm.slane %v4039, 0
        %v5061 = vunpack.c.l.b16 %v4037
        %v5062 = vunpack.c.l.b16 %v4038
        %v5063 = vpack.c.b16 %v5062, %v5061
        %v5066 = vsel %vm2566, %v5054, 0
        %v5069 = vsel %vm2566, %v5055, 0
        %5071 = vmatpush.bf16.msra.mxu0 0
        %5072 = vmatpush.bf16.msra.mxu0 0
        %5073 = vmatpush.bf16.msra.mxu0 0
        %5074 = vmatpush.bf16.msra.mxu0 0
        %5075 = vmatpush.bf16.msra.mxu0 0
        %5076 = vmatpush.bf16.msra.mxu0 0
        %5077 = vmatpush.bf16.msra.mxu0 0
        %5078 = vmatpush.bf16.msra.mxu0 %v5063
        %5079 = vmatmul.bf16.gmra.mxu0 %v5066
        %v5080 = vpop.f32.mrf.mxu0
        %v5081 = vadd.f32 %v5057, %v5080
        %v5082 = vpop.f32.mrf.mxu0
        %v5083 = vadd.f32 %v5057, %v5082
        %5084 = vmatmul.bf16.gmra.mxu0 %v5069
        %v5085 = vpop.f32.mrf.mxu0
        %v5086 = vadd.f32 %v5057, %v5085
        %v5087 = vpop.f32.mrf.mxu0
        %v5088 = vadd.f32 %v5057, %v5087
        %5089 = vdwg.mxu0
        %v5090 = vmul.f32 %v5081, 0.5
        %v5091 = vmul.f32 %v5083, 0.5
        %v5092 = vmul.f32 %v5086, 0.5
        %v5093 = vmul.f32 %v5088, 0.5
        %v5094 = vmul.f32 %v5081, 0.70710677
        %v5095 = vmul.f32 %v5083, 0.70710677
        %v5096 = vmul.f32 %v5086, 0.70710677
        %v5097 = vmul.f32 %v5088, 0.70710677
        %v5098 = vmul.f32 %v5094, %v5094
        %v5099 = vmin.f32 16.0, %v5098
        %v5100 = vmul.f32 %v5099, 2.1237322e-06
        %v5101 = vadd.f32 %v5100, 0.00028619796
        %v5102 = vmul.f32 %v5099, %v5101
        %v5103 = vadd.f32 %v5102, 0.0036580483
        %v5104 = vmul.f32 %v5099, %v5103
        %v5105 = vadd.f32 %v5104, 0.05243302
        %v5106 = vmul.f32 %v5099, %v5105
        %v5107 = vadd.f32 %v5106, 0.18741608
        %v5108 = vmul.f32 %v5099, %v5107
        %v5109 = vadd.f32 %v5108, 1.1283791
        %v5110 = vmul.f32 %v5094, %v5109
        %v5111 = vmul.f32 %v5099, 3.8918573e-05
        %v5112 = vadd.f32 %v5111, 0.001143296
        %v5113 = vmul.f32 %v5099, %v5112
        %v5114 = vadd.f32 %v5113, 0.014752088
        %v5115 = vmul.f32 %v5099, %v5114
        %v5116 = vadd.f32 %v5115, 0.112945676
        %v5117 = vmul.f32 %v5099, %v5116
        %v5118 = vadd.f32 %v5117, 0.4994258
        %v5119 = vmul.f32 %v5099, %v5118
        %v5120 = vadd.f32 %v5119, 1.0
        %v5121 = vrcp.pop %v5120
        %v5122 = vmul.f32 %v5120, %v5121
        %v5123 = vsub.f32 1.0, %v5122
        %v5124 = vmul.f32 %v5121, %v5123
        %v5125 = vadd.f32 %v5121, %v5124
        %vm5126 = vweird.f32 %v5120
        %vm5127 = vweird.f32 %v5121
        %vm5128 = vmor %vm5126, %vm5127
        %v5129 = vsel %vm5128, %v5121, %v5125
        %v5130 = vand.u32 2147483647, %v5120
        %vm5131 = vcmp.eq.f32.partialorder %v5130, 8.507059e+37
        %v5132 = vand.u32 %v5120, 2147483648
        %v5133 = vor.u32 1.1754944e-38, %v5132
        %v5134 = vsel %vm5131, %v5133, %v5129
        %v5135 = vmul.f32 %v5110, %v5134
        %v5136 = vmin.f32 %v5135, 1.0
        %v5137 = vmax.f32 %v5136, -1.0
        %v5138 = vmul.f32 %v5095, %v5095
        %v5139 = vmin.f32 16.0, %v5138
        %v5140 = vmul.f32 %v5139, 2.1237322e-06
        %v5141 = vadd.f32 %v5140, 0.00028619796
        %v5142 = vmul.f32 %v5139, %v5141
        %v5143 = vadd.f32 %v5142, 0.0036580483
        %v5144 = vmul.f32 %v5139, %v5143
        %v5145 = vadd.f32 %v5144, 0.05243302
        %v5146 = vmul.f32 %v5139, %v5145
        %v5147 = vadd.f32 %v5146, 0.18741608
        %v5148 = vmul.f32 %v5139, %v5147
        %v5149 = vadd.f32 %v5148, 1.1283791
        %v5150 = vmul.f32 %v5095, %v5149
        %v5151 = vmul.f32 %v5139, 3.8918573e-05
        %v5152 = vadd.f32 %v5151, 0.001143296
        %v5153 = vmul.f32 %v5139, %v5152
        %v5154 = vadd.f32 %v5153, 0.014752088
        %v5155 = vmul.f32 %v5139, %v5154
        %v5156 = vadd.f32 %v5155, 0.112945676
        %v5157 = vmul.f32 %v5139, %v5156
        %v5158 = vadd.f32 %v5157, 0.4994258
        %v5159 = vmul.f32 %v5139, %v5158
        %v5160 = vadd.f32 %v5159, 1.0
        %v5161 = vrcp.pop %v5160
        %v5162 = vmul.f32 %v5160, %v5161
        %v5163 = vsub.f32 1.0, %v5162
        %v5164 = vmul.f32 %v5161, %v5163
        %v5165 = vadd.f32 %v5161, %v5164
        %vm5166 = vweird.f32 %v5160
        %vm5167 = vweird.f32 %v5161
        %vm5168 = vmor %vm5166, %vm5167
        %v5169 = vsel %vm5168, %v5161, %v5165
        %v5170 = vand.u32 2147483647, %v5160
        %vm5171 = vcmp.eq.f32.partialorder %v5170, 8.507059e+37
        %v5172 = vand.u32 %v5160, 2147483648
        %v5173 = vor.u32 1.1754944e-38, %v5172
        %v5174 = vsel %vm5171, %v5173, %v5169
        %v5175 = vmul.f32 %v5150, %v5174
        %v5176 = vmin.f32 %v5175, 1.0
        %v5177 = vmax.f32 %v5176, -1.0
        %v5178 = vmul.f32 %v5096, %v5096
        %v5179 = vmin.f32 16.0, %v5178
        %v5180 = vmul.f32 %v5179, 2.1237322e-06
        %v5181 = vadd.f32 %v5180, 0.00028619796
        %v5182 = vmul.f32 %v5179, %v5181
        %v5183 = vadd.f32 %v5182, 0.0036580483
        %v5184 = vmul.f32 %v5179, %v5183
        %v5185 = vadd.f32 %v5184, 0.05243302
        %v5186 = vmul.f32 %v5179, %v5185
        %v5187 = vadd.f32 %v5186, 0.18741608
        %v5188 = vmul.f32 %v5179, %v5187
        %v5189 = vadd.f32 %v5188, 1.1283791
        %v5190 = vmul.f32 %v5096, %v5189
        %v5191 = vmul.f32 %v5179, 3.8918573e-05
        %v5192 = vadd.f32 %v5191, 0.001143296
        %v5193 = vmul.f32 %v5179, %v5192
        %v5194 = vadd.f32 %v5193, 0.014752088
        %v5195 = vmul.f32 %v5179, %v5194
        %v5196 = vadd.f32 %v5195, 0.112945676
        %v5197 = vmul.f32 %v5179, %v5196
        %v5198 = vadd.f32 %v5197, 0.4994258
        %v5199 = vmul.f32 %v5179, %v5198
        %v5200 = vadd.f32 %v5199, 1.0
        %v5201 = vrcp.pop %v5200
        %v5202 = vmul.f32 %v5200, %v5201
        %v5203 = vsub.f32 1.0, %v5202
        %v5204 = vmul.f32 %v5201, %v5203
        %v5205 = vadd.f32 %v5201, %v5204
        %vm5206 = vweird.f32 %v5200
        %vm5207 = vweird.f32 %v5201
        %vm5208 = vmor %vm5206, %vm5207
        %v5209 = vsel %vm5208, %v5201, %v5205
        %v5210 = vand.u32 2147483647, %v5200
        %vm5211 = vcmp.eq.f32.partialorder %v5210, 8.507059e+37
        %v5212 = vand.u32 %v5200, 2147483648
        %v5213 = vor.u32 1.1754944e-38, %v5212
        %v5214 = vsel %vm5211, %v5213, %v5209
        %v5215 = vmul.f32 %v5190, %v5214
        %v5216 = vmin.f32 %v5215, 1.0
        %v5217 = vmax.f32 %v5216, -1.0
        %v5218 = vmul.f32 %v5097, %v5097
        %v5219 = vmin.f32 16.0, %v5218
        %v5220 = vmul.f32 %v5219, 2.1237322e-06
        %v5221 = vadd.f32 %v5220, 0.00028619796
        %v5222 = vmul.f32 %v5219, %v5221
        %v5223 = vadd.f32 %v5222, 0.0036580483
        %v5224 = vmul.f32 %v5219, %v5223
        %v5225 = vadd.f32 %v5224, 0.05243302
        %v5226 = vmul.f32 %v5219, %v5225
        %v5227 = vadd.f32 %v5226, 0.18741608
        %v5228 = vmul.f32 %v5219, %v5227
        %v5229 = vadd.f32 %v5228, 1.1283791
        %v5230 = vmul.f32 %v5097, %v5229
        %v5231 = vmul.f32 %v5219, 3.8918573e-05
        %v5232 = vadd.f32 %v5231, 0.001143296
        %v5233 = vmul.f32 %v5219, %v5232
        %v5234 = vadd.f32 %v5233, 0.014752088
        %v5235 = vmul.f32 %v5219, %v5234
        %v5236 = vadd.f32 %v5235, 0.112945676
        %v5237 = vmul.f32 %v5219, %v5236
        %v5238 = vadd.f32 %v5237, 0.4994258
        %v5239 = vmul.f32 %v5219, %v5238
        %v5240 = vadd.f32 %v5239, 1.0
        %v5241 = vrcp.pop %v5240
        %v5242 = vmul.f32 %v5240, %v5241
        %v5243 = vsub.f32 1.0, %v5242
        %v5244 = vmul.f32 %v5241, %v5243
        %v5245 = vadd.f32 %v5241, %v5244
        %vm5246 = vweird.f32 %v5240
        %vm5247 = vweird.f32 %v5241
        %vm5248 = vmor %vm5246, %vm5247
        %v5249 = vsel %vm5248, %v5241, %v5245
        %v5250 = vand.u32 2147483647, %v5240
        %vm5251 = vcmp.eq.f32.partialorder %v5250, 8.507059e+37
        %v5252 = vand.u32 %v5240, 2147483648
        %v5253 = vor.u32 1.1754944e-38, %v5252
        %v5254 = vsel %vm5251, %v5253, %v5249
        %v5255 = vmul.f32 %v5230, %v5254
        %v5256 = vmin.f32 %v5255, 1.0
        %v5257 = vmax.f32 %v5256, -1.0
        %v5258 = vadd.f32 %v5137, 1.0
        %v5259 = vadd.f32 %v5177, 1.0
        %v5260 = vadd.f32 %v5217, 1.0
        %v5261 = vadd.f32 %v5257, 1.0
        %v5262 = vmul.f32 %v5090, %v5258
        %v5263 = vmul.f32 %v5091, %v5259
        %v5264 = vmul.f32 %v5092, %v5260
        %v5265 = vmul.f32 %v5093, %v5261
        %v5266 = vpack.c.bf16 %v5263, %v5262
        %v5267 = vpack.c.bf16 %v5265, %v5264
        %v5269 = vperm.slane %v4048, 0
        %v5279 = vunpack.c.l.b16 %v4040
        %v5280 = vunpack.c.l.b16 %v4041
        %v5281 = vunpack.c.l.b16 %v4042
        %v5282 = vunpack.c.l.b16 %v4043
        %v5283 = vunpack.c.l.b16 %v4044
        %v5284 = vunpack.c.l.b16 %v4045
        %v5285 = vunpack.c.l.b16 %v4046
        %v5286 = vunpack.c.l.b16 %v4047
        %v5287 = vpack.c.b16 %v5280, %v5279
        %v5288 = vpack.c.b16 %v5282, %v5281
        %v5289 = vpack.c.b16 %v5284, %v5283
        %v5290 = vpack.c.b16 %v5286, %v5285
        %v5296 = vsel %vm3964, %v5266, 0
        %v5299 = vsel %vm3964, %v5267, 0
        %5301 = vmatpush.bf16.msra.mxu0 0
        %5302 = vmatpush.bf16.msra.mxu0 0
        %5303 = vmatpush.bf16.msra.mxu0 0
        %5304 = vmatpush.bf16.msra.mxu0 0
        %5305 = vmatpush.bf16.msra.mxu0 %v5290
        %5306 = vmatpush.bf16.msra.mxu0 %v5289
        %5307 = vmatpush.bf16.msra.mxu0 %v5288
        %5308 = vmatpush.bf16.msra.mxu0 %v5287
        %5309 = vmatmul.bf16.gmra.mxu0 %v5296
        %v5310 = vpop.f32.mrf.mxu0
        %v5311 = vadd.f32 %v5269, %v5310
        %v5312 = vpop.f32.mrf.mxu0
        %v5313 = vadd.f32 %v5269, %v5312
        %5314 = vmatmul.bf16.gmra.mxu0 %v5299
        %v5315 = vpop.f32.mrf.mxu0
        %v5316 = vadd.f32 %v5269, %v5315
        %v5317 = vpop.f32.mrf.mxu0
        %v5318 = vadd.f32 %v5269, %v5317
        %5319 = vdwg.mxu0
        %v5320 = vadd.f32 %v4952, %v5311
        %v5321 = vadd.f32 %v4953, %v5313
        %v5322 = vadd.f32 %v4954, %v5316
        %v5323 = vadd.f32 %v4955, %v5318
        %v5324 = vld [vmem:[%s73] sm:$0xff]
        %v5325 = vld [vmem:[%s73 + $0x8] sm:$0xff]
        %v5326 = vld [vmem:[%s73 + $0x10] sm:$0xff]
        %v5327 = vld [vmem:[%s73 + $0x18] sm:$0xff]
        %v5328 = vld [vmem:[%s75] sm:$0x3]
        %v5329 = vunpack.c.l.bf16 %v5328
        %v5330 = vld [vmem:[%s77] sm:$0x3]
        %v5331 = vunpack.c.l.bf16 %v5330
        %v5332 = vld [vmem:[%s79] sm:$0xf]
        %v5333 = vld [vmem:[%s79 + $0x4] sm:$0xf]
        %v5334 = vld [vmem:[%s79 + $0x8] sm:$0xf]
        %v5335 = vld [vmem:[%s79 + $0xc] sm:$0xf]
        %v5336 = vld [vmem:[%s79 + $0x10] sm:$0xf]
        %v5337 = vld [vmem:[%s79 + $0x14] sm:$0xf]
        %v5338 = vld [vmem:[%s79 + $0x18] sm:$0xf]
        %v5339 = vld [vmem:[%s79 + $0x1c] sm:$0xf]
        %v5341 = vsel %vm2723, %v5324, 0
        %5343 = vmatpush.msra.mxu0 0.0
        %5344 = vmatpush.msra.mxu0 0.0
        %5345 = vmatpush.msra.mxu0 0.0
        %5346 = vmatpush.msra.mxu0 0.0
        %5347 = vmatpush.msra.mxu0 0.0
        %5348 = vmatpush.msra.mxu0 0.0
        %5349 = vmatpush.msra.mxu0 0.0
        %5350 = vmatpush.msra.mxu0 0.0
        %5351 = vmatpush.msra.mxu0 0.0
        %5352 = vmatpush.msra.mxu0 0.0
        %5353 = vmatpush.msra.mxu0 0.0
        %5354 = vmatpush.msra.mxu0 0.0
        %5355 = vmatpush.msra.mxu0 %v5323
        %5356 = vmatpush.msra.mxu0 %v5322
        %5357 = vmatpush.msra.mxu0 %v5321
        %5358 = vmatpush.msra.mxu0 %v5320
        %5359 = vmatmul.f32.gmra.mxu0 %v5341
        %v5360 = vpop.f32.mrf.mxu0
        %v5361 = vadd.f32 0.0, %v5360
        %5362 = vdwg.mxu0
        %v5364 = vsel %vm2723, %v5325, 0
        %5366 = vmatpush.msra.mxu0 0.0
        %5367 = vmatpush.msra.mxu0 0.0
        %5368 = vmatpush.msra.mxu0 0.0
        %5369 = vmatpush.msra.mxu0 0.0
        %5370 = vmatpush.msra.mxu0 0.0
        %5371 = vmatpush.msra.mxu0 0.0
        %5372 = vmatpush.msra.mxu0 0.0
        %5373 = vmatpush.msra.mxu0 0.0
        %5374 = vmatpush.msra.mxu0 0.0
        %5375 = vmatpush.msra.mxu0 0.0
        %5376 = vmatpush.msra.mxu0 0.0
        %5377 = vmatpush.msra.mxu0 0.0
        %5378 = vmatpush.msra.mxu0 %v5323
        %5379 = vmatpush.msra.mxu0 %v5322
        %5380 = vmatpush.msra.mxu0 %v5321
        %5381 = vmatpush.msra.mxu0 %v5320
        %5382 = vmatmul.f32.gmra.mxu0 %v5364
        %v5383 = vpop.f32.mrf.mxu0
        %v5384 = vadd.f32 0.0, %v5383
        %5385 = vdwg.mxu0
        %v5387 = vsel %vm2723, %v5326, 0
        %5389 = vmatpush.msra.mxu0 0.0
        %5390 = vmatpush.msra.mxu0 0.0
        %5391 = vmatpush.msra.mxu0 0.0
        %5392 = vmatpush.msra.mxu0 0.0
        %5393 = vmatpush.msra.mxu0 0.0
        %5394 = vmatpush.msra.mxu0 0.0
        %5395 = vmatpush.msra.mxu0 0.0
        %5396 = vmatpush.msra.mxu0 0.0
        %5397 = vmatpush.msra.mxu0 0.0
        %5398 = vmatpush.msra.mxu0 0.0
        %5399 = vmatpush.msra.mxu0 0.0
        %5400 = vmatpush.msra.mxu0 0.0
        %5401 = vmatpush.msra.mxu0 %v5323
        %5402 = vmatpush.msra.mxu0 %v5322
        %5403 = vmatpush.msra.mxu0 %v5321
        %5404 = vmatpush.msra.mxu0 %v5320
        %5405 = vmatmul.f32.gmra.mxu0 %v5387
        %v5406 = vpop.f32.mrf.mxu0
        %v5407 = vadd.f32 0.0, %v5406
        %5408 = vdwg.mxu0
        %v5410 = vsel %vm2723, %v5327, 0
        %5412 = vmatpush.msra.mxu0 0.0
        %5413 = vmatpush.msra.mxu0 0.0
        %5414 = vmatpush.msra.mxu0 0.0
        %5415 = vmatpush.msra.mxu0 0.0
        %5416 = vmatpush.msra.mxu0 0.0
        %5417 = vmatpush.msra.mxu0 0.0
        %5418 = vmatpush.msra.mxu0 0.0
        %5419 = vmatpush.msra.mxu0 0.0
        %5420 = vmatpush.msra.mxu0 0.0
        %5421 = vmatpush.msra.mxu0 0.0
        %5422 = vmatpush.msra.mxu0 0.0
        %5423 = vmatpush.msra.mxu0 0.0
        %5424 = vmatpush.msra.mxu0 %v5323
        %5425 = vmatpush.msra.mxu0 %v5322
        %5426 = vmatpush.msra.mxu0 %v5321
        %5427 = vmatpush.msra.mxu0 %v5320
        %5428 = vmatmul.f32.gmra.mxu0 %v5410
        %v5429 = vpop.f32.mrf.mxu0
        %v5430 = vadd.f32 0.0, %v5429
        %5431 = vdwg.mxu0
        %v5432 = vsel %vm2566, %v5361, 0.0
        %5433 = vadd.xlane.f32.xlu0 %v5432
        %v5434 = vpop.xlane.xlu0 %5433
        %v5435 = vadd.f32 %v5434, 0.0
        %v5436 = vsel %vm2566, %v5384, 0.0
        %5437 = vadd.xlane.f32.xlu0 %v5436
        %v5438 = vpop.xlane.xlu0 %5437
        %v5439 = vadd.f32 %v5435, %v5438
        %v5440 = vsel %vm2566, %v5407, 0.0
        %5441 = vadd.xlane.f32.xlu0 %v5440
        %v5442 = vpop.xlane.xlu0 %5441
        %v5443 = vadd.f32 %v5439, %v5442
        %v5444 = vsel %vm2566, %v5430, 0.0
        %5445 = vadd.xlane.f32.xlu0 %v5444
        %v5446 = vpop.xlane.xlu0 %5445
        %v5447 = vadd.f32 %v5443, %v5446
        %v5448 = vrcp.pop 64.0
        %v5449 = vmul.f32 64.0, %v5448
        %v5450 = vsub.f32 1.0, %v5449
        %v5451 = vmul.f32 %v5448, %v5450
        %v5452 = vadd.f32 %v5448, %v5451
        %vm5453 = vweird.f32 %v5448
        %v5454 = vsel %vm5453, %v5448, %v5452
        %v5455 = vmul.f32 %v5447, %v5454
        %v5456 = vsub.f32 %v5361, %v5455
        %v5457 = vmul.f32 %v5456, %v5456
        %v5458 = vsel %vm2566, %v5457, 0.0
        %5459 = vadd.xlane.f32.xlu0 %v5458
        %v5460 = vpop.xlane.xlu0 %5459
        %v5461 = vadd.f32 %v5460, 0.0
        %v5462 = vsub.f32 %v5384, %v5455
        %v5463 = vmul.f32 %v5462, %v5462
        %v5464 = vsel %vm2566, %v5463, 0.0
        %5465 = vadd.xlane.f32.xlu0 %v5464
        %v5466 = vpop.xlane.xlu0 %5465
        %v5467 = vadd.f32 %v5461, %v5466
        %v5468 = vsub.f32 %v5407, %v5455
        %v5469 = vmul.f32 %v5468, %v5468
        %v5470 = vsel %vm2566, %v5469, 0.0
        %5471 = vadd.xlane.f32.xlu0 %v5470
        %v5472 = vpop.xlane.xlu0 %5471
        %v5473 = vadd.f32 %v5467, %v5472
        %v5474 = vsub.f32 %v5430, %v5455
        %v5475 = vmul.f32 %v5474, %v5474
        %v5476 = vsel %vm2566, %v5475, 0.0
        %5477 = vadd.xlane.f32.xlu0 %v5476
        %v5478 = vpop.xlane.xlu0 %5477
        %v5479 = vadd.f32 %v5473, %v5478
        %v5480 = vmul.f32 %v5479, %v5454
        %v5481 = vadd.f32 %v5480, 1e-05
        %v5482 = vrsqrt.pop %v5481
        %v5483 = vmul.f32 %v5482, %v5481
        %v5484 = vmul.f32 %v5483, %v5482
        %v5485 = vmul.f32 0.5, %v5484
        %v5486 = vsub.f32 1.5, %v5485
        %v5487 = vmul.f32 %v5482, %v5486
        %vm5488 = vweird.f32 %v5481
        %vm5489 = vweird.f32 %v5482
        %vm5490 = vmor %vm5488, %vm5489
        %v5491 = vsel %vm5490, %v5482, %v5487
        %v5492 = vmul.f32 %v5456, %v5491
        %v5493 = vperm.slane %v5329, 0
        %v5494 = vmul.f32 %v5492, %v5493
        %v5495 = vperm.slane %v5331, 0
        %v5496 = vadd.f32 %v5494, %v5495
        %v5497 = vpack.c.bf16 %v5496, %v5496
        %v5498 = vmul.f32 %v5462, %v5491
        %v5499 = vperm.slane %v5329, 1
        %v5500 = vmul.f32 %v5498, %v5499
        %v5501 = vperm.slane %v5331, 1
        %v5502 = vadd.f32 %v5500, %v5501
        %v5503 = vpack.c.bf16 %v5502, %v5502
        %v5506 = vunpack.c.l.b16 %v5334
        %v5507 = vunpack.c.l.b16 %v5335
        %v5508 = vpack.c.b16 %v5507, %v5506
        %v5511 = vsel %vm2566, %v5503, 0
        %5513 = vmatpush.bf16.msra.mxu0 0
        %5514 = vmatpush.bf16.msra.mxu0 0
        %5515 = vmatpush.bf16.msra.mxu0 0
        %5516 = vmatpush.bf16.msra.mxu0 0
        %5517 = vmatpush.bf16.msra.mxu0 0
        %5518 = vmatpush.bf16.msra.mxu0 0
        %5519 = vmatpush.bf16.msra.mxu0 0
        %5520 = vmatpush.bf16.msra.mxu0 %v5508
        %5521 = vmatmul.bf16.gmra.mxu0 %v5511
        %v5522 = vpop.f32.mrf.mxu0
        %v5523 = vadd.f32 0.0, %v5522
        %v5524 = vpop.f32.mrf.mxu0
        %5525 = vdwg.mxu0
        %v5528 = vunpack.c.l.b16 %v5332
        %v5529 = vunpack.c.l.b16 %v5333
        %v5530 = vpack.c.b16 %v5529, %v5528
        %v5533 = vsel %vm2566, %v5497, 0
        %5535 = vmatpush.bf16.msra.mxu0 0
        %5536 = vmatpush.bf16.msra.mxu0 0
        %5537 = vmatpush.bf16.msra.mxu0 0
        %5538 = vmatpush.bf16.msra.mxu0 0
        %5539 = vmatpush.bf16.msra.mxu0 0
        %5540 = vmatpush.bf16.msra.mxu0 0
        %5541 = vmatpush.bf16.msra.mxu0 0
        %5542 = vmatpush.bf16.msra.mxu0 %v5530
        %5543 = vmatmul.bf16.gmra.mxu0 %v5533
        %v5544 = vpop.f32.mrf.mxu0
        %v5545 = vadd.f32 %v5523, %v5544
        %v5546 = vpop.f32.mrf.mxu0
        %5547 = vdwg.mxu0
        %v5548 = vmul.f32 %v5468, %v5491
        %v5549 = vperm.slane %v5329, 2
        %v5550 = vmul.f32 %v5548, %v5549
        %v5551 = vperm.slane %v5331, 2
        %v5552 = vadd.f32 %v5550, %v5551
        %v5553 = vpack.c.bf16 %v5552, %v5552
        %v5556 = vunpack.c.l.b16 %v5336
        %v5557 = vunpack.c.l.b16 %v5337
        %v5558 = vpack.c.b16 %v5557, %v5556
        %v5561 = vsel %vm2566, %v5553, 0
        %5563 = vmatpush.bf16.msra.mxu0 0
        %5564 = vmatpush.bf16.msra.mxu0 0
        %5565 = vmatpush.bf16.msra.mxu0 0
        %5566 = vmatpush.bf16.msra.mxu0 0
        %5567 = vmatpush.bf16.msra.mxu0 0
        %5568 = vmatpush.bf16.msra.mxu0 0
        %5569 = vmatpush.bf16.msra.mxu0 0
        %5570 = vmatpush.bf16.msra.mxu0 %v5558
        %5571 = vmatmul.bf16.gmra.mxu0 %v5561
        %v5572 = vpop.f32.mrf.mxu0
        %v5573 = vadd.f32 0.0, %v5572
        %v5574 = vpop.f32.mrf.mxu0
        %5575 = vdwg.mxu0
        %v5576 = vadd.f32 %v5545, %v5573
        %v5577 = vmul.f32 %v5474, %v5491
        %v5578 = vperm.slane %v5329, 3
        %v5579 = vmul.f32 %v5577, %v5578
        %v5580 = vperm.slane %v5331, 3
        %v5581 = vadd.f32 %v5579, %v5580
        %v5582 = vpack.c.bf16 %v5581, %v5581
        %v5585 = vunpack.c.l.b16 %v5338
        %v5586 = vunpack.c.l.b16 %v5339
        %v5587 = vpack.c.b16 %v5586, %v5585
        %v5590 = vsel %vm2566, %v5582, 0
        %5592 = vmatpush.bf16.msra.mxu0 0
        %5593 = vmatpush.bf16.msra.mxu0 0
        %5594 = vmatpush.bf16.msra.mxu0 0
        %5595 = vmatpush.bf16.msra.mxu0 0
        %5596 = vmatpush.bf16.msra.mxu0 0
        %5597 = vmatpush.bf16.msra.mxu0 0
        %5598 = vmatpush.bf16.msra.mxu0 0
        %5599 = vmatpush.bf16.msra.mxu0 %v5587
        %5600 = vmatmul.bf16.gmra.mxu0 %v5590
        %v5601 = vpop.f32.mrf.mxu0
        %v5602 = vadd.f32 0.0, %v5601
        %v5603 = vpop.f32.mrf.mxu0
        %5604 = vdwg.mxu0
        %v5605 = vadd.f32 %v5576, %v5602
        %v5606 = vld [vmem:[#allocation22] sm:$0x1]
        %v5607 = vunpack.c.l.bf16 %v5606
        %v5608 = vld [vmem:[#allocation23] sm:$0x1]
        %v5609 = vunpack.c.l.bf16 %v5608
        %v5610 = vld [vmem:[%s85] sm:$0xf]
        %v5611 = vld [vmem:[%s85 + $0x4] sm:$0xf]
        %v5612 = vld [vmem:[%s85 + $0x8] sm:$0xf]
        %v5613 = vld [vmem:[%s85 + $0xc] sm:$0xf]
        %v5614 = vld [vmem:[%s85 + $0x10] sm:$0xf]
        %v5615 = vld [vmem:[%s85 + $0x14] sm:$0xf]
        %v5616 = vld [vmem:[%s85 + $0x18] sm:$0xf]
        %v5617 = vld [vmem:[%s85 + $0x1c] sm:$0xf]
        %v5618 = vld [vmem:[%s85 + $0x20] sm:$0xf]
        %v5619 = vld [vmem:[%s85 + $0x24] sm:$0xf]
        %v5620 = vld [vmem:[%s85 + $0x28] sm:$0xf]
        %v5621 = vld [vmem:[%s85 + $0x2c] sm:$0xf]
        %v5622 = vld [vmem:[%s85 + $0x30] sm:$0xf]
        %v5623 = vld [vmem:[%s85 + $0x34] sm:$0xf]
        %v5624 = vld [vmem:[%s85 + $0x38] sm:$0xf]
        %v5625 = vld [vmem:[%s85 + $0x3c] sm:$0xf]
        %v5626 = vld [vmem:[%s85 + $0x40] sm:$0xf]
        %v5627 = vld [vmem:[%s85 + $0x44] sm:$0xf]
        %v5628 = vld [vmem:[%s85 + $0x48] sm:$0xf]
        %v5629 = vld [vmem:[%s85 + $0x4c] sm:$0xf]
        %v5630 = vld [vmem:[%s85 + $0x50] sm:$0xf]
        %v5631 = vld [vmem:[%s85 + $0x54] sm:$0xf]
        %v5632 = vld [vmem:[%s85 + $0x58] sm:$0xf]
        %v5633 = vld [vmem:[%s85 + $0x5c] sm:$0xf]
        %v5634 = vld [vmem:[%s85 + $0x60] sm:$0xf]
        %v5635 = vld [vmem:[%s85 + $0x64] sm:$0xf]
        %v5636 = vld [vmem:[%s85 + $0x68] sm:$0xf]
        %v5637 = vld [vmem:[%s85 + $0x6c] sm:$0xf]
        %v5638 = vld [vmem:[%s85 + $0x70] sm:$0xf]
        %v5639 = vld [vmem:[%s85 + $0x74] sm:$0xf]
        %v5640 = vld [vmem:[%s85 + $0x78] sm:$0xf]
        %v5641 = vld [vmem:[%s85 + $0x7c] sm:$0xf]
        %v5642 = vld [vmem:[%s85 + $0x80] sm:$0xf]
        %v5643 = vld [vmem:[%s85 + $0x84] sm:$0xf]
        %v5644 = vld [vmem:[%s85 + $0x88] sm:$0xf]
        %v5645 = vld [vmem:[%s85 + $0x8c] sm:$0xf]
        %v5646 = vld [vmem:[%s85 + $0x90] sm:$0xf]
        %v5647 = vld [vmem:[%s85 + $0x94] sm:$0xf]
        %v5648 = vld [vmem:[%s85 + $0x98] sm:$0xf]
        %v5649 = vld [vmem:[%s85 + $0x9c] sm:$0xf]
        %v5650 = vld [vmem:[%s85 + $0xa0] sm:$0xf]
        %v5651 = vld [vmem:[%s85 + $0xa4] sm:$0xf]
        %v5652 = vld [vmem:[%s85 + $0xa8] sm:$0xf]
        %v5653 = vld [vmem:[%s85 + $0xac] sm:$0xf]
        %v5654 = vld [vmem:[%s85 + $0xb0] sm:$0xf]
        %v5655 = vld [vmem:[%s85 + $0xb4] sm:$0xf]
        %v5656 = vld [vmem:[%s85 + $0xb8] sm:$0xf]
        %v5657 = vld [vmem:[%s85 + $0xbc] sm:$0xf]
        %v5658 = vld [vmem:[%s87] sm:$0x1]
        %v5659 = vld [vmem:[%s87 + $0x1] sm:$0x1]
        %v5660 = vld [vmem:[%s87 + $0x2] sm:$0x1]
        %v5661 = vld [vmem:[%s87 + $0x3] sm:$0x1]
        %v5662 = vld [vmem:[%s87 + $0x4] sm:$0x1]
        %v5663 = vld [vmem:[%s87 + $0x5] sm:$0x1]
        %v5664 = vld [vmem:[%s87 + $0x6] sm:$0x1]
        %v5665 = vld [vmem:[%s87 + $0x7] sm:$0x1]
        %v5666 = vld [vmem:[%s87 + $0x8] sm:$0x1]
        %v5667 = vld [vmem:[%s87 + $0x9] sm:$0x1]
        %v5668 = vld [vmem:[%s87 + $0xa] sm:$0x1]
        %v5669 = vld [vmem:[%s87 + $0xb] sm:$0x1]
        %v5670 = vld [vmem:[%s89] sm:$0xff]
        %v5671 = vld [vmem:[%s89 + $0x8] sm:$0xff]
        %v5672 = vld [vmem:[%s89 + $0x10] sm:$0xff]
        %v5673 = vld [vmem:[%s89 + $0x18] sm:$0xff]
        %v5674 = vld [vmem:[%s91] sm:$0xf]
        %v5675 = vld [vmem:[%s91 + $0x4] sm:$0xf]
        %v5676 = vld [vmem:[%s91 + $0x8] sm:$0xf]
        %v5677 = vld [vmem:[%s91 + $0xc] sm:$0xf]
        %v5678 = vld [vmem:[#allocation25] sm:$0x1]
        %v5679 = vld [vmem:[#allocation26] sm:$0x1]
        %v5680 = vunpack.c.l.bf16 %v5679
        %v5681 = vld [vmem:[#allocation28] sm:$0x1]
        %v5682 = vunpack.c.l.bf16 %v5681
        %v5683 = vld [vmem:[%s99] sm:$0xf]
        %v5684 = vld [vmem:[%s99 + $0x4] sm:$0xf]
        %v5685 = vld [vmem:[%s99 + $0x8] sm:$0xf]
        %v5686 = vld [vmem:[%s99 + $0xc] sm:$0xf]
        %v5687 = vld [vmem:[#allocation29] sm:$0x1]
        %v5688 = vld [vmem:[%s103] sm:$0xf]
        %v5689 = vld [vmem:[%s103 + $0x4] sm:$0xf]
        %v5690 = vld [vmem:[%s103 + $0x8] sm:$0xf]
        %v5691 = vld [vmem:[%s103 + $0xc] sm:$0xf]
        %v5692 = vld [vmem:[%s103 + $0x10] sm:$0xf]
        %v5693 = vld [vmem:[%s103 + $0x14] sm:$0xf]
        %v5694 = vld [vmem:[%s103 + $0x18] sm:$0xf]
        %v5695 = vld [vmem:[%s103 + $0x1c] sm:$0xf]
        %v5696 = vld [vmem:[%s103 + $0x20] sm:$0xf]
        %v5697 = vld [vmem:[%s103 + $0x24] sm:$0xf]
        %v5698 = vld [vmem:[%s103 + $0x28] sm:$0xf]
        %v5699 = vld [vmem:[%s103 + $0x2c] sm:$0xf]
        %v5700 = vld [vmem:[%s103 + $0x30] sm:$0xf]
        %v5701 = vld [vmem:[%s103 + $0x34] sm:$0xf]
        %v5702 = vld [vmem:[%s103 + $0x38] sm:$0xf]
        %v5703 = vld [vmem:[%s103 + $0x3c] sm:$0xf]
        %v5704 = vld [vmem:[#allocation31] sm:$0x1]
        %v5705 = vsel %vm2723, %v5605, 0.0
        %5706 = vadd.xlane.f32.xlu0 %v5705
        %v5707 = vpop.xlane.xlu0 %5706
        %v5708 = vrcp.pop 32.0
        %v5709 = vmul.f32 32.0, %v5708
        %v5710 = vsub.f32 1.0, %v5709
        %v5711 = vmul.f32 %v5708, %v5710
        %v5712 = vadd.f32 %v5708, %v5711
        %vm5713 = vweird.f32 %v5708
        %v5714 = vsel %vm5713, %v5708, %v5712
        %v5715 = vmul.f32 %v5707, %v5714
        %v5716 = vsub.f32 %v5605, %v5715
        %v5717 = vmul.f32 %v5716, %v5716
        %v5718 = vsel %vm2723, %v5717, 0.0
        %5719 = vadd.xlane.f32.xlu0 %v5718
        %v5720 = vpop.xlane.xlu0 %5719
        %v5721 = vmul.f32 %v5720, %v5714
        %v5722 = vadd.f32 %v5721, 1e-05
        %v5723 = vrsqrt.pop %v5722
        %v5724 = vmul.f32 %v5723, %v5722
        %v5725 = vmul.f32 %v5724, %v5723
        %v5726 = vmul.f32 0.5, %v5725
        %v5727 = vsub.f32 1.5, %v5726
        %v5728 = vmul.f32 %v5723, %v5727
        %vm5729 = vweird.f32 %v5722
        %vm5730 = vweird.f32 %v5723
        %vm5731 = vmor %vm5729, %vm5730
        %v5732 = vsel %vm5731, %v5723, %v5728
        %v5733 = vmul.f32 %v5716, %v5732
        %v5734 = vperm.slane %v5607, 0
        %v5735 = vmul.f32 %v5733, %v5734
        %v5736 = vperm.slane %v5609, 0
        %v5737 = vadd.f32 %v5735, %v5736
        %v5738 = vpack.c.bf16 %v5737, %v5737
        %v5740 = vperm.slane %v5658, 0
        %v5746 = vunpack.c.l.b16 %v5610
        %v5747 = vunpack.c.l.b16 %v5611
        %v5748 = vunpack.c.l.b16 %v5612
        %v5749 = vunpack.c.l.b16 %v5613
        %v5750 = vpack.c.b16 %v5747, %v5746
        %v5751 = vpack.c.b16 %v5749, %v5748
        %v5755 = vsel %vm2723, %v5738, 0
        %5757 = vmatpush.bf16.msra.mxu0 0
        %5758 = vmatpush.bf16.msra.mxu0 0
        %5759 = vmatpush.bf16.msra.mxu0 0
        %5760 = vmatpush.bf16.msra.mxu0 0
        %5761 = vmatpush.bf16.msra.mxu0 0
        %5762 = vmatpush.bf16.msra.mxu0 0
        %5763 = vmatpush.bf16.msra.mxu0 %v5751
        %5764 = vmatpush.bf16.msra.mxu0 %v5750
        %5765 = vmatmul.bf16.gmra.mxu0 %v5755
        %v5766 = vpop.f32.mrf.mxu0
        %v5767 = vadd.f32 %v5740, %v5766
        %v5768 = vpop.f32.mrf.mxu0
        %5769 = vdwg.mxu0
        %v5770 = vmul.f32 %v5767, 0.35355338
        %v5772 = vperm.slane %v5662, 0
        %v5778 = vunpack.c.l.b16 %v5626
        %v5779 = vunpack.c.l.b16 %v5627
        %v5780 = vunpack.c.l.b16 %v5628
        %v5781 = vunpack.c.l.b16 %v5629
        %v5782 = vpack.c.b16 %v5779, %v5778
        %v5783 = vpack.c.b16 %v5781, %v5780
        %5786 = vmatpush.bf16.msra.mxu0 0
        %5787 = vmatpush.bf16.msra.mxu0 0
        %5788 = vmatpush.bf16.msra.mxu0 0
        %5789 = vmatpush.bf16.msra.mxu0 0
        %5790 = vmatpush.bf16.msra.mxu0 0
        %5791 = vmatpush.bf16.msra.mxu0 0
        %5792 = vmatpush.bf16.msra.mxu0 %v5783
        %5793 = vmatpush.bf16.msra.mxu0 %v5782
        %5794 = vmatmul.bf16.gmra.mxu0 %v5755
        %v5795 = vpop.f32.mrf.mxu0
        %v5796 = vadd.f32 %v5772, %v5795
        %v5797 = vpop.f32.mrf.mxu0
        %5798 = vdwg.mxu0
        %v5800 = vperm.slane %v5666, 0
        %v5806 = vunpack.c.l.b16 %v5642
        %v5807 = vunpack.c.l.b16 %v5643
        %v5808 = vunpack.c.l.b16 %v5644
        %v5809 = vunpack.c.l.b16 %v5645
        %v5810 = vpack.c.b16 %v5807, %v5806
        %v5811 = vpack.c.b16 %v5809, %v5808
        %5814 = vmatpush.bf16.msra.mxu0 0
        %5815 = vmatpush.bf16.msra.mxu0 0
        %5816 = vmatpush.bf16.msra.mxu0 0
        %5817 = vmatpush.bf16.msra.mxu0 0
        %5818 = vmatpush.bf16.msra.mxu0 0
        %5819 = vmatpush.bf16.msra.mxu0 0
        %5820 = vmatpush.bf16.msra.mxu0 %v5811
        %5821 = vmatpush.bf16.msra.mxu0 %v5810
        %5822 = vmatmul.bf16.gmra.mxu0 %v5755
        %v5823 = vpop.f32.mrf.mxu0
        %v5824 = vadd.f32 %v5800, %v5823
        %v5825 = vpop.f32.mrf.mxu0
        %5826 = vdwg.mxu0
        %v5828 = vsel %vm2959, %v5770, 0
        %v5831 = vsel %vm2959, %v5796, 0
        %5833 = vmatpush.xpose.msra.mxu0 0.0
        %5834 = vmatpush.xpose.msra.mxu0 0.0
        %5835 = vmatpush.xpose.msra.mxu0 0.0
        %5836 = vmatpush.xpose.msra.mxu0 0.0
        %5837 = vmatpush.xpose.msra.mxu0 0.0
        %5838 = vmatpush.xpose.msra.mxu0 0.0
        %5839 = vmatpush.xpose.msra.mxu0 0.0
        %5840 = vmatpush.xpose.msra.mxu0 0.0
        %5841 = vmatpush.xpose.msra.mxu0 0.0
        %5842 = vmatpush.xpose.msra.mxu0 0.0
        %5843 = vmatpush.xpose.msra.mxu0 0.0
        %5844 = vmatpush.xpose.msra.mxu0 0.0
        %5845 = vmatpush.xpose.msra.mxu0 0.0
        %5846 = vmatpush.xpose.msra.mxu0 0.0
        %5847 = vmatpush.xpose.msra.mxu0 0.0
        %5848 = vmatpush.xpose.msra.mxu0 %v5831
        %5849 = vmatmul.f32.gmra.mxu0 %v5828
        %v5850 = vpop.f32.mrf.mxu0
        %v5851 = vadd.f32 %v5670, %v5850
        %5852 = vdwg.mxu0
        %v5853 = vsel %vm2959, %v5851, -inf
        %5854 = vmax.xlane.f32.xlu0 %v5853
        %v5855 = vpop.xlane.xlu0 %5854
        %v5856 = vsub.f32 %v5851, %v5855
        %v5857 = vmul.f32 %v5856, 1.442695
        %v5858 = vpow.pop %v5857
        %v5859 = vsel %vm2959, %v5858, 0.0
        %5860 = vadd.xlane.f32.xlu0 %v5859
        %v5861 = vpop.xlane.xlu0 %5860
        %v5862 = vrcp.pop %v5861
        %v5863 = vmul.f32 %v5858, %v5862
        %v5864 = vpack.c.bf16 %v5863, %v5863
        %v5865 = vpack.c.bf16 %v5824, %v5824
        %v5867 = vsel %vm2959, %v5864, 0
        %v5870 = vsel %vm3119, %v5865, 0
        %5872 = vmatpush.bf16.msra.mxu0 0
        %5873 = vmatpush.bf16.msra.mxu0 0
        %5874 = vmatpush.bf16.msra.mxu0 0
        %5875 = vmatpush.bf16.msra.mxu0 0
        %5876 = vmatpush.bf16.msra.mxu0 0
        %5877 = vmatpush.bf16.msra.mxu0 0
        %5878 = vmatpush.bf16.msra.mxu0 0
        %5879 = vmatpush.bf16.msra.mxu0 %v5870
        %5880 = vmatmul.bf16.gmra.mxu0 %v5867
        %v5881 = vpop.f32.mrf.mxu0
        %v5882 = vadd.f32 0.0, %v5881
        %v5883 = vpop.f32.mrf.mxu0
        %5884 = vdwg.mxu0
        %v5885 = vpack.c.bf16 %v5882, %v5882
        %v5887 = vperm.slane %v5659, 0
        %v5893 = vunpack.c.l.b16 %v5614
        %v5894 = vunpack.c.l.b16 %v5615
        %v5895 = vunpack.c.l.b16 %v5616
        %v5896 = vunpack.c.l.b16 %v5617
        %v5897 = vpack.c.b16 %v5894, %v5893
        %v5898 = vpack.c.b16 %v5896, %v5895
        %5901 = vmatpush.bf16.msra.mxu0 0
        %5902 = vmatpush.bf16.msra.mxu0 0
        %5903 = vmatpush.bf16.msra.mxu0 0
        %5904 = vmatpush.bf16.msra.mxu0 0
        %5905 = vmatpush.bf16.msra.mxu0 0
        %5906 = vmatpush.bf16.msra.mxu0 0
        %5907 = vmatpush.bf16.msra.mxu0 %v5898
        %5908 = vmatpush.bf16.msra.mxu0 %v5897
        %5909 = vmatmul.bf16.gmra.mxu0 %v5755
        %v5910 = vpop.f32.mrf.mxu0
        %v5911 = vadd.f32 %v5887, %v5910
        %v5912 = vpop.f32.mrf.mxu0
        %5913 = vdwg.mxu0
        %v5914 = vmul.f32 %v5911, 0.35355338
        %v5916 = vperm.slane %v5663, 0
        %v5922 = vunpack.c.l.b16 %v5630
        %v5923 = vunpack.c.l.b16 %v5631
        %v5924 = vunpack.c.l.b16 %v5632
        %v5925 = vunpack.c.l.b16 %v5633
        %v5926 = vpack.c.b16 %v5923, %v5922
        %v5927 = vpack.c.b16 %v5925, %v5924
        %5930 = vmatpush.bf16.msra.mxu0 0
        %5931 = vmatpush.bf16.msra.mxu0 0
        %5932 = vmatpush.bf16.msra.mxu0 0
        %5933 = vmatpush.bf16.msra.mxu0 0
        %5934 = vmatpush.bf16.msra.mxu0 0
        %5935 = vmatpush.bf16.msra.mxu0 0
        %5936 = vmatpush.bf16.msra.mxu0 %v5927
        %5937 = vmatpush.bf16.msra.mxu0 %v5926
        %5938 = vmatmul.bf16.gmra.mxu0 %v5755
        %v5939 = vpop.f32.mrf.mxu0
        %v5940 = vadd.f32 %v5916, %v5939
        %v5941 = vpop.f32.mrf.mxu0
        %5942 = vdwg.mxu0
        %v5944 = vperm.slane %v5667, 0
        %v5950 = vunpack.c.l.b16 %v5646
        %v5951 = vunpack.c.l.b16 %v5647
        %v5952 = vunpack.c.l.b16 %v5648
        %v5953 = vunpack.c.l.b16 %v5649
        %v5954 = vpack.c.b16 %v5951, %v5950
        %v5955 = vpack.c.b16 %v5953, %v5952
        %5958 = vmatpush.bf16.msra.mxu0 0
        %5959 = vmatpush.bf16.msra.mxu0 0
        %5960 = vmatpush.bf16.msra.mxu0 0
        %5961 = vmatpush.bf16.msra.mxu0 0
        %5962 = vmatpush.bf16.msra.mxu0 0
        %5963 = vmatpush.bf16.msra.mxu0 0
        %5964 = vmatpush.bf16.msra.mxu0 %v5955
        %5965 = vmatpush.bf16.msra.mxu0 %v5954
        %5966 = vmatmul.bf16.gmra.mxu0 %v5755
        %v5967 = vpop.f32.mrf.mxu0
        %v5968 = vadd.f32 %v5944, %v5967
        %v5969 = vpop.f32.mrf.mxu0
        %5970 = vdwg.mxu0
        %v5972 = vsel %vm2959, %v5914, 0
        %v5975 = vsel %vm2959, %v5940, 0
        %5977 = vmatpush.xpose.msra.mxu0 0.0
        %5978 = vmatpush.xpose.msra.mxu0 0.0
        %5979 = vmatpush.xpose.msra.mxu0 0.0
        %5980 = vmatpush.xpose.msra.mxu0 0.0
        %5981 = vmatpush.xpose.msra.mxu0 0.0
        %5982 = vmatpush.xpose.msra.mxu0 0.0
        %5983 = vmatpush.xpose.msra.mxu0 0.0
        %5984 = vmatpush.xpose.msra.mxu0 0.0
        %5985 = vmatpush.xpose.msra.mxu0 0.0
        %5986 = vmatpush.xpose.msra.mxu0 0.0
        %5987 = vmatpush.xpose.msra.mxu0 0.0
        %5988 = vmatpush.xpose.msra.mxu0 0.0
        %5989 = vmatpush.xpose.msra.mxu0 0.0
        %5990 = vmatpush.xpose.msra.mxu0 0.0
        %5991 = vmatpush.xpose.msra.mxu0 0.0
        %5992 = vmatpush.xpose.msra.mxu0 %v5975
        %5993 = vmatmul.f32.gmra.mxu0 %v5972
        %v5994 = vpop.f32.mrf.mxu0
        %v5995 = vadd.f32 %v5671, %v5994
        %5996 = vdwg.mxu0
        %v5997 = vsel %vm2959, %v5995, -inf
        %5998 = vmax.xlane.f32.xlu0 %v5997
        %v5999 = vpop.xlane.xlu0 %5998
        %v6000 = vsub.f32 %v5995, %v5999
        %v6001 = vmul.f32 %v6000, 1.442695
        %v6002 = vpow.pop %v6001
        %v6003 = vsel %vm2959, %v6002, 0.0
        %6004 = vadd.xlane.f32.xlu0 %v6003
        %v6005 = vpop.xlane.xlu0 %6004
        %v6006 = vrcp.pop %v6005
        %v6007 = vmul.f32 %v6002, %v6006
        %v6008 = vpack.c.bf16 %v6007, %v6007
        %v6009 = vpack.c.bf16 %v5968, %v5968
        %v6011 = vsel %vm2959, %v6008, 0
        %v6014 = vsel %vm3119, %v6009, 0
        %6016 = vmatpush.bf16.msra.mxu0 0
        %6017 = vmatpush.bf16.msra.mxu0 0
        %6018 = vmatpush.bf16.msra.mxu0 0
        %6019 = vmatpush.bf16.msra.mxu0 0
        %6020 = vmatpush.bf16.msra.mxu0 0
        %6021 = vmatpush.bf16.msra.mxu0 0
        %6022 = vmatpush.bf16.msra.mxu0 0
        %6023 = vmatpush.bf16.msra.mxu0 %v6014
        %6024 = vmatmul.bf16.gmra.mxu0 %v6011
        %v6025 = vpop.f32.mrf.mxu0
        %v6026 = vadd.f32 0.0, %v6025
        %v6027 = vpop.f32.mrf.mxu0
        %6028 = vdwg.mxu0
        %v6029 = vpack.c.bf16 %v6026, %v6026
        %v6031 = vsel %vm2959, %v6029, 0
        %v6034 = vsel %vm3119, %v5675, 0
        %6036 = vmatpush.bf16.msra.mxu0 0
        %6037 = vmatpush.bf16.msra.mxu0 0
        %6038 = vmatpush.bf16.msra.mxu0 0
        %6039 = vmatpush.bf16.msra.mxu0 0
        %6040 = vmatpush.bf16.msra.mxu0 0
        %6041 = vmatpush.bf16.msra.mxu0 0
        %6042 = vmatpush.bf16.msra.mxu0 0
        %6043 = vmatpush.bf16.msra.mxu0 %v6034
        %6044 = vmatmul.bf16.gmra.mxu0 %v6031
        %v6045 = vpop.f32.mrf.mxu0
        %v6046 = vadd.f32 0.0, %v6045
        %v6047 = vpop.f32.mrf.mxu0
        %6048 = vdwg.mxu0
        %v6050 = vsel %vm2959, %v5885, 0
        %v6053 = vsel %vm3119, %v5674, 0
        %6055 = vmatpush.bf16.msra.mxu0 0
        %6056 = vmatpush.bf16.msra.mxu0 0
        %6057 = vmatpush.bf16.msra.mxu0 0
        %6058 = vmatpush.bf16.msra.mxu0 0
        %6059 = vmatpush.bf16.msra.mxu0 0
        %6060 = vmatpush.bf16.msra.mxu0 0
        %6061 = vmatpush.bf16.msra.mxu0 0
        %6062 = vmatpush.bf16.msra.mxu0 %v6053
        %6063 = vmatmul.bf16.gmra.mxu0 %v6050
        %v6064 = vpop.f32.mrf.mxu0
        %v6065 = vadd.f32 %v6046, %v6064
        %v6066 = vpop.f32.mrf.mxu0
        %6067 = vdwg.mxu0
        %v6069 = vperm.slane %v5660, 0
        %v6075 = vunpack.c.l.b16 %v5618
        %v6076 = vunpack.c.l.b16 %v5619
        %v6077 = vunpack.c.l.b16 %v5620
        %v6078 = vunpack.c.l.b16 %v5621
        %v6079 = vpack.c.b16 %v6076, %v6075
        %v6080 = vpack.c.b16 %v6078, %v6077
        %6083 = vmatpush.bf16.msra.mxu0 0
        %6084 = vmatpush.bf16.msra.mxu0 0
        %6085 = vmatpush.bf16.msra.mxu0 0
        %6086 = vmatpush.bf16.msra.mxu0 0
        %6087 = vmatpush.bf16.msra.mxu0 0
        %6088 = vmatpush.bf16.msra.mxu0 0
        %6089 = vmatpush.bf16.msra.mxu0 %v6080
        %6090 = vmatpush.bf16.msra.mxu0 %v6079
        %6091 = vmatmul.bf16.gmra.mxu0 %v5755
        %v6092 = vpop.f32.mrf.mxu0
        %v6093 = vadd.f32 %v6069, %v6092
        %v6094 = vpop.f32.mrf.mxu0
        %6095 = vdwg.mxu0
        %v6096 = vmul.f32 %v6093, 0.35355338
        %v6098 = vperm.slane %v5664, 0
        %v6104 = vunpack.c.l.b16 %v5634
        %v6105 = vunpack.c.l.b16 %v5635
        %v6106 = vunpack.c.l.b16 %v5636
        %v6107 = vunpack.c.l.b16 %v5637
        %v6108 = vpack.c.b16 %v6105, %v6104
        %v6109 = vpack.c.b16 %v6107, %v6106
        %6112 = vmatpush.bf16.msra.mxu0 0
        %6113 = vmatpush.bf16.msra.mxu0 0
        %6114 = vmatpush.bf16.msra.mxu0 0
        %6115 = vmatpush.bf16.msra.mxu0 0
        %6116 = vmatpush.bf16.msra.mxu0 0
        %6117 = vmatpush.bf16.msra.mxu0 0
        %6118 = vmatpush.bf16.msra.mxu0 %v6109
        %6119 = vmatpush.bf16.msra.mxu0 %v6108
        %6120 = vmatmul.bf16.gmra.mxu0 %v5755
        %v6121 = vpop.f32.mrf.mxu0
        %v6122 = vadd.f32 %v6098, %v6121
        %v6123 = vpop.f32.mrf.mxu0
        %6124 = vdwg.mxu0
        %v6126 = vperm.slane %v5668, 0
        %v6132 = vunpack.c.l.b16 %v5650
        %v6133 = vunpack.c.l.b16 %v5651
        %v6134 = vunpack.c.l.b16 %v5652
        %v6135 = vunpack.c.l.b16 %v5653
        %v6136 = vpack.c.b16 %v6133, %v6132
        %v6137 = vpack.c.b16 %v6135, %v6134
        %6140 = vmatpush.bf16.msra.mxu0 0
        %6141 = vmatpush.bf16.msra.mxu0 0
        %6142 = vmatpush.bf16.msra.mxu0 0
        %6143 = vmatpush.bf16.msra.mxu0 0
        %6144 = vmatpush.bf16.msra.mxu0 0
        %6145 = vmatpush.bf16.msra.mxu0 0
        %6146 = vmatpush.bf16.msra.mxu0 %v6137
        %6147 = vmatpush.bf16.msra.mxu0 %v6136
        %6148 = vmatmul.bf16.gmra.mxu0 %v5755
        %v6149 = vpop.f32.mrf.mxu0
        %v6150 = vadd.f32 %v6126, %v6149
        %v6151 = vpop.f32.mrf.mxu0
        %6152 = vdwg.mxu0
        %v6154 = vsel %vm2959, %v6096, 0
        %v6157 = vsel %vm2959, %v6122, 0
        %6159 = vmatpush.xpose.msra.mxu0 0.0
        %6160 = vmatpush.xpose.msra.mxu0 0.0
        %6161 = vmatpush.xpose.msra.mxu0 0.0
        %6162 = vmatpush.xpose.msra.mxu0 0.0
        %6163 = vmatpush.xpose.msra.mxu0 0.0
        %6164 = vmatpush.xpose.msra.mxu0 0.0
        %6165 = vmatpush.xpose.msra.mxu0 0.0
        %6166 = vmatpush.xpose.msra.mxu0 0.0
        %6167 = vmatpush.xpose.msra.mxu0 0.0
        %6168 = vmatpush.xpose.msra.mxu0 0.0
        %6169 = vmatpush.xpose.msra.mxu0 0.0
        %6170 = vmatpush.xpose.msra.mxu0 0.0
        %6171 = vmatpush.xpose.msra.mxu0 0.0
        %6172 = vmatpush.xpose.msra.mxu0 0.0
        %6173 = vmatpush.xpose.msra.mxu0 0.0
        %6174 = vmatpush.xpose.msra.mxu0 %v6157
        %6175 = vmatmul.f32.gmra.mxu0 %v6154
        %v6176 = vpop.f32.mrf.mxu0
        %v6177 = vadd.f32 %v5672, %v6176
        %6178 = vdwg.mxu0
        %v6179 = vsel %vm2959, %v6177, -inf
        %6180 = vmax.xlane.f32.xlu0 %v6179
        %v6181 = vpop.xlane.xlu0 %6180
        %v6182 = vsub.f32 %v6177, %v6181
        %v6183 = vmul.f32 %v6182, 1.442695
        %v6184 = vpow.pop %v6183
        %v6185 = vsel %vm2959, %v6184, 0.0
        %6186 = vadd.xlane.f32.xlu0 %v6185
        %v6187 = vpop.xlane.xlu0 %6186
        %v6188 = vrcp.pop %v6187
        %v6189 = vmul.f32 %v6184, %v6188
        %v6190 = vpack.c.bf16 %v6189, %v6189
        %v6191 = vpack.c.bf16 %v6150, %v6150
        %v6193 = vsel %vm2959, %v6190, 0
        %v6196 = vsel %vm3119, %v6191, 0
        %6198 = vmatpush.bf16.msra.mxu0 0
        %6199 = vmatpush.bf16.msra.mxu0 0
        %6200 = vmatpush.bf16.msra.mxu0 0
        %6201 = vmatpush.bf16.msra.mxu0 0
        %6202 = vmatpush.bf16.msra.mxu0 0
        %6203 = vmatpush.bf16.msra.mxu0 0
        %6204 = vmatpush.bf16.msra.mxu0 0
        %6205 = vmatpush.bf16.msra.mxu0 %v6196
        %6206 = vmatmul.bf16.gmra.mxu0 %v6193
        %v6207 = vpop.f32.mrf.mxu0
        %v6208 = vadd.f32 0.0, %v6207
        %v6209 = vpop.f32.mrf.mxu0
        %6210 = vdwg.mxu0
        %v6211 = vpack.c.bf16 %v6208, %v6208
        %v6213 = vsel %vm2959, %v6211, 0
        %v6216 = vsel %vm3119, %v5676, 0
        %6218 = vmatpush.bf16.msra.mxu0 0
        %6219 = vmatpush.bf16.msra.mxu0 0
        %6220 = vmatpush.bf16.msra.mxu0 0
        %6221 = vmatpush.bf16.msra.mxu0 0
        %6222 = vmatpush.bf16.msra.mxu0 0
        %6223 = vmatpush.bf16.msra.mxu0 0
        %6224 = vmatpush.bf16.msra.mxu0 0
        %6225 = vmatpush.bf16.msra.mxu0 %v6216
        %6226 = vmatmul.bf16.gmra.mxu0 %v6213
        %v6227 = vpop.f32.mrf.mxu0
        %v6228 = vadd.f32 0.0, %v6227
        %v6229 = vpop.f32.mrf.mxu0
        %6230 = vdwg.mxu0
        %v6231 = vadd.f32 %v6065, %v6228
        %v6233 = vperm.slane %v5661, 0
        %v6239 = vunpack.c.l.b16 %v5622
        %v6240 = vunpack.c.l.b16 %v5623
        %v6241 = vunpack.c.l.b16 %v5624
        %v6242 = vunpack.c.l.b16 %v5625
        %v6243 = vpack.c.b16 %v6240, %v6239
        %v6244 = vpack.c.b16 %v6242, %v6241
        %6247 = vmatpush.bf16.msra.mxu0 0
        %6248 = vmatpush.bf16.msra.mxu0 0
        %6249 = vmatpush.bf16.msra.mxu0 0
        %6250 = vmatpush.bf16.msra.mxu0 0
        %6251 = vmatpush.bf16.msra.mxu0 0
        %6252 = vmatpush.bf16.msra.mxu0 0
        %6253 = vmatpush.bf16.msra.mxu0 %v6244
        %6254 = vmatpush.bf16.msra.mxu0 %v6243
        %6255 = vmatmul.bf16.gmra.mxu0 %v5755
        %v6256 = vpop.f32.mrf.mxu0
        %v6257 = vadd.f32 %v6233, %v6256
        %v6258 = vpop.f32.mrf.mxu0
        %6259 = vdwg.mxu0
        %v6260 = vmul.f32 %v6257, 0.35355338
        %v6262 = vperm.slane %v5665, 0
        %v6268 = vunpack.c.l.b16 %v5638
        %v6269 = vunpack.c.l.b16 %v5639
        %v6270 = vunpack.c.l.b16 %v5640
        %v6271 = vunpack.c.l.b16 %v5641
        %v6272 = vpack.c.b16 %v6269, %v6268
        %v6273 = vpack.c.b16 %v6271, %v6270
        %6276 = vmatpush.bf16.msra.mxu0 0
        %6277 = vmatpush.bf16.msra.mxu0 0
        %6278 = vmatpush.bf16.msra.mxu0 0
        %6279 = vmatpush.bf16.msra.mxu0 0
        %6280 = vmatpush.bf16.msra.mxu0 0
        %6281 = vmatpush.bf16.msra.mxu0 0
        %6282 = vmatpush.bf16.msra.mxu0 %v6273
        %6283 = vmatpush.bf16.msra.mxu0 %v6272
        %6284 = vmatmul.bf16.gmra.mxu0 %v5755
        %v6285 = vpop.f32.mrf.mxu0
        %v6286 = vadd.f32 %v6262, %v6285
        %v6287 = vpop.f32.mrf.mxu0
        %6288 = vdwg.mxu0
        %v6290 = vperm.slane %v5669, 0
        %v6296 = vunpack.c.l.b16 %v5654
        %v6297 = vunpack.c.l.b16 %v5655
        %v6298 = vunpack.c.l.b16 %v5656
        %v6299 = vunpack.c.l.b16 %v5657
        %v6300 = vpack.c.b16 %v6297, %v6296
        %v6301 = vpack.c.b16 %v6299, %v6298
        %6304 = vmatpush.bf16.msra.mxu0 0
        %6305 = vmatpush.bf16.msra.mxu0 0
        %6306 = vmatpush.bf16.msra.mxu0 0
        %6307 = vmatpush.bf16.msra.mxu0 0
        %6308 = vmatpush.bf16.msra.mxu0 0
        %6309 = vmatpush.bf16.msra.mxu0 0
        %6310 = vmatpush.bf16.msra.mxu0 %v6301
        %6311 = vmatpush.bf16.msra.mxu0 %v6300
        %6312 = vmatmul.bf16.gmra.mxu0 %v5755
        %v6313 = vpop.f32.mrf.mxu0
        %v6314 = vadd.f32 %v6290, %v6313
        %v6315 = vpop.f32.mrf.mxu0
        %6316 = vdwg.mxu0
        %v6318 = vsel %vm2959, %v6260, 0
        %v6321 = vsel %vm2959, %v6286, 0
        %6323 = vmatpush.xpose.msra.mxu0 0.0
        %6324 = vmatpush.xpose.msra.mxu0 0.0
        %6325 = vmatpush.xpose.msra.mxu0 0.0
        %6326 = vmatpush.xpose.msra.mxu0 0.0
        %6327 = vmatpush.xpose.msra.mxu0 0.0
        %6328 = vmatpush.xpose.msra.mxu0 0.0
        %6329 = vmatpush.xpose.msra.mxu0 0.0
        %6330 = vmatpush.xpose.msra.mxu0 0.0
        %6331 = vmatpush.xpose.msra.mxu0 0.0
        %6332 = vmatpush.xpose.msra.mxu0 0.0
        %6333 = vmatpush.xpose.msra.mxu0 0.0
        %6334 = vmatpush.xpose.msra.mxu0 0.0
        %6335 = vmatpush.xpose.msra.mxu0 0.0
        %6336 = vmatpush.xpose.msra.mxu0 0.0
        %6337 = vmatpush.xpose.msra.mxu0 0.0
        %6338 = vmatpush.xpose.msra.mxu0 %v6321
        %6339 = vmatmul.f32.gmra.mxu0 %v6318
        %v6340 = vpop.f32.mrf.mxu0
        %v6341 = vadd.f32 %v5673, %v6340
        %6342 = vdwg.mxu0
        %v6343 = vsel %vm2959, %v6341, -inf
        %6344 = vmax.xlane.f32.xlu0 %v6343
        %v6345 = vpop.xlane.xlu0 %6344
        %v6346 = vsub.f32 %v6341, %v6345
        %v6347 = vmul.f32 %v6346, 1.442695
        %v6348 = vpow.pop %v6347
        %v6349 = vsel %vm2959, %v6348, 0.0
        %6350 = vadd.xlane.f32.xlu0 %v6349
        %v6351 = vpop.xlane.xlu0 %6350
        %v6352 = vrcp.pop %v6351
        %v6353 = vmul.f32 %v6348, %v6352
        %v6354 = vpack.c.bf16 %v6353, %v6353
        %v6355 = vpack.c.bf16 %v6314, %v6314
        %v6357 = vsel %vm2959, %v6354, 0
        %v6360 = vsel %vm3119, %v6355, 0
        %6362 = vmatpush.bf16.msra.mxu0 0
        %6363 = vmatpush.bf16.msra.mxu0 0
        %6364 = vmatpush.bf16.msra.mxu0 0
        %6365 = vmatpush.bf16.msra.mxu0 0
        %6366 = vmatpush.bf16.msra.mxu0 0
        %6367 = vmatpush.bf16.msra.mxu0 0
        %6368 = vmatpush.bf16.msra.mxu0 0
        %6369 = vmatpush.bf16.msra.mxu0 %v6360
        %6370 = vmatmul.bf16.gmra.mxu0 %v6357
        %v6371 = vpop.f32.mrf.mxu0
        %v6372 = vadd.f32 0.0, %v6371
        %v6373 = vpop.f32.mrf.mxu0
        %6374 = vdwg.mxu0
        %v6375 = vpack.c.bf16 %v6372, %v6372
        %v6377 = vsel %vm2959, %v6375, 0
        %v6380 = vsel %vm3119, %v5677, 0
        %6382 = vmatpush.bf16.msra.mxu0 0
        %6383 = vmatpush.bf16.msra.mxu0 0
        %6384 = vmatpush.bf16.msra.mxu0 0
        %6385 = vmatpush.bf16.msra.mxu0 0
        %6386 = vmatpush.bf16.msra.mxu0 0
        %6387 = vmatpush.bf16.msra.mxu0 0
        %6388 = vmatpush.bf16.msra.mxu0 0
        %6389 = vmatpush.bf16.msra.mxu0 %v6380
        %6390 = vmatmul.bf16.gmra.mxu0 %v6377
        %v6391 = vpop.f32.mrf.mxu0
        %v6392 = vadd.f32 0.0, %v6391
        %v6393 = vpop.f32.mrf.mxu0
        %6394 = vdwg.mxu0
        %v6395 = vadd.f32 %v6231, %v6392
        %v6397 = vperm.slane %v5678, 0
        %v6399 = vadd.f32 %v6395, %v6397
        %v6400 = vadd.f32 %v5605, %v6399
        %v6401 = vsel %vm2723, %v6400, 0.0
        %6402 = vadd.xlane.f32.xlu0 %v6401
        %v6403 = vpop.xlane.xlu0 %6402
        %v6404 = vmul.f32 %v6403, %v5714
        %v6405 = vsub.f32 %v6400, %v6404
        %v6406 = vmul.f32 %v6405, %v6405
        %v6407 = vsel %vm2723, %v6406, 0.0
        %6408 = vadd.xlane.f32.xlu0 %v6407
        %v6409 = vpop.xlane.xlu0 %6408
        %v6410 = vmul.f32 %v6409, %v5714
        %v6411 = vadd.f32 %v6410, 1e-05
        %v6412 = vrsqrt.pop %v6411
        %v6413 = vmul.f32 %v6412, %v6411
        %v6414 = vmul.f32 %v6413, %v6412
        %v6415 = vmul.f32 0.5, %v6414
        %v6416 = vsub.f32 1.5, %v6415
        %v6417 = vmul.f32 %v6412, %v6416
        %vm6418 = vweird.f32 %v6411
        %vm6419 = vweird.f32 %v6412
        %vm6420 = vmor %vm6418, %vm6419
        %v6421 = vsel %vm6420, %v6412, %v6417
        %v6422 = vmul.f32 %v6405, %v6421
        %v6423 = vperm.slane %v5680, 0
        %v6424 = vmul.f32 %v6422, %v6423
        %v6425 = vperm.slane %v5682, 0
        %v6426 = vadd.f32 %v6424, %v6425
        %v6427 = vpack.c.bf16 %v6426, %v6426
        %v6429 = vperm.slane %v5687, 0
        %v6435 = vunpack.c.l.b16 %v5683
        %v6436 = vunpack.c.l.b16 %v5684
        %v6437 = vunpack.c.l.b16 %v5685
        %v6438 = vunpack.c.l.b16 %v5686
        %v6439 = vpack.c.b16 %v6436, %v6435
        %v6440 = vpack.c.b16 %v6438, %v6437
        %v6444 = vsel %vm2723, %v6427, 0
        %6446 = vmatpush.bf16.msra.mxu0 0
        %6447 = vmatpush.bf16.msra.mxu0 0
        %6448 = vmatpush.bf16.msra.mxu0 0
        %6449 = vmatpush.bf16.msra.mxu0 0
        %6450 = vmatpush.bf16.msra.mxu0 0
        %6451 = vmatpush.bf16.msra.mxu0 0
        %6452 = vmatpush.bf16.msra.mxu0 %v6440
        %6453 = vmatpush.bf16.msra.mxu0 %v6439
        %6454 = vmatmul.bf16.gmra.mxu0 %v6444
        %v6455 = vpop.f32.mrf.mxu0
        %v6456 = vadd.f32 %v6429, %v6455
        %v6457 = vpop.f32.mrf.mxu0
        %6458 = vdwg.mxu0
        %v6459 = vmul.f32 %v6456, 0.5
        %v6460 = vmul.f32 %v6456, 0.70710677
        %v6461 = vmul.f32 %v6460, %v6460
        %v6462 = vmin.f32 16.0, %v6461
        %v6463 = vmul.f32 %v6462, 2.1237322e-06
        %v6464 = vadd.f32 %v6463, 0.00028619796
        %v6465 = vmul.f32 %v6462, %v6464
        %v6466 = vadd.f32 %v6465, 0.0036580483
        %v6467 = vmul.f32 %v6462, %v6466
        %v6468 = vadd.f32 %v6467, 0.05243302
        %v6469 = vmul.f32 %v6462, %v6468
        %v6470 = vadd.f32 %v6469, 0.18741608
        %v6471 = vmul.f32 %v6462, %v6470
        %v6472 = vadd.f32 %v6471, 1.1283791
        %v6473 = vmul.f32 %v6460, %v6472
        %v6474 = vmul.f32 %v6462, 3.8918573e-05
        %v6475 = vadd.f32 %v6474, 0.001143296
        %v6476 = vmul.f32 %v6462, %v6475
        %v6477 = vadd.f32 %v6476, 0.014752088
        %v6478 = vmul.f32 %v6462, %v6477
        %v6479 = vadd.f32 %v6478, 0.112945676
        %v6480 = vmul.f32 %v6462, %v6479
        %v6481 = vadd.f32 %v6480, 0.4994258
        %v6482 = vmul.f32 %v6462, %v6481
        %v6483 = vadd.f32 %v6482, 1.0
        %v6484 = vrcp.pop %v6483
        %v6485 = vmul.f32 %v6483, %v6484
        %v6486 = vsub.f32 1.0, %v6485
        %v6487 = vmul.f32 %v6484, %v6486
        %v6488 = vadd.f32 %v6484, %v6487
        %vm6489 = vweird.f32 %v6483
        %vm6490 = vweird.f32 %v6484
        %vm6491 = vmor %vm6489, %vm6490
        %v6492 = vsel %vm6491, %v6484, %v6488
        %v6493 = vand.u32 2147483647, %v6483
        %vm6494 = vcmp.eq.f32.partialorder %v6493, 8.507059e+37
        %v6495 = vand.u32 %v6483, 2147483648
        %v6496 = vor.u32 1.1754944e-38, %v6495
        %v6497 = vsel %vm6494, %v6496, %v6492
        %v6498 = vmul.f32 %v6473, %v6497
        %v6499 = vmin.f32 %v6498, 1.0
        %v6500 = vmax.f32 %v6499, -1.0
        %v6501 = vadd.f32 %v6500, 1.0
        %v6502 = vmul.f32 %v6459, %v6501
        %v6503 = vpack.c.bf16 %v6502, %v6502
        %v6505 = vperm.slane %v5704, 0
        %v6523 = vunpack.c.l.b16 %v5688
        %v6524 = vunpack.c.l.b16 %v5689
        %v6525 = vunpack.c.l.b16 %v5690
        %v6526 = vunpack.c.l.b16 %v5691
        %v6527 = vunpack.c.l.b16 %v5692
        %v6528 = vunpack.c.l.b16 %v5693
        %v6529 = vunpack.c.l.b16 %v5694
        %v6530 = vunpack.c.l.b16 %v5695
        %v6531 = vunpack.c.l.b16 %v5696
        %v6532 = vunpack.c.l.b16 %v5697
        %v6533 = vunpack.c.l.b16 %v5698
        %v6534 = vunpack.c.l.b16 %v5699
        %v6535 = vunpack.c.l.b16 %v5700
        %v6536 = vunpack.c.l.b16 %v5701
        %v6537 = vunpack.c.l.b16 %v5702
        %v6538 = vunpack.c.l.b16 %v5703
        %v6539 = vpack.c.b16 %v6524, %v6523
        %v6540 = vpack.c.b16 %v6526, %v6525
        %v6541 = vpack.c.b16 %v6528, %v6527
        %v6542 = vpack.c.b16 %v6530, %v6529
        %v6543 = vpack.c.b16 %v6532, %v6531
        %v6544 = vpack.c.b16 %v6534, %v6533
        %v6545 = vpack.c.b16 %v6536, %v6535
        %v6546 = vpack.c.b16 %v6538, %v6537
        %6555 = vmatpush.bf16.msra.mxu0 %v6546
        %6556 = vmatpush.bf16.msra.mxu0 %v6545
        %6557 = vmatpush.bf16.msra.mxu0 %v6544
        %6558 = vmatpush.bf16.msra.mxu0 %v6543
        %6559 = vmatpush.bf16.msra.mxu0 %v6542
        %6560 = vmatpush.bf16.msra.mxu0 %v6541
        %6561 = vmatpush.bf16.msra.mxu0 %v6540
        %6562 = vmatpush.bf16.msra.mxu0 %v6539
        %6563 = vmatmul.bf16.gmra.mxu0 %v6503
        %v6564 = vpop.f32.mrf.mxu0
        %v6565 = vadd.f32 %v6505, %v6564
        %v6566 = vpop.f32.mrf.mxu0
        %6567 = vdwg.mxu0
        %v6568 = vadd.f32 %v6400, %v6565
        %v6569 = vld [vmem:[#allocation32] sm:$0x1]
        %v6570 = vunpack.c.l.bf16 %v6569
        %v6571 = vld [vmem:[#allocation34] sm:$0x1]
        %v6572 = vunpack.c.l.bf16 %v6571
        %v6573 = vld [vmem:[%s111] sm:$0xf]
        %v6574 = vld [vmem:[%s111 + $0x4] sm:$0xf]
        %v6575 = vld [vmem:[%s111 + $0x8] sm:$0xf]
        %v6576 = vld [vmem:[%s111 + $0xc] sm:$0xf]
        %v6577 = vld [vmem:[%s111 + $0x10] sm:$0xf]
        %v6578 = vld [vmem:[%s111 + $0x14] sm:$0xf]
        %v6579 = vld [vmem:[%s111 + $0x18] sm:$0xf]
        %v6580 = vld [vmem:[%s111 + $0x1c] sm:$0xf]
        %v6581 = vld [vmem:[%s111 + $0x20] sm:$0xf]
        %v6582 = vld [vmem:[%s111 + $0x24] sm:$0xf]
        %v6583 = vld [vmem:[%s111 + $0x28] sm:$0xf]
        %v6584 = vld [vmem:[%s111 + $0x2c] sm:$0xf]
        %v6585 = vld [vmem:[%s111 + $0x30] sm:$0xf]
        %v6586 = vld [vmem:[%s111 + $0x34] sm:$0xf]
        %v6587 = vld [vmem:[%s111 + $0x38] sm:$0xf]
        %v6588 = vld [vmem:[%s111 + $0x3c] sm:$0xf]
        %v6589 = vld [vmem:[%s111 + $0x40] sm:$0xf]
        %v6590 = vld [vmem:[%s111 + $0x44] sm:$0xf]
        %v6591 = vld [vmem:[%s111 + $0x48] sm:$0xf]
        %v6592 = vld [vmem:[%s111 + $0x4c] sm:$0xf]
        %v6593 = vld [vmem:[%s111 + $0x50] sm:$0xf]
        %v6594 = vld [vmem:[%s111 + $0x54] sm:$0xf]
        %v6595 = vld [vmem:[%s111 + $0x58] sm:$0xf]
        %v6596 = vld [vmem:[%s111 + $0x5c] sm:$0xf]
        %v6597 = vld [vmem:[%s111 + $0x60] sm:$0xf]
        %v6598 = vld [vmem:[%s111 + $0x64] sm:$0xf]
        %v6599 = vld [vmem:[%s111 + $0x68] sm:$0xf]
        %v6600 = vld [vmem:[%s111 + $0x6c] sm:$0xf]
        %v6601 = vld [vmem:[%s111 + $0x70] sm:$0xf]
        %v6602 = vld [vmem:[%s111 + $0x74] sm:$0xf]
        %v6603 = vld [vmem:[%s111 + $0x78] sm:$0xf]
        %v6604 = vld [vmem:[%s111 + $0x7c] sm:$0xf]
        %v6605 = vld [vmem:[%s111 + $0x80] sm:$0xf]
        %v6606 = vld [vmem:[%s111 + $0x84] sm:$0xf]
        %v6607 = vld [vmem:[%s111 + $0x88] sm:$0xf]
        %v6608 = vld [vmem:[%s111 + $0x8c] sm:$0xf]
        %v6609 = vld [vmem:[%s111 + $0x90] sm:$0xf]
        %v6610 = vld [vmem:[%s111 + $0x94] sm:$0xf]
        %v6611 = vld [vmem:[%s111 + $0x98] sm:$0xf]
        %v6612 = vld [vmem:[%s111 + $0x9c] sm:$0xf]
        %v6613 = vld [vmem:[%s111 + $0xa0] sm:$0xf]
        %v6614 = vld [vmem:[%s111 + $0xa4] sm:$0xf]
        %v6615 = vld [vmem:[%s111 + $0xa8] sm:$0xf]
        %v6616 = vld [vmem:[%s111 + $0xac] sm:$0xf]
        %v6617 = vld [vmem:[%s111 + $0xb0] sm:$0xf]
        %v6618 = vld [vmem:[%s111 + $0xb4] sm:$0xf]
        %v6619 = vld [vmem:[%s111 + $0xb8] sm:$0xf]
        %v6620 = vld [vmem:[%s111 + $0xbc] sm:$0xf]
        %v6621 = vld [vmem:[%s113] sm:$0x1]
        %v6622 = vld [vmem:[%s113 + $0x1] sm:$0x1]
        %v6623 = vld [vmem:[%s113 + $0x2] sm:$0x1]
        %v6624 = vld [vmem:[%s113 + $0x3] sm:$0x1]
        %v6625 = vld [vmem:[%s113 + $0x4] sm:$0x1]
        %v6626 = vld [vmem:[%s113 + $0x5] sm:$0x1]
        %v6627 = vld [vmem:[%s113 + $0x6] sm:$0x1]
        %v6628 = vld [vmem:[%s113 + $0x7] sm:$0x1]
        %v6629 = vld [vmem:[%s113 + $0x8] sm:$0x1]
        %v6630 = vld [vmem:[%s113 + $0x9] sm:$0x1]
        %v6631 = vld [vmem:[%s113 + $0xa] sm:$0x1]
        %v6632 = vld [vmem:[%s113 + $0xb] sm:$0x1]
        %v6633 = vld [vmem:[%s115] sm:$0xff]
        %v6634 = vld [vmem:[%s115 + $0x8] sm:$0xff]
        %v6635 = vld [vmem:[%s115 + $0x10] sm:$0xff]
        %v6636 = vld [vmem:[%s115 + $0x18] sm:$0xff]
        %v6637 = vld [vmem:[%s117] sm:$0xf]
        %v6638 = vld [vmem:[%s117 + $0x4] sm:$0xf]
        %v6639 = vld [vmem:[%s117 + $0x8] sm:$0xf]
        %v6640 = vld [vmem:[%s117 + $0xc] sm:$0xf]
        %v6641 = vld [vmem:[#allocation35] sm:$0x1]
        %v6642 = vld [vmem:[#allocation37] sm:$0x1]
        %v6643 = vunpack.c.l.bf16 %v6642
        %v6644 = vld [vmem:[#allocation38] sm:$0x1]
        %v6645 = vunpack.c.l.bf16 %v6644
        %v6646 = vld [vmem:[%s125] sm:$0xf]
        %v6647 = vld [vmem:[%s125 + $0x4] sm:$0xf]
        %v6648 = vld [vmem:[%s125 + $0x8] sm:$0xf]
        %v6649 = vld [vmem:[%s125 + $0xc] sm:$0xf]
        %v6650 = vld [vmem:[#allocation40] sm:$0x1]
        %v6651 = vld [vmem:[%s129] sm:$0xf]
        %v6652 = vld [vmem:[%s129 + $0x4] sm:$0xf]
        %v6653 = vld [vmem:[%s129 + $0x8] sm:$0xf]
        %v6654 = vld [vmem:[%s129 + $0xc] sm:$0xf]
        %v6655 = vld [vmem:[%s129 + $0x10] sm:$0xf]
        %v6656 = vld [vmem:[%s129 + $0x14] sm:$0xf]
        %v6657 = vld [vmem:[%s129 + $0x18] sm:$0xf]
        %v6658 = vld [vmem:[%s129 + $0x1c] sm:$0xf]
        %v6659 = vld [vmem:[%s129 + $0x20] sm:$0xf]
        %v6660 = vld [vmem:[%s129 + $0x24] sm:$0xf]
        %v6661 = vld [vmem:[%s129 + $0x28] sm:$0xf]
        %v6662 = vld [vmem:[%s129 + $0x2c] sm:$0xf]
        %v6663 = vld [vmem:[%s129 + $0x30] sm:$0xf]
        %v6664 = vld [vmem:[%s129 + $0x34] sm:$0xf]
        %v6665 = vld [vmem:[%s129 + $0x38] sm:$0xf]
        %v6666 = vld [vmem:[%s129 + $0x3c] sm:$0xf]
        %v6667 = vld [vmem:[#allocation41] sm:$0x1]
        %v6668 = vsel %vm2723, %v6568, 0.0
        %6669 = vadd.xlane.f32.xlu0 %v6668
        %v6670 = vpop.xlane.xlu0 %6669
        %v6671 = vmul.f32 %v6670, %v5714
        %v6672 = vsub.f32 %v6568, %v6671
        %v6673 = vmul.f32 %v6672, %v6672
        %v6674 = vsel %vm2723, %v6673, 0.0
        %6675 = vadd.xlane.f32.xlu0 %v6674
        %v6676 = vpop.xlane.xlu0 %6675
        %v6677 = vmul.f32 %v6676, %v5714
        %v6678 = vadd.f32 %v6677, 1e-05
        %v6679 = vrsqrt.pop %v6678
        %v6680 = vmul.f32 %v6679, %v6678
        %v6681 = vmul.f32 %v6680, %v6679
        %v6682 = vmul.f32 0.5, %v6681
        %v6683 = vsub.f32 1.5, %v6682
        %v6684 = vmul.f32 %v6679, %v6683
        %vm6685 = vweird.f32 %v6678
        %vm6686 = vweird.f32 %v6679
        %vm6687 = vmor %vm6685, %vm6686
        %v6688 = vsel %vm6687, %v6679, %v6684
        %v6689 = vmul.f32 %v6672, %v6688
        %v6690 = vperm.slane %v6570, 0
        %v6691 = vmul.f32 %v6689, %v6690
        %v6692 = vperm.slane %v6572, 0
        %v6693 = vadd.f32 %v6691, %v6692
        %v6694 = vpack.c.bf16 %v6693, %v6693
        %v6696 = vperm.slane %v6621, 0
        %v6702 = vunpack.c.l.b16 %v6573
        %v6703 = vunpack.c.l.b16 %v6574
        %v6704 = vunpack.c.l.b16 %v6575
        %v6705 = vunpack.c.l.b16 %v6576
        %v6706 = vpack.c.b16 %v6703, %v6702
        %v6707 = vpack.c.b16 %v6705, %v6704
        %v6711 = vsel %vm2723, %v6694, 0
        %6713 = vmatpush.bf16.msra.mxu0 0
        %6714 = vmatpush.bf16.msra.mxu0 0
        %6715 = vmatpush.bf16.msra.mxu0 0
        %6716 = vmatpush.bf16.msra.mxu0 0
        %6717 = vmatpush.bf16.msra.mxu0 0
        %6718 = vmatpush.bf16.msra.mxu0 0
        %6719 = vmatpush.bf16.msra.mxu0 %v6707
        %6720 = vmatpush.bf16.msra.mxu0 %v6706
        %6721 = vmatmul.bf16.gmra.mxu0 %v6711
        %v6722 = vpop.f32.mrf.mxu0
        %v6723 = vadd.f32 %v6696, %v6722
        %v6724 = vpop.f32.mrf.mxu0
        %6725 = vdwg.mxu0
        %v6726 = vmul.f32 %v6723, 0.35355338
        %v6728 = vperm.slane %v6625, 0
        %v6734 = vunpack.c.l.b16 %v6589
        %v6735 = vunpack.c.l.b16 %v6590
        %v6736 = vunpack.c.l.b16 %v6591
        %v6737 = vunpack.c.l.b16 %v6592
        %v6738 = vpack.c.b16 %v6735, %v6734
        %v6739 = vpack.c.b16 %v6737, %v6736
        %6742 = vmatpush.bf16.msra.mxu0 0
        %6743 = vmatpush.bf16.msra.mxu0 0
        %6744 = vmatpush.bf16.msra.mxu0 0
        %6745 = vmatpush.bf16.msra.mxu0 0
        %6746 = vmatpush.bf16.msra.mxu0 0
        %6747 = vmatpush.bf16.msra.mxu0 0
        %6748 = vmatpush.bf16.msra.mxu0 %v6739
        %6749 = vmatpush.bf16.msra.mxu0 %v6738
        %6750 = vmatmul.bf16.gmra.mxu0 %v6711
        %v6751 = vpop.f32.mrf.mxu0
        %v6752 = vadd.f32 %v6728, %v6751
        %v6753 = vpop.f32.mrf.mxu0
        %6754 = vdwg.mxu0
        %v6756 = vperm.slane %v6629, 0
        %v6762 = vunpack.c.l.b16 %v6605
        %v6763 = vunpack.c.l.b16 %v6606
        %v6764 = vunpack.c.l.b16 %v6607
        %v6765 = vunpack.c.l.b16 %v6608
        %v6766 = vpack.c.b16 %v6763, %v6762
        %v6767 = vpack.c.b16 %v6765, %v6764
        %6770 = vmatpush.bf16.msra.mxu0 0
        %6771 = vmatpush.bf16.msra.mxu0 0
        %6772 = vmatpush.bf16.msra.mxu0 0
        %6773 = vmatpush.bf16.msra.mxu0 0
        %6774 = vmatpush.bf16.msra.mxu0 0
        %6775 = vmatpush.bf16.msra.mxu0 0
        %6776 = vmatpush.bf16.msra.mxu0 %v6767
        %6777 = vmatpush.bf16.msra.mxu0 %v6766
        %6778 = vmatmul.bf16.gmra.mxu0 %v6711
        %v6779 = vpop.f32.mrf.mxu0
        %v6780 = vadd.f32 %v6756, %v6779
        %v6781 = vpop.f32.mrf.mxu0
        %6782 = vdwg.mxu0
        %v6784 = vsel %vm2959, %v6726, 0
        %v6787 = vsel %vm2959, %v6752, 0
        %6789 = vmatpush.xpose.msra.mxu0 0.0
        %6790 = vmatpush.xpose.msra.mxu0 0.0
        %6791 = vmatpush.xpose.msra.mxu0 0.0
        %6792 = vmatpush.xpose.msra.mxu0 0.0
        %6793 = vmatpush.xpose.msra.mxu0 0.0
        %6794 = vmatpush.xpose.msra.mxu0 0.0
        %6795 = vmatpush.xpose.msra.mxu0 0.0
        %6796 = vmatpush.xpose.msra.mxu0 0.0
        %6797 = vmatpush.xpose.msra.mxu0 0.0
        %6798 = vmatpush.xpose.msra.mxu0 0.0
        %6799 = vmatpush.xpose.msra.mxu0 0.0
        %6800 = vmatpush.xpose.msra.mxu0 0.0
        %6801 = vmatpush.xpose.msra.mxu0 0.0
        %6802 = vmatpush.xpose.msra.mxu0 0.0
        %6803 = vmatpush.xpose.msra.mxu0 0.0
        %6804 = vmatpush.xpose.msra.mxu0 %v6787
        %6805 = vmatmul.f32.gmra.mxu0 %v6784
        %v6806 = vpop.f32.mrf.mxu0
        %v6807 = vadd.f32 %v6633, %v6806
        %6808 = vdwg.mxu0
        %v6809 = vsel %vm2959, %v6807, -inf
        %6810 = vmax.xlane.f32.xlu0 %v6809
        %v6811 = vpop.xlane.xlu0 %6810
        %v6812 = vsub.f32 %v6807, %v6811
        %v6813 = vmul.f32 %v6812, 1.442695
        %v6814 = vpow.pop %v6813
        %v6815 = vsel %vm2959, %v6814, 0.0
        %6816 = vadd.xlane.f32.xlu0 %v6815
        %v6817 = vpop.xlane.xlu0 %6816
        %v6818 = vrcp.pop %v6817
        %v6819 = vmul.f32 %v6814, %v6818
        %v6820 = vpack.c.bf16 %v6819, %v6819
        %v6821 = vpack.c.bf16 %v6780, %v6780
        %v6823 = vsel %vm2959, %v6820, 0
        %v6826 = vsel %vm3119, %v6821, 0
        %6828 = vmatpush.bf16.msra.mxu0 0
        %6829 = vmatpush.bf16.msra.mxu0 0
        %6830 = vmatpush.bf16.msra.mxu0 0
        %6831 = vmatpush.bf16.msra.mxu0 0
        %6832 = vmatpush.bf16.msra.mxu0 0
        %6833 = vmatpush.bf16.msra.mxu0 0
        %6834 = vmatpush.bf16.msra.mxu0 0
        %6835 = vmatpush.bf16.msra.mxu0 %v6826
        %6836 = vmatmul.bf16.gmra.mxu0 %v6823
        %v6837 = vpop.f32.mrf.mxu0
        %v6838 = vadd.f32 0.0, %v6837
        %v6839 = vpop.f32.mrf.mxu0
        %6840 = vdwg.mxu0
        %v6841 = vpack.c.bf16 %v6838, %v6838
        %v6843 = vperm.slane %v6622, 0
        %v6849 = vunpack.c.l.b16 %v6577
        %v6850 = vunpack.c.l.b16 %v6578
        %v6851 = vunpack.c.l.b16 %v6579
        %v6852 = vunpack.c.l.b16 %v6580
        %v6853 = vpack.c.b16 %v6850, %v6849
        %v6854 = vpack.c.b16 %v6852, %v6851
        %6857 = vmatpush.bf16.msra.mxu0 0
        %6858 = vmatpush.bf16.msra.mxu0 0
        %6859 = vmatpush.bf16.msra.mxu0 0
        %6860 = vmatpush.bf16.msra.mxu0 0
        %6861 = vmatpush.bf16.msra.mxu0 0
        %6862 = vmatpush.bf16.msra.mxu0 0
        %6863 = vmatpush.bf16.msra.mxu0 %v6854
        %6864 = vmatpush.bf16.msra.mxu0 %v6853
        %6865 = vmatmul.bf16.gmra.mxu0 %v6711
        %v6866 = vpop.f32.mrf.mxu0
        %v6867 = vadd.f32 %v6843, %v6866
        %v6868 = vpop.f32.mrf.mxu0
        %6869 = vdwg.mxu0
        %v6870 = vmul.f32 %v6867, 0.35355338
        %v6872 = vperm.slane %v6626, 0
        %v6878 = vunpack.c.l.b16 %v6593
        %v6879 = vunpack.c.l.b16 %v6594
        %v6880 = vunpack.c.l.b16 %v6595
        %v6881 = vunpack.c.l.b16 %v6596
        %v6882 = vpack.c.b16 %v6879, %v6878
        %v6883 = vpack.c.b16 %v6881, %v6880
        %6886 = vmatpush.bf16.msra.mxu0 0
        %6887 = vmatpush.bf16.msra.mxu0 0
        %6888 = vmatpush.bf16.msra.mxu0 0
        %6889 = vmatpush.bf16.msra.mxu0 0
        %6890 = vmatpush.bf16.msra.mxu0 0
        %6891 = vmatpush.bf16.msra.mxu0 0
        %6892 = vmatpush.bf16.msra.mxu0 %v6883
        %6893 = vmatpush.bf16.msra.mxu0 %v6882
        %6894 = vmatmul.bf16.gmra.mxu0 %v6711
        %v6895 = vpop.f32.mrf.mxu0
        %v6896 = vadd.f32 %v6872, %v6895
        %v6897 = vpop.f32.mrf.mxu0
        %6898 = vdwg.mxu0
        %v6900 = vperm.slane %v6630, 0
        %v6906 = vunpack.c.l.b16 %v6609
        %v6907 = vunpack.c.l.b16 %v6610
        %v6908 = vunpack.c.l.b16 %v6611
        %v6909 = vunpack.c.l.b16 %v6612
        %v6910 = vpack.c.b16 %v6907, %v6906
        %v6911 = vpack.c.b16 %v6909, %v6908
        %6914 = vmatpush.bf16.msra.mxu0 0
        %6915 = vmatpush.bf16.msra.mxu0 0
        %6916 = vmatpush.bf16.msra.mxu0 0
        %6917 = vmatpush.bf16.msra.mxu0 0
        %6918 = vmatpush.bf16.msra.mxu0 0
        %6919 = vmatpush.bf16.msra.mxu0 0
        %6920 = vmatpush.bf16.msra.mxu0 %v6911
        %6921 = vmatpush.bf16.msra.mxu0 %v6910
        %6922 = vmatmul.bf16.gmra.mxu0 %v6711
        %v6923 = vpop.f32.mrf.mxu0
        %v6924 = vadd.f32 %v6900, %v6923
        %v6925 = vpop.f32.mrf.mxu0
        %6926 = vdwg.mxu0
        %v6928 = vsel %vm2959, %v6870, 0
        %v6931 = vsel %vm2959, %v6896, 0
        %6933 = vmatpush.xpose.msra.mxu0 0.0
        %6934 = vmatpush.xpose.msra.mxu0 0.0
        %6935 = vmatpush.xpose.msra.mxu0 0.0
        %6936 = vmatpush.xpose.msra.mxu0 0.0
        %6937 = vmatpush.xpose.msra.mxu0 0.0
        %6938 = vmatpush.xpose.msra.mxu0 0.0
        %6939 = vmatpush.xpose.msra.mxu0 0.0
        %6940 = vmatpush.xpose.msra.mxu0 0.0
        %6941 = vmatpush.xpose.msra.mxu0 0.0
        %6942 = vmatpush.xpose.msra.mxu0 0.0
        %6943 = vmatpush.xpose.msra.mxu0 0.0
        %6944 = vmatpush.xpose.msra.mxu0 0.0
        %6945 = vmatpush.xpose.msra.mxu0 0.0
        %6946 = vmatpush.xpose.msra.mxu0 0.0
        %6947 = vmatpush.xpose.msra.mxu0 0.0
        %6948 = vmatpush.xpose.msra.mxu0 %v6931
        %6949 = vmatmul.f32.gmra.mxu0 %v6928
        %v6950 = vpop.f32.mrf.mxu0
        %v6951 = vadd.f32 %v6634, %v6950
        %6952 = vdwg.mxu0
        %v6953 = vsel %vm2959, %v6951, -inf
        %6954 = vmax.xlane.f32.xlu0 %v6953
        %v6955 = vpop.xlane.xlu0 %6954
        %v6956 = vsub.f32 %v6951, %v6955
        %v6957 = vmul.f32 %v6956, 1.442695
        %v6958 = vpow.pop %v6957
        %v6959 = vsel %vm2959, %v6958, 0.0
        %6960 = vadd.xlane.f32.xlu0 %v6959
        %v6961 = vpop.xlane.xlu0 %6960
        %v6962 = vrcp.pop %v6961
        %v6963 = vmul.f32 %v6958, %v6962
        %v6964 = vpack.c.bf16 %v6963, %v6963
        %v6965 = vpack.c.bf16 %v6924, %v6924
        %v6967 = vsel %vm2959, %v6964, 0
        %v6970 = vsel %vm3119, %v6965, 0
        %6972 = vmatpush.bf16.msra.mxu0 0
        %6973 = vmatpush.bf16.msra.mxu0 0
        %6974 = vmatpush.bf16.msra.mxu0 0
        %6975 = vmatpush.bf16.msra.mxu0 0
        %6976 = vmatpush.bf16.msra.mxu0 0
        %6977 = vmatpush.bf16.msra.mxu0 0
        %6978 = vmatpush.bf16.msra.mxu0 0
        %6979 = vmatpush.bf16.msra.mxu0 %v6970
        %6980 = vmatmul.bf16.gmra.mxu0 %v6967
        %v6981 = vpop.f32.mrf.mxu0
        %v6982 = vadd.f32 0.0, %v6981
        %v6983 = vpop.f32.mrf.mxu0
        %6984 = vdwg.mxu0
        %v6985 = vpack.c.bf16 %v6982, %v6982
        %v6987 = vsel %vm2959, %v6985, 0
        %v6990 = vsel %vm3119, %v6638, 0
        %6992 = vmatpush.bf16.msra.mxu0 0
        %6993 = vmatpush.bf16.msra.mxu0 0
        %6994 = vmatpush.bf16.msra.mxu0 0
        %6995 = vmatpush.bf16.msra.mxu0 0
        %6996 = vmatpush.bf16.msra.mxu0 0
        %6997 = vmatpush.bf16.msra.mxu0 0
        %6998 = vmatpush.bf16.msra.mxu0 0
        %6999 = vmatpush.bf16.msra.mxu0 %v6990
        %7000 = vmatmul.bf16.gmra.mxu0 %v6987
        %v7001 = vpop.f32.mrf.mxu0
        %v7002 = vadd.f32 0.0, %v7001
        %v7003 = vpop.f32.mrf.mxu0
        %7004 = vdwg.mxu0
        %v7006 = vsel %vm2959, %v6841, 0
        %v7009 = vsel %vm3119, %v6637, 0
        %7011 = vmatpush.bf16.msra.mxu0 0
        %7012 = vmatpush.bf16.msra.mxu0 0
        %7013 = vmatpush.bf16.msra.mxu0 0
        %7014 = vmatpush.bf16.msra.mxu0 0
        %7015 = vmatpush.bf16.msra.mxu0 0
        %7016 = vmatpush.bf16.msra.mxu0 0
        %7017 = vmatpush.bf16.msra.mxu0 0
        %7018 = vmatpush.bf16.msra.mxu0 %v7009
        %7019 = vmatmul.bf16.gmra.mxu0 %v7006
        %v7020 = vpop.f32.mrf.mxu0
        %v7021 = vadd.f32 %v7002, %v7020
        %v7022 = vpop.f32.mrf.mxu0
        %7023 = vdwg.mxu0
        %v7025 = vperm.slane %v6623, 0
        %v7031 = vunpack.c.l.b16 %v6581
        %v7032 = vunpack.c.l.b16 %v6582
        %v7033 = vunpack.c.l.b16 %v6583
        %v7034 = vunpack.c.l.b16 %v6584
        %v7035 = vpack.c.b16 %v7032, %v7031
        %v7036 = vpack.c.b16 %v7034, %v7033
        %7039 = vmatpush.bf16.msra.mxu0 0
        %7040 = vmatpush.bf16.msra.mxu0 0
        %7041 = vmatpush.bf16.msra.mxu0 0
        %7042 = vmatpush.bf16.msra.mxu0 0
        %7043 = vmatpush.bf16.msra.mxu0 0
        %7044 = vmatpush.bf16.msra.mxu0 0
        %7045 = vmatpush.bf16.msra.mxu0 %v7036
        %7046 = vmatpush.bf16.msra.mxu0 %v7035
        %7047 = vmatmul.bf16.gmra.mxu0 %v6711
        %v7048 = vpop.f32.mrf.mxu0
        %v7049 = vadd.f32 %v7025, %v7048
        %v7050 = vpop.f32.mrf.mxu0
        %7051 = vdwg.mxu0
        %v7052 = vmul.f32 %v7049, 0.35355338
        %v7054 = vperm.slane %v6627, 0
        %v7060 = vunpack.c.l.b16 %v6597
        %v7061 = vunpack.c.l.b16 %v6598
        %v7062 = vunpack.c.l.b16 %v6599
        %v7063 = vunpack.c.l.b16 %v6600
        %v7064 = vpack.c.b16 %v7061, %v7060
        %v7065 = vpack.c.b16 %v7063, %v7062
        %7068 = vmatpush.bf16.msra.mxu0 0
        %7069 = vmatpush.bf16.msra.mxu0 0
        %7070 = vmatpush.bf16.msra.mxu0 0
        %7071 = vmatpush.bf16.msra.mxu0 0
        %7072 = vmatpush.bf16.msra.mxu0 0
        %7073 = vmatpush.bf16.msra.mxu0 0
        %7074 = vmatpush.bf16.msra.mxu0 %v7065
        %7075 = vmatpush.bf16.msra.mxu0 %v7064
        %7076 = vmatmul.bf16.gmra.mxu0 %v6711
        %v7077 = vpop.f32.mrf.mxu0
        %v7078 = vadd.f32 %v7054, %v7077
        %v7079 = vpop.f32.mrf.mxu0
        %7080 = vdwg.mxu0
        %v7082 = vperm.slane %v6631, 0
        %v7088 = vunpack.c.l.b16 %v6613
        %v7089 = vunpack.c.l.b16 %v6614
        %v7090 = vunpack.c.l.b16 %v6615
        %v7091 = vunpack.c.l.b16 %v6616
        %v7092 = vpack.c.b16 %v7089, %v7088
        %v7093 = vpack.c.b16 %v7091, %v7090
        %7096 = vmatpush.bf16.msra.mxu0 0
        %7097 = vmatpush.bf16.msra.mxu0 0
        %7098 = vmatpush.bf16.msra.mxu0 0
        %7099 = vmatpush.bf16.msra.mxu0 0
        %7100 = vmatpush.bf16.msra.mxu0 0
        %7101 = vmatpush.bf16.msra.mxu0 0
        %7102 = vmatpush.bf16.msra.mxu0 %v7093
        %7103 = vmatpush.bf16.msra.mxu0 %v7092
        %7104 = vmatmul.bf16.gmra.mxu0 %v6711
        %v7105 = vpop.f32.mrf.mxu0
        %v7106 = vadd.f32 %v7082, %v7105
        %v7107 = vpop.f32.mrf.mxu0
        %7108 = vdwg.mxu0
        %v7110 = vsel %vm2959, %v7052, 0
        %v7113 = vsel %vm2959, %v7078, 0
        %7115 = vmatpush.xpose.msra.mxu0 0.0
        %7116 = vmatpush.xpose.msra.mxu0 0.0
        %7117 = vmatpush.xpose.msra.mxu0 0.0
        %7118 = vmatpush.xpose.msra.mxu0 0.0
        %7119 = vmatpush.xpose.msra.mxu0 0.0
        %7120 = vmatpush.xpose.msra.mxu0 0.0
        %7121 = vmatpush.xpose.msra.mxu0 0.0
        %7122 = vmatpush.xpose.msra.mxu0 0.0
        %7123 = vmatpush.xpose.msra.mxu0 0.0
        %7124 = vmatpush.xpose.msra.mxu0 0.0
        %7125 = vmatpush.xpose.msra.mxu0 0.0
        %7126 = vmatpush.xpose.msra.mxu0 0.0
        %7127 = vmatpush.xpose.msra.mxu0 0.0
        %7128 = vmatpush.xpose.msra.mxu0 0.0
        %7129 = vmatpush.xpose.msra.mxu0 0.0
        %7130 = vmatpush.xpose.msra.mxu0 %v7113
        %7131 = vmatmul.f32.gmra.mxu0 %v7110
        %v7132 = vpop.f32.mrf.mxu0
        %v7133 = vadd.f32 %v6635, %v7132
        %7134 = vdwg.mxu0
        %v7135 = vsel %vm2959, %v7133, -inf
        %7136 = vmax.xlane.f32.xlu0 %v7135
        %v7137 = vpop.xlane.xlu0 %7136
        %v7138 = vsub.f32 %v7133, %v7137
        %v7139 = vmul.f32 %v7138, 1.442695
        %v7140 = vpow.pop %v7139
        %v7141 = vsel %vm2959, %v7140, 0.0
        %7142 = vadd.xlane.f32.xlu0 %v7141
        %v7143 = vpop.xlane.xlu0 %7142
        %v7144 = vrcp.pop %v7143
        %v7145 = vmul.f32 %v7140, %v7144
        %v7146 = vpack.c.bf16 %v7145, %v7145
        %v7147 = vpack.c.bf16 %v7106, %v7106
        %v7149 = vsel %vm2959, %v7146, 0
        %v7152 = vsel %vm3119, %v7147, 0
        %7154 = vmatpush.bf16.msra.mxu0 0
        %7155 = vmatpush.bf16.msra.mxu0 0
        %7156 = vmatpush.bf16.msra.mxu0 0
        %7157 = vmatpush.bf16.msra.mxu0 0
        %7158 = vmatpush.bf16.msra.mxu0 0
        %7159 = vmatpush.bf16.msra.mxu0 0
        %7160 = vmatpush.bf16.msra.mxu0 0
        %7161 = vmatpush.bf16.msra.mxu0 %v7152
        %7162 = vmatmul.bf16.gmra.mxu0 %v7149
        %v7163 = vpop.f32.mrf.mxu0
        %v7164 = vadd.f32 0.0, %v7163
        %v7165 = vpop.f32.mrf.mxu0
        %7166 = vdwg.mxu0
        %v7167 = vpack.c.bf16 %v7164, %v7164
        %v7169 = vsel %vm2959, %v7167, 0
        %v7172 = vsel %vm3119, %v6639, 0
        %7174 = vmatpush.bf16.msra.mxu0 0
        %7175 = vmatpush.bf16.msra.mxu0 0
        %7176 = vmatpush.bf16.msra.mxu0 0
        %7177 = vmatpush.bf16.msra.mxu0 0
        %7178 = vmatpush.bf16.msra.mxu0 0
        %7179 = vmatpush.bf16.msra.mxu0 0
        %7180 = vmatpush.bf16.msra.mxu0 0
        %7181 = vmatpush.bf16.msra.mxu0 %v7172
        %7182 = vmatmul.bf16.gmra.mxu0 %v7169
        %v7183 = vpop.f32.mrf.mxu0
        %v7184 = vadd.f32 0.0, %v7183
        %v7185 = vpop.f32.mrf.mxu0
        %7186 = vdwg.mxu0
        %v7187 = vadd.f32 %v7021, %v7184
        %v7189 = vperm.slane %v6624, 0
        %v7195 = vunpack.c.l.b16 %v6585
        %v7196 = vunpack.c.l.b16 %v6586
        %v7197 = vunpack.c.l.b16 %v6587
        %v7198 = vunpack.c.l.b16 %v6588
        %v7199 = vpack.c.b16 %v7196, %v7195
        %v7200 = vpack.c.b16 %v7198, %v7197
        %7203 = vmatpush.bf16.msra.mxu0 0
        %7204 = vmatpush.bf16.msra.mxu0 0
        %7205 = vmatpush.bf16.msra.mxu0 0
        %7206 = vmatpush.bf16.msra.mxu0 0
        %7207 = vmatpush.bf16.msra.mxu0 0
        %7208 = vmatpush.bf16.msra.mxu0 0
        %7209 = vmatpush.bf16.msra.mxu0 %v7200
        %7210 = vmatpush.bf16.msra.mxu0 %v7199
        %7211 = vmatmul.bf16.gmra.mxu0 %v6711
        %v7212 = vpop.f32.mrf.mxu0
        %v7213 = vadd.f32 %v7189, %v7212
        %v7214 = vpop.f32.mrf.mxu0
        %7215 = vdwg.mxu0
        %v7216 = vmul.f32 %v7213, 0.35355338
        %v7218 = vperm.slane %v6628, 0
        %v7224 = vunpack.c.l.b16 %v6601
        %v7225 = vunpack.c.l.b16 %v6602
        %v7226 = vunpack.c.l.b16 %v6603
        %v7227 = vunpack.c.l.b16 %v6604
        %v7228 = vpack.c.b16 %v7225, %v7224
        %v7229 = vpack.c.b16 %v7227, %v7226
        %7232 = vmatpush.bf16.msra.mxu0 0
        %7233 = vmatpush.bf16.msra.mxu0 0
        %7234 = vmatpush.bf16.msra.mxu0 0
        %7235 = vmatpush.bf16.msra.mxu0 0
        %7236 = vmatpush.bf16.msra.mxu0 0
        %7237 = vmatpush.bf16.msra.mxu0 0
        %7238 = vmatpush.bf16.msra.mxu0 %v7229
        %7239 = vmatpush.bf16.msra.mxu0 %v7228
        %7240 = vmatmul.bf16.gmra.mxu0 %v6711
        %v7241 = vpop.f32.mrf.mxu0
        %v7242 = vadd.f32 %v7218, %v7241
        %v7243 = vpop.f32.mrf.mxu0
        %7244 = vdwg.mxu0
        %v7246 = vperm.slane %v6632, 0
        %v7252 = vunpack.c.l.b16 %v6617
        %v7253 = vunpack.c.l.b16 %v6618
        %v7254 = vunpack.c.l.b16 %v6619
        %v7255 = vunpack.c.l.b16 %v6620
        %v7256 = vpack.c.b16 %v7253, %v7252
        %v7257 = vpack.c.b16 %v7255, %v7254
        %7260 = vmatpush.bf16.msra.mxu0 0
        %7261 = vmatpush.bf16.msra.mxu0 0
        %7262 = vmatpush.bf16.msra.mxu0 0
        %7263 = vmatpush.bf16.msra.mxu0 0
        %7264 = vmatpush.bf16.msra.mxu0 0
        %7265 = vmatpush.bf16.msra.mxu0 0
        %7266 = vmatpush.bf16.msra.mxu0 %v7257
        %7267 = vmatpush.bf16.msra.mxu0 %v7256
        %7268 = vmatmul.bf16.gmra.mxu0 %v6711
        %v7269 = vpop.f32.mrf.mxu0
        %v7270 = vadd.f32 %v7246, %v7269
        %v7271 = vpop.f32.mrf.mxu0
        %7272 = vdwg.mxu0
        %v7274 = vsel %vm2959, %v7216, 0
        %v7277 = vsel %vm2959, %v7242, 0
        %7279 = vmatpush.xpose.msra.mxu0 0.0
        %7280 = vmatpush.xpose.msra.mxu0 0.0
        %7281 = vmatpush.xpose.msra.mxu0 0.0
        %7282 = vmatpush.xpose.msra.mxu0 0.0
        %7283 = vmatpush.xpose.msra.mxu0 0.0
        %7284 = vmatpush.xpose.msra.mxu0 0.0
        %7285 = vmatpush.xpose.msra.mxu0 0.0
        %7286 = vmatpush.xpose.msra.mxu0 0.0
        %7287 = vmatpush.xpose.msra.mxu0 0.0
        %7288 = vmatpush.xpose.msra.mxu0 0.0
        %7289 = vmatpush.xpose.msra.mxu0 0.0
        %7290 = vmatpush.xpose.msra.mxu0 0.0
        %7291 = vmatpush.xpose.msra.mxu0 0.0
        %7292 = vmatpush.xpose.msra.mxu0 0.0
        %7293 = vmatpush.xpose.msra.mxu0 0.0
        %7294 = vmatpush.xpose.msra.mxu0 %v7277
        %7295 = vmatmul.f32.gmra.mxu0 %v7274
        %v7296 = vpop.f32.mrf.mxu0
        %v7297 = vadd.f32 %v6636, %v7296
        %7298 = vdwg.mxu0
        %v7299 = vsel %vm2959, %v7297, -inf
        %7300 = vmax.xlane.f32.xlu0 %v7299
        %v7301 = vpop.xlane.xlu0 %7300
        %v7302 = vsub.f32 %v7297, %v7301
        %v7303 = vmul.f32 %v7302, 1.442695
        %v7304 = vpow.pop %v7303
        %v7305 = vsel %vm2959, %v7304, 0.0
        %7306 = vadd.xlane.f32.xlu0 %v7305
        %v7307 = vpop.xlane.xlu0 %7306
        %v7308 = vrcp.pop %v7307
        %v7309 = vmul.f32 %v7304, %v7308
        %v7310 = vpack.c.bf16 %v7309, %v7309
        %v7311 = vpack.c.bf16 %v7270, %v7270
        %v7313 = vsel %vm2959, %v7310, 0
        %v7316 = vsel %vm3119, %v7311, 0
        %7318 = vmatpush.bf16.msra.mxu0 0
        %7319 = vmatpush.bf16.msra.mxu0 0
        %7320 = vmatpush.bf16.msra.mxu0 0
        %7321 = vmatpush.bf16.msra.mxu0 0
        %7322 = vmatpush.bf16.msra.mxu0 0
        %7323 = vmatpush.bf16.msra.mxu0 0
        %7324 = vmatpush.bf16.msra.mxu0 0
        %7325 = vmatpush.bf16.msra.mxu0 %v7316
        %7326 = vmatmul.bf16.gmra.mxu0 %v7313
        %v7327 = vpop.f32.mrf.mxu0
        %v7328 = vadd.f32 0.0, %v7327
        %v7329 = vpop.f32.mrf.mxu0
        %7330 = vdwg.mxu0
        %v7331 = vpack.c.bf16 %v7328, %v7328
        %v7333 = vsel %vm2959, %v7331, 0
        %v7336 = vsel %vm3119, %v6640, 0
        %7338 = vmatpush.bf16.msra.mxu0 0
        %7339 = vmatpush.bf16.msra.mxu0 0
        %7340 = vmatpush.bf16.msra.mxu0 0
        %7341 = vmatpush.bf16.msra.mxu0 0
        %7342 = vmatpush.bf16.msra.mxu0 0
        %7343 = vmatpush.bf16.msra.mxu0 0
        %7344 = vmatpush.bf16.msra.mxu0 0
        %7345 = vmatpush.bf16.msra.mxu0 %v7336
        %7346 = vmatmul.bf16.gmra.mxu0 %v7333
        %v7347 = vpop.f32.mrf.mxu0
        %v7348 = vadd.f32 0.0, %v7347
        %v7349 = vpop.f32.mrf.mxu0
        %7350 = vdwg.mxu0
        %v7351 = vadd.f32 %v7187, %v7348
        %v7353 = vperm.slane %v6641, 0
        %v7355 = vadd.f32 %v7351, %v7353
        %v7356 = vadd.f32 %v6568, %v7355
        %v7357 = vsel %vm2723, %v7356, 0.0
        %7358 = vadd.xlane.f32.xlu0 %v7357
        %v7359 = vpop.xlane.xlu0 %7358
        %v7360 = vmul.f32 %v7359, %v5714
        %v7361 = vsub.f32 %v7356, %v7360
        %v7362 = vmul.f32 %v7361, %v7361
        %v7363 = vsel %vm2723, %v7362, 0.0
        %7364 = vadd.xlane.f32.xlu0 %v7363
        %v7365 = vpop.xlane.xlu0 %7364
        %v7366 = vmul.f32 %v7365, %v5714
        %v7367 = vadd.f32 %v7366, 1e-05
        %v7368 = vrsqrt.pop %v7367
        %v7369 = vmul.f32 %v7368, %v7367
        %v7370 = vmul.f32 %v7369, %v7368
        %v7371 = vmul.f32 0.5, %v7370
        %v7372 = vsub.f32 1.5, %v7371
        %v7373 = vmul.f32 %v7368, %v7372
        %vm7374 = vweird.f32 %v7367
        %vm7375 = vweird.f32 %v7368
        %vm7376 = vmor %vm7374, %vm7375
        %v7377 = vsel %vm7376, %v7368, %v7373
        %v7378 = vmul.f32 %v7361, %v7377
        %v7379 = vperm.slane %v6643, 0
        %v7380 = vmul.f32 %v7378, %v7379
        %v7381 = vperm.slane %v6645, 0
        %v7382 = vadd.f32 %v7380, %v7381
        %v7383 = vpack.c.bf16 %v7382, %v7382
        %v7385 = vperm.slane %v6650, 0
        %v7391 = vunpack.c.l.b16 %v6646
        %v7392 = vunpack.c.l.b16 %v6647
        %v7393 = vunpack.c.l.b16 %v6648
        %v7394 = vunpack.c.l.b16 %v6649
        %v7395 = vpack.c.b16 %v7392, %v7391
        %v7396 = vpack.c.b16 %v7394, %v7393
        %v7400 = vsel %vm2723, %v7383, 0
        %7402 = vmatpush.bf16.msra.mxu0 0
        %7403 = vmatpush.bf16.msra.mxu0 0
        %7404 = vmatpush.bf16.msra.mxu0 0
        %7405 = vmatpush.bf16.msra.mxu0 0
        %7406 = vmatpush.bf16.msra.mxu0 0
        %7407 = vmatpush.bf16.msra.mxu0 0
        %7408 = vmatpush.bf16.msra.mxu0 %v7396
        %7409 = vmatpush.bf16.msra.mxu0 %v7395
        %7410 = vmatmul.bf16.gmra.mxu0 %v7400
        %v7411 = vpop.f32.mrf.mxu0
        %v7412 = vadd.f32 %v7385, %v7411
        %v7413 = vpop.f32.mrf.mxu0
        %7414 = vdwg.mxu0
        %v7415 = vmul.f32 %v7412, 0.5
        %v7416 = vmul.f32 %v7412, 0.70710677
        %v7417 = vmul.f32 %v7416, %v7416
        %v7418 = vmin.f32 16.0, %v7417
        %v7419 = vmul.f32 %v7418, 2.1237322e-06
        %v7420 = vadd.f32 %v7419, 0.00028619796
        %v7421 = vmul.f32 %v7418, %v7420
        %v7422 = vadd.f32 %v7421, 0.0036580483
        %v7423 = vmul.f32 %v7418, %v7422
        %v7424 = vadd.f32 %v7423, 0.05243302
        %v7425 = vmul.f32 %v7418, %v7424
        %v7426 = vadd.f32 %v7425, 0.18741608
        %v7427 = vmul.f32 %v7418, %v7426
        %v7428 = vadd.f32 %v7427, 1.1283791
        %v7429 = vmul.f32 %v7416, %v7428
        %v7430 = vmul.f32 %v7418, 3.8918573e-05
        %v7431 = vadd.f32 %v7430, 0.001143296
        %v7432 = vmul.f32 %v7418, %v7431
        %v7433 = vadd.f32 %v7432, 0.014752088
        %v7434 = vmul.f32 %v7418, %v7433
        %v7435 = vadd.f32 %v7434, 0.112945676
        %v7436 = vmul.f32 %v7418, %v7435
        %v7437 = vadd.f32 %v7436, 0.4994258
        %v7438 = vmul.f32 %v7418, %v7437
        %v7439 = vadd.f32 %v7438, 1.0
        %v7440 = vrcp.pop %v7439
        %v7441 = vmul.f32 %v7439, %v7440
        %v7442 = vsub.f32 1.0, %v7441
        %v7443 = vmul.f32 %v7440, %v7442
        %v7444 = vadd.f32 %v7440, %v7443
        %vm7445 = vweird.f32 %v7439
        %vm7446 = vweird.f32 %v7440
        %vm7447 = vmor %vm7445, %vm7446
        %v7448 = vsel %vm7447, %v7440, %v7444
        %v7449 = vand.u32 2147483647, %v7439
        %vm7450 = vcmp.eq.f32.partialorder %v7449, 8.507059e+37
        %v7451 = vand.u32 %v7439, 2147483648
        %v7452 = vor.u32 1.1754944e-38, %v7451
        %v7453 = vsel %vm7450, %v7452, %v7448
        %v7454 = vmul.f32 %v7429, %v7453
        %v7455 = vmin.f32 %v7454, 1.0
        %v7456 = vmax.f32 %v7455, -1.0
        %v7457 = vadd.f32 %v7456, 1.0
        %v7458 = vmul.f32 %v7415, %v7457
        %v7459 = vpack.c.bf16 %v7458, %v7458
        %v7461 = vperm.slane %v6667, 0
        %v7479 = vunpack.c.l.b16 %v6651
        %v7480 = vunpack.c.l.b16 %v6652
        %v7481 = vunpack.c.l.b16 %v6653
        %v7482 = vunpack.c.l.b16 %v6654
        %v7483 = vunpack.c.l.b16 %v6655
        %v7484 = vunpack.c.l.b16 %v6656
        %v7485 = vunpack.c.l.b16 %v6657
        %v7486 = vunpack.c.l.b16 %v6658
        %v7487 = vunpack.c.l.b16 %v6659
        %v7488 = vunpack.c.l.b16 %v6660
        %v7489 = vunpack.c.l.b16 %v6661
        %v7490 = vunpack.c.l.b16 %v6662
        %v7491 = vunpack.c.l.b16 %v6663
        %v7492 = vunpack.c.l.b16 %v6664
        %v7493 = vunpack.c.l.b16 %v6665
        %v7494 = vunpack.c.l.b16 %v6666
        %v7495 = vpack.c.b16 %v7480, %v7479
        %v7496 = vpack.c.b16 %v7482, %v7481
        %v7497 = vpack.c.b16 %v7484, %v7483
        %v7498 = vpack.c.b16 %v7486, %v7485
        %v7499 = vpack.c.b16 %v7488, %v7487
        %v7500 = vpack.c.b16 %v7490, %v7489
        %v7501 = vpack.c.b16 %v7492, %v7491
        %v7502 = vpack.c.b16 %v7494, %v7493
        %7511 = vmatpush.bf16.msra.mxu0 %v7502
        %7512 = vmatpush.bf16.msra.mxu0 %v7501
        %7513 = vmatpush.bf16.msra.mxu0 %v7500
        %7514 = vmatpush.bf16.msra.mxu0 %v7499
        %7515 = vmatpush.bf16.msra.mxu0 %v7498
        %7516 = vmatpush.bf16.msra.mxu0 %v7497
        %7517 = vmatpush.bf16.msra.mxu0 %v7496
        %7518 = vmatpush.bf16.msra.mxu0 %v7495
        %7519 = vmatmul.bf16.gmra.mxu0 %v7459
        %v7520 = vpop.f32.mrf.mxu0
        %v7521 = vadd.f32 %v7461, %v7520
        %v7522 = vpop.f32.mrf.mxu0
        %7523 = vdwg.mxu0
        %v7524 = vadd.f32 %v7356, %v7521
        %v7525 = vld [vmem:[#allocation43] sm:$0x1]
        %v7526 = vunpack.c.l.bf16 %v7525
        %v7527 = vld [vmem:[#allocation44] sm:$0x1]
        %v7528 = vunpack.c.l.bf16 %v7527
        %v7529 = vld [vmem:[%s137] sm:$0xff]
        %v7530 = vld [vmem:[%s137 + $0x8] sm:$0xff]
        %v7531 = vld [vmem:[%s137 + $0x10] sm:$0xff]
        %v7532 = vld [vmem:[%s137 + $0x18] sm:$0xff]
        %v7533 = vld [vmem:[#allocation46] sm:$0x1]
        %v7534 = vsel %vm2723, %v7524, 0.0
        %7535 = vadd.xlane.f32.xlu0 %v7534
        %v7536 = vpop.xlane.xlu0 %7535
        %v7537 = vmul.f32 %v7536, %v5714
        %v7538 = vsub.f32 %v7524, %v7537
        %v7539 = vmul.f32 %v7538, %v7538
        %v7540 = vsel %vm2723, %v7539, 0.0
        %7541 = vadd.xlane.f32.xlu0 %v7540
        %v7542 = vpop.xlane.xlu0 %7541
        %v7543 = vmul.f32 %v7542, %v5714
        %v7544 = vadd.f32 %v7543, 1e-05
        %v7545 = vrsqrt.pop %v7544
        %v7546 = vmul.f32 %v7545, %v7544
        %v7547 = vmul.f32 %v7546, %v7545
        %v7548 = vmul.f32 0.5, %v7547
        %v7549 = vsub.f32 1.5, %v7548
        %v7550 = vmul.f32 %v7545, %v7549
        %vm7551 = vweird.f32 %v7544
        %vm7552 = vweird.f32 %v7545
        %vm7553 = vmor %vm7551, %vm7552
        %v7554 = vsel %vm7553, %v7545, %v7550
        %v7555 = vmul.f32 %v7538, %v7554
        %v7556 = vperm.slane %v7526, 0
        %v7557 = vmul.f32 %v7555, %v7556
        %v7558 = vperm.slane %v7528, 0
        %v7559 = vadd.f32 %v7557, %v7558
        %v7560 = vsel %vm2723, %v7559, 0.0
        %v7561 = vrot.slane %v7560, 4
        %v7562 = vadd.f32 %v7560, %v7561
        %v7563 = vrot.slane %v7562, 2
        %v7564 = vadd.f32 %v7562, %v7563
        %v7565 = vrot.slane %v7564, 1
        %v7566 = vadd.f32 %v7564, %v7565
        %v7567 = vrcp.pop 8.0
        %v7568 = vmul.f32 8.0, %v7567
        %v7569 = vsub.f32 1.0, %v7568
        %v7570 = vmul.f32 %v7567, %v7569
        %v7571 = vadd.f32 %v7567, %v7570
        %vm7572 = vweird.f32 %v7567
        %v7573 = vsel %vm7572, %v7567, %v7571
        %v7574 = vmul.f32 %v7566, %v7573
        %v7576 = vsel %vm2723, %v7574, 0
        %7578 = vmatpush.msra.mxu0 0.0
        %7579 = vmatpush.msra.mxu0 0.0
        %7580 = vmatpush.msra.mxu0 0.0
        %7581 = vmatpush.msra.mxu0 0.0
        %7582 = vmatpush.msra.mxu0 0.0
        %7583 = vmatpush.msra.mxu0 0.0
        %7584 = vmatpush.msra.mxu0 0.0
        %7585 = vmatpush.msra.mxu0 0.0
        %7586 = vmatpush.msra.mxu0 0.0
        %7587 = vmatpush.msra.mxu0 0.0
        %7588 = vmatpush.msra.mxu0 0.0
        %7589 = vmatpush.msra.mxu0 0.0
        %7590 = vmatpush.msra.mxu0 %v7532
        %7591 = vmatpush.msra.mxu0 %v7531
        %7592 = vmatpush.msra.mxu0 %v7530
        %7593 = vmatpush.msra.mxu0 %v7529
        %7594 = vmatmul.f32.gmra.mxu0 %v7576
        %v7595 = vpop.f32.mrf.mxu0
        %v7596 = vadd.f32 %v7533, %v7595
        %7597 = vdwg.mxu0
        %vm7598 = vcmask 40960
        %7599 = vst.msk [vmem:[%s2463] sm:$0x1] %vm7598, %v7596
        %s7600 = sand.u32 %s1653, 1
        %s7601 = scalar_lea.sflag [#allocation4], %s7600
        %s7602 = sand.u32 %s1653, 1
        %s7603 = scalar_lea.vmem [#allocation47], %s7602
        // Predicated region
        $region417: #{omni_transformer_v3_forward.1} parent=299 // pred_check
          %p7604 = pneg %p1663
        $region418: #{omni_transformer_v3_forward.1} parent=299 // pred_check_branch
          %7606 = sbr.rel (%p7604) target = $region420
        $region419: #{omni_transformer_v3_forward.1} parent=299 // pred_region
          %7608 = vsyncadd %s7601, 0
          %s7609 = scalar_lea.hbm %s141, %s170
          %s7611 = sshll.u32 %s7603, 4
          %s7612 = int_to_ptr.vmem [resolvable:$true] %s7611
          %s7613 = sshll.u32 %s7609, 4
          %s7614 = int_to_ptr.hbm [resolvable:$true] %s7613
          %7616 = dma.vmem_to_hbm [thread:$0]  %s7612, 16, %s7614, %s7601
        $region420: #{omni_transformer_v3_forward.1} parent=299 // pred_fallthru
          _
      $region300: #{omni_transformer_v3_forward.1} parent=5 // pred_fallthru
        _
      %p7617 = scmp.le.s32.totalorder 2, %s165
      // Predicated region
      $region421: #{omni_transformer_v3_forward.1} parent=5 // pred_check
        %p7618 = pneg %p7617
      $region422: #{omni_transformer_v3_forward.1} parent=5 // pred_check_branch
        %7620 = sbr.rel (%p7618) target = $region424
      $region423: #{omni_transformer_v3_forward.1} parent=5 // pred_region
        %s7621 = ssub.s32 %s165, 2
        // Predicated region
        $region425: #{omni_transformer_v3_forward.1} parent=423 // pred_check
          %p7622 = pneg %p1669
        $region426: #{omni_transformer_v3_forward.1} parent=423 // pred_check_branch
          %7624 = sbr.rel (%p7622) target = $region428
        $region427: #{omni_transformer_v3_forward.1} parent=423 // pred_region
          %s7625 = sand.u32 %s1654, 1
          %s7626 = scalar_lea.sflag [#allocation4], %s7625
          %s7627 = sand.u32 %s1654, 1
          %s7628 = scalar_lea.vmem [#allocation47], %s7627
          %7630 = dma.done %s7626, 16
        $region428: #{omni_transformer_v3_forward.1} parent=423 // pred_fallthru
          _
      $region424: #{omni_transformer_v3_forward.1} parent=5 // pred_fallthru
        _
    $region6: #{omni_transformer_v3_forward.1} parent=1 // loop_footer
      %s169 = sadd.s32 1, %s165
    $region7: #{omni_transformer_v3_forward.1} parent=1 // loop_footer_branch
      %164 = sbr.rel target = $region3
    $region8: #{omni_transformer_v3_forward.1} parent=1 // loop_exit
      _
    %7631 = vsyncpa [#allocation3], 1
    %s7632 = scalar_lea.sflag [#allocation3], 1
    %7633 = vsyncpa %s7632, 1
    %7634 = vsyncpa [#allocation6], 1
    %7635 = vsyncpa [#allocation9], 1
    %7636 = vsyncpa [#allocation12], 1
    %7637 = vsyncpa [#allocation15], 1
    %7638 = vsyncpa [#allocation18], 1
    %7639 = vsyncpa [#allocation21], 1
    %7640 = vsyncpa [#allocation24], 1
    %7641 = vsyncpa [#allocation27], 1
    %7642 = vsyncpa [#allocation30], 1
    %7643 = vsyncpa [#allocation33], 1
    %7644 = vsyncpa [#allocation36], 1
    %7645 = vsyncpa [#allocation39], 1
    %7646 = vsyncpa [#allocation42], 1
    %7647 = vsyncpa [#allocation45], 1
    %7648 = vsyncpa [#allocation4], 1
    %s7649 = scalar_lea.sflag [#allocation4], 1
    %7650 = vsyncpa %s7649, 1

</llo_original>
